<compile_context>
chip_gen: v7x
topology: tpu7x:2x2x1
jax: 0.10.0
libtpu: 0.0.40
codegen_flags: <defaults>
</compile_context>

<pallas_src>
import functools

import jax
import jax.numpy as jnp
from jax.experimental import pallas as pl
from jax.experimental.pallas import tpu as pltpu

BN_EPS = 1e-5
ROW_TILE = 8  # output rows per grid step; must be >= k-1 (9x9 conv halo)


# ----------------------------------------------------------------------------
# Fused conv kernel: stride-1 "same" conv + folded BN/bias + activation (+ residual)
# ----------------------------------------------------------------------------
def _fused_conv_kernel(*refs, k, th, w_out, cout, mode):
    """refs = (x_lo, x_hi, w, b[, res], out)

    x_lo/x_hi : (th, Wp, Cin) bf16 -- two consecutive padded row blocks (halo trick)
    w         : (k, k*Cin, Cout) bf16 -- BN scale folded in, rows ordered (dj, cin)
    b         : (1, Cout) f32         -- conv bias * bn_scale + bn_shift
    res       : (th, W, Cout) bf16    -- optional residual input
    out       : (th, W, Cout)

    mode: "relu"          -> relu(conv + b)
          "res_add_relu"  -> relu(res + (conv + b))          (residual Block)
          "relu_res_add"  -> res + relu(conv + b)            (final global residual)
    """
    if mode in ("res_add_relu", "relu_res_add"):
        x_lo_ref, x_hi_ref, w_ref, b_ref, res_ref, o_ref = refs
    else:
        x_lo_ref, x_hi_ref, w_ref, b_ref, o_ref = refs
        res_ref = None

    # 2*th padded rows cover the (k-1)-row halo needed by this output row block.
    x = jnp.concatenate([x_lo_ref[...], x_hi_ref[...]], axis=0)  # (2*th, Wp, Cin) bf16
    cin = x.shape[-1]

    acc = None
    for di in range(k):                                   # kernel rows
        rows = x[di:di + th]                              # (th, Wp, Cin)
        taps = [rows[:, dj:dj + w_out, :].reshape(th * w_out, cin) for dj in range(k)]
        patch = jnp.concatenate(taps, axis=-1)            # (th*W, k*Cin) bf16, VMEM only
        d = jnp.dot(patch, w_ref[di], preferred_element_type=jnp.float32)
        acc = d if acc is None else acc + d               # f32 accumulation

    y = acc + b_ref[...]                                  # (th*W, Cout) f32

    if mode == "res_add_relu":       # Block: relu(x0 + BN(conv(...)))
        r = res_ref[...].reshape(th * w_out, cout).astype(jnp.float32)
        y = jnp.maximum(y + r, 0.0)
    elif mode == "relu_res_add":     # final: res + relu(BN(conv(...)))
        r = res_ref[...].reshape(th * w_out, cout).astype(jnp.float32)
        y = jnp.maximum(y, 0.0) + r
    else:                            # "relu"
        y = jnp.maximum(y, 0.0)

    o_ref[...] = y.reshape(th, w_out, cout).astype(o_ref.dtype)


def fused_conv(x, w_folded, b_folded, *, k, mode="relu", residual=None,
               out_dtype=jnp.bfloat16):
    """x: (N, H, W, Cin) NHWC; w_folded: (k, k*Cin, Cout) bf16; b_folded: (1, Cout) f32."""
    n, h, w_dim, cin = x.shape
    cout = w_folded.shape[-1]
    th = ROW_TILE
    assert th >= k - 1, "row tile must cover the conv halo"
    assert h % th == 0, "this demo assumes H is a multiple of the row tile (8)"
    assert (mode in ("res_add_relu", "relu_res_add")) == (residual is not None)

    pad = (k - 1) // 2
    wp = w_dim + 2 * pad
    hp = h + th  # bottom-padded so row-block (i+1) always exists (extra rows unused)
    xp = jnp.pad(x.astype(jnp.bfloat16),
                 ((0, 0), (pad, hp - h - pad), (pad, pad), (0, 0)))

    in_specs = [
        pl.BlockSpec((None, th, wp, cin), lambda b, i: (b, i, 0, 0)),      # rows block i
        pl.BlockSpec((None, th, wp, cin), lambda b, i: (b, i + 1, 0, 0)),  # rows block i+1 (halo)
        pl.BlockSpec((k, k * cin, cout), lambda b, i: (0, 0, 0)),          # resident weights
        pl.BlockSpec((1, cout), lambda b, i: (0, 0)),                      # folded bias
    ]
    args = [xp, xp, w_folded, b_folded]
    if residual is not None:
        in_specs.append(pl.BlockSpec((None, th, w_dim, cout), lambda b, i: (b, i, 0, 0)))
        args.append(residual)

    kern = functools.partial(_fused_conv_kernel, k=k, th=th, w_out=w_dim,
                             cout=cout, mode=mode)
    return pl.pallas_call(
        kern,
        out_shape=jax.ShapeDtypeStruct((n, h, w_dim, cout), out_dtype),
        grid=(n, h // th),
        in_specs=in_specs,
        out_specs=pl.BlockSpec((None, th, w_dim, cout), lambda b, i: (b, i, 0, 0)),
        compiler_params=pltpu.CompilerParams(
            dimension_semantics=("parallel", "parallel")),
    )(*args)


# ----------------------------------------------------------------------------
# Parameter construction: conv weight + eval-mode BatchNorm folded at build time
# ----------------------------------------------------------------------------
def _fold_conv_bn(key, cin, cout, k):
    # Synthetic deterministic params: W ~ 0.02*N(0,1), bias = 0; BN eval-mode with
    # freshly-initialised running stats (mean=0, var=1, gamma=1, beta=0).
    w = 0.02 * jax.random.normal(key, (cout, cin, k, k), jnp.float32)
    b = jnp.zeros((cout,), jnp.float32)
    gamma = jnp.ones((cout,), jnp.float32)
    beta = jnp.zeros((cout,), jnp.float32)
    mean = jnp.zeros((cout,), jnp.float32)
    var = jnp.ones((cout,), jnp.float32)
    scale = gamma / jnp.sqrt(var + BN_EPS)
    shift = beta - mean * scale
    # (Cout, Cin, k, k) -> (k_di, k_dj, Cin, Cout) -> (k, k*Cin, Cout); fold BN scale.
    wm = jnp.transpose(w, (2, 3, 1, 0)).reshape(k, k * cin, cout)
    w_folded = (wm * scale[None, None, :]).astype(jnp.bfloat16)
    b_folded = (b * scale + shift).reshape(1, cout).astype(jnp.float32)
    return {"w": w_folded, "b": b_folded}


def build_resnet_generator(key, input_nc=16, ngf=32, n_res_blocks=3):
    keys = iter(jax.random.split(key, 2 + 2 * n_res_blocks))
    return {
        "m1": _fold_conv_bn(next(keys), input_nc, ngf, 9),      # Conv9x9 + BN + ReLU
        "blocks": [
            {"c1": _fold_conv_bn(next(keys), ngf, ngf, 3),      # Conv3x3 + BN + ReLU
             "c2": _fold_conv_bn(next(keys), ngf, ngf, 3)}      # Conv3x3 + BN
            for _ in range(n_res_blocks)
        ],
        "m3": _fold_conv_bn(next(keys), ngf, ngf, 3),           # Conv3x3 + BN + ReLU
    }


# ----------------------------------------------------------------------------
# Forward pass (mirrors ResnetGenerator.forward in eval mode)
# ----------------------------------------------------------------------------
def resnet_generator_apply(params, x_nchw):
    x = jnp.transpose(x_nchw, (0, 2, 3, 1))                     # NCHW -> NHWC
    # model1: Conv2d(input_nc, ngf, 9, s=1, p=4) + BN + ReLU
    res = fused_conv(x, params["m1"]["w"], params["m1"]["b"], k=9, mode="relu")
    # model2: 3 residual Blocks: x1 = BN(conv(relu(BN(conv(x0))))); out = relu(x0 + x1)
    h = res
    for blk in params["blocks"]:
        t = fused_conv(h, blk["c1"]["w"], blk["c1"]["b"], k=3, mode="relu")
        h = fused_conv(t, blk["c2"]["w"], blk["c2"]["b"], k=3,
                       mode="res_add_relu", residual=h)
    # model3 + global residual: res + ReLU(BN(Conv3x3(h)))
    # TODO(synk): intermediate activations are carried in bf16 (per perf feedback);
    # the final residual add and output are f32.
    y = fused_conv(h, params["m3"]["w"], params["m3"]["b"], k=3,
                   mode="relu_res_add", residual=res, out_dtype=jnp.float32)
    return jnp.transpose(y, (0, 3, 1, 2))                       # NHWC -> NCHW


if __name__ == "__main__":
    key = jax.random.PRNGKey(0)
    pkey, xkey = jax.random.split(key)

    # Small, self-consistent shapes (module defaults are input_nc=ngf=64; scaled down).
    INPUT_NC, NGF, H, W, N = 16, 32, 16, 16, 2
    params = build_resnet_generator(pkey, input_nc=INPUT_NC, ngf=NGF, n_res_blocks=3)

    x = jax.random.normal(xkey, (N, INPUT_NC, H, W), jnp.float32)   # NCHW like PyTorch
    y = jax.jit(resnet_generator_apply)(params, x)
    jax.block_until_ready(y)

    assert y.shape == (N, NGF, H, W), y.shape
    assert y.dtype == jnp.float32
    assert bool(jnp.all(jnp.isfinite(y)))
    print("KERNEL_OK")
</pallas_src>

<mosaic_0001>
module attributes {stable_mosaic.version = 11 : i64} {
  func.func @_fused_conv_kernel(%arg0: i32, %arg1: i32, %arg2: memref<1x8x24x16xbf16, #tpu.memory_space<vmem>>, %arg3: memref<1x8x24x16xbf16, #tpu.memory_space<vmem>>, %arg4: memref<9x144x32xbf16, #tpu.memory_space<vmem>>, %arg5: memref<1x32xf32, #tpu.memory_space<vmem>>, %arg6: memref<1x8x16x32xbf16, #tpu.memory_space<vmem>>) attributes {dimension_semantics = [#tpu.dimension_semantics<parallel>, #tpu.dimension_semantics<parallel>], iteration_bounds = array<i64: 2, 2>, scalar_prefetch = 0 : i64, scratch_operands = 0 : i64, tpu.core_type = #tpu.core_type<tc>, window_params = [{transform_indices = @transform_0, window_bounds = array<i64: 1, 8, 24, 16>}, {transform_indices = @transform_1, window_bounds = array<i64: 1, 8, 24, 16>}, {pipeline_mode = #tpu.pipeline_mode<synchronous>, transform_indices = @transform_2, window_bounds = array<i64: 9, 144, 32>}, {pipeline_mode = #tpu.pipeline_mode<synchronous>, transform_indices = @transform_3, window_bounds = array<i64: 1, 32>}, {transform_indices = @transform_4, window_bounds = array<i64: 1, 8, 16, 32>}]} {
    %c0 = arith.constant 0 : index
    %c0_0 = arith.constant 0 : index
    %c0_1 = arith.constant 0 : index
    %c0_2 = arith.constant 0 : index
    %0 = vector.load %arg2[%c0, %c0_0, %c0_1, %c0_2] : memref<1x8x24x16xbf16, #tpu.memory_space<vmem>>, vector<1x8x24x16xbf16>
    %1 = vector.shape_cast %0 : vector<1x8x24x16xbf16> to vector<8x24x16xbf16>
    %c0_3 = arith.constant 0 : index
    %c0_4 = arith.constant 0 : index
    %c0_5 = arith.constant 0 : index
    %c0_6 = arith.constant 0 : index
    %2 = vector.load %arg3[%c0_3, %c0_4, %c0_5, %c0_6] : memref<1x8x24x16xbf16, #tpu.memory_space<vmem>>, vector<1x8x24x16xbf16>
    %3 = vector.shape_cast %2 : vector<1x8x24x16xbf16> to vector<8x24x16xbf16>
    %4 = tpu.concatenate %1, %3 in 0 : vector<8x24x16xbf16>, vector<8x24x16xbf16> -> vector<16x24x16xbf16>
    %5 = vector.extract_strided_slice %4 {offsets = [0, 0, 0], sizes = [8, 24, 16], strides = [1, 1, 1]} : vector<16x24x16xbf16> to vector<8x24x16xbf16>
    %6 = vector.extract_strided_slice %5 {offsets = [0, 0, 0], sizes = [8, 16, 16], strides = [1, 1, 1]} : vector<8x24x16xbf16> to vector<8x16x16xbf16>
    %7 = vector.shape_cast %6 : vector<8x16x16xbf16> to vector<128x16xbf16>
    %8 = vector.extract_strided_slice %5 {offsets = [0, 1, 0], sizes = [8, 16, 16], strides = [1, 1, 1]} : vector<8x24x16xbf16> to vector<8x16x16xbf16>
    %9 = vector.shape_cast %8 : vector<8x16x16xbf16> to vector<128x16xbf16>
    %10 = vector.extract_strided_slice %5 {offsets = [0, 2, 0], sizes = [8, 16, 16], strides = [1, 1, 1]} : vector<8x24x16xbf16> to vector<8x16x16xbf16>
    %11 = vector.shape_cast %10 : vector<8x16x16xbf16> to vector<128x16xbf16>
    %12 = vector.extract_strided_slice %5 {offsets = [0, 3, 0], sizes = [8, 16, 16], strides = [1, 1, 1]} : vector<8x24x16xbf16> to vector<8x16x16xbf16>
    %13 = vector.shape_cast %12 : vector<8x16x16xbf16> to vector<128x16xbf16>
    %14 = vector.extract_strided_slice %5 {offsets = [0, 4, 0], sizes = [8, 16, 16], strides = [1, 1, 1]} : vector<8x24x16xbf16> to vector<8x16x16xbf16>
    %15 = vector.shape_cast %14 : vector<8x16x16xbf16> to vector<128x16xbf16>
    %16 = vector.extract_strided_slice %5 {offsets = [0, 5, 0], sizes = [8, 16, 16], strides = [1, 1, 1]} : vector<8x24x16xbf16> to vector<8x16x16xbf16>
    %17 = vector.shape_cast %16 : vector<8x16x16xbf16> to vector<128x16xbf16>
    %18 = vector.extract_strided_slice %5 {offsets = [0, 6, 0], sizes = [8, 16, 16], strides = [1, 1, 1]} : vector<8x24x16xbf16> to vector<8x16x16xbf16>
    %19 = vector.shape_cast %18 : vector<8x16x16xbf16> to vector<128x16xbf16>
    %20 = vector.extract_strided_slice %5 {offsets = [0, 7, 0], sizes = [8, 16, 16], strides = [1, 1, 1]} : vector<8x24x16xbf16> to vector<8x16x16xbf16>
    %21 = vector.shape_cast %20 : vector<8x16x16xbf16> to vector<128x16xbf16>
    %22 = vector.extract_strided_slice %5 {offsets = [0, 8, 0], sizes = [8, 16, 16], strides = [1, 1, 1]} : vector<8x24x16xbf16> to vector<8x16x16xbf16>
    %23 = vector.shape_cast %22 : vector<8x16x16xbf16> to vector<128x16xbf16>
    %24 = tpu.concatenate %7, %9, %11, %13, %15, %17, %19, %21, %23 in 1 : vector<128x16xbf16>, vector<128x16xbf16>, vector<128x16xbf16>, vector<128x16xbf16>, vector<128x16xbf16>, vector<128x16xbf16>, vector<128x16xbf16>, vector<128x16xbf16>, vector<128x16xbf16> -> vector<128x144xbf16>
    %c0_7 = arith.constant 0 : index
    %c0_8 = arith.constant 0 : index
    %c0_9 = arith.constant 0 : index
    %25 = vector.load %arg4[%c0_7, %c0_8, %c0_9] : memref<9x144x32xbf16, #tpu.memory_space<vmem>>, vector<1x144x32xbf16>
    %26 = vector.shape_cast %25 : vector<1x144x32xbf16> to vector<144x32xbf16>
    %cst = arith.constant dense<0.000000e+00> : vector<128x32xf32>
    %27 = tpu.matmul %24, %26, %cst {dimension_numbers = #tpu.dot_dimension_numbers<[1], [0], [0], [1], [0, 0, 1, 1], [], []>} : vector<128x144xbf16>, vector<144x32xbf16>, vector<128x32xf32> -> vector<128x32xf32>
    %28 = vector.extract_strided_slice %4 {offsets = [1, 0, 0], sizes = [8, 24, 16], strides = [1, 1, 1]} : vector<16x24x16xbf16> to vector<8x24x16xbf16>
    %29 = vector.extract_strided_slice %28 {offsets = [0, 0, 0], sizes = [8, 16, 16], strides = [1, 1, 1]} : vector<8x24x16xbf16> to vector<8x16x16xbf16>
    %30 = vector.shape_cast %29 : vector<8x16x16xbf16> to vector<128x16xbf16>
    %31 = vector.extract_strided_slice %28 {offsets = [0, 1, 0], sizes = [8, 16, 16], strides = [1, 1, 1]} : vector<8x24x16xbf16> to vector<8x16x16xbf16>
    %32 = vector.shape_cast %31 : vector<8x16x16xbf16> to vector<128x16xbf16>
    %33 = vector.extract_strided_slice %28 {offsets = [0, 2, 0], sizes = [8, 16, 16], strides = [1, 1, 1]} : vector<8x24x16xbf16> to vector<8x16x16xbf16>
    %34 = vector.shape_cast %33 : vector<8x16x16xbf16> to vector<128x16xbf16>
    %35 = vector.extract_strided_slice %28 {offsets = [0, 3, 0], sizes = [8, 16, 16], strides = [1, 1, 1]} : vector<8x24x16xbf16> to vector<8x16x16xbf16>
    %36 = vector.shape_cast %35 : vector<8x16x16xbf16> to vector<128x16xbf16>
    %37 = vector.extract_strided_slice %28 {offsets = [0, 4, 0], sizes = [8, 16, 16], strides = [1, 1, 1]} : vector<8x24x16xbf16> to vector<8x16x16xbf16>
    %38 = vector.shape_cast %37 : vector<8x16x16xbf16> to vector<128x16xbf16>
    %39 = vector.extract_strided_slice %28 {offsets = [0, 5, 0], sizes = [8, 16, 16], strides = [1, 1, 1]} : vector<8x24x16xbf16> to vector<8x16x16xbf16>
    %40 = vector.shape_cast %39 : vector<8x16x16xbf16> to vector<128x16xbf16>
    %41 = vector.extract_strided_slice %28 {offsets = [0, 6, 0], sizes = [8, 16, 16], strides = [1, 1, 1]} : vector<8x24x16xbf16> to vector<8x16x16xbf16>
    %42 = vector.shape_cast %41 : vector<8x16x16xbf16> to vector<128x16xbf16>
    %43 = vector.extract_strided_slice %28 {offsets = [0, 7, 0], sizes = [8, 16, 16], strides = [1, 1, 1]} : vector<8x24x16xbf16> to vector<8x16x16xbf16>
    %44 = vector.shape_cast %43 : vector<8x16x16xbf16> to vector<128x16xbf16>
    %45 = vector.extract_strided_slice %28 {offsets = [0, 8, 0], sizes = [8, 16, 16], strides = [1, 1, 1]} : vector<8x24x16xbf16> to vector<8x16x16xbf16>
    %46 = vector.shape_cast %45 : vector<8x16x16xbf16> to vector<128x16xbf16>
    %47 = tpu.concatenate %30, %32, %34, %36, %38, %40, %42, %44, %46 in 1 : vector<128x16xbf16>, vector<128x16xbf16>, vector<128x16xbf16>, vector<128x16xbf16>, vector<128x16xbf16>, vector<128x16xbf16>, vector<128x16xbf16>, vector<128x16xbf16>, vector<128x16xbf16> -> vector<128x144xbf16>
    %c1 = arith.constant 1 : index
    %c0_10 = arith.constant 0 : index
    %c0_11 = arith.constant 0 : index
    %48 = vector.load %arg4[%c1, %c0_10, %c0_11] : memref<9x144x32xbf16, #tpu.memory_space<vmem>>, vector<1x144x32xbf16>
    %49 = vector.shape_cast %48 : vector<1x144x32xbf16> to vector<144x32xbf16>
    %cst_12 = arith.constant dense<0.000000e+00> : vector<128x32xf32>
    %50 = tpu.matmul %47, %49, %cst_12 {dimension_numbers = #tpu.dot_dimension_numbers<[1], [0], [0], [1], [0, 0, 1, 1], [], []>} : vector<128x144xbf16>, vector<144x32xbf16>, vector<128x32xf32> -> vector<128x32xf32>
    %51 = arith.addf %27, %50 : vector<128x32xf32>
    %52 = vector.extract_strided_slice %4 {offsets = [2, 0, 0], sizes = [8, 24, 16], strides = [1, 1, 1]} : vector<16x24x16xbf16> to vector<8x24x16xbf16>
    %53 = vector.extract_strided_slice %52 {offsets = [0, 0, 0], sizes = [8, 16, 16], strides = [1, 1, 1]} : vector<8x24x16xbf16> to vector<8x16x16xbf16>
    %54 = vector.shape_cast %53 : vector<8x16x16xbf16> to vector<128x16xbf16>
    %55 = vector.extract_strided_slice %52 {offsets = [0, 1, 0], sizes = [8, 16, 16], strides = [1, 1, 1]} : vector<8x24x16xbf16> to vector<8x16x16xbf16>
    %56 = vector.shape_cast %55 : vector<8x16x16xbf16> to vector<128x16xbf16>
    %57 = vector.extract_strided_slice %52 {offsets = [0, 2, 0], sizes = [8, 16, 16], strides = [1, 1, 1]} : vector<8x24x16xbf16> to vector<8x16x16xbf16>
    %58 = vector.shape_cast %57 : vector<8x16x16xbf16> to vector<128x16xbf16>
    %59 = vector.extract_strided_slice %52 {offsets = [0, 3, 0], sizes = [8, 16, 16], strides = [1, 1, 1]} : vector<8x24x16xbf16> to vector<8x16x16xbf16>
    %60 = vector.shape_cast %59 : vector<8x16x16xbf16> to vector<128x16xbf16>
    %61 = vector.extract_strided_slice %52 {offsets = [0, 4, 0], sizes = [8, 16, 16], strides = [1, 1, 1]} : vector<8x24x16xbf16> to vector<8x16x16xbf16>
    %62 = vector.shape_cast %61 : vector<8x16x16xbf16> to vector<128x16xbf16>
    %63 = vector.extract_strided_slice %52 {offsets = [0, 5, 0], sizes = [8, 16, 16], strides = [1, 1, 1]} : vector<8x24x16xbf16> to vector<8x16x16xbf16>
    %64 = vector.shape_cast %63 : vector<8x16x16xbf16> to vector<128x16xbf16>
    %65 = vector.extract_strided_slice %52 {offsets = [0, 6, 0], sizes = [8, 16, 16], strides = [1, 1, 1]} : vector<8x24x16xbf16> to vector<8x16x16xbf16>
    %66 = vector.shape_cast %65 : vector<8x16x16xbf16> to vector<128x16xbf16>
    %67 = vector.extract_strided_slice %52 {offsets = [0, 7, 0], sizes = [8, 16, 16], strides = [1, 1, 1]} : vector<8x24x16xbf16> to vector<8x16x16xbf16>
    %68 = vector.shape_cast %67 : vector<8x16x16xbf16> to vector<128x16xbf16>
    %69 = vector.extract_strided_slice %52 {offsets = [0, 8, 0], sizes = [8, 16, 16], strides = [1, 1, 1]} : vector<8x24x16xbf16> to vector<8x16x16xbf16>
    %70 = vector.shape_cast %69 : vector<8x16x16xbf16> to vector<128x16xbf16>
    %71 = tpu.concatenate %54, %56, %58, %60, %62, %64, %66, %68, %70 in 1 : vector<128x16xbf16>, vector<128x16xbf16>, vector<128x16xbf16>, vector<128x16xbf16>, vector<128x16xbf16>, vector<128x16xbf16>, vector<128x16xbf16>, vector<128x16xbf16>, vector<128x16xbf16> -> vector<128x144xbf16>
    %c2 = arith.constant 2 : index
    %c0_13 = arith.constant 0 : index
    %c0_14 = arith.constant 0 : index
    %72 = vector.load %arg4[%c2, %c0_13, %c0_14] : memref<9x144x32xbf16, #tpu.memory_space<vmem>>, vector<1x144x32xbf16>
    %73 = vector.shape_cast %72 : vector<1x144x32xbf16> to vector<144x32xbf16>
    %cst_15 = arith.constant dense<0.000000e+00> : vector<128x32xf32>
    %74 = tpu.matmul %71, %73, %cst_15 {dimension_numbers = #tpu.dot_dimension_numbers<[1], [0], [0], [1], [0, 0, 1, 1], [], []>} : vector<128x144xbf16>, vector<144x32xbf16>, vector<128x32xf32> -> vector<128x32xf32>
    %75 = arith.addf %51, %74 : vector<128x32xf32>
    %76 = vector.extract_strided_slice %4 {offsets = [3, 0, 0], sizes = [8, 24, 16], strides = [1, 1, 1]} : vector<16x24x16xbf16> to vector<8x24x16xbf16>
    %77 = vector.extract_strided_slice %76 {offsets = [0, 0, 0], sizes = [8, 16, 16], strides = [1, 1, 1]} : vector<8x24x16xbf16> to vector<8x16x16xbf16>
    %78 = vector.shape_cast %77 : vector<8x16x16xbf16> to vector<128x16xbf16>
    %79 = vector.extract_strided_slice %76 {offsets = [0, 1, 0], sizes = [8, 16, 16], strides = [1, 1, 1]} : vector<8x24x16xbf16> to vector<8x16x16xbf16>
    %80 = vector.shape_cast %79 : vector<8x16x16xbf16> to vector<128x16xbf16>
    %81 = vector.extract_strided_slice %76 {offsets = [0, 2, 0], sizes = [8, 16, 16], strides = [1, 1, 1]} : vector<8x24x16xbf16> to vector<8x16x16xbf16>
    %82 = vector.shape_cast %81 : vector<8x16x16xbf16> to vector<128x16xbf16>
    %83 = vector.extract_strided_slice %76 {offsets = [0, 3, 0], sizes = [8, 16, 16], strides = [1, 1, 1]} : vector<8x24x16xbf16> to vector<8x16x16xbf16>
    %84 = vector.shape_cast %83 : vector<8x16x16xbf16> to vector<128x16xbf16>
    %85 = vector.extract_strided_slice %76 {offsets = [0, 4, 0], sizes = [8, 16, 16], strides = [1, 1, 1]} : vector<8x24x16xbf16> to vector<8x16x16xbf16>
    %86 = vector.shape_cast %85 : vector<8x16x16xbf16> to vector<128x16xbf16>
    %87 = vector.extract_strided_slice %76 {offsets = [0, 5, 0], sizes = [8, 16, 16], strides = [1, 1, 1]} : vector<8x24x16xbf16> to vector<8x16x16xbf16>
    %88 = vector.shape_cast %87 : vector<8x16x16xbf16> to vector<128x16xbf16>
    %89 = vector.extract_strided_slice %76 {offsets = [0, 6, 0], sizes = [8, 16, 16], strides = [1, 1, 1]} : vector<8x24x16xbf16> to vector<8x16x16xbf16>
    %90 = vector.shape_cast %89 : vector<8x16x16xbf16> to vector<128x16xbf16>
    %91 = vector.extract_strided_slice %76 {offsets = [0, 7, 0], sizes = [8, 16, 16], strides = [1, 1, 1]} : vector<8x24x16xbf16> to vector<8x16x16xbf16>
    %92 = vector.shape_cast %91 : vector<8x16x16xbf16> to vector<128x16xbf16>
    %93 = vector.extract_strided_slice %76 {offsets = [0, 8, 0], sizes = [8, 16, 16], strides = [1, 1, 1]} : vector<8x24x16xbf16> to vector<8x16x16xbf16>
    %94 = vector.shape_cast %93 : vector<8x16x16xbf16> to vector<128x16xbf16>
    %95 = tpu.concatenate %78, %80, %82, %84, %86, %88, %90, %92, %94 in 1 : vector<128x16xbf16>, vector<128x16xbf16>, vector<128x16xbf16>, vector<128x16xbf16>, vector<128x16xbf16>, vector<128x16xbf16>, vector<128x16xbf16>, vector<128x16xbf16>, vector<128x16xbf16> -> vector<128x144xbf16>
    %c3 = arith.constant 3 : index
    %c0_16 = arith.constant 0 : index
    %c0_17 = arith.constant 0 : index
    %96 = vector.load %arg4[%c3, %c0_16, %c0_17] : memref<9x144x32xbf16, #tpu.memory_space<vmem>>, vector<1x144x32xbf16>
    %97 = vector.shape_cast %96 : vector<1x144x32xbf16> to vector<144x32xbf16>
    %cst_18 = arith.constant dense<0.000000e+00> : vector<128x32xf32>
    %98 = tpu.matmul %95, %97, %cst_18 {dimension_numbers = #tpu.dot_dimension_numbers<[1], [0], [0], [1], [0, 0, 1, 1], [], []>} : vector<128x144xbf16>, vector<144x32xbf16>, vector<128x32xf32> -> vector<128x32xf32>
    %99 = arith.addf %75, %98 : vector<128x32xf32>
    %100 = vector.extract_strided_slice %4 {offsets = [4, 0, 0], sizes = [8, 24, 16], strides = [1, 1, 1]} : vector<16x24x16xbf16> to vector<8x24x16xbf16>
    %101 = vector.extract_strided_slice %100 {offsets = [0, 0, 0], sizes = [8, 16, 16], strides = [1, 1, 1]} : vector<8x24x16xbf16> to vector<8x16x16xbf16>
    %102 = vector.shape_cast %101 : vector<8x16x16xbf16> to vector<128x16xbf16>
    %103 = vector.extract_strided_slice %100 {offsets = [0, 1, 0], sizes = [8, 16, 16], strides = [1, 1, 1]} : vector<8x24x16xbf16> to vector<8x16x16xbf16>
    %104 = vector.shape_cast %103 : vector<8x16x16xbf16> to vector<128x16xbf16>
    %105 = vector.extract_strided_slice %100 {offsets = [0, 2, 0], sizes = [8, 16, 16], strides = [1, 1, 1]} : vector<8x24x16xbf16> to vector<8x16x16xbf16>
    %106 = vector.shape_cast %105 : vector<8x16x16xbf16> to vector<128x16xbf16>
    %107 = vector.extract_strided_slice %100 {offsets = [0, 3, 0], sizes = [8, 16, 16], strides = [1, 1, 1]} : vector<8x24x16xbf16> to vector<8x16x16xbf16>
    %108 = vector.shape_cast %107 : vector<8x16x16xbf16> to vector<128x16xbf16>
    %109 = vector.extract_strided_slice %100 {offsets = [0, 4, 0], sizes = [8, 16, 16], strides = [1, 1, 1]} : vector<8x24x16xbf16> to vector<8x16x16xbf16>
    %110 = vector.shape_cast %109 : vector<8x16x16xbf16> to vector<128x16xbf16>
    %111 = vector.extract_strided_slice %100 {offsets = [0, 5, 0], sizes = [8, 16, 16], strides = [1, 1, 1]} : vector<8x24x16xbf16> to vector<8x16x16xbf16>
    %112 = vector.shape_cast %111 : vector<8x16x16xbf16> to vector<128x16xbf16>
    %113 = vector.extract_strided_slice %100 {offsets = [0, 6, 0], sizes = [8, 16, 16], strides = [1, 1, 1]} : vector<8x24x16xbf16> to vector<8x16x16xbf16>
    %114 = vector.shape_cast %113 : vector<8x16x16xbf16> to vector<128x16xbf16>
    %115 = vector.extract_strided_slice %100 {offsets = [0, 7, 0], sizes = [8, 16, 16], strides = [1, 1, 1]} : vector<8x24x16xbf16> to vector<8x16x16xbf16>
    %116 = vector.shape_cast %115 : vector<8x16x16xbf16> to vector<128x16xbf16>
    %117 = vector.extract_strided_slice %100 {offsets = [0, 8, 0], sizes = [8, 16, 16], strides = [1, 1, 1]} : vector<8x24x16xbf16> to vector<8x16x16xbf16>
    %118 = vector.shape_cast %117 : vector<8x16x16xbf16> to vector<128x16xbf16>
    %119 = tpu.concatenate %102, %104, %106, %108, %110, %112, %114, %116, %118 in 1 : vector<128x16xbf16>, vector<128x16xbf16>, vector<128x16xbf16>, vector<128x16xbf16>, vector<128x16xbf16>, vector<128x16xbf16>, vector<128x16xbf16>, vector<128x16xbf16>, vector<128x16xbf16> -> vector<128x144xbf16>
    %c4 = arith.constant 4 : index
    %c0_19 = arith.constant 0 : index
    %c0_20 = arith.constant 0 : index
    %120 = vector.load %arg4[%c4, %c0_19, %c0_20] : memref<9x144x32xbf16, #tpu.memory_space<vmem>>, vector<1x144x32xbf16>
    %121 = vector.shape_cast %120 : vector<1x144x32xbf16> to vector<144x32xbf16>
    %cst_21 = arith.constant dense<0.000000e+00> : vector<128x32xf32>
    %122 = tpu.matmul %119, %121, %cst_21 {dimension_numbers = #tpu.dot_dimension_numbers<[1], [0], [0], [1], [0, 0, 1, 1], [], []>} : vector<128x144xbf16>, vector<144x32xbf16>, vector<128x32xf32> -> vector<128x32xf32>
    %123 = arith.addf %99, %122 : vector<128x32xf32>
    %124 = vector.extract_strided_slice %4 {offsets = [5, 0, 0], sizes = [8, 24, 16], strides = [1, 1, 1]} : vector<16x24x16xbf16> to vector<8x24x16xbf16>
    %125 = vector.extract_strided_slice %124 {offsets = [0, 0, 0], sizes = [8, 16, 16], strides = [1, 1, 1]} : vector<8x24x16xbf16> to vector<8x16x16xbf16>
    %126 = vector.shape_cast %125 : vector<8x16x16xbf16> to vector<128x16xbf16>
    %127 = vector.extract_strided_slice %124 {offsets = [0, 1, 0], sizes = [8, 16, 16], strides = [1, 1, 1]} : vector<8x24x16xbf16> to vector<8x16x16xbf16>
    %128 = vector.shape_cast %127 : vector<8x16x16xbf16> to vector<128x16xbf16>
    %129 = vector.extract_strided_slice %124 {offsets = [0, 2, 0], sizes = [8, 16, 16], strides = [1, 1, 1]} : vector<8x24x16xbf16> to vector<8x16x16xbf16>
    %130 = vector.shape_cast %129 : vector<8x16x16xbf16> to vector<128x16xbf16>
    %131 = vector.extract_strided_slice %124 {offsets = [0, 3, 0], sizes = [8, 16, 16], strides = [1, 1, 1]} : vector<8x24x16xbf16> to vector<8x16x16xbf16>
    %132 = vector.shape_cast %131 : vector<8x16x16xbf16> to vector<128x16xbf16>
    %133 = vector.extract_strided_slice %124 {offsets = [0, 4, 0], sizes = [8, 16, 16], strides = [1, 1, 1]} : vector<8x24x16xbf16> to vector<8x16x16xbf16>
    %134 = vector.shape_cast %133 : vector<8x16x16xbf16> to vector<128x16xbf16>
    %135 = vector.extract_strided_slice %124 {offsets = [0, 5, 0], sizes = [8, 16, 16], strides = [1, 1, 1]} : vector<8x24x16xbf16> to vector<8x16x16xbf16>
    %136 = vector.shape_cast %135 : vector<8x16x16xbf16> to vector<128x16xbf16>
    %137 = vector.extract_strided_slice %124 {offsets = [0, 6, 0], sizes = [8, 16, 16], strides = [1, 1, 1]} : vector<8x24x16xbf16> to vector<8x16x16xbf16>
    %138 = vector.shape_cast %137 : vector<8x16x16xbf16> to vector<128x16xbf16>
    %139 = vector.extract_strided_slice %124 {offsets = [0, 7, 0], sizes = [8, 16, 16], strides = [1, 1, 1]} : vector<8x24x16xbf16> to vector<8x16x16xbf16>
    %140 = vector.shape_cast %139 : vector<8x16x16xbf16> to vector<128x16xbf16>
    %141 = vector.extract_strided_slice %124 {offsets = [0, 8, 0], sizes = [8, 16, 16], strides = [1, 1, 1]} : vector<8x24x16xbf16> to vector<8x16x16xbf16>
    %142 = vector.shape_cast %141 : vector<8x16x16xbf16> to vector<128x16xbf16>
    %143 = tpu.concatenate %126, %128, %130, %132, %134, %136, %138, %140, %142 in 1 : vector<128x16xbf16>, vector<128x16xbf16>, vector<128x16xbf16>, vector<128x16xbf16>, vector<128x16xbf16>, vector<128x16xbf16>, vector<128x16xbf16>, vector<128x16xbf16>, vector<128x16xbf16> -> vector<128x144xbf16>
    %c5 = arith.constant 5 : index
    %c0_22 = arith.constant 0 : index
    %c0_23 = arith.constant 0 : index
    %144 = vector.load %arg4[%c5, %c0_22, %c0_23] : memref<9x144x32xbf16, #tpu.memory_space<vmem>>, vector<1x144x32xbf16>
    %145 = vector.shape_cast %144 : vector<1x144x32xbf16> to vector<144x32xbf16>
    %cst_24 = arith.constant dense<0.000000e+00> : vector<128x32xf32>
    %146 = tpu.matmul %143, %145, %cst_24 {dimension_numbers = #tpu.dot_dimension_numbers<[1], [0], [0], [1], [0, 0, 1, 1], [], []>} : vector<128x144xbf16>, vector<144x32xbf16>, vector<128x32xf32> -> vector<128x32xf32>
    %147 = arith.addf %123, %146 : vector<128x32xf32>
    %148 = vector.extract_strided_slice %4 {offsets = [6, 0, 0], sizes = [8, 24, 16], strides = [1, 1, 1]} : vector<16x24x16xbf16> to vector<8x24x16xbf16>
    %149 = vector.extract_strided_slice %148 {offsets = [0, 0, 0], sizes = [8, 16, 16], strides = [1, 1, 1]} : vector<8x24x16xbf16> to vector<8x16x16xbf16>
    %150 = vector.shape_cast %149 : vector<8x16x16xbf16> to vector<128x16xbf16>
    %151 = vector.extract_strided_slice %148 {offsets = [0, 1, 0], sizes = [8, 16, 16], strides = [1, 1, 1]} : vector<8x24x16xbf16> to vector<8x16x16xbf16>
    %152 = vector.shape_cast %151 : vector<8x16x16xbf16> to vector<128x16xbf16>
    %153 = vector.extract_strided_slice %148 {offsets = [0, 2, 0], sizes = [8, 16, 16], strides = [1, 1, 1]} : vector<8x24x16xbf16> to vector<8x16x16xbf16>
    %154 = vector.shape_cast %153 : vector<8x16x16xbf16> to vector<128x16xbf16>
    %155 = vector.extract_strided_slice %148 {offsets = [0, 3, 0], sizes = [8, 16, 16], strides = [1, 1, 1]} : vector<8x24x16xbf16> to vector<8x16x16xbf16>
    %156 = vector.shape_cast %155 : vector<8x16x16xbf16> to vector<128x16xbf16>
    %157 = vector.extract_strided_slice %148 {offsets = [0, 4, 0], sizes = [8, 16, 16], strides = [1, 1, 1]} : vector<8x24x16xbf16> to vector<8x16x16xbf16>
    %158 = vector.shape_cast %157 : vector<8x16x16xbf16> to vector<128x16xbf16>
    %159 = vector.extract_strided_slice %148 {offsets = [0, 5, 0], sizes = [8, 16, 16], strides = [1, 1, 1]} : vector<8x24x16xbf16> to vector<8x16x16xbf16>
    %160 = vector.shape_cast %159 : vector<8x16x16xbf16> to vector<128x16xbf16>
    %161 = vector.extract_strided_slice %148 {offsets = [0, 6, 0], sizes = [8, 16, 16], strides = [1, 1, 1]} : vector<8x24x16xbf16> to vector<8x16x16xbf16>
    %162 = vector.shape_cast %161 : vector<8x16x16xbf16> to vector<128x16xbf16>
    %163 = vector.extract_strided_slice %148 {offsets = [0, 7, 0], sizes = [8, 16, 16], strides = [1, 1, 1]} : vector<8x24x16xbf16> to vector<8x16x16xbf16>
    %164 = vector.shape_cast %163 : vector<8x16x16xbf16> to vector<128x16xbf16>
    %165 = vector.extract_strided_slice %148 {offsets = [0, 8, 0], sizes = [8, 16, 16], strides = [1, 1, 1]} : vector<8x24x16xbf16> to vector<8x16x16xbf16>
    %166 = vector.shape_cast %165 : vector<8x16x16xbf16> to vector<128x16xbf16>
    %167 = tpu.concatenate %150, %152, %154, %156, %158, %160, %162, %164, %166 in 1 : vector<128x16xbf16>, vector<128x16xbf16>, vector<128x16xbf16>, vector<128x16xbf16>, vector<128x16xbf16>, vector<128x16xbf16>, vector<128x16xbf16>, vector<128x16xbf16>, vector<128x16xbf16> -> vector<128x144xbf16>
    %c6 = arith.constant 6 : index
    %c0_25 = arith.constant 0 : index
    %c0_26 = arith.constant 0 : index
    %168 = vector.load %arg4[%c6, %c0_25, %c0_26] : memref<9x144x32xbf16, #tpu.memory_space<vmem>>, vector<1x144x32xbf16>
    %169 = vector.shape_cast %168 : vector<1x144x32xbf16> to vector<144x32xbf16>
    %cst_27 = arith.constant dense<0.000000e+00> : vector<128x32xf32>
    %170 = tpu.matmul %167, %169, %cst_27 {dimension_numbers = #tpu.dot_dimension_numbers<[1], [0], [0], [1], [0, 0, 1, 1], [], []>} : vector<128x144xbf16>, vector<144x32xbf16>, vector<128x32xf32> -> vector<128x32xf32>
    %171 = arith.addf %147, %170 : vector<128x32xf32>
    %172 = vector.extract_strided_slice %4 {offsets = [7, 0, 0], sizes = [8, 24, 16], strides = [1, 1, 1]} : vector<16x24x16xbf16> to vector<8x24x16xbf16>
    %173 = vector.extract_strided_slice %172 {offsets = [0, 0, 0], sizes = [8, 16, 16], strides = [1, 1, 1]} : vector<8x24x16xbf16> to vector<8x16x16xbf16>
    %174 = vector.shape_cast %173 : vector<8x16x16xbf16> to vector<128x16xbf16>
    %175 = vector.extract_strided_slice %172 {offsets = [0, 1, 0], sizes = [8, 16, 16], strides = [1, 1, 1]} : vector<8x24x16xbf16> to vector<8x16x16xbf16>
    %176 = vector.shape_cast %175 : vector<8x16x16xbf16> to vector<128x16xbf16>
    %177 = vector.extract_strided_slice %172 {offsets = [0, 2, 0], sizes = [8, 16, 16], strides = [1, 1, 1]} : vector<8x24x16xbf16> to vector<8x16x16xbf16>
    %178 = vector.shape_cast %177 : vector<8x16x16xbf16> to vector<128x16xbf16>
    %179 = vector.extract_strided_slice %172 {offsets = [0, 3, 0], sizes = [8, 16, 16], strides = [1, 1, 1]} : vector<8x24x16xbf16> to vector<8x16x16xbf16>
    %180 = vector.shape_cast %179 : vector<8x16x16xbf16> to vector<128x16xbf16>
    %181 = vector.extract_strided_slice %172 {offsets = [0, 4, 0], sizes = [8, 16, 16], strides = [1, 1, 1]} : vector<8x24x16xbf16> to vector<8x16x16xbf16>
    %182 = vector.shape_cast %181 : vector<8x16x16xbf16> to vector<128x16xbf16>
    %183 = vector.extract_strided_slice %172 {offsets = [0, 5, 0], sizes = [8, 16, 16], strides = [1, 1, 1]} : vector<8x24x16xbf16> to vector<8x16x16xbf16>
    %184 = vector.shape_cast %183 : vector<8x16x16xbf16> to vector<128x16xbf16>
    %185 = vector.extract_strided_slice %172 {offsets = [0, 6, 0], sizes = [8, 16, 16], strides = [1, 1, 1]} : vector<8x24x16xbf16> to vector<8x16x16xbf16>
    %186 = vector.shape_cast %185 : vector<8x16x16xbf16> to vector<128x16xbf16>
    %187 = vector.extract_strided_slice %172 {offsets = [0, 7, 0], sizes = [8, 16, 16], strides = [1, 1, 1]} : vector<8x24x16xbf16> to vector<8x16x16xbf16>
    %188 = vector.shape_cast %187 : vector<8x16x16xbf16> to vector<128x16xbf16>
    %189 = vector.extract_strided_slice %172 {offsets = [0, 8, 0], sizes = [8, 16, 16], strides = [1, 1, 1]} : vector<8x24x16xbf16> to vector<8x16x16xbf16>
    %190 = vector.shape_cast %189 : vector<8x16x16xbf16> to vector<128x16xbf16>
    %191 = tpu.concatenate %174, %176, %178, %180, %182, %184, %186, %188, %190 in 1 : vector<128x16xbf16>, vector<128x16xbf16>, vector<128x16xbf16>, vector<128x16xbf16>, vector<128x16xbf16>, vector<128x16xbf16>, vector<128x16xbf16>, vector<128x16xbf16>, vector<128x16xbf16> -> vector<128x144xbf16>
    %c7 = arith.constant 7 : index
    %c0_28 = arith.constant 0 : index
    %c0_29 = arith.constant 0 : index
    %192 = vector.load %arg4[%c7, %c0_28, %c0_29] : memref<9x144x32xbf16, #tpu.memory_space<vmem>>, vector<1x144x32xbf16>
    %193 = vector.shape_cast %192 : vector<1x144x32xbf16> to vector<144x32xbf16>
    %cst_30 = arith.constant dense<0.000000e+00> : vector<128x32xf32>
    %194 = tpu.matmul %191, %193, %cst_30 {dimension_numbers = #tpu.dot_dimension_numbers<[1], [0], [0], [1], [0, 0, 1, 1], [], []>} : vector<128x144xbf16>, vector<144x32xbf16>, vector<128x32xf32> -> vector<128x32xf32>
    %195 = arith.addf %171, %194 : vector<128x32xf32>
    %196 = vector.extract_strided_slice %4 {offsets = [8, 0, 0], sizes = [8, 24, 16], strides = [1, 1, 1]} : vector<16x24x16xbf16> to vector<8x24x16xbf16>
    %197 = vector.extract_strided_slice %196 {offsets = [0, 0, 0], sizes = [8, 16, 16], strides = [1, 1, 1]} : vector<8x24x16xbf16> to vector<8x16x16xbf16>
    %198 = vector.shape_cast %197 : vector<8x16x16xbf16> to vector<128x16xbf16>
    %199 = vector.extract_strided_slice %196 {offsets = [0, 1, 0], sizes = [8, 16, 16], strides = [1, 1, 1]} : vector<8x24x16xbf16> to vector<8x16x16xbf16>
    %200 = vector.shape_cast %199 : vector<8x16x16xbf16> to vector<128x16xbf16>
    %201 = vector.extract_strided_slice %196 {offsets = [0, 2, 0], sizes = [8, 16, 16], strides = [1, 1, 1]} : vector<8x24x16xbf16> to vector<8x16x16xbf16>
    %202 = vector.shape_cast %201 : vector<8x16x16xbf16> to vector<128x16xbf16>
    %203 = vector.extract_strided_slice %196 {offsets = [0, 3, 0], sizes = [8, 16, 16], strides = [1, 1, 1]} : vector<8x24x16xbf16> to vector<8x16x16xbf16>
    %204 = vector.shape_cast %203 : vector<8x16x16xbf16> to vector<128x16xbf16>
    %205 = vector.extract_strided_slice %196 {offsets = [0, 4, 0], sizes = [8, 16, 16], strides = [1, 1, 1]} : vector<8x24x16xbf16> to vector<8x16x16xbf16>
    %206 = vector.shape_cast %205 : vector<8x16x16xbf16> to vector<128x16xbf16>
    %207 = vector.extract_strided_slice %196 {offsets = [0, 5, 0], sizes = [8, 16, 16], strides = [1, 1, 1]} : vector<8x24x16xbf16> to vector<8x16x16xbf16>
    %208 = vector.shape_cast %207 : vector<8x16x16xbf16> to vector<128x16xbf16>
    %209 = vector.extract_strided_slice %196 {offsets = [0, 6, 0], sizes = [8, 16, 16], strides = [1, 1, 1]} : vector<8x24x16xbf16> to vector<8x16x16xbf16>
    %210 = vector.shape_cast %209 : vector<8x16x16xbf16> to vector<128x16xbf16>
    %211 = vector.extract_strided_slice %196 {offsets = [0, 7, 0], sizes = [8, 16, 16], strides = [1, 1, 1]} : vector<8x24x16xbf16> to vector<8x16x16xbf16>
    %212 = vector.shape_cast %211 : vector<8x16x16xbf16> to vector<128x16xbf16>
    %213 = vector.extract_strided_slice %196 {offsets = [0, 8, 0], sizes = [8, 16, 16], strides = [1, 1, 1]} : vector<8x24x16xbf16> to vector<8x16x16xbf16>
    %214 = vector.shape_cast %213 : vector<8x16x16xbf16> to vector<128x16xbf16>
    %215 = tpu.concatenate %198, %200, %202, %204, %206, %208, %210, %212, %214 in 1 : vector<128x16xbf16>, vector<128x16xbf16>, vector<128x16xbf16>, vector<128x16xbf16>, vector<128x16xbf16>, vector<128x16xbf16>, vector<128x16xbf16>, vector<128x16xbf16>, vector<128x16xbf16> -> vector<128x144xbf16>
    %c8 = arith.constant 8 : index
    %c0_31 = arith.constant 0 : index
    %c0_32 = arith.constant 0 : index
    %216 = vector.load %arg4[%c8, %c0_31, %c0_32] : memref<9x144x32xbf16, #tpu.memory_space<vmem>>, vector<1x144x32xbf16>
    %217 = vector.shape_cast %216 : vector<1x144x32xbf16> to vector<144x32xbf16>
    %cst_33 = arith.constant dense<0.000000e+00> : vector<128x32xf32>
    %218 = tpu.matmul %215, %217, %cst_33 {dimension_numbers = #tpu.dot_dimension_numbers<[1], [0], [0], [1], [0, 0, 1, 1], [], []>} : vector<128x144xbf16>, vector<144x32xbf16>, vector<128x32xf32> -> vector<128x32xf32>
    %219 = arith.addf %195, %218 : vector<128x32xf32>
    %c0_34 = arith.constant 0 : index
    %c0_35 = arith.constant 0 : index
    %220 = vector.load %arg5[%c0_34, %c0_35] : memref<1x32xf32, #tpu.memory_space<vmem>>, vector<1x32xf32>
    %221 = vector.broadcast %220 : vector<1x32xf32> to vector<128x32xf32>
    %222 = arith.addf %219, %221 : vector<128x32xf32>
    %cst_36 = arith.constant 0.000000e+00 : f32
    %223 = vector.broadcast %cst_36 : f32 to vector<128x32xf32>
    %224 = arith.maximumf %222, %223 : vector<128x32xf32>
    %225 = vector.shape_cast %224 : vector<128x32xf32> to vector<8x16x32xf32>
    %226 = arith.truncf %225 : vector<8x16x32xf32> to vector<8x16x32xbf16>
    %c0_37 = arith.constant 0 : index
    %c0_38 = arith.constant 0 : index
    %c0_39 = arith.constant 0 : index
    %c0_40 = arith.constant 0 : index
    %227 = vector.load %arg6[%c0_37, %c0_38, %c0_39, %c0_40] : memref<1x8x16x32xbf16, #tpu.memory_space<vmem>>, vector<1x8x16x32xbf16>
    %228 = vector.shape_cast %227 : vector<1x8x16x32xbf16> to vector<8x16x32xbf16>
    %229 = vector.shape_cast %226 : vector<8x16x32xbf16> to vector<1x8x16x32xbf16>
    tpu.vector_store %arg6[%c0_37, %c0_38, %c0_39, %c0_40], %229 {strides = array<i32>} : memref<1x8x16x32xbf16, #tpu.memory_space<vmem>>, vector<1x8x16x32xbf16>,
    return
  }
  func.func @transform_0(%arg0: i32, %arg1: i32) -> (i32, i32, i32, i32) {
    %c0_i32 = arith.constant 0 : i32
    %c0_i32_0 = arith.constant 0 : i32
    %c0_i32_1 = arith.constant 0 : i32
    return %arg0, %arg1, %c0_i32, %c0_i32_0 : i32, i32, i32, i32
  }
  func.func @transform_1(%arg0: i32, %arg1: i32) -> (i32, i32, i32, i32) {
    %c1_i32 = arith.constant 1 : i32
    %0 = arith.addi %arg1, %c1_i32 : i32
    %c0_i32 = arith.constant 0 : i32
    %c0_i32_0 = arith.constant 0 : i32
    %c0_i32_1 = arith.constant 0 : i32
    return %arg0, %0, %c0_i32, %c0_i32_0 : i32, i32, i32, i32
  }
  func.func @transform_2(%arg0: i32, %arg1: i32) -> (i32, i32, i32) {
    %c0_i32 = arith.constant 0 : i32
    %c0_i32_0 = arith.constant 0 : i32
    %c0_i32_1 = arith.constant 0 : i32
    %c0_i32_2 = arith.constant 0 : i32
    return %c0_i32, %c0_i32_0, %c0_i32_1 : i32, i32, i32
  }
  func.func @transform_3(%arg0: i32, %arg1: i32) -> (i32, i32) {
    %c0_i32 = arith.constant 0 : i32
    %c0_i32_0 = arith.constant 0 : i32
    %c0_i32_1 = arith.constant 0 : i32
    return %c0_i32, %c0_i32_0 : i32, i32
  }
  func.func @transform_4(%arg0: i32, %arg1: i32) -> (i32, i32, i32, i32) {
    %c0_i32 = arith.constant 0 : i32
    %c0_i32_0 = arith.constant 0 : i32
    %c0_i32_1 = arith.constant 0 : i32
    return %arg0, %arg1, %c0_i32, %c0_i32_0 : i32, i32, i32, i32
  }
}

module attributes {stable_mosaic.version = 11 : i64} {
  func.func @_fused_conv_kernel(%arg0: i32, %arg1: i32, %arg2: memref<1x8x18x32xbf16, #tpu.memory_space<vmem>>, %arg3: memref<1x8x18x32xbf16, #tpu.memory_space<vmem>>, %arg4: memref<3x96x32xbf16, #tpu.memory_space<vmem>>, %arg5: memref<1x32xf32, #tpu.memory_space<vmem>>, %arg6: memref<1x8x16x32xbf16, #tpu.memory_space<vmem>>) attributes {dimension_semantics = [#tpu.dimension_semantics<parallel>, #tpu.dimension_semantics<parallel>], iteration_bounds = array<i64: 2, 2>, scalar_prefetch = 0 : i64, scratch_operands = 0 : i64, tpu.core_type = #tpu.core_type<tc>, window_params = [{transform_indices = @transform_0, window_bounds = array<i64: 1, 8, 18, 32>}, {transform_indices = @transform_1, window_bounds = array<i64: 1, 8, 18, 32>}, {pipeline_mode = #tpu.pipeline_mode<synchronous>, transform_indices = @transform_2, window_bounds = array<i64: 3, 96, 32>}, {pipeline_mode = #tpu.pipeline_mode<synchronous>, transform_indices = @transform_3, window_bounds = array<i64: 1, 32>}, {transform_indices = @transform_4, window_bounds = array<i64: 1, 8, 16, 32>}]} {
    %c0 = arith.constant 0 : index
    %c0_0 = arith.constant 0 : index
    %c0_1 = arith.constant 0 : index
    %c0_2 = arith.constant 0 : index
    %0 = vector.load %arg2[%c0, %c0_0, %c0_1, %c0_2] : memref<1x8x18x32xbf16, #tpu.memory_space<vmem>>, vector<1x8x18x32xbf16>
    %1 = vector.shape_cast %0 : vector<1x8x18x32xbf16> to vector<8x18x32xbf16>
    %c0_3 = arith.constant 0 : index
    %c0_4 = arith.constant 0 : index
    %c0_5 = arith.constant 0 : index
    %c0_6 = arith.constant 0 : index
    %2 = vector.load %arg3[%c0_3, %c0_4, %c0_5, %c0_6] : memref<1x8x18x32xbf16, #tpu.memory_space<vmem>>, vector<1x8x18x32xbf16>
    %3 = vector.shape_cast %2 : vector<1x8x18x32xbf16> to vector<8x18x32xbf16>
    %4 = tpu.concatenate %1, %3 in 0 : vector<8x18x32xbf16>, vector<8x18x32xbf16> -> vector<16x18x32xbf16>
    %5 = vector.extract_strided_slice %4 {offsets = [0, 0, 0], sizes = [8, 18, 32], strides = [1, 1, 1]} : vector<16x18x32xbf16> to vector<8x18x32xbf16>
    %6 = vector.extract_strided_slice %5 {offsets = [0, 0, 0], sizes = [8, 16, 32], strides = [1, 1, 1]} : vector<8x18x32xbf16> to vector<8x16x32xbf16>
    %7 = vector.shape_cast %6 : vector<8x16x32xbf16> to vector<128x32xbf16>
    %8 = vector.extract_strided_slice %5 {offsets = [0, 1, 0], sizes = [8, 16, 32], strides = [1, 1, 1]} : vector<8x18x32xbf16> to vector<8x16x32xbf16>
    %9 = vector.shape_cast %8 : vector<8x16x32xbf16> to vector<128x32xbf16>
    %10 = vector.extract_strided_slice %5 {offsets = [0, 2, 0], sizes = [8, 16, 32], strides = [1, 1, 1]} : vector<8x18x32xbf16> to vector<8x16x32xbf16>
    %11 = vector.shape_cast %10 : vector<8x16x32xbf16> to vector<128x32xbf16>
    %12 = tpu.concatenate %7, %9, %11 in 1 : vector<128x32xbf16>, vector<128x32xbf16>, vector<128x32xbf16> -> vector<128x96xbf16>
    %c0_7 = arith.constant 0 : index
    %c0_8 = arith.constant 0 : index
    %c0_9 = arith.constant 0 : index
    %13 = vector.load %arg4[%c0_7, %c0_8, %c0_9] : memref<3x96x32xbf16, #tpu.memory_space<vmem>>, vector<1x96x32xbf16>
    %14 = vector.shape_cast %13 : vector<1x96x32xbf16> to vector<96x32xbf16>
    %cst = arith.constant dense<0.000000e+00> : vector<128x32xf32>
    %15 = tpu.matmul %12, %14, %cst {dimension_numbers = #tpu.dot_dimension_numbers<[1], [0], [0], [1], [0, 0, 1, 1], [], []>} : vector<128x96xbf16>, vector<96x32xbf16>, vector<128x32xf32> -> vector<128x32xf32>
    %16 = vector.extract_strided_slice %4 {offsets = [1, 0, 0], sizes = [8, 18, 32], strides = [1, 1, 1]} : vector<16x18x32xbf16> to vector<8x18x32xbf16>
    %17 = vector.extract_strided_slice %16 {offsets = [0, 0, 0], sizes = [8, 16, 32], strides = [1, 1, 1]} : vector<8x18x32xbf16> to vector<8x16x32xbf16>
    %18 = vector.shape_cast %17 : vector<8x16x32xbf16> to vector<128x32xbf16>
    %19 = vector.extract_strided_slice %16 {offsets = [0, 1, 0], sizes = [8, 16, 32], strides = [1, 1, 1]} : vector<8x18x32xbf16> to vector<8x16x32xbf16>
    %20 = vector.shape_cast %19 : vector<8x16x32xbf16> to vector<128x32xbf16>
    %21 = vector.extract_strided_slice %16 {offsets = [0, 2, 0], sizes = [8, 16, 32], strides = [1, 1, 1]} : vector<8x18x32xbf16> to vector<8x16x32xbf16>
    %22 = vector.shape_cast %21 : vector<8x16x32xbf16> to vector<128x32xbf16>
    %23 = tpu.concatenate %18, %20, %22 in 1 : vector<128x32xbf16>, vector<128x32xbf16>, vector<128x32xbf16> -> vector<128x96xbf16>
    %c1 = arith.constant 1 : index
    %c0_10 = arith.constant 0 : index
    %c0_11 = arith.constant 0 : index
    %24 = vector.load %arg4[%c1, %c0_10, %c0_11] : memref<3x96x32xbf16, #tpu.memory_space<vmem>>, vector<1x96x32xbf16>
    %25 = vector.shape_cast %24 : vector<1x96x32xbf16> to vector<96x32xbf16>
    %cst_12 = arith.constant dense<0.000000e+00> : vector<128x32xf32>
    %26 = tpu.matmul %23, %25, %cst_12 {dimension_numbers = #tpu.dot_dimension_numbers<[1], [0], [0], [1], [0, 0, 1, 1], [], []>} : vector<128x96xbf16>, vector<96x32xbf16>, vector<128x32xf32> -> vector<128x32xf32>
    %27 = arith.addf %15, %26 : vector<128x32xf32>
    %28 = vector.extract_strided_slice %4 {offsets = [2, 0, 0], sizes = [8, 18, 32], strides = [1, 1, 1]} : vector<16x18x32xbf16> to vector<8x18x32xbf16>
    %29 = vector.extract_strided_slice %28 {offsets = [0, 0, 0], sizes = [8, 16, 32], strides = [1, 1, 1]} : vector<8x18x32xbf16> to vector<8x16x32xbf16>
    %30 = vector.shape_cast %29 : vector<8x16x32xbf16> to vector<128x32xbf16>
    %31 = vector.extract_strided_slice %28 {offsets = [0, 1, 0], sizes = [8, 16, 32], strides = [1, 1, 1]} : vector<8x18x32xbf16> to vector<8x16x32xbf16>
    %32 = vector.shape_cast %31 : vector<8x16x32xbf16> to vector<128x32xbf16>
    %33 = vector.extract_strided_slice %28 {offsets = [0, 2, 0], sizes = [8, 16, 32], strides = [1, 1, 1]} : vector<8x18x32xbf16> to vector<8x16x32xbf16>
    %34 = vector.shape_cast %33 : vector<8x16x32xbf16> to vector<128x32xbf16>
    %35 = tpu.concatenate %30, %32, %34 in 1 : vector<128x32xbf16>, vector<128x32xbf16>, vector<128x32xbf16> -> vector<128x96xbf16>
    %c2 = arith.constant 2 : index
    %c0_13 = arith.constant 0 : index
    %c0_14 = arith.constant 0 : index
    %36 = vector.load %arg4[%c2, %c0_13, %c0_14] : memref<3x96x32xbf16, #tpu.memory_space<vmem>>, vector<1x96x32xbf16>
    %37 = vector.shape_cast %36 : vector<1x96x32xbf16> to vector<96x32xbf16>
    %cst_15 = arith.constant dense<0.000000e+00> : vector<128x32xf32>
    %38 = tpu.matmul %35, %37, %cst_15 {dimension_numbers = #tpu.dot_dimension_numbers<[1], [0], [0], [1], [0, 0, 1, 1], [], []>} : vector<128x96xbf16>, vector<96x32xbf16>, vector<128x32xf32> -> vector<128x32xf32>
    %39 = arith.addf %27, %38 : vector<128x32xf32>
    %c0_16 = arith.constant 0 : index
    %c0_17 = arith.constant 0 : index
    %40 = vector.load %arg5[%c0_16, %c0_17] : memref<1x32xf32, #tpu.memory_space<vmem>>, vector<1x32xf32>
    %41 = vector.broadcast %40 : vector<1x32xf32> to vector<128x32xf32>
    %42 = arith.addf %39, %41 : vector<128x32xf32>
    %cst_18 = arith.constant 0.000000e+00 : f32
    %43 = vector.broadcast %cst_18 : f32 to vector<128x32xf32>
    %44 = arith.maximumf %42, %43 : vector<128x32xf32>
    %45 = vector.shape_cast %44 : vector<128x32xf32> to vector<8x16x32xf32>
    %46 = arith.truncf %45 : vector<8x16x32xf32> to vector<8x16x32xbf16>
    %c0_19 = arith.constant 0 : index
    %c0_20 = arith.constant 0 : index
    %c0_21 = arith.constant 0 : index
    %c0_22 = arith.constant 0 : index
    %47 = vector.load %arg6[%c0_19, %c0_20, %c0_21, %c0_22] : memref<1x8x16x32xbf16, #tpu.memory_space<vmem>>, vector<1x8x16x32xbf16>
    %48 = vector.shape_cast %47 : vector<1x8x16x32xbf16> to vector<8x16x32xbf16>
    %49 = vector.shape_cast %46 : vector<8x16x32xbf16> to vector<1x8x16x32xbf16>
    tpu.vector_store %arg6[%c0_19, %c0_20, %c0_21, %c0_22], %49 {strides = array<i32>} : memref<1x8x16x32xbf16, #tpu.memory_space<vmem>>, vector<1x8x16x32xbf16>,
    return
  }
  func.func @transform_0(%arg0: i32, %arg1: i32) -> (i32, i32, i32, i32) {
    %c0_i32 = arith.constant 0 : i32
    %c0_i32_0 = arith.constant 0 : i32
    %c0_i32_1 = arith.constant 0 : i32
    return %arg0, %arg1, %c0_i32, %c0_i32_0 : i32, i32, i32, i32
  }
  func.func @transform_1(%arg0: i32, %arg1: i32) -> (i32, i32, i32, i32) {
    %c1_i32 = arith.constant 1 : i32
    %0 = arith.addi %arg1, %c1_i32 : i32
    %c0_i32 = arith.constant 0 : i32
    %c0_i32_0 = arith.constant 0 : i32
    %c0_i32_1 = arith.constant 0 : i32
    return %arg0, %0, %c0_i32, %c0_i32_0 : i32, i32, i32, i32
  }
  func.func @transform_2(%arg0: i32, %arg1: i32) -> (i32, i32, i32) {
    %c0_i32 = arith.constant 0 : i32
    %c0_i32_0 = arith.constant 0 : i32
    %c0_i32_1 = arith.constant 0 : i32
    %c0_i32_2 = arith.constant 0 : i32
    return %c0_i32, %c0_i32_0, %c0_i32_1 : i32, i32, i32
  }
  func.func @transform_3(%arg0: i32, %arg1: i32) -> (i32, i32) {
    %c0_i32 = arith.constant 0 : i32
    %c0_i32_0 = arith.constant 0 : i32
    %c0_i32_1 = arith.constant 0 : i32
    return %c0_i32, %c0_i32_0 : i32, i32
  }
  func.func @transform_4(%arg0: i32, %arg1: i32) -> (i32, i32, i32, i32) {
    %c0_i32 = arith.constant 0 : i32
    %c0_i32_0 = arith.constant 0 : i32
    %c0_i32_1 = arith.constant 0 : i32
    return %arg0, %arg1, %c0_i32, %c0_i32_0 : i32, i32, i32, i32
  }
}

module attributes {stable_mosaic.version = 11 : i64} {
  func.func @_fused_conv_kernel(%arg0: i32, %arg1: i32, %arg2: memref<1x8x18x32xbf16, #tpu.memory_space<vmem>>, %arg3: memref<1x8x18x32xbf16, #tpu.memory_space<vmem>>, %arg4: memref<3x96x32xbf16, #tpu.memory_space<vmem>>, %arg5: memref<1x32xf32, #tpu.memory_space<vmem>>, %arg6: memref<1x8x16x32xbf16, #tpu.memory_space<vmem>>, %arg7: memref<1x8x16x32xbf16, #tpu.memory_space<vmem>>) attributes {dimension_semantics = [#tpu.dimension_semantics<parallel>, #tpu.dimension_semantics<parallel>], iteration_bounds = array<i64: 2, 2>, scalar_prefetch = 0 : i64, scratch_operands = 0 : i64, tpu.core_type = #tpu.core_type<tc>, window_params = [{transform_indices = @transform_0, window_bounds = array<i64: 1, 8, 18, 32>}, {transform_indices = @transform_1, window_bounds = array<i64: 1, 8, 18, 32>}, {pipeline_mode = #tpu.pipeline_mode<synchronous>, transform_indices = @transform_2, window_bounds = array<i64: 3, 96, 32>}, {pipeline_mode = #tpu.pipeline_mode<synchronous>, transform_indices = @transform_3, window_bounds = array<i64: 1, 32>}, {transform_indices = @transform_4, window_bounds = array<i64: 1, 8, 16, 32>}, {transform_indices = @transform_5, window_bounds = array<i64: 1, 8, 16, 32>}]} {
    %c0 = arith.constant 0 : index
    %c0_0 = arith.constant 0 : index
    %c0_1 = arith.constant 0 : index
    %c0_2 = arith.constant 0 : index
    %0 = vector.load %arg2[%c0, %c0_0, %c0_1, %c0_2] : memref<1x8x18x32xbf16, #tpu.memory_space<vmem>>, vector<1x8x18x32xbf16>
    %1 = vector.shape_cast %0 : vector<1x8x18x32xbf16> to vector<8x18x32xbf16>
    %c0_3 = arith.constant 0 : index
    %c0_4 = arith.constant 0 : index
    %c0_5 = arith.constant 0 : index
    %c0_6 = arith.constant 0 : index
    %2 = vector.load %arg3[%c0_3, %c0_4, %c0_5, %c0_6] : memref<1x8x18x32xbf16, #tpu.memory_space<vmem>>, vector<1x8x18x32xbf16>
    %3 = vector.shape_cast %2 : vector<1x8x18x32xbf16> to vector<8x18x32xbf16>
    %4 = tpu.concatenate %1, %3 in 0 : vector<8x18x32xbf16>, vector<8x18x32xbf16> -> vector<16x18x32xbf16>
    %5 = vector.extract_strided_slice %4 {offsets = [0, 0, 0], sizes = [8, 18, 32], strides = [1, 1, 1]} : vector<16x18x32xbf16> to vector<8x18x32xbf16>
    %6 = vector.extract_strided_slice %5 {offsets = [0, 0, 0], sizes = [8, 16, 32], strides = [1, 1, 1]} : vector<8x18x32xbf16> to vector<8x16x32xbf16>
    %7 = vector.shape_cast %6 : vector<8x16x32xbf16> to vector<128x32xbf16>
    %8 = vector.extract_strided_slice %5 {offsets = [0, 1, 0], sizes = [8, 16, 32], strides = [1, 1, 1]} : vector<8x18x32xbf16> to vector<8x16x32xbf16>
    %9 = vector.shape_cast %8 : vector<8x16x32xbf16> to vector<128x32xbf16>
    %10 = vector.extract_strided_slice %5 {offsets = [0, 2, 0], sizes = [8, 16, 32], strides = [1, 1, 1]} : vector<8x18x32xbf16> to vector<8x16x32xbf16>
    %11 = vector.shape_cast %10 : vector<8x16x32xbf16> to vector<128x32xbf16>
    %12 = tpu.concatenate %7, %9, %11 in 1 : vector<128x32xbf16>, vector<128x32xbf16>, vector<128x32xbf16> -> vector<128x96xbf16>
    %c0_7 = arith.constant 0 : index
    %c0_8 = arith.constant 0 : index
    %c0_9 = arith.constant 0 : index
    %13 = vector.load %arg4[%c0_7, %c0_8, %c0_9] : memref<3x96x32xbf16, #tpu.memory_space<vmem>>, vector<1x96x32xbf16>
    %14 = vector.shape_cast %13 : vector<1x96x32xbf16> to vector<96x32xbf16>
    %cst = arith.constant dense<0.000000e+00> : vector<128x32xf32>
    %15 = tpu.matmul %12, %14, %cst {dimension_numbers = #tpu.dot_dimension_numbers<[1], [0], [0], [1], [0, 0, 1, 1], [], []>} : vector<128x96xbf16>, vector<96x32xbf16>, vector<128x32xf32> -> vector<128x32xf32>
    %16 = vector.extract_strided_slice %4 {offsets = [1, 0, 0], sizes = [8, 18, 32], strides = [1, 1, 1]} : vector<16x18x32xbf16> to vector<8x18x32xbf16>
    %17 = vector.extract_strided_slice %16 {offsets = [0, 0, 0], sizes = [8, 16, 32], strides = [1, 1, 1]} : vector<8x18x32xbf16> to vector<8x16x32xbf16>
    %18 = vector.shape_cast %17 : vector<8x16x32xbf16> to vector<128x32xbf16>
    %19 = vector.extract_strided_slice %16 {offsets = [0, 1, 0], sizes = [8, 16, 32], strides = [1, 1, 1]} : vector<8x18x32xbf16> to vector<8x16x32xbf16>
    %20 = vector.shape_cast %19 : vector<8x16x32xbf16> to vector<128x32xbf16>
    %21 = vector.extract_strided_slice %16 {offsets = [0, 2, 0], sizes = [8, 16, 32], strides = [1, 1, 1]} : vector<8x18x32xbf16> to vector<8x16x32xbf16>
    %22 = vector.shape_cast %21 : vector<8x16x32xbf16> to vector<128x32xbf16>
    %23 = tpu.concatenate %18, %20, %22 in 1 : vector<128x32xbf16>, vector<128x32xbf16>, vector<128x32xbf16> -> vector<128x96xbf16>
    %c1 = arith.constant 1 : index
    %c0_10 = arith.constant 0 : index
    %c0_11 = arith.constant 0 : index
    %24 = vector.load %arg4[%c1, %c0_10, %c0_11] : memref<3x96x32xbf16, #tpu.memory_space<vmem>>, vector<1x96x32xbf16>
    %25 = vector.shape_cast %24 : vector<1x96x32xbf16> to vector<96x32xbf16>
    %cst_12 = arith.constant dense<0.000000e+00> : vector<128x32xf32>
    %26 = tpu.matmul %23, %25, %cst_12 {dimension_numbers = #tpu.dot_dimension_numbers<[1], [0], [0], [1], [0, 0, 1, 1], [], []>} : vector<128x96xbf16>, vector<96x32xbf16>, vector<128x32xf32> -> vector<128x32xf32>
    %27 = arith.addf %15, %26 : vector<128x32xf32>
    %28 = vector.extract_strided_slice %4 {offsets = [2, 0, 0], sizes = [8, 18, 32], strides = [1, 1, 1]} : vector<16x18x32xbf16> to vector<8x18x32xbf16>
    %29 = vector.extract_strided_slice %28 {offsets = [0, 0, 0], sizes = [8, 16, 32], strides = [1, 1, 1]} : vector<8x18x32xbf16> to vector<8x16x32xbf16>
    %30 = vector.shape_cast %29 : vector<8x16x32xbf16> to vector<128x32xbf16>
    %31 = vector.extract_strided_slice %28 {offsets = [0, 1, 0], sizes = [8, 16, 32], strides = [1, 1, 1]} : vector<8x18x32xbf16> to vector<8x16x32xbf16>
    %32 = vector.shape_cast %31 : vector<8x16x32xbf16> to vector<128x32xbf16>
    %33 = vector.extract_strided_slice %28 {offsets = [0, 2, 0], sizes = [8, 16, 32], strides = [1, 1, 1]} : vector<8x18x32xbf16> to vector<8x16x32xbf16>
    %34 = vector.shape_cast %33 : vector<8x16x32xbf16> to vector<128x32xbf16>
    %35 = tpu.concatenate %30, %32, %34 in 1 : vector<128x32xbf16>, vector<128x32xbf16>, vector<128x32xbf16> -> vector<128x96xbf16>
    %c2 = arith.constant 2 : index
    %c0_13 = arith.constant 0 : index
    %c0_14 = arith.constant 0 : index
    %36 = vector.load %arg4[%c2, %c0_13, %c0_14] : memref<3x96x32xbf16, #tpu.memory_space<vmem>>, vector<1x96x32xbf16>
    %37 = vector.shape_cast %36 : vector<1x96x32xbf16> to vector<96x32xbf16>
    %cst_15 = arith.constant dense<0.000000e+00> : vector<128x32xf32>
    %38 = tpu.matmul %35, %37, %cst_15 {dimension_numbers = #tpu.dot_dimension_numbers<[1], [0], [0], [1], [0, 0, 1, 1], [], []>} : vector<128x96xbf16>, vector<96x32xbf16>, vector<128x32xf32> -> vector<128x32xf32>
    %39 = arith.addf %27, %38 : vector<128x32xf32>
    %c0_16 = arith.constant 0 : index
    %c0_17 = arith.constant 0 : index
    %40 = vector.load %arg5[%c0_16, %c0_17] : memref<1x32xf32, #tpu.memory_space<vmem>>, vector<1x32xf32>
    %41 = vector.broadcast %40 : vector<1x32xf32> to vector<128x32xf32>
    %42 = arith.addf %39, %41 : vector<128x32xf32>
    %c0_18 = arith.constant 0 : index
    %c0_19 = arith.constant 0 : index
    %c0_20 = arith.constant 0 : index
    %c0_21 = arith.constant 0 : index
    %43 = vector.load %arg6[%c0_18, %c0_19, %c0_20, %c0_21] : memref<1x8x16x32xbf16, #tpu.memory_space<vmem>>, vector<1x8x16x32xbf16>
    %44 = vector.shape_cast %43 : vector<1x8x16x32xbf16> to vector<8x16x32xbf16>
    %45 = vector.shape_cast %44 : vector<8x16x32xbf16> to vector<128x32xbf16>
    %46 = arith.extf %45 : vector<128x32xbf16> to vector<128x32xf32>
    %47 = arith.addf %42, %46 : vector<128x32xf32>
    %cst_22 = arith.constant 0.000000e+00 : f32
    %48 = vector.broadcast %cst_22 : f32 to vector<128x32xf32>
    %49 = arith.maximumf %47, %48 : vector<128x32xf32>
    %50 = vector.shape_cast %49 : vector<128x32xf32> to vector<8x16x32xf32>
    %51 = arith.truncf %50 : vector<8x16x32xf32> to vector<8x16x32xbf16>
    %c0_23 = arith.constant 0 : index
    %c0_24 = arith.constant 0 : index
    %c0_25 = arith.constant 0 : index
    %c0_26 = arith.constant 0 : index
    %52 = vector.load %arg7[%c0_23, %c0_24, %c0_25, %c0_26] : memref<1x8x16x32xbf16, #tpu.memory_space<vmem>>, vector<1x8x16x32xbf16>
    %53 = vector.shape_cast %52 : vector<1x8x16x32xbf16> to vector<8x16x32xbf16>
    %54 = vector.shape_cast %51 : vector<8x16x32xbf16> to vector<1x8x16x32xbf16>
    tpu.vector_store %arg7[%c0_23, %c0_24, %c0_25, %c0_26], %54 {strides = array<i32>} : memref<1x8x16x32xbf16, #tpu.memory_space<vmem>>, vector<1x8x16x32xbf16>,
    return
  }
  func.func @transform_0(%arg0: i32, %arg1: i32) -> (i32, i32, i32, i32) {
    %c0_i32 = arith.constant 0 : i32
    %c0_i32_0 = arith.constant 0 : i32
    %c0_i32_1 = arith.constant 0 : i32
    return %arg0, %arg1, %c0_i32, %c0_i32_0 : i32, i32, i32, i32
  }
  func.func @transform_1(%arg0: i32, %arg1: i32) -> (i32, i32, i32, i32) {
    %c1_i32 = arith.constant 1 : i32
    %0 = arith.addi %arg1, %c1_i32 : i32
    %c0_i32 = arith.constant 0 : i32
    %c0_i32_0 = arith.constant 0 : i32
    %c0_i32_1 = arith.constant 0 : i32
    return %arg0, %0, %c0_i32, %c0_i32_0 : i32, i32, i32, i32
  }
  func.func @transform_2(%arg0: i32, %arg1: i32) -> (i32, i32, i32) {
    %c0_i32 = arith.constant 0 : i32
    %c0_i32_0 = arith.constant 0 : i32
    %c0_i32_1 = arith.constant 0 : i32
    %c0_i32_2 = arith.constant 0 : i32
    return %c0_i32, %c0_i32_0, %c0_i32_1 : i32, i32, i32
  }
  func.func @transform_3(%arg0: i32, %arg1: i32) -> (i32, i32) {
    %c0_i32 = arith.constant 0 : i32
    %c0_i32_0 = arith.constant 0 : i32
    %c0_i32_1 = arith.constant 0 : i32
    return %c0_i32, %c0_i32_0 : i32, i32
  }
  func.func @transform_4(%arg0: i32, %arg1: i32) -> (i32, i32, i32, i32) {
    %c0_i32 = arith.constant 0 : i32
    %c0_i32_0 = arith.constant 0 : i32
    %c0_i32_1 = arith.constant 0 : i32
    return %arg0, %arg1, %c0_i32, %c0_i32_0 : i32, i32, i32, i32
  }
  func.func @transform_5(%arg0: i32, %arg1: i32) -> (i32, i32, i32, i32) {
    %c0_i32 = arith.constant 0 : i32
    %c0_i32_0 = arith.constant 0 : i32
    %c0_i32_1 = arith.constant 0 : i32
    return %arg0, %arg1, %c0_i32, %c0_i32_0 : i32, i32, i32, i32
  }
}

module attributes {stable_mosaic.version = 11 : i64} {
  func.func @_fused_conv_kernel(%arg0: i32, %arg1: i32, %arg2: memref<1x8x18x32xbf16, #tpu.memory_space<vmem>>, %arg3: memref<1x8x18x32xbf16, #tpu.memory_space<vmem>>, %arg4: memref<3x96x32xbf16, #tpu.memory_space<vmem>>, %arg5: memref<1x32xf32, #tpu.memory_space<vmem>>, %arg6: memref<1x8x16x32xbf16, #tpu.memory_space<vmem>>, %arg7: memref<1x8x16x32xf32, #tpu.memory_space<vmem>>) attributes {dimension_semantics = [#tpu.dimension_semantics<parallel>, #tpu.dimension_semantics<parallel>], iteration_bounds = array<i64: 2, 2>, scalar_prefetch = 0 : i64, scratch_operands = 0 : i64, tpu.core_type = #tpu.core_type<tc>, window_params = [{transform_indices = @transform_0, window_bounds = array<i64: 1, 8, 18, 32>}, {transform_indices = @transform_1, window_bounds = array<i64: 1, 8, 18, 32>}, {pipeline_mode = #tpu.pipeline_mode<synchronous>, transform_indices = @transform_2, window_bounds = array<i64: 3, 96, 32>}, {pipeline_mode = #tpu.pipeline_mode<synchronous>, transform_indices = @transform_3, window_bounds = array<i64: 1, 32>}, {transform_indices = @transform_4, window_bounds = array<i64: 1, 8, 16, 32>}, {transform_indices = @transform_5, window_bounds = array<i64: 1, 8, 16, 32>}]} {
    %c0 = arith.constant 0 : index
    %c0_0 = arith.constant 0 : index
    %c0_1 = arith.constant 0 : index
    %c0_2 = arith.constant 0 : index
    %0 = vector.load %arg2[%c0, %c0_0, %c0_1, %c0_2] : memref<1x8x18x32xbf16, #tpu.memory_space<vmem>>, vector<1x8x18x32xbf16>
    %1 = vector.shape_cast %0 : vector<1x8x18x32xbf16> to vector<8x18x32xbf16>
    %c0_3 = arith.constant 0 : index
    %c0_4 = arith.constant 0 : index
    %c0_5 = arith.constant 0 : index
    %c0_6 = arith.constant 0 : index
    %2 = vector.load %arg3[%c0_3, %c0_4, %c0_5, %c0_6] : memref<1x8x18x32xbf16, #tpu.memory_space<vmem>>, vector<1x8x18x32xbf16>
    %3 = vector.shape_cast %2 : vector<1x8x18x32xbf16> to vector<8x18x32xbf16>
    %4 = tpu.concatenate %1, %3 in 0 : vector<8x18x32xbf16>, vector<8x18x32xbf16> -> vector<16x18x32xbf16>
    %5 = vector.extract_strided_slice %4 {offsets = [0, 0, 0], sizes = [8, 18, 32], strides = [1, 1, 1]} : vector<16x18x32xbf16> to vector<8x18x32xbf16>
    %6 = vector.extract_strided_slice %5 {offsets = [0, 0, 0], sizes = [8, 16, 32], strides = [1, 1, 1]} : vector<8x18x32xbf16> to vector<8x16x32xbf16>
    %7 = vector.shape_cast %6 : vector<8x16x32xbf16> to vector<128x32xbf16>
    %8 = vector.extract_strided_slice %5 {offsets = [0, 1, 0], sizes = [8, 16, 32], strides = [1, 1, 1]} : vector<8x18x32xbf16> to vector<8x16x32xbf16>
    %9 = vector.shape_cast %8 : vector<8x16x32xbf16> to vector<128x32xbf16>
    %10 = vector.extract_strided_slice %5 {offsets = [0, 2, 0], sizes = [8, 16, 32], strides = [1, 1, 1]} : vector<8x18x32xbf16> to vector<8x16x32xbf16>
    %11 = vector.shape_cast %10 : vector<8x16x32xbf16> to vector<128x32xbf16>
    %12 = tpu.concatenate %7, %9, %11 in 1 : vector<128x32xbf16>, vector<128x32xbf16>, vector<128x32xbf16> -> vector<128x96xbf16>
    %c0_7 = arith.constant 0 : index
    %c0_8 = arith.constant 0 : index
    %c0_9 = arith.constant 0 : index
    %13 = vector.load %arg4[%c0_7, %c0_8, %c0_9] : memref<3x96x32xbf16, #tpu.memory_space<vmem>>, vector<1x96x32xbf16>
    %14 = vector.shape_cast %13 : vector<1x96x32xbf16> to vector<96x32xbf16>
    %cst = arith.constant dense<0.000000e+00> : vector<128x32xf32>
    %15 = tpu.matmul %12, %14, %cst {dimension_numbers = #tpu.dot_dimension_numbers<[1], [0], [0], [1], [0, 0, 1, 1], [], []>} : vector<128x96xbf16>, vector<96x32xbf16>, vector<128x32xf32> -> vector<128x32xf32>
    %16 = vector.extract_strided_slice %4 {offsets = [1, 0, 0], sizes = [8, 18, 32], strides = [1, 1, 1]} : vector<16x18x32xbf16> to vector<8x18x32xbf16>
    %17 = vector.extract_strided_slice %16 {offsets = [0, 0, 0], sizes = [8, 16, 32], strides = [1, 1, 1]} : vector<8x18x32xbf16> to vector<8x16x32xbf16>
    %18 = vector.shape_cast %17 : vector<8x16x32xbf16> to vector<128x32xbf16>
    %19 = vector.extract_strided_slice %16 {offsets = [0, 1, 0], sizes = [8, 16, 32], strides = [1, 1, 1]} : vector<8x18x32xbf16> to vector<8x16x32xbf16>
    %20 = vector.shape_cast %19 : vector<8x16x32xbf16> to vector<128x32xbf16>
    %21 = vector.extract_strided_slice %16 {offsets = [0, 2, 0], sizes = [8, 16, 32], strides = [1, 1, 1]} : vector<8x18x32xbf16> to vector<8x16x32xbf16>
    %22 = vector.shape_cast %21 : vector<8x16x32xbf16> to vector<128x32xbf16>
    %23 = tpu.concatenate %18, %20, %22 in 1 : vector<128x32xbf16>, vector<128x32xbf16>, vector<128x32xbf16> -> vector<128x96xbf16>
    %c1 = arith.constant 1 : index
    %c0_10 = arith.constant 0 : index
    %c0_11 = arith.constant 0 : index
    %24 = vector.load %arg4[%c1, %c0_10, %c0_11] : memref<3x96x32xbf16, #tpu.memory_space<vmem>>, vector<1x96x32xbf16>
    %25 = vector.shape_cast %24 : vector<1x96x32xbf16> to vector<96x32xbf16>
    %cst_12 = arith.constant dense<0.000000e+00> : vector<128x32xf32>
    %26 = tpu.matmul %23, %25, %cst_12 {dimension_numbers = #tpu.dot_dimension_numbers<[1], [0], [0], [1], [0, 0, 1, 1], [], []>} : vector<128x96xbf16>, vector<96x32xbf16>, vector<128x32xf32> -> vector<128x32xf32>
    %27 = arith.addf %15, %26 : vector<128x32xf32>
    %28 = vector.extract_strided_slice %4 {offsets = [2, 0, 0], sizes = [8, 18, 32], strides = [1, 1, 1]} : vector<16x18x32xbf16> to vector<8x18x32xbf16>
    %29 = vector.extract_strided_slice %28 {offsets = [0, 0, 0], sizes = [8, 16, 32], strides = [1, 1, 1]} : vector<8x18x32xbf16> to vector<8x16x32xbf16>
    %30 = vector.shape_cast %29 : vector<8x16x32xbf16> to vector<128x32xbf16>
    %31 = vector.extract_strided_slice %28 {offsets = [0, 1, 0], sizes = [8, 16, 32], strides = [1, 1, 1]} : vector<8x18x32xbf16> to vector<8x16x32xbf16>
    %32 = vector.shape_cast %31 : vector<8x16x32xbf16> to vector<128x32xbf16>
    %33 = vector.extract_strided_slice %28 {offsets = [0, 2, 0], sizes = [8, 16, 32], strides = [1, 1, 1]} : vector<8x18x32xbf16> to vector<8x16x32xbf16>
    %34 = vector.shape_cast %33 : vector<8x16x32xbf16> to vector<128x32xbf16>
    %35 = tpu.concatenate %30, %32, %34 in 1 : vector<128x32xbf16>, vector<128x32xbf16>, vector<128x32xbf16> -> vector<128x96xbf16>
    %c2 = arith.constant 2 : index
    %c0_13 = arith.constant 0 : index
    %c0_14 = arith.constant 0 : index
    %36 = vector.load %arg4[%c2, %c0_13, %c0_14] : memref<3x96x32xbf16, #tpu.memory_space<vmem>>, vector<1x96x32xbf16>
    %37 = vector.shape_cast %36 : vector<1x96x32xbf16> to vector<96x32xbf16>
    %cst_15 = arith.constant dense<0.000000e+00> : vector<128x32xf32>
    %38 = tpu.matmul %35, %37, %cst_15 {dimension_numbers = #tpu.dot_dimension_numbers<[1], [0], [0], [1], [0, 0, 1, 1], [], []>} : vector<128x96xbf16>, vector<96x32xbf16>, vector<128x32xf32> -> vector<128x32xf32>
    %39 = arith.addf %27, %38 : vector<128x32xf32>
    %c0_16 = arith.constant 0 : index
    %c0_17 = arith.constant 0 : index
    %40 = vector.load %arg5[%c0_16, %c0_17] : memref<1x32xf32, #tpu.memory_space<vmem>>, vector<1x32xf32>
    %41 = vector.broadcast %40 : vector<1x32xf32> to vector<128x32xf32>
    %42 = arith.addf %39, %41 : vector<128x32xf32>
    %c0_18 = arith.constant 0 : index
    %c0_19 = arith.constant 0 : index
    %c0_20 = arith.constant 0 : index
    %c0_21 = arith.constant 0 : index
    %43 = vector.load %arg6[%c0_18, %c0_19, %c0_20, %c0_21] : memref<1x8x16x32xbf16, #tpu.memory_space<vmem>>, vector<1x8x16x32xbf16>
    %44 = vector.shape_cast %43 : vector<1x8x16x32xbf16> to vector<8x16x32xbf16>
    %45 = vector.shape_cast %44 : vector<8x16x32xbf16> to vector<128x32xbf16>
    %46 = arith.extf %45 : vector<128x32xbf16> to vector<128x32xf32>
    %cst_22 = arith.constant 0.000000e+00 : f32
    %47 = vector.broadcast %cst_22 : f32 to vector<128x32xf32>
    %48 = arith.maximumf %42, %47 : vector<128x32xf32>
    %49 = arith.addf %48, %46 : vector<128x32xf32>
    %50 = vector.shape_cast %49 : vector<128x32xf32> to vector<8x16x32xf32>
    %c0_23 = arith.constant 0 : index
    %c0_24 = arith.constant 0 : index
    %c0_25 = arith.constant 0 : index
    %c0_26 = arith.constant 0 : index
    %51 = vector.load %arg7[%c0_23, %c0_24, %c0_25, %c0_26] : memref<1x8x16x32xf32, #tpu.memory_space<vmem>>, vector<1x8x16x32xf32>
    %52 = vector.shape_cast %51 : vector<1x8x16x32xf32> to vector<8x16x32xf32>
    %53 = vector.shape_cast %50 : vector<8x16x32xf32> to vector<1x8x16x32xf32>
    tpu.vector_store %arg7[%c0_23, %c0_24, %c0_25, %c0_26], %53 {strides = array<i32>} : memref<1x8x16x32xf32, #tpu.memory_space<vmem>>, vector<1x8x16x32xf32>,
    return
  }
  func.func @transform_0(%arg0: i32, %arg1: i32) -> (i32, i32, i32, i32) {
    %c0_i32 = arith.constant 0 : i32
    %c0_i32_0 = arith.constant 0 : i32
    %c0_i32_1 = arith.constant 0 : i32
    return %arg0, %arg1, %c0_i32, %c0_i32_0 : i32, i32, i32, i32
  }
  func.func @transform_1(%arg0: i32, %arg1: i32) -> (i32, i32, i32, i32) {
    %c1_i32 = arith.constant 1 : i32
    %0 = arith.addi %arg1, %c1_i32 : i32
    %c0_i32 = arith.constant 0 : i32
    %c0_i32_0 = arith.constant 0 : i32
    %c0_i32_1 = arith.constant 0 : i32
    return %arg0, %0, %c0_i32, %c0_i32_0 : i32, i32, i32, i32
  }
  func.func @transform_2(%arg0: i32, %arg1: i32) -> (i32, i32, i32) {
    %c0_i32 = arith.constant 0 : i32
    %c0_i32_0 = arith.constant 0 : i32
    %c0_i32_1 = arith.constant 0 : i32
    %c0_i32_2 = arith.constant 0 : i32
    return %c0_i32, %c0_i32_0, %c0_i32_1 : i32, i32, i32
  }
  func.func @transform_3(%arg0: i32, %arg1: i32) -> (i32, i32) {
    %c0_i32 = arith.constant 0 : i32
    %c0_i32_0 = arith.constant 0 : i32
    %c0_i32_1 = arith.constant 0 : i32
    return %c0_i32, %c0_i32_0 : i32, i32
  }
  func.func @transform_4(%arg0: i32, %arg1: i32) -> (i32, i32, i32, i32) {
    %c0_i32 = arith.constant 0 : i32
    %c0_i32_0 = arith.constant 0 : i32
    %c0_i32_1 = arith.constant 0 : i32
    return %arg0, %arg1, %c0_i32, %c0_i32_0 : i32, i32, i32, i32
  }
  func.func @transform_5(%arg0: i32, %arg1: i32) -> (i32, i32, i32, i32) {
    %c0_i32 = arith.constant 0 : i32
    %c0_i32_0 = arith.constant 0 : i32
    %c0_i32_1 = arith.constant 0 : i32
    return %arg0, %arg1, %c0_i32, %c0_i32_0 : i32, i32, i32, i32
  }
}

</mosaic_0001>

<llo_original>
// kernel: resnet_generator_apply.15
$region0: #{resnet_generator_apply.15}
  #allocation0 [shape = 'u32[]', space=smem, size = 0x4, offset = 0x4, fixed_abs, tag = 'smem constant byte address 0x4 - core index']
  #allocation1 [shape = 'u32[144,128]{1,0:T(1,128)}', space=vmem, size = 0x12000, scoped, tag = 'internal scratch']
  %s0 = inlined_call_operand.vmem [shape: bf16[2,24,18,32], index: 0, kind: input, shape index: {}, may-alias: {0,1}]
  %s1 = inlined_call_operand.vmem [shape: bf16[2,24,18,32], index: 1, kind: input, shape index: {}, may-alias: {0,1}]
  %s2 = inlined_call_operand.vmem [shape: bf16[3,96,32], index: 2, kind: input, shape index: {}]
  %s3 = inlined_call_operand.vmem [shape: f32[1,32], index: 3, kind: input, shape index: {}]
  %s4 = inlined_call_operand.vmem [shape: bf16[2,16,16,32], index: 4, kind: input, shape index: {}]
  %s5 = inlined_call_operand.hbm [shape: f32[2,16,16,32], index: 5, kind: output, shape index: {}]
  %s6 = sld [smem:[#allocation0]]
  $region53: #{resnet_generator_apply.15} parent=0
    _
  %s8 = ssub.s32 1, %s6
  %s9 = scalar_select 0, %s8, %s6
  $region1: #{resnet_generator_apply.15} parent=0
    #allocation2 [shape = 'u8[131072]{0}', space=vmem, size = 0x20000, scoped, tag = 'output window, operand 0']
    #allocation3 [shape = 's32[2]{0}', space=sflag, size = 0x8, scoped, tag = 'scoped memory for resnet_generator_apply.15']
    %10 = vsyncpa [#allocation3], 0
    %s11 = scalar_lea.sflag [#allocation3], 1
    %12 = vsyncpa %s11, 0
    loop: start=0, step=1, limit=6
    $region2: #{resnet_generator_apply.15} parent=1 // loop_pre_header
      _
    $region3: #{resnet_generator_apply.15} parent=1 // loop_header
      %s14 = sphi 0, %s18
      %p15 = scmp.ge.s32.totalorder %s14, 6
      %s21 = sphi 0, %s33
      %s22 = sphi 0, %s29
      %s23 = sphi 0, %s21
      %s24 = sphi 0, %s22
      %s25 = sphi 0, %s23
      %s26 = sphi 0, %s24
      %s38 = sphi 0, %s40
      %s41 = sphi 0, %s38
      %s42 = sphi 0, %s41
      %s58 = sphi 0, %s42
      %s68 = sphi 0, %s70
      %s71 = sphi 0, %s68
      %s72 = sphi 0, %s71
      %s88 = sphi 0, %s72
      %s92 = sphi 0, %s92
      %s94 = sphi 0, %s92
      %s95 = sphi 0, %s94
      %s109 = sphi 0, %s95
      %s113 = sphi 0, %s113
      %s115 = sphi 0, %s113
      %s116 = sphi 0, %s115
      %s130 = sphi 0, %s116
      %s138 = sphi 0, %s140
      %s141 = sphi 0, %s138
      %s142 = sphi 0, %s141
      %s158 = sphi 0, %s142
      %s166 = sphi 0, %s168
      %s169 = sphi 0, %s166
      %s170 = sphi 0, %s169
      %s186 = sphi 0, %s170
    $region4: #{resnet_generator_apply.15} parent=1 // loop_header_branch
      %17 = sbr.rel (%p15) target = $region8
    $region5: #{resnet_generator_apply.15} parent=1 // loop_body
      %s19 = ssub.s32 %s14, 1
      %s20 = ssub.s32 %s14, 2
      %s27 = sadd.s32 1, %s22
      %p28 = scmp.ge.s32.totalorder %s27, 2
      %s29 = scalar_select %p28, 0, %s27
      %s30 = sadd.s32 1, %s21
      %s31 = scalar_select %p28, %s30, %s21
      %p32 = scmp.ge.s32.totalorder %s31, 2
      %s33 = scalar_select %p32, 0, %s31
      %s34 = ssub.s32 %s21, %s33
      %s35 = ssub.s32 %s22, %s29
      %s36 = sor.u32 %s34, %s35
      %p37 = scmp.eq.s32.totalorder %s36, 0
      %s39 = sadd.s32 %s38, 1
      %s40 = scalar_select %p37, %s38, %s39
      %p43 = pneg %p37
      %p44 = scmp.eq.s32.totalorder %s14, 3
      %p45 = por %p43, %p44
      %p46 = scmp.ne.s32.totalorder %s38, %s41
      %p47 = scmp.eq.s32.totalorder %s14, 0
      %p48 = por %p46, %p47
      %p49 = scmp.ne.s32.totalorder %s38, %s41
      %p50 = scmp.eq.s32.totalorder %s19, 3
      %p51 = por %p49, %p50
      %p52 = scmp.ne.s32.totalorder %s41, %s42
      %p53 = scmp.eq.s32.totalorder %s19, 0
      %p54 = por %p52, %p53
      %p55 = scmp.ne.s32.totalorder %s41, %s42
      %p56 = scmp.eq.s32.totalorder %s20, 3
      %p57 = por %p55, %p56
      %p59 = scmp.ne.s32.totalorder %s42, %s58
      %p60 = scmp.eq.s32.totalorder %s20, 0
      %p61 = por %p59, %p60
      %s62 = sadd.s32 %s22, 1
      %s63 = sadd.s32 %s29, 1
      %s64 = ssub.s32 %s21, %s33
      %s65 = ssub.s32 %s62, %s63
      %s66 = sor.u32 %s64, %s65
      %p67 = scmp.eq.s32.totalorder %s66, 0
      %s69 = sadd.s32 %s68, 1
      %s70 = scalar_select %p67, %s68, %s69
      %p73 = pneg %p67
      %p74 = scmp.eq.s32.totalorder %s14, 3
      %p75 = por %p73, %p74
      %p76 = scmp.ne.s32.totalorder %s68, %s71
      %p77 = scmp.eq.s32.totalorder %s14, 0
      %p78 = por %p76, %p77
      %p79 = scmp.ne.s32.totalorder %s68, %s71
      %p80 = scmp.eq.s32.totalorder %s19, 3
      %p81 = por %p79, %p80
      %p82 = scmp.ne.s32.totalorder %s71, %s72
      %p83 = scmp.eq.s32.totalorder %s19, 0
      %p84 = por %p82, %p83
      %p85 = scmp.ne.s32.totalorder %s71, %s72
      %p86 = scmp.eq.s32.totalorder %s20, 3
      %p87 = por %p85, %p86
      %p89 = scmp.ne.s32.totalorder %s72, %s88
      %p90 = scmp.eq.s32.totalorder %s20, 0
      %p91 = por %p89, %p90
      %s93 = sadd.s32 %s92, 1
      %p96 = scmp.eq.s32.totalorder %s14, 3
      %p97 = scmp.ne.s32.totalorder %s92, %s94
      %p98 = scmp.eq.s32.totalorder %s14, 0
      %p99 = por %p97, %p98
      %p100 = scmp.ne.s32.totalorder %s92, %s94
      %p101 = scmp.eq.s32.totalorder %s19, 3
      %p102 = por %p100, %p101
      %p103 = scmp.ne.s32.totalorder %s94, %s95
      %p104 = scmp.eq.s32.totalorder %s19, 0
      %p105 = por %p103, %p104
      %p106 = scmp.ne.s32.totalorder %s94, %s95
      %p107 = scmp.eq.s32.totalorder %s20, 3
      %p108 = por %p106, %p107
      %p110 = scmp.ne.s32.totalorder %s95, %s109
      %p111 = scmp.eq.s32.totalorder %s20, 0
      %p112 = por %p110, %p111
      %s114 = sadd.s32 %s113, 1
      %p117 = scmp.eq.s32.totalorder %s14, 3
      %p118 = scmp.ne.s32.totalorder %s113, %s115
      %p119 = scmp.eq.s32.totalorder %s14, 0
      %p120 = por %p118, %p119
      %p121 = scmp.ne.s32.totalorder %s113, %s115
      %p122 = scmp.eq.s32.totalorder %s19, 3
      %p123 = por %p121, %p122
      %p124 = scmp.ne.s32.totalorder %s115, %s116
      %p125 = scmp.eq.s32.totalorder %s19, 0
      %p126 = por %p124, %p125
      %p127 = scmp.ne.s32.totalorder %s115, %s116
      %p128 = scmp.eq.s32.totalorder %s20, 3
      %p129 = por %p127, %p128
      %p131 = scmp.ne.s32.totalorder %s116, %s130
      %p132 = scmp.eq.s32.totalorder %s20, 0
      %p133 = por %p131, %p132
      %s134 = ssub.s32 %s21, %s33
      %s135 = ssub.s32 %s22, %s29
      %s136 = sor.u32 %s134, %s135
      %p137 = scmp.eq.s32.totalorder %s136, 0
      %s139 = sadd.s32 %s138, 1
      %s140 = scalar_select %p137, %s138, %s139
      %p143 = pneg %p137
      %p144 = scmp.eq.s32.totalorder %s14, 3
      %p145 = por %p143, %p144
      %p146 = scmp.ne.s32.totalorder %s138, %s141
      %p147 = scmp.eq.s32.totalorder %s14, 0
      %p148 = por %p146, %p147
      %p149 = scmp.ne.s32.totalorder %s138, %s141
      %p150 = scmp.eq.s32.totalorder %s19, 3
      %p151 = por %p149, %p150
      %p152 = scmp.ne.s32.totalorder %s141, %s142
      %p153 = scmp.eq.s32.totalorder %s19, 0
      %p154 = por %p152, %p153
      %p155 = scmp.ne.s32.totalorder %s141, %s142
      %p156 = scmp.eq.s32.totalorder %s20, 3
      %p157 = por %p155, %p156
      %p159 = scmp.ne.s32.totalorder %s142, %s158
      %p160 = scmp.eq.s32.totalorder %s20, 0
      %p161 = por %p159, %p160
      %s162 = ssub.s32 %s21, %s33
      %s163 = ssub.s32 %s22, %s29
      %s164 = sor.u32 %s162, %s163
      %p165 = scmp.eq.s32.totalorder %s164, 0
      %s167 = sadd.s32 %s166, 1
      %s168 = scalar_select %p165, %s166, %s167
      %p171 = pneg %p165
      %p172 = scmp.eq.s32.totalorder %s14, 3
      %p173 = por %p171, %p172
      %p174 = scmp.ne.s32.totalorder %s166, %s169
      %p175 = scmp.eq.s32.totalorder %s14, 0
      %p176 = por %p174, %p175
      %p177 = scmp.ne.s32.totalorder %s166, %s169
      %p178 = scmp.eq.s32.totalorder %s19, 3
      %p179 = por %p177, %p178
      %p180 = scmp.ne.s32.totalorder %s169, %s170
      %p181 = scmp.eq.s32.totalorder %s19, 0
      %p182 = por %p180, %p181
      %p183 = scmp.ne.s32.totalorder %s169, %s170
      %p184 = scmp.eq.s32.totalorder %s20, 3
      %p185 = por %p183, %p184
      %p187 = scmp.ne.s32.totalorder %s170, %s186
      %p188 = scmp.eq.s32.totalorder %s20, 0
      %p189 = por %p187, %p188
      %p190 = scmp.le.s32.totalorder 1, %s14
      %p191 = scmp.lt.s32.totalorder %s14, 5
      %p192 = pnand %p190, %p191
      %p193 = pneg %p192
      // Predicated region
      $region9: #{resnet_generator_apply.15} parent=5 // pred_check
        _
      $region10: #{resnet_generator_apply.15} parent=5 // pred_check_branch
        %195 = sbr.rel (%p192) target = $region12
      $region11: #{resnet_generator_apply.15} parent=5 // pred_region
        %s196 = ssub.s32 %s14, 1
        // Predicated region
        $region13: #{resnet_generator_apply.15} parent=11 // pred_check
          %p197 = pneg %p105
        $region14: #{resnet_generator_apply.15} parent=11 // pred_check_branch
          %199 = sbr.rel (%p197) target = $region16
        $region15: #{resnet_generator_apply.15} parent=11 // pred_region
          _
        $region16: #{resnet_generator_apply.15} parent=11 // pred_fallthru
          _
        // Predicated region
        $region17: #{resnet_generator_apply.15} parent=11 // pred_check
          %p200 = pneg %p126
        $region18: #{resnet_generator_apply.15} parent=11 // pred_check_branch
          %202 = sbr.rel (%p200) target = $region20
        $region19: #{resnet_generator_apply.15} parent=11 // pred_region
          _
        $region20: #{resnet_generator_apply.15} parent=11 // pred_fallthru
          _
      $region12: #{resnet_generator_apply.15} parent=5 // pred_fallthru
        _
      %p203 = scmp.lt.s32.totalorder %s14, 4
      // Predicated region
      $region21: #{resnet_generator_apply.15} parent=5 // pred_check
        %p204 = pneg %p203
      $region22: #{resnet_generator_apply.15} parent=5 // pred_check_branch
        %206 = sbr.rel (%p204) target = $region24
      $region23: #{resnet_generator_apply.15} parent=5 // pred_region
        // Predicated region
        $region25: #{resnet_generator_apply.15} parent=23 // pred_check
          %p207 = pneg %p48
        $region26: #{resnet_generator_apply.15} parent=23 // pred_check_branch
          %209 = sbr.rel (%p207) target = $region28
        $region27: #{resnet_generator_apply.15} parent=23 // pred_region
          %s210 = smul.u32 8, %s22
          %p211 = scmp.lt.s32.totalorder %s21, 1
          %s212 = scalar_select %p211, %s21, 1
          %p213 = scmp.lt.s32.totalorder %s210, 23
          %s214 = scalar_select %p213, %s210, 23
          %s215 = smul.addr %s214, 3
          %s216 = smul.addr %s212, 72
          %s217 = sadd.s32 %s215, %s216
          %s218 = smul.addr %s217, 4
          %s219 = scalar_lea.vmem %s0, %s218
          %s220 = smul.u32 8, %s22
        $region28: #{resnet_generator_apply.15} parent=23 // pred_fallthru
          _
        // Predicated region
        $region29: #{resnet_generator_apply.15} parent=23 // pred_check
          %p221 = pneg %p78
        $region30: #{resnet_generator_apply.15} parent=23 // pred_check_branch
          %223 = sbr.rel (%p221) target = $region32
        $region31: #{resnet_generator_apply.15} parent=23 // pred_region
          %s224 = sadd.s32 %s22, 1
          %s225 = smul.u32 8, %s224
          %p226 = scmp.lt.s32.totalorder %s21, 1
          %s227 = scalar_select %p226, %s21, 1
          %p228 = scmp.lt.s32.totalorder %s225, 23
          %s229 = scalar_select %p228, %s225, 23
          %s230 = smul.addr %s229, 3
          %s231 = smul.addr %s227, 72
          %s232 = sadd.s32 %s230, %s231
          %s233 = smul.addr %s232, 4
          %s234 = scalar_lea.vmem %s1, %s233
          %s235 = sadd.s32 %s22, 1
          %s236 = smul.u32 8, %s235
        $region32: #{resnet_generator_apply.15} parent=23 // pred_fallthru
          _
        // Predicated region
        $region33: #{resnet_generator_apply.15} parent=23 // pred_check
          %p237 = pneg %p148
        $region34: #{resnet_generator_apply.15} parent=23 // pred_check_branch
          %239 = sbr.rel (%p237) target = $region36
        $region35: #{resnet_generator_apply.15} parent=23 // pred_region
          %s240 = smul.u32 8, %s22
          %p241 = scmp.lt.s32.totalorder %s21, 1
          %s242 = scalar_select %p241, %s21, 1
          %p243 = scmp.lt.s32.totalorder %s240, 15
          %s244 = scalar_select %p243, %s240, 15
          %s245 = smul.addr %s244, 2
          %s246 = smul.addr %s242, 32
          %s247 = sadd.s32 %s245, %s246
          %s248 = smul.addr %s247, 4
          %s249 = scalar_lea.vmem %s4, %s248
          %s250 = smul.u32 8, %s22
        $region36: #{resnet_generator_apply.15} parent=23 // pred_fallthru
          _
      $region24: #{resnet_generator_apply.15} parent=5 // pred_fallthru
        _
      %p251 = scmp.le.s32.totalorder 1, %s14
      %p252 = scmp.lt.s32.totalorder %s14, 5
      %p253 = pnand %p251, %p252
      %p254 = pneg %p253
      // Predicated region
      $region37: #{resnet_generator_apply.15} parent=5 // pred_check
        _
      $region38: #{resnet_generator_apply.15} parent=5 // pred_check_branch
        %256 = sbr.rel (%p253) target = $region40
      $region39: #{resnet_generator_apply.15} parent=5 // pred_region
        %s257 = ssub.s32 %s14, 1
        %s258 = smul.u32 8, %s24
        %p259 = scmp.lt.s32.totalorder %s23, 1
        %s260 = scalar_select %p259, %s23, 1
        %p261 = scmp.lt.s32.totalorder %s258, 23
        %s262 = scalar_select %p261, %s258, 23
        %s263 = smul.addr %s262, 3
        %s264 = smul.addr %s260, 72
        %s265 = sadd.s32 %s263, %s264
        %s266 = smul.addr %s265, 4
        %s267 = scalar_lea.vmem %s0, %s266
        %p268 = pneg %p54
        %p269 = pneg %p51
        %s270 = sadd.s32 %s24, 1
        %s271 = smul.u32 8, %s270
        %p272 = scmp.lt.s32.totalorder %s23, 1
        %s273 = scalar_select %p272, %s23, 1
        %p274 = scmp.lt.s32.totalorder %s271, 23
        %s275 = scalar_select %p274, %s271, 23
        %s276 = smul.addr %s275, 3
        %s277 = smul.addr %s273, 72
        %s278 = sadd.s32 %s276, %s277
        %s279 = smul.addr %s278, 4
        %s280 = scalar_lea.vmem %s1, %s279
        %p281 = pneg %p84
        %p282 = pneg %p81
        %p283 = pneg %p105
        %p284 = pneg %p102
        %p285 = pneg %p126
        %p286 = pneg %p123
        %s287 = smul.u32 8, %s24
        %p288 = scmp.lt.s32.totalorder %s23, 1
        %s289 = scalar_select %p288, %s23, 1
        %p290 = scmp.lt.s32.totalorder %s287, 15
        %s291 = scalar_select %p290, %s287, 15
        %s292 = smul.addr %s291, 2
        %s293 = smul.addr %s289, 32
        %s294 = sadd.s32 %s292, %s293
        %s295 = smul.addr %s294, 4
        %s296 = scalar_lea.vmem %s4, %s295
        %p297 = pneg %p154
        %p298 = pneg %p151
        %p299 = pneg %p182
        %p300 = pneg %p179
        %s301 = sand.u32 %s169, 1
        %s302 = scalar_lea.sflag [#allocation3], %s301
        %s303 = sand.u32 %s169, 1
        %s304 = smul.addr %s303, 128
        %s305 = scalar_lea.vmem [#allocation2], %s304
        %s306 = smul.u32 8, %s24
        %p307 = scmp.lt.s32.totalorder %s23, 1
        %s308 = scalar_select %p307, %s23, 1
        %p309 = scmp.lt.s32.totalorder %s306, 23
        %s310 = scalar_select %p309, %s306, 23
        %s311 = smul.addr %s310, 3
        %s312 = smul.addr %s308, 72
        %s313 = sadd.s32 %s311, %s312
        %s314 = smul.addr %s313, 4
        %s315 = scalar_lea.vmem %s0, %s314
        %s316 = smul.u32 8, %s24
        %s317 = sadd.s32 %s24, 1
        %s318 = smul.u32 8, %s317
        %p319 = scmp.lt.s32.totalorder %s23, 1
        %s320 = scalar_select %p319, %s23, 1
        %p321 = scmp.lt.s32.totalorder %s318, 23
        %s322 = scalar_select %p321, %s318, 23
        %s323 = smul.addr %s322, 3
        %s324 = smul.addr %s320, 72
        %s325 = sadd.s32 %s323, %s324
        %s326 = smul.addr %s325, 4
        %s327 = scalar_lea.vmem %s1, %s326
        %s328 = sadd.s32 %s24, 1
        %s329 = smul.u32 8, %s328
        %s330 = smul.u32 8, %s24
        %p331 = scmp.lt.s32.totalorder %s23, 1
        %s332 = scalar_select %p331, %s23, 1
        %p333 = scmp.lt.s32.totalorder %s330, 15
        %s334 = scalar_select %p333, %s330, 15
        %s335 = smul.addr %s334, 2
        %s336 = smul.addr %s332, 32
        %s337 = sadd.s32 %s335, %s336
        %s338 = smul.addr %s337, 4
        %s339 = scalar_lea.vmem %s4, %s338
        %s340 = smul.u32 8, %s24
        %s341 = smul.u32 8, %s24
        %v343 = vld [vmem:[%s315] sm:$0xf]
        %v344 = vld [vmem:[%s315 + $0x4] sm:$0xf]
        %v345 = vld [vmem:[%s315 + $0x8] sm:$0x1]
        %v346 = vld [vmem:[%s315 + $0xc] sm:$0xf]
        %v347 = vld [vmem:[%s315 + $0x10] sm:$0xf]
        %v348 = vld [vmem:[%s315 + $0x14] sm:$0x1]
        %v349 = vld [vmem:[%s315 + $0x18] sm:$0xf]
        %v350 = vld [vmem:[%s315 + $0x1c] sm:$0xf]
        %v351 = vld [vmem:[%s315 + $0x20] sm:$0x1]
        %v352 = vld [vmem:[%s315 + $0x24] sm:$0xf]
        %v353 = vld [vmem:[%s315 + $0x28] sm:$0xf]
        %v354 = vld [vmem:[%s315 + $0x2c] sm:$0x1]
        %v355 = vld [vmem:[%s315 + $0x30] sm:$0xf]
        %v356 = vld [vmem:[%s315 + $0x34] sm:$0xf]
        %v357 = vld [vmem:[%s315 + $0x38] sm:$0x1]
        %v358 = vld [vmem:[%s315 + $0x3c] sm:$0xf]
        %v359 = vld [vmem:[%s315 + $0x40] sm:$0xf]
        %v360 = vld [vmem:[%s315 + $0x44] sm:$0x1]
        %v361 = vld [vmem:[%s315 + $0x48] sm:$0xf]
        %v362 = vld [vmem:[%s315 + $0x4c] sm:$0xf]
        %v363 = vld [vmem:[%s315 + $0x50] sm:$0x1]
        %v364 = vld [vmem:[%s315 + $0x54] sm:$0xf]
        %v365 = vld [vmem:[%s315 + $0x58] sm:$0xf]
        %v366 = vld [vmem:[%s315 + $0x5c] sm:$0x1]
        %v367 = vld [vmem:[%s327] sm:$0xf]
        %v368 = vld [vmem:[%s327 + $0x4] sm:$0xf]
        %v369 = vld [vmem:[%s327 + $0x8] sm:$0x1]
        %v370 = vld [vmem:[%s327 + $0xc] sm:$0xf]
        %v371 = vld [vmem:[%s327 + $0x10] sm:$0xf]
        %v372 = vld [vmem:[%s327 + $0x14] sm:$0x1]
        %vm373 = vsmask.f32 3328
        %vm374 = vsmask.f32 7440
        %vm375 = vmor %vm373, %vm374
        %v377 = vshrl.u32 %v343, 16
        %v379 = vrot.slane %v377, 4
        %v380 = vshll.u32 %v343, 16
        %v382 = vrot.slane %v380, 5
        %v383 = vor.u32 %v379, %v382
        %v384 = vrot.slane %v383, 4
        %v386 = vshll.u32 %v344, 16
        %v388 = vrot.slane %v386, 5
        %v389 = vsel %vm375, %v384, %v388
        %v390 = vshrl.u32 %v344, 16
        %v392 = vrot.slane %v390, 4
        %v393 = vor.u32 %v392, %v388
        %v394 = vrot.slane %v393, 4
        %v396 = vshll.u32 %v345, 16
        %v398 = vrot.slane %v396, 5
        %v399 = vsel %vm375, %v394, %v398
        %v401 = vshrl.u32 %v346, 16
        %v403 = vrot.slane %v401, 4
        %v404 = vshll.u32 %v346, 16
        %v406 = vrot.slane %v404, 5
        %v407 = vor.u32 %v403, %v406
        %v408 = vrot.slane %v407, 4
        %v410 = vshll.u32 %v347, 16
        %v412 = vrot.slane %v410, 5
        %v413 = vsel %vm375, %v408, %v412
        %v414 = vshrl.u32 %v347, 16
        %v416 = vrot.slane %v414, 4
        %v417 = vor.u32 %v416, %v412
        %v418 = vrot.slane %v417, 4
        %v420 = vshll.u32 %v348, 16
        %v422 = vrot.slane %v420, 5
        %v423 = vsel %vm375, %v418, %v422
        %v425 = vshrl.u32 %v349, 16
        %v427 = vrot.slane %v425, 4
        %v428 = vshll.u32 %v349, 16
        %v430 = vrot.slane %v428, 5
        %v431 = vor.u32 %v427, %v430
        %v432 = vrot.slane %v431, 4
        %v434 = vshll.u32 %v350, 16
        %v436 = vrot.slane %v434, 5
        %v437 = vsel %vm375, %v432, %v436
        %v438 = vshrl.u32 %v350, 16
        %v440 = vrot.slane %v438, 4
        %v441 = vor.u32 %v440, %v436
        %v442 = vrot.slane %v441, 4
        %v444 = vshll.u32 %v351, 16
        %v446 = vrot.slane %v444, 5
        %v447 = vsel %vm375, %v442, %v446
        %v449 = vshrl.u32 %v352, 16
        %v451 = vrot.slane %v449, 4
        %v452 = vshll.u32 %v352, 16
        %v454 = vrot.slane %v452, 5
        %v455 = vor.u32 %v451, %v454
        %v456 = vrot.slane %v455, 4
        %v458 = vshll.u32 %v353, 16
        %v460 = vrot.slane %v458, 5
        %v461 = vsel %vm375, %v456, %v460
        %v462 = vshrl.u32 %v353, 16
        %v464 = vrot.slane %v462, 4
        %v465 = vor.u32 %v464, %v460
        %v466 = vrot.slane %v465, 4
        %v468 = vshll.u32 %v354, 16
        %v470 = vrot.slane %v468, 5
        %v471 = vsel %vm375, %v466, %v470
        %v473 = vshrl.u32 %v355, 16
        %v475 = vrot.slane %v473, 4
        %v476 = vshll.u32 %v355, 16
        %v478 = vrot.slane %v476, 5
        %v479 = vor.u32 %v475, %v478
        %v480 = vrot.slane %v479, 4
        %v482 = vshll.u32 %v356, 16
        %v484 = vrot.slane %v482, 5
        %v485 = vsel %vm375, %v480, %v484
        %v486 = vshrl.u32 %v356, 16
        %v488 = vrot.slane %v486, 4
        %v489 = vor.u32 %v488, %v484
        %v490 = vrot.slane %v489, 4
        %v492 = vshll.u32 %v357, 16
        %v494 = vrot.slane %v492, 5
        %v495 = vsel %vm375, %v490, %v494
        %v497 = vshrl.u32 %v358, 16
        %v499 = vrot.slane %v497, 4
        %v500 = vshll.u32 %v358, 16
        %v502 = vrot.slane %v500, 5
        %v503 = vor.u32 %v499, %v502
        %v504 = vrot.slane %v503, 4
        %v506 = vshll.u32 %v359, 16
        %v508 = vrot.slane %v506, 5
        %v509 = vsel %vm375, %v504, %v508
        %v510 = vshrl.u32 %v359, 16
        %v512 = vrot.slane %v510, 4
        %v513 = vor.u32 %v512, %v508
        %v514 = vrot.slane %v513, 4
        %v516 = vshll.u32 %v360, 16
        %v518 = vrot.slane %v516, 5
        %v519 = vsel %vm375, %v514, %v518
        %v521 = vshrl.u32 %v361, 16
        %v523 = vrot.slane %v521, 4
        %v524 = vshll.u32 %v361, 16
        %v526 = vrot.slane %v524, 5
        %v527 = vor.u32 %v523, %v526
        %v528 = vrot.slane %v527, 4
        %v530 = vshll.u32 %v362, 16
        %v532 = vrot.slane %v530, 5
        %v533 = vsel %vm375, %v528, %v532
        %v534 = vshrl.u32 %v362, 16
        %v536 = vrot.slane %v534, 4
        %v537 = vor.u32 %v536, %v532
        %v538 = vrot.slane %v537, 4
        %v540 = vshll.u32 %v363, 16
        %v542 = vrot.slane %v540, 5
        %v543 = vsel %vm375, %v538, %v542
        %v545 = vshrl.u32 %v364, 16
        %v547 = vrot.slane %v545, 4
        %v548 = vshll.u32 %v364, 16
        %v550 = vrot.slane %v548, 5
        %v551 = vor.u32 %v547, %v550
        %v552 = vrot.slane %v551, 4
        %v554 = vshll.u32 %v365, 16
        %v556 = vrot.slane %v554, 5
        %v557 = vsel %vm375, %v552, %v556
        %v558 = vshrl.u32 %v365, 16
        %v560 = vrot.slane %v558, 4
        %v561 = vor.u32 %v560, %v556
        %v562 = vrot.slane %v561, 4
        %v564 = vshll.u32 %v366, 16
        %v566 = vrot.slane %v564, 5
        %v567 = vsel %vm375, %v562, %v566
        %vm592 = vcmask 1042432
        %vm593 = vcmask 1046532
        %vm594 = vmor %vm592, %vm593
        %v595 = vrot.slane %v343, 5
        %v596 = vrot.slane %v595, 4
        %v597 = vrot.slane %v344, 5
        %v598 = vsel %vm594, %v596, %v597
        %v599 = vrot.slane %v597, 4
        %v600 = vrot.slane %v345, 5
        %v601 = vsel %vm594, %v599, %v600
        %v602 = vrot.slane %v346, 5
        %v603 = vrot.slane %v602, 4
        %v604 = vrot.slane %v347, 5
        %v605 = vsel %vm594, %v603, %v604
        %v606 = vrot.slane %v604, 4
        %v607 = vrot.slane %v348, 5
        %v608 = vsel %vm594, %v606, %v607
        %v609 = vrot.slane %v349, 5
        %v610 = vrot.slane %v609, 4
        %v611 = vrot.slane %v350, 5
        %v612 = vsel %vm594, %v610, %v611
        %v613 = vrot.slane %v611, 4
        %v614 = vrot.slane %v351, 5
        %v615 = vsel %vm594, %v613, %v614
        %v616 = vrot.slane %v352, 5
        %v617 = vrot.slane %v616, 4
        %v618 = vrot.slane %v353, 5
        %v619 = vsel %vm594, %v617, %v618
        %v620 = vrot.slane %v618, 4
        %v621 = vrot.slane %v354, 5
        %v622 = vsel %vm594, %v620, %v621
        %v623 = vrot.slane %v355, 5
        %v624 = vrot.slane %v623, 4
        %v625 = vrot.slane %v356, 5
        %v626 = vsel %vm594, %v624, %v625
        %v627 = vrot.slane %v625, 4
        %v628 = vrot.slane %v357, 5
        %v629 = vsel %vm594, %v627, %v628
        %v630 = vrot.slane %v358, 5
        %v631 = vrot.slane %v630, 4
        %v632 = vrot.slane %v359, 5
        %v633 = vsel %vm594, %v631, %v632
        %v634 = vrot.slane %v632, 4
        %v635 = vrot.slane %v360, 5
        %v636 = vsel %vm594, %v634, %v635
        %v637 = vrot.slane %v361, 5
        %v638 = vrot.slane %v637, 4
        %v639 = vrot.slane %v362, 5
        %v640 = vsel %vm594, %v638, %v639
        %v641 = vrot.slane %v639, 4
        %v642 = vrot.slane %v363, 5
        %v643 = vsel %vm594, %v641, %v642
        %v644 = vrot.slane %v364, 5
        %v645 = vrot.slane %v644, 4
        %v646 = vrot.slane %v365, 5
        %v647 = vsel %vm594, %v645, %v646
        %v648 = vrot.slane %v646, 4
        %v649 = vrot.slane %v366, 5
        %v650 = vsel %vm594, %v648, %v649
        %v651 = vunpack.c.l.b16 %v343
        %v652 = vunpack.c.l.b16 %v344
        %v653 = vunpack.c.l.b16 %v346
        %v654 = vunpack.c.l.b16 %v347
        %v655 = vunpack.c.l.b16 %v349
        %v656 = vunpack.c.l.b16 %v350
        %v657 = vunpack.c.l.b16 %v352
        %v658 = vunpack.c.l.b16 %v353
        %v659 = vunpack.c.l.b16 %v355
        %v660 = vunpack.c.l.b16 %v356
        %v661 = vunpack.c.l.b16 %v358
        %v662 = vunpack.c.l.b16 %v359
        %v663 = vunpack.c.l.b16 %v361
        %v664 = vunpack.c.l.b16 %v362
        %v665 = vunpack.c.l.b16 %v364
        %v666 = vunpack.c.l.b16 %v365
        %v667 = vpack.c.b16 %v652, %v651
        %v668 = vpack.c.b16 %v654, %v653
        %v669 = vpack.c.b16 %v656, %v655
        %v670 = vpack.c.b16 %v658, %v657
        %v671 = vpack.c.b16 %v660, %v659
        %v672 = vpack.c.b16 %v662, %v661
        %v673 = vpack.c.b16 %v664, %v663
        %v674 = vpack.c.b16 %v666, %v665
        %v675 = vunpack.c.l.b16 %v389
        %v676 = vunpack.c.l.b16 %v399
        %v677 = vunpack.c.l.b16 %v413
        %v678 = vunpack.c.l.b16 %v423
        %v679 = vunpack.c.l.b16 %v437
        %v680 = vunpack.c.l.b16 %v447
        %v681 = vunpack.c.l.b16 %v461
        %v682 = vunpack.c.l.b16 %v471
        %v683 = vunpack.c.l.b16 %v485
        %v684 = vunpack.c.l.b16 %v495
        %v685 = vunpack.c.l.b16 %v509
        %v686 = vunpack.c.l.b16 %v519
        %v687 = vunpack.c.l.b16 %v533
        %v688 = vunpack.c.l.b16 %v543
        %v689 = vunpack.c.l.b16 %v557
        %v690 = vunpack.c.l.b16 %v567
        %v691 = vpack.c.b16 %v676, %v675
        %v692 = vpack.c.b16 %v678, %v677
        %v693 = vpack.c.b16 %v680, %v679
        %v694 = vpack.c.b16 %v682, %v681
        %v695 = vpack.c.b16 %v684, %v683
        %v696 = vpack.c.b16 %v686, %v685
        %v697 = vpack.c.b16 %v688, %v687
        %v698 = vpack.c.b16 %v690, %v689
        %699 = vrot.lane.b32.xlu0 %v691, 32
        %v700 = vpop.permute.xlu0 %699
        %701 = vrot.lane.b32.xlu0 %v692, 32
        %v702 = vpop.permute.xlu0 %701
        %703 = vrot.lane.b32.xlu0 %v693, 32
        %v704 = vpop.permute.xlu0 %703
        %705 = vrot.lane.b32.xlu0 %v694, 32
        %v706 = vpop.permute.xlu0 %705
        %707 = vrot.lane.b32.xlu0 %v695, 32
        %v708 = vpop.permute.xlu0 %707
        %709 = vrot.lane.b32.xlu0 %v696, 32
        %v710 = vpop.permute.xlu0 %709
        %711 = vrot.lane.b32.xlu0 %v697, 32
        %v712 = vpop.permute.xlu0 %711
        %713 = vrot.lane.b32.xlu0 %v698, 32
        %v714 = vpop.permute.xlu0 %713
        %v715 = vunpack.c.l.b16 %v598
        %v716 = vunpack.c.l.b16 %v601
        %v717 = vunpack.c.l.b16 %v605
        %v718 = vunpack.c.l.b16 %v608
        %v719 = vunpack.c.l.b16 %v612
        %v720 = vunpack.c.l.b16 %v615
        %v721 = vunpack.c.l.b16 %v619
        %v722 = vunpack.c.l.b16 %v622
        %v723 = vunpack.c.l.b16 %v626
        %v724 = vunpack.c.l.b16 %v629
        %v725 = vunpack.c.l.b16 %v633
        %v726 = vunpack.c.l.b16 %v636
        %v727 = vunpack.c.l.b16 %v640
        %v728 = vunpack.c.l.b16 %v643
        %v729 = vunpack.c.l.b16 %v647
        %v730 = vunpack.c.l.b16 %v650
        %v731 = vpack.c.b16 %v716, %v715
        %v732 = vpack.c.b16 %v718, %v717
        %v733 = vpack.c.b16 %v720, %v719
        %v734 = vpack.c.b16 %v722, %v721
        %v735 = vpack.c.b16 %v724, %v723
        %v736 = vpack.c.b16 %v726, %v725
        %v737 = vpack.c.b16 %v728, %v727
        %v738 = vpack.c.b16 %v730, %v729
        %739 = vrot.lane.b32.xlu0 %v731, 64
        %v740 = vpop.permute.xlu0 %739
        %741 = vrot.lane.b32.xlu0 %v732, 64
        %v742 = vpop.permute.xlu0 %741
        %743 = vrot.lane.b32.xlu0 %v733, 64
        %v744 = vpop.permute.xlu0 %743
        %745 = vrot.lane.b32.xlu0 %v734, 64
        %v746 = vpop.permute.xlu0 %745
        %747 = vrot.lane.b32.xlu0 %v735, 64
        %v748 = vpop.permute.xlu0 %747
        %749 = vrot.lane.b32.xlu0 %v736, 64
        %v750 = vpop.permute.xlu0 %749
        %751 = vrot.lane.b32.xlu0 %v737, 64
        %v752 = vpop.permute.xlu0 %751
        %753 = vrot.lane.b32.xlu0 %v738, 64
        %v754 = vpop.permute.xlu0 %753
        %vm755 = vcmask 261120
        %v758 = vsel %vm755, %v667, %v700
        %v761 = vsel %vm755, %v668, %v702
        %v764 = vsel %vm755, %v669, %v704
        %v767 = vsel %vm755, %v670, %v706
        %v770 = vsel %vm755, %v671, %v708
        %v773 = vsel %vm755, %v672, %v710
        %v776 = vsel %vm755, %v673, %v712
        %v779 = vsel %vm755, %v674, %v714
        %vm780 = vcmask 523264
        %v782 = vsel %vm780, %v758, %v740
        %v784 = vsel %vm780, %v761, %v742
        %v786 = vsel %vm780, %v764, %v744
        %v788 = vsel %vm780, %v767, %v746
        %v790 = vsel %vm780, %v770, %v748
        %v792 = vsel %vm780, %v773, %v750
        %v794 = vsel %vm780, %v776, %v752
        %v796 = vsel %vm780, %v779, %v754
        %v797 = vld [vmem:[%s2] sm:$0xf]
        %v798 = vld [vmem:[%s2 + $0x4] sm:$0xf]
        %v799 = vld [vmem:[%s2 + $0x8] sm:$0xf]
        %v800 = vld [vmem:[%s2 + $0xc] sm:$0xf]
        %v801 = vld [vmem:[%s2 + $0x10] sm:$0xf]
        %v802 = vld [vmem:[%s2 + $0x14] sm:$0xf]
        %v803 = vld [vmem:[%s2 + $0x18] sm:$0xf]
        %v804 = vld [vmem:[%s2 + $0x1c] sm:$0xf]
        %v805 = vld [vmem:[%s2 + $0x20] sm:$0xf]
        %v806 = vld [vmem:[%s2 + $0x24] sm:$0xf]
        %v807 = vld [vmem:[%s2 + $0x28] sm:$0xf]
        %v808 = vld [vmem:[%s2 + $0x2c] sm:$0xf]
        %v810 = vshrl.u32 %v367, 16
        %v812 = vrot.slane %v810, 4
        %v813 = vshll.u32 %v367, 16
        %v815 = vrot.slane %v813, 5
        %v816 = vor.u32 %v812, %v815
        %v817 = vrot.slane %v816, 4
        %v819 = vshll.u32 %v368, 16
        %v821 = vrot.slane %v819, 5
        %v822 = vsel %vm375, %v817, %v821
        %v823 = vshrl.u32 %v368, 16
        %v825 = vrot.slane %v823, 4
        %v826 = vor.u32 %v825, %v821
        %v827 = vrot.slane %v826, 4
        %v829 = vshll.u32 %v369, 16
        %v831 = vrot.slane %v829, 5
        %v832 = vsel %vm375, %v827, %v831
        %v836 = vrot.slane %v367, 5
        %v837 = vrot.slane %v836, 4
        %v838 = vrot.slane %v368, 5
        %v839 = vsel %vm594, %v837, %v838
        %v840 = vrot.slane %v838, 4
        %v841 = vrot.slane %v369, 5
        %v842 = vsel %vm594, %v840, %v841
        %v843 = vunpack.c.l.b16 %v367
        %v844 = vunpack.c.l.b16 %v368
        %v845 = vpack.c.b16 %v844, %v843
        %v846 = vunpack.c.l.b16 %v822
        %v847 = vunpack.c.l.b16 %v832
        %v848 = vpack.c.b16 %v847, %v846
        %849 = vrot.lane.b32.xlu0 %v848, 32
        %v850 = vpop.permute.xlu0 %849
        %v851 = vunpack.c.l.b16 %v839
        %v852 = vunpack.c.l.b16 %v842
        %v853 = vpack.c.b16 %v852, %v851
        %854 = vrot.lane.b32.xlu0 %v853, 64
        %v855 = vpop.permute.xlu0 %854
        %v858 = vsel %vm755, %v845, %v850
        %v860 = vsel %vm780, %v858, %v855
        %s861 = scalar_lea.vmem %s2, 48
        %v862 = vld [vmem:[%s861] sm:$0xf]
        %v863 = vld [vmem:[%s861 + $0x4] sm:$0xf]
        %v864 = vld [vmem:[%s861 + $0x8] sm:$0xf]
        %v865 = vld [vmem:[%s861 + $0xc] sm:$0xf]
        %v866 = vld [vmem:[%s861 + $0x10] sm:$0xf]
        %v867 = vld [vmem:[%s861 + $0x14] sm:$0xf]
        %v868 = vld [vmem:[%s861 + $0x18] sm:$0xf]
        %v869 = vld [vmem:[%s861 + $0x1c] sm:$0xf]
        %v870 = vld [vmem:[%s861 + $0x20] sm:$0xf]
        %v871 = vld [vmem:[%s861 + $0x24] sm:$0xf]
        %v872 = vld [vmem:[%s861 + $0x28] sm:$0xf]
        %v873 = vld [vmem:[%s861 + $0x2c] sm:$0xf]
        %v886 = vunpack.c.l.b16 %v862
        %v887 = vunpack.c.l.b16 %v863
        %v888 = vunpack.c.l.b16 %v864
        %v889 = vunpack.c.l.b16 %v865
        %v890 = vunpack.c.l.b16 %v866
        %v891 = vunpack.c.l.b16 %v867
        %v892 = vunpack.c.l.b16 %v868
        %v893 = vunpack.c.l.b16 %v869
        %v894 = vunpack.c.l.b16 %v870
        %v895 = vunpack.c.l.b16 %v871
        %v896 = vunpack.c.l.b16 %v872
        %v897 = vunpack.c.l.b16 %v873
        %v898 = vpack.c.b16 %v887, %v886
        %v899 = vpack.c.b16 %v889, %v888
        %v900 = vpack.c.b16 %v891, %v890
        %v901 = vpack.c.b16 %v893, %v892
        %v902 = vpack.c.b16 %v895, %v894
        %v903 = vpack.c.b16 %v897, %v896
        %vm910 = vcmask 785408
        %v911 = vsel %vm910, %v784, 0
        %v913 = vsel %vm910, %v786, 0
        %v915 = vsel %vm910, %v788, 0
        %v917 = vsel %vm910, %v790, 0
        %v919 = vsel %vm910, %v792, 0
        %v921 = vsel %vm910, %v794, 0
        %v923 = vsel %vm910, %v796, 0
        %v925 = vsel %vm910, %v860, 0
        %927 = vmatprep.subr.bf16.mxu0 0
        %928 = vmatpush1.bf16.msra.mxu0 %v898
        %929 = vmatprep.subr.bf16.mxu0 0
        %930 = vmatpush1.bf16.msra.mxu0 %v899
        %931 = vmatprep.subr.bf16.mxu0 0
        %932 = vmatpush1.bf16.msra.mxu0 %v900
        %933 = vmatprep.subr.bf16.mxu0 0
        %934 = vmatpush1.bf16.msra.mxu0 %v901
        %935 = vmatprep.subr.bf16.mxu0 0
        %936 = vmatpush1.bf16.msra.mxu0 %v902
        %937 = vmatprep.subr.bf16.mxu0 0
        %938 = vmatpush1.bf16.msra.mxu0 %v903
        %939 = vmatprep.subr.bf16.mxu0 0
        %940 = vmatpush1.bf16.msra.mxu0 0
        %941 = vmatprep.subr.bf16.mxu0 0
        %942 = vmatpush1.bf16.msra.mxu0 0
        %943 = vmatprep.subr.bf16.mxu0 0
        %944 = vmatpush1.bf16.msra.mxu0 0
        %945 = vmatprep.subr.bf16.mxu0 0
        %946 = vmatpush1.bf16.msra.mxu0 0
        %947 = vmatprep.subr.bf16.mxu0 0
        %948 = vmatpush1.bf16.msra.mxu0 0
        %949 = vmatprep.subr.bf16.mxu0 0
        %950 = vmatpush1.bf16.msra.mxu0 0
        %951 = vmatprep.subr.bf16.mxu0 0
        %952 = vmatpush1.bf16.msra.mxu0 0
        %953 = vmatprep.subr.bf16.mxu0 0
        %954 = vmatpush1.bf16.msra.mxu0 0
        %955 = vmatprep.subr.bf16.mxu0 0
        %956 = vmatpush1.bf16.msra.mxu0 0
        %957 = vmatprep.subr.bf16.mxu0 0
        %958 = vmatpush1.bf16.msra.mxu0 0
        %959 = vmatprep.mubr.bf16.mxu0 0
        %960 = vmatmul.mubr.bf16.gmra.mrb[0].mxu0 %v911
        %v961 = vpop.f32.mrb[0].mxu0
        %v962 = vadd.f32 0.0, %v961
        %v963 = vpop.f32.mrb[0].mxu0
        %v964 = vpop.f32.mrb[0].mxu0
        %v965 = vadd.f32 0.0, %v964
        %v966 = vpop.f32.mrb[0].mxu0
        %967 = vmatprep.mubr.bf16.mxu0 0
        %968 = vmatmul.mubr.bf16.gmra.mrb[0].mxu0 %v913
        %v969 = vpop.f32.mrb[0].mxu0
        %v970 = vadd.f32 0.0, %v969
        %v971 = vpop.f32.mrb[0].mxu0
        %v972 = vpop.f32.mrb[0].mxu0
        %v973 = vadd.f32 0.0, %v972
        %v974 = vpop.f32.mrb[0].mxu0
        %975 = vmatprep.mubr.bf16.mxu0 0
        %976 = vmatmul.mubr.bf16.gmra.mrb[0].mxu0 %v915
        %v977 = vpop.f32.mrb[0].mxu0
        %v978 = vadd.f32 0.0, %v977
        %v979 = vpop.f32.mrb[0].mxu0
        %v980 = vpop.f32.mrb[0].mxu0
        %v981 = vadd.f32 0.0, %v980
        %v982 = vpop.f32.mrb[0].mxu0
        %983 = vmatprep.mubr.bf16.mxu0 0
        %984 = vmatmul.mubr.bf16.gmra.mrb[0].mxu0 %v917
        %v985 = vpop.f32.mrb[0].mxu0
        %v986 = vadd.f32 0.0, %v985
        %v987 = vpop.f32.mrb[0].mxu0
        %v988 = vpop.f32.mrb[0].mxu0
        %v989 = vadd.f32 0.0, %v988
        %v990 = vpop.f32.mrb[0].mxu0
        %991 = vmatprep.mubr.bf16.mxu0 0
        %992 = vmatmul.mubr.bf16.gmra.mrb[0].mxu0 %v919
        %v993 = vpop.f32.mrb[0].mxu0
        %v994 = vadd.f32 0.0, %v993
        %v995 = vpop.f32.mrb[0].mxu0
        %v996 = vpop.f32.mrb[0].mxu0
        %v997 = vadd.f32 0.0, %v996
        %v998 = vpop.f32.mrb[0].mxu0
        %999 = vmatprep.mubr.bf16.mxu0 0
        %1000 = vmatmul.mubr.bf16.gmra.mrb[0].mxu0 %v921
        %v1001 = vpop.f32.mrb[0].mxu0
        %v1002 = vadd.f32 0.0, %v1001
        %v1003 = vpop.f32.mrb[0].mxu0
        %v1004 = vpop.f32.mrb[0].mxu0
        %v1005 = vadd.f32 0.0, %v1004
        %v1006 = vpop.f32.mrb[0].mxu0
        %1007 = vmatprep.mubr.bf16.mxu0 0
        %1008 = vmatmul.mubr.bf16.gmra.mrb[0].mxu0 %v923
        %v1009 = vpop.f32.mrb[0].mxu0
        %v1010 = vadd.f32 0.0, %v1009
        %v1011 = vpop.f32.mrb[0].mxu0
        %v1012 = vpop.f32.mrb[0].mxu0
        %v1013 = vadd.f32 0.0, %v1012
        %v1014 = vpop.f32.mrb[0].mxu0
        %1015 = vmatprep.mubr.bf16.mxu0 0
        %1016 = vmatmul.mubr.bf16.gmra.mrb[0].mxu0 %v925
        %v1017 = vpop.f32.mrb[0].mxu0
        %v1018 = vadd.f32 0.0, %v1017
        %v1019 = vpop.f32.mrb[0].mxu0
        %v1020 = vpop.f32.mrb[0].mxu0
        %v1021 = vadd.f32 0.0, %v1020
        %v1022 = vpop.f32.mrb[0].mxu0
        %1023 = vdwg.mxu0
        %v1036 = vunpack.c.l.b16 %v797
        %v1037 = vunpack.c.l.b16 %v798
        %v1038 = vunpack.c.l.b16 %v799
        %v1039 = vunpack.c.l.b16 %v800
        %v1040 = vunpack.c.l.b16 %v801
        %v1041 = vunpack.c.l.b16 %v802
        %v1042 = vunpack.c.l.b16 %v803
        %v1043 = vunpack.c.l.b16 %v804
        %v1044 = vunpack.c.l.b16 %v805
        %v1045 = vunpack.c.l.b16 %v806
        %v1046 = vunpack.c.l.b16 %v807
        %v1047 = vunpack.c.l.b16 %v808
        %v1048 = vpack.c.b16 %v1037, %v1036
        %v1049 = vpack.c.b16 %v1039, %v1038
        %v1050 = vpack.c.b16 %v1041, %v1040
        %v1051 = vpack.c.b16 %v1043, %v1042
        %v1052 = vpack.c.b16 %v1045, %v1044
        %v1053 = vpack.c.b16 %v1047, %v1046
        %v1060 = vsel %vm910, %v782, 0
        %1062 = vmatprep.subr.bf16.mxu0 0
        %1063 = vmatpush1.bf16.msra.mxu0 %v1048
        %1064 = vmatprep.subr.bf16.mxu0 0
        %1065 = vmatpush1.bf16.msra.mxu0 %v1049
        %1066 = vmatprep.subr.bf16.mxu0 0
        %1067 = vmatpush1.bf16.msra.mxu0 %v1050
        %1068 = vmatprep.subr.bf16.mxu0 0
        %1069 = vmatpush1.bf16.msra.mxu0 %v1051
        %1070 = vmatprep.subr.bf16.mxu0 0
        %1071 = vmatpush1.bf16.msra.mxu0 %v1052
        %1072 = vmatprep.subr.bf16.mxu0 0
        %1073 = vmatpush1.bf16.msra.mxu0 %v1053
        %1074 = vmatprep.subr.bf16.mxu0 0
        %1075 = vmatpush1.bf16.msra.mxu0 0
        %1076 = vmatprep.subr.bf16.mxu0 0
        %1077 = vmatpush1.bf16.msra.mxu0 0
        %1078 = vmatprep.subr.bf16.mxu0 0
        %1079 = vmatpush1.bf16.msra.mxu0 0
        %1080 = vmatprep.subr.bf16.mxu0 0
        %1081 = vmatpush1.bf16.msra.mxu0 0
        %1082 = vmatprep.subr.bf16.mxu0 0
        %1083 = vmatpush1.bf16.msra.mxu0 0
        %1084 = vmatprep.subr.bf16.mxu0 0
        %1085 = vmatpush1.bf16.msra.mxu0 0
        %1086 = vmatprep.subr.bf16.mxu0 0
        %1087 = vmatpush1.bf16.msra.mxu0 0
        %1088 = vmatprep.subr.bf16.mxu0 0
        %1089 = vmatpush1.bf16.msra.mxu0 0
        %1090 = vmatprep.subr.bf16.mxu0 0
        %1091 = vmatpush1.bf16.msra.mxu0 0
        %1092 = vmatprep.subr.bf16.mxu0 0
        %1093 = vmatpush1.bf16.msra.mxu0 0
        %1094 = vmatprep.mubr.bf16.mxu0 0
        %1095 = vmatmul.mubr.bf16.gmra.mrb[0].mxu0 %v1060
        %v1096 = vpop.f32.mrb[0].mxu0
        %v1097 = vadd.f32 %v962, %v1096
        %v1098 = vpop.f32.mrb[0].mxu0
        %v1099 = vpop.f32.mrb[0].mxu0
        %v1100 = vadd.f32 %v965, %v1099
        %v1101 = vpop.f32.mrb[0].mxu0
        %1102 = vmatprep.mubr.bf16.mxu0 0
        %1103 = vmatmul.mubr.bf16.gmra.mrb[0].mxu0 %v911
        %v1104 = vpop.f32.mrb[0].mxu0
        %v1105 = vadd.f32 %v970, %v1104
        %v1106 = vpop.f32.mrb[0].mxu0
        %v1107 = vpop.f32.mrb[0].mxu0
        %v1108 = vadd.f32 %v973, %v1107
        %v1109 = vpop.f32.mrb[0].mxu0
        %1110 = vmatprep.mubr.bf16.mxu0 0
        %1111 = vmatmul.mubr.bf16.gmra.mrb[0].mxu0 %v913
        %v1112 = vpop.f32.mrb[0].mxu0
        %v1113 = vadd.f32 %v978, %v1112
        %v1114 = vpop.f32.mrb[0].mxu0
        %v1115 = vpop.f32.mrb[0].mxu0
        %v1116 = vadd.f32 %v981, %v1115
        %v1117 = vpop.f32.mrb[0].mxu0
        %1118 = vmatprep.mubr.bf16.mxu0 0
        %1119 = vmatmul.mubr.bf16.gmra.mrb[0].mxu0 %v915
        %v1120 = vpop.f32.mrb[0].mxu0
        %v1121 = vadd.f32 %v986, %v1120
        %v1122 = vpop.f32.mrb[0].mxu0
        %v1123 = vpop.f32.mrb[0].mxu0
        %v1124 = vadd.f32 %v989, %v1123
        %v1125 = vpop.f32.mrb[0].mxu0
        %1126 = vmatprep.mubr.bf16.mxu0 0
        %1127 = vmatmul.mubr.bf16.gmra.mrb[0].mxu0 %v917
        %v1128 = vpop.f32.mrb[0].mxu0
        %v1129 = vadd.f32 %v994, %v1128
        %v1130 = vpop.f32.mrb[0].mxu0
        %v1131 = vpop.f32.mrb[0].mxu0
        %v1132 = vadd.f32 %v997, %v1131
        %v1133 = vpop.f32.mrb[0].mxu0
        %1134 = vmatprep.mubr.bf16.mxu0 0
        %1135 = vmatmul.mubr.bf16.gmra.mrb[0].mxu0 %v919
        %v1136 = vpop.f32.mrb[0].mxu0
        %v1137 = vadd.f32 %v1002, %v1136
        %v1138 = vpop.f32.mrb[0].mxu0
        %v1139 = vpop.f32.mrb[0].mxu0
        %v1140 = vadd.f32 %v1005, %v1139
        %v1141 = vpop.f32.mrb[0].mxu0
        %1142 = vmatprep.mubr.bf16.mxu0 0
        %1143 = vmatmul.mubr.bf16.gmra.mrb[0].mxu0 %v921
        %v1144 = vpop.f32.mrb[0].mxu0
        %v1145 = vadd.f32 %v1010, %v1144
        %v1146 = vpop.f32.mrb[0].mxu0
        %v1147 = vpop.f32.mrb[0].mxu0
        %v1148 = vadd.f32 %v1013, %v1147
        %v1149 = vpop.f32.mrb[0].mxu0
        %1150 = vmatprep.mubr.bf16.mxu0 0
        %1151 = vmatmul.mubr.bf16.gmra.mrb[0].mxu0 %v923
        %v1152 = vpop.f32.mrb[0].mxu0
        %v1153 = vadd.f32 %v1018, %v1152
        %v1154 = vpop.f32.mrb[0].mxu0
        %v1155 = vpop.f32.mrb[0].mxu0
        %v1156 = vadd.f32 %v1021, %v1155
        %v1157 = vpop.f32.mrb[0].mxu0
        %1158 = vdwg.mxu0
        %v1160 = vshrl.u32 %v370, 16
        %v1162 = vrot.slane %v1160, 4
        %v1163 = vshll.u32 %v370, 16
        %v1165 = vrot.slane %v1163, 5
        %v1166 = vor.u32 %v1162, %v1165
        %v1167 = vrot.slane %v1166, 4
        %v1169 = vshll.u32 %v371, 16
        %v1171 = vrot.slane %v1169, 5
        %v1172 = vsel %vm375, %v1167, %v1171
        %v1173 = vshrl.u32 %v371, 16
        %v1175 = vrot.slane %v1173, 4
        %v1176 = vor.u32 %v1175, %v1171
        %v1177 = vrot.slane %v1176, 4
        %v1179 = vshll.u32 %v372, 16
        %v1181 = vrot.slane %v1179, 5
        %v1182 = vsel %vm375, %v1177, %v1181
        %v1186 = vrot.slane %v370, 5
        %v1187 = vrot.slane %v1186, 4
        %v1188 = vrot.slane %v371, 5
        %v1189 = vsel %vm594, %v1187, %v1188
        %v1190 = vrot.slane %v1188, 4
        %v1191 = vrot.slane %v372, 5
        %v1192 = vsel %vm594, %v1190, %v1191
        %v1193 = vunpack.c.l.b16 %v370
        %v1194 = vunpack.c.l.b16 %v371
        %v1195 = vpack.c.b16 %v1194, %v1193
        %v1196 = vunpack.c.l.b16 %v1172
        %v1197 = vunpack.c.l.b16 %v1182
        %v1198 = vpack.c.b16 %v1197, %v1196
        %1199 = vrot.lane.b32.xlu0 %v1198, 32
        %v1200 = vpop.permute.xlu0 %1199
        %v1201 = vunpack.c.l.b16 %v1189
        %v1202 = vunpack.c.l.b16 %v1192
        %v1203 = vpack.c.b16 %v1202, %v1201
        %1204 = vrot.lane.b32.xlu0 %v1203, 64
        %v1205 = vpop.permute.xlu0 %1204
        %v1208 = vsel %vm755, %v1195, %v1200
        %v1210 = vsel %vm780, %v1208, %v1205
        %s1211 = scalar_lea.vmem %s2, 96
        %v1212 = vld [vmem:[%s1211] sm:$0xf]
        %v1213 = vld [vmem:[%s1211 + $0x4] sm:$0xf]
        %v1214 = vld [vmem:[%s1211 + $0x8] sm:$0xf]
        %v1215 = vld [vmem:[%s1211 + $0xc] sm:$0xf]
        %v1216 = vld [vmem:[%s1211 + $0x10] sm:$0xf]
        %v1217 = vld [vmem:[%s1211 + $0x14] sm:$0xf]
        %v1218 = vld [vmem:[%s1211 + $0x18] sm:$0xf]
        %v1219 = vld [vmem:[%s1211 + $0x1c] sm:$0xf]
        %v1220 = vld [vmem:[%s1211 + $0x20] sm:$0xf]
        %v1221 = vld [vmem:[%s1211 + $0x24] sm:$0xf]
        %v1222 = vld [vmem:[%s1211 + $0x28] sm:$0xf]
        %v1223 = vld [vmem:[%s1211 + $0x2c] sm:$0xf]
        %v1236 = vunpack.c.l.b16 %v1212
        %v1237 = vunpack.c.l.b16 %v1213
        %v1238 = vunpack.c.l.b16 %v1214
        %v1239 = vunpack.c.l.b16 %v1215
        %v1240 = vunpack.c.l.b16 %v1216
        %v1241 = vunpack.c.l.b16 %v1217
        %v1242 = vunpack.c.l.b16 %v1218
        %v1243 = vunpack.c.l.b16 %v1219
        %v1244 = vunpack.c.l.b16 %v1220
        %v1245 = vunpack.c.l.b16 %v1221
        %v1246 = vunpack.c.l.b16 %v1222
        %v1247 = vunpack.c.l.b16 %v1223
        %v1248 = vpack.c.b16 %v1237, %v1236
        %v1249 = vpack.c.b16 %v1239, %v1238
        %v1250 = vpack.c.b16 %v1241, %v1240
        %v1251 = vpack.c.b16 %v1243, %v1242
        %v1252 = vpack.c.b16 %v1245, %v1244
        %v1253 = vpack.c.b16 %v1247, %v1246
        %v1260 = vsel %vm910, %v1210, 0
        %1262 = vmatprep.subr.bf16.mxu0 0
        %1263 = vmatpush1.bf16.msra.mxu0 %v1248
        %1264 = vmatprep.subr.bf16.mxu0 0
        %1265 = vmatpush1.bf16.msra.mxu0 %v1249
        %1266 = vmatprep.subr.bf16.mxu0 0
        %1267 = vmatpush1.bf16.msra.mxu0 %v1250
        %1268 = vmatprep.subr.bf16.mxu0 0
        %1269 = vmatpush1.bf16.msra.mxu0 %v1251
        %1270 = vmatprep.subr.bf16.mxu0 0
        %1271 = vmatpush1.bf16.msra.mxu0 %v1252
        %1272 = vmatprep.subr.bf16.mxu0 0
        %1273 = vmatpush1.bf16.msra.mxu0 %v1253
        %1274 = vmatprep.subr.bf16.mxu0 0
        %1275 = vmatpush1.bf16.msra.mxu0 0
        %1276 = vmatprep.subr.bf16.mxu0 0
        %1277 = vmatpush1.bf16.msra.mxu0 0
        %1278 = vmatprep.subr.bf16.mxu0 0
        %1279 = vmatpush1.bf16.msra.mxu0 0
        %1280 = vmatprep.subr.bf16.mxu0 0
        %1281 = vmatpush1.bf16.msra.mxu0 0
        %1282 = vmatprep.subr.bf16.mxu0 0
        %1283 = vmatpush1.bf16.msra.mxu0 0
        %1284 = vmatprep.subr.bf16.mxu0 0
        %1285 = vmatpush1.bf16.msra.mxu0 0
        %1286 = vmatprep.subr.bf16.mxu0 0
        %1287 = vmatpush1.bf16.msra.mxu0 0
        %1288 = vmatprep.subr.bf16.mxu0 0
        %1289 = vmatpush1.bf16.msra.mxu0 0
        %1290 = vmatprep.subr.bf16.mxu0 0
        %1291 = vmatpush1.bf16.msra.mxu0 0
        %1292 = vmatprep.subr.bf16.mxu0 0
        %1293 = vmatpush1.bf16.msra.mxu0 0
        %1294 = vmatprep.mubr.bf16.mxu0 0
        %1295 = vmatmul.mubr.bf16.gmra.mrb[0].mxu0 %v913
        %v1296 = vpop.f32.mrb[0].mxu0
        %v1297 = vadd.f32 0.0, %v1296
        %v1298 = vpop.f32.mrb[0].mxu0
        %v1299 = vpop.f32.mrb[0].mxu0
        %v1300 = vadd.f32 0.0, %v1299
        %v1301 = vpop.f32.mrb[0].mxu0
        %1302 = vmatprep.mubr.bf16.mxu0 0
        %1303 = vmatmul.mubr.bf16.gmra.mrb[0].mxu0 %v915
        %v1304 = vpop.f32.mrb[0].mxu0
        %v1305 = vadd.f32 0.0, %v1304
        %v1306 = vpop.f32.mrb[0].mxu0
        %v1307 = vpop.f32.mrb[0].mxu0
        %v1308 = vadd.f32 0.0, %v1307
        %v1309 = vpop.f32.mrb[0].mxu0
        %1310 = vmatprep.mubr.bf16.mxu0 0
        %1311 = vmatmul.mubr.bf16.gmra.mrb[0].mxu0 %v917
        %v1312 = vpop.f32.mrb[0].mxu0
        %v1313 = vadd.f32 0.0, %v1312
        %v1314 = vpop.f32.mrb[0].mxu0
        %v1315 = vpop.f32.mrb[0].mxu0
        %v1316 = vadd.f32 0.0, %v1315
        %v1317 = vpop.f32.mrb[0].mxu0
        %1318 = vmatprep.mubr.bf16.mxu0 0
        %1319 = vmatmul.mubr.bf16.gmra.mrb[0].mxu0 %v919
        %v1320 = vpop.f32.mrb[0].mxu0
        %v1321 = vadd.f32 0.0, %v1320
        %v1322 = vpop.f32.mrb[0].mxu0
        %v1323 = vpop.f32.mrb[0].mxu0
        %v1324 = vadd.f32 0.0, %v1323
        %v1325 = vpop.f32.mrb[0].mxu0
        %1326 = vmatprep.mubr.bf16.mxu0 0
        %1327 = vmatmul.mubr.bf16.gmra.mrb[0].mxu0 %v921
        %v1328 = vpop.f32.mrb[0].mxu0
        %v1329 = vadd.f32 0.0, %v1328
        %v1330 = vpop.f32.mrb[0].mxu0
        %v1331 = vpop.f32.mrb[0].mxu0
        %v1332 = vadd.f32 0.0, %v1331
        %v1333 = vpop.f32.mrb[0].mxu0
        %1334 = vmatprep.mubr.bf16.mxu0 0
        %1335 = vmatmul.mubr.bf16.gmra.mrb[0].mxu0 %v923
        %v1336 = vpop.f32.mrb[0].mxu0
        %v1337 = vadd.f32 0.0, %v1336
        %v1338 = vpop.f32.mrb[0].mxu0
        %v1339 = vpop.f32.mrb[0].mxu0
        %v1340 = vadd.f32 0.0, %v1339
        %v1341 = vpop.f32.mrb[0].mxu0
        %1342 = vmatprep.mubr.bf16.mxu0 0
        %1343 = vmatmul.mubr.bf16.gmra.mrb[0].mxu0 %v925
        %v1344 = vpop.f32.mrb[0].mxu0
        %v1345 = vadd.f32 0.0, %v1344
        %v1346 = vpop.f32.mrb[0].mxu0
        %v1347 = vpop.f32.mrb[0].mxu0
        %v1348 = vadd.f32 0.0, %v1347
        %v1349 = vpop.f32.mrb[0].mxu0
        %1350 = vmatprep.mubr.bf16.mxu0 0
        %1351 = vmatmul.mubr.bf16.gmra.mrb[0].mxu0 %v1260
        %v1352 = vpop.f32.mrb[0].mxu0
        %v1353 = vadd.f32 0.0, %v1352
        %v1354 = vpop.f32.mrb[0].mxu0
        %v1355 = vpop.f32.mrb[0].mxu0
        %v1356 = vadd.f32 0.0, %v1355
        %v1357 = vpop.f32.mrb[0].mxu0
        %1358 = vdwg.mxu0
        %v1359 = vadd.f32 %v1097, %v1297
        %v1360 = vadd.f32 %v1100, %v1300
        %v1361 = vadd.f32 %v1105, %v1305
        %v1362 = vadd.f32 %v1108, %v1308
        %v1363 = vadd.f32 %v1113, %v1313
        %v1364 = vadd.f32 %v1116, %v1316
        %v1365 = vadd.f32 %v1121, %v1321
        %v1366 = vadd.f32 %v1124, %v1324
        %v1367 = vadd.f32 %v1129, %v1329
        %v1368 = vadd.f32 %v1132, %v1332
        %v1369 = vadd.f32 %v1137, %v1337
        %v1370 = vadd.f32 %v1140, %v1340
        %v1371 = vadd.f32 %v1145, %v1345
        %v1372 = vadd.f32 %v1148, %v1348
        %v1373 = vadd.f32 %v1153, %v1353
        %v1374 = vadd.f32 %v1156, %v1356
        %v1375 = vld [vmem:[%s3] sm:$0x1]
        %v1377 = vlaneseq
        %v1378 = vshrl.u32 %v1377, 7
        %v1379 = vsub.s32 0, %v1378
        %v1380 = vrot.slane %v1375, %v1379
        %v1382 = vadd.f32 %v1359, %v1380
        %v1383 = vadd.f32 %v1360, %v1380
        %v1384 = vadd.f32 %v1361, %v1380
        %v1385 = vadd.f32 %v1362, %v1380
        %v1386 = vadd.f32 %v1363, %v1380
        %v1387 = vadd.f32 %v1364, %v1380
        %v1388 = vadd.f32 %v1365, %v1380
        %v1389 = vadd.f32 %v1366, %v1380
        %v1390 = vadd.f32 %v1367, %v1380
        %v1391 = vadd.f32 %v1368, %v1380
        %v1392 = vadd.f32 %v1369, %v1380
        %v1393 = vadd.f32 %v1370, %v1380
        %v1394 = vadd.f32 %v1371, %v1380
        %v1395 = vadd.f32 %v1372, %v1380
        %v1396 = vadd.f32 %v1373, %v1380
        %v1397 = vadd.f32 %v1374, %v1380
        %v1398 = vld [vmem:[%s339] sm:$0xf]
        %v1399 = vld [vmem:[%s339 + $0x4] sm:$0xf]
        %v1400 = vld [vmem:[%s339 + $0x8] sm:$0xf]
        %v1401 = vld [vmem:[%s339 + $0xc] sm:$0xf]
        %v1402 = vld [vmem:[%s339 + $0x10] sm:$0xf]
        %v1403 = vld [vmem:[%s339 + $0x14] sm:$0xf]
        %v1404 = vld [vmem:[%s339 + $0x18] sm:$0xf]
        %v1405 = vld [vmem:[%s339 + $0x1c] sm:$0xf]
        %v1406 = vld [vmem:[%s339 + $0x20] sm:$0xf]
        %v1407 = vld [vmem:[%s339 + $0x24] sm:$0xf]
        %v1408 = vld [vmem:[%s339 + $0x28] sm:$0xf]
        %v1409 = vld [vmem:[%s339 + $0x2c] sm:$0xf]
        %v1410 = vld [vmem:[%s339 + $0x30] sm:$0xf]
        %v1411 = vld [vmem:[%s339 + $0x34] sm:$0xf]
        %v1412 = vld [vmem:[%s339 + $0x38] sm:$0xf]
        %v1413 = vld [vmem:[%s339 + $0x3c] sm:$0xf]
        %v1414 = vunpack.c.l.bf16 %v1398
        %v1415 = vunpack.c.l.bf16 %v1399
        %v1416 = vunpack.c.l.bf16 %v1400
        %v1417 = vunpack.c.l.bf16 %v1401
        %v1418 = vunpack.c.l.bf16 %v1402
        %v1419 = vunpack.c.l.bf16 %v1403
        %v1420 = vunpack.c.l.bf16 %v1404
        %v1421 = vunpack.c.l.bf16 %v1405
        %v1422 = vunpack.c.l.bf16 %v1406
        %v1423 = vunpack.c.l.bf16 %v1407
        %v1424 = vunpack.c.l.bf16 %v1408
        %v1425 = vunpack.c.l.bf16 %v1409
        %v1426 = vunpack.c.l.bf16 %v1410
        %v1427 = vunpack.c.l.bf16 %v1411
        %v1428 = vunpack.c.l.bf16 %v1412
        %v1429 = vunpack.c.l.bf16 %v1413
        %v1430 = vmax.f32 %v1382, 0.0
        %v1431 = vmax.f32 %v1383, 0.0
        %v1432 = vmax.f32 %v1384, 0.0
        %v1433 = vmax.f32 %v1385, 0.0
        %v1434 = vmax.f32 %v1386, 0.0
        %v1435 = vmax.f32 %v1387, 0.0
        %v1436 = vmax.f32 %v1388, 0.0
        %v1437 = vmax.f32 %v1389, 0.0
        %v1438 = vmax.f32 %v1390, 0.0
        %v1439 = vmax.f32 %v1391, 0.0
        %v1440 = vmax.f32 %v1392, 0.0
        %v1441 = vmax.f32 %v1393, 0.0
        %v1442 = vmax.f32 %v1394, 0.0
        %v1443 = vmax.f32 %v1395, 0.0
        %v1444 = vmax.f32 %v1396, 0.0
        %v1445 = vmax.f32 %v1397, 0.0
        %v1446 = vadd.f32 %v1430, %v1414
        %v1447 = vadd.f32 %v1431, %v1415
        %v1448 = vadd.f32 %v1432, %v1416
        %v1449 = vadd.f32 %v1433, %v1417
        %v1450 = vadd.f32 %v1434, %v1418
        %v1451 = vadd.f32 %v1435, %v1419
        %v1452 = vadd.f32 %v1436, %v1420
        %v1453 = vadd.f32 %v1437, %v1421
        %v1454 = vadd.f32 %v1438, %v1422
        %v1455 = vadd.f32 %v1439, %v1423
        %v1456 = vadd.f32 %v1440, %v1424
        %v1457 = vadd.f32 %v1441, %v1425
        %v1458 = vadd.f32 %v1442, %v1426
        %v1459 = vadd.f32 %v1443, %v1427
        %v1460 = vadd.f32 %v1444, %v1428
        %v1461 = vadd.f32 %v1445, %v1429
        %1462 = vst.msk [vmem:[%s305] sm:$0xff] %vm755, %v1446
        %1463 = vst.msk [vmem:[%s305 + $0x8] sm:$0xff] %vm755, %v1447
        %1464 = vst.msk [vmem:[%s305 + $0x10] sm:$0xff] %vm755, %v1448
        %1465 = vst.msk [vmem:[%s305 + $0x18] sm:$0xff] %vm755, %v1449
        %1466 = vst.msk [vmem:[%s305 + $0x20] sm:$0xff] %vm755, %v1450
        %1467 = vst.msk [vmem:[%s305 + $0x28] sm:$0xff] %vm755, %v1451
        %1468 = vst.msk [vmem:[%s305 + $0x30] sm:$0xff] %vm755, %v1452
        %1469 = vst.msk [vmem:[%s305 + $0x38] sm:$0xff] %vm755, %v1453
        %1470 = vst.msk [vmem:[%s305 + $0x40] sm:$0xff] %vm755, %v1454
        %1471 = vst.msk [vmem:[%s305 + $0x48] sm:$0xff] %vm755, %v1455
        %1472 = vst.msk [vmem:[%s305 + $0x50] sm:$0xff] %vm755, %v1456
        %1473 = vst.msk [vmem:[%s305 + $0x58] sm:$0xff] %vm755, %v1457
        %1474 = vst.msk [vmem:[%s305 + $0x60] sm:$0xff] %vm755, %v1458
        %1475 = vst.msk [vmem:[%s305 + $0x68] sm:$0xff] %vm755, %v1459
        %1476 = vst.msk [vmem:[%s305 + $0x70] sm:$0xff] %vm755, %v1460
        %1477 = vst.msk [vmem:[%s305 + $0x78] sm:$0xff] %vm755, %v1461
        %s1478 = sand.u32 %s169, 1
        %s1479 = scalar_lea.sflag [#allocation3], %s1478
        %s1480 = sand.u32 %s169, 1
        %s1481 = smul.addr %s1480, 128
        %s1482 = scalar_lea.vmem [#allocation2], %s1481
        // Predicated region
        $region41: #{resnet_generator_apply.15} parent=39 // pred_check
          %p1483 = pneg %p179
        $region42: #{resnet_generator_apply.15} parent=39 // pred_check_branch
          %1485 = sbr.rel (%p1483) target = $region44
        $region43: #{resnet_generator_apply.15} parent=39 // pred_region
          %s1486 = smul.u32 8, %s24
          %s1488 = ssub.s32 2048, 2048
          %1489 = vsyncadd %s1479, %s1488
          %s1490 = smul.addr %s1486, 2
          %s1491 = smul.addr %s23, 32
          %s1492 = sadd.s32 %s1490, %s1491
          %s1493 = smul.addr %s1492, 128
          %s1494 = scalar_lea.hbm %s5, %s1493
          %s1495 = sshll.u32 %s1482, 4
          %s1496 = int_to_ptr.vmem [resolvable:$true] %s1495
          %1501 = dma.vmem_to_hbm [thread:$0]  %s1496, 2048, %s1494, %s1479, 128, 128, 8
        $region44: #{resnet_generator_apply.15} parent=39 // pred_fallthru
          _
      $region40: #{resnet_generator_apply.15} parent=5 // pred_fallthru
        _
      %p1502 = scmp.le.s32.totalorder 2, %s14
      // Predicated region
      $region45: #{resnet_generator_apply.15} parent=5 // pred_check
        %p1503 = pneg %p1502
      $region46: #{resnet_generator_apply.15} parent=5 // pred_check_branch
        %1505 = sbr.rel (%p1503) target = $region48
      $region47: #{resnet_generator_apply.15} parent=5 // pred_region
        %s1506 = ssub.s32 %s14, 2
        // Predicated region
        $region49: #{resnet_generator_apply.15} parent=47 // pred_check
          %p1507 = pneg %p185
        $region50: #{resnet_generator_apply.15} parent=47 // pred_check_branch
          %1509 = sbr.rel (%p1507) target = $region52
        $region51: #{resnet_generator_apply.15} parent=47 // pred_region
          %s1510 = sand.u32 %s170, 1
          %s1511 = scalar_lea.sflag [#allocation3], %s1510
          %s1512 = sand.u32 %s170, 1
          %s1513 = smul.addr %s1512, 128
          %s1514 = scalar_lea.vmem [#allocation2], %s1513
          %1515 = dma.done %s1511, 2048
        $region52: #{resnet_generator_apply.15} parent=47 // pred_fallthru
          _
      $region48: #{resnet_generator_apply.15} parent=5 // pred_fallthru
        _
    $region6: #{resnet_generator_apply.15} parent=1 // loop_footer
      %s18 = sadd.s32 1, %s14
    $region7: #{resnet_generator_apply.15} parent=1 // loop_footer_branch
      %13 = sbr.rel target = $region3
    $region8: #{resnet_generator_apply.15} parent=1 // loop_exit
      _
    %1516 = vsyncpa [#allocation3], 1
    %s1517 = scalar_lea.sflag [#allocation3], 1
    %1518 = vsyncpa %s1517, 1

// kernel: resnet_generator_apply.9
$region0: #{resnet_generator_apply.9}
  #allocation0 [shape = 'u32[]', space=smem, size = 0x4, offset = 0x4, fixed_abs, tag = 'smem constant byte address 0x4 - core index']
  #allocation1 [shape = 'u32[144,128]{1,0:T(1,128)}', space=vmem, size = 0x12000, scoped, tag = 'internal scratch']
  %s0 = inlined_call_operand.vmem [shape: bf16[2,24,18,32], index: 0, kind: input, shape index: {}, may-alias: {0,1}]
  %s1 = inlined_call_operand.vmem [shape: bf16[2,24,18,32], index: 1, kind: input, shape index: {}, may-alias: {0,1}]
  %s2 = inlined_call_operand.vmem [shape: bf16[3,96,32], index: 2, kind: input, shape index: {}]
  %s3 = inlined_call_operand.vmem [shape: f32[1,32], index: 3, kind: input, shape index: {}]
  %s4 = inlined_call_operand.vmem [shape: bf16[2,16,16,32], index: 4, kind: output, shape index: {}]
  %s5 = sld [smem:[#allocation0]]
  $region49: #{resnet_generator_apply.9} parent=0
    _
  %s7 = ssub.s32 1, %s5
  %s8 = scalar_select 0, %s7, %s5
  loop: start=0, step=1, limit=6
  $region2: #{resnet_generator_apply.9} parent=0 // loop_pre_header
    _
  $region3: #{resnet_generator_apply.9} parent=0 // loop_header
    %s10 = sphi 0, %s14
    %p11 = scmp.ge.s32.totalorder %s10, 6
    %s17 = sphi 0, %s29
    %s18 = sphi 0, %s25
    %s19 = sphi 0, %s17
    %s20 = sphi 0, %s18
    %s21 = sphi 0, %s19
    %s22 = sphi 0, %s20
    %s34 = sphi 0, %s36
    %s37 = sphi 0, %s34
    %s38 = sphi 0, %s37
    %s54 = sphi 0, %s38
    %s64 = sphi 0, %s66
    %s67 = sphi 0, %s64
    %s68 = sphi 0, %s67
    %s84 = sphi 0, %s68
    %s88 = sphi 0, %s88
    %s90 = sphi 0, %s88
    %s91 = sphi 0, %s90
    %s105 = sphi 0, %s91
    %s109 = sphi 0, %s109
    %s111 = sphi 0, %s109
    %s112 = sphi 0, %s111
    %s126 = sphi 0, %s112
    %s134 = sphi 0, %s136
    %s137 = sphi 0, %s134
    %s138 = sphi 0, %s137
    %s154 = sphi 0, %s138
  $region4: #{resnet_generator_apply.9} parent=0 // loop_header_branch
    %13 = sbr.rel (%p11) target = $region8
  $region5: #{resnet_generator_apply.9} parent=0 // loop_body
    %s15 = ssub.s32 %s10, 1
    %s16 = ssub.s32 %s10, 2
    %s23 = sadd.s32 1, %s18
    %p24 = scmp.ge.s32.totalorder %s23, 2
    %s25 = scalar_select %p24, 0, %s23
    %s26 = sadd.s32 1, %s17
    %s27 = scalar_select %p24, %s26, %s17
    %p28 = scmp.ge.s32.totalorder %s27, 2
    %s29 = scalar_select %p28, 0, %s27
    %s30 = ssub.s32 %s17, %s29
    %s31 = ssub.s32 %s18, %s25
    %s32 = sor.u32 %s30, %s31
    %p33 = scmp.eq.s32.totalorder %s32, 0
    %s35 = sadd.s32 %s34, 1
    %s36 = scalar_select %p33, %s34, %s35
    %p39 = pneg %p33
    %p40 = scmp.eq.s32.totalorder %s10, 3
    %p41 = por %p39, %p40
    %p42 = scmp.ne.s32.totalorder %s34, %s37
    %p43 = scmp.eq.s32.totalorder %s10, 0
    %p44 = por %p42, %p43
    %p45 = scmp.ne.s32.totalorder %s34, %s37
    %p46 = scmp.eq.s32.totalorder %s15, 3
    %p47 = por %p45, %p46
    %p48 = scmp.ne.s32.totalorder %s37, %s38
    %p49 = scmp.eq.s32.totalorder %s15, 0
    %p50 = por %p48, %p49
    %p51 = scmp.ne.s32.totalorder %s37, %s38
    %p52 = scmp.eq.s32.totalorder %s16, 3
    %p53 = por %p51, %p52
    %p55 = scmp.ne.s32.totalorder %s38, %s54
    %p56 = scmp.eq.s32.totalorder %s16, 0
    %p57 = por %p55, %p56
    %s58 = sadd.s32 %s18, 1
    %s59 = sadd.s32 %s25, 1
    %s60 = ssub.s32 %s17, %s29
    %s61 = ssub.s32 %s58, %s59
    %s62 = sor.u32 %s60, %s61
    %p63 = scmp.eq.s32.totalorder %s62, 0
    %s65 = sadd.s32 %s64, 1
    %s66 = scalar_select %p63, %s64, %s65
    %p69 = pneg %p63
    %p70 = scmp.eq.s32.totalorder %s10, 3
    %p71 = por %p69, %p70
    %p72 = scmp.ne.s32.totalorder %s64, %s67
    %p73 = scmp.eq.s32.totalorder %s10, 0
    %p74 = por %p72, %p73
    %p75 = scmp.ne.s32.totalorder %s64, %s67
    %p76 = scmp.eq.s32.totalorder %s15, 3
    %p77 = por %p75, %p76
    %p78 = scmp.ne.s32.totalorder %s67, %s68
    %p79 = scmp.eq.s32.totalorder %s15, 0
    %p80 = por %p78, %p79
    %p81 = scmp.ne.s32.totalorder %s67, %s68
    %p82 = scmp.eq.s32.totalorder %s16, 3
    %p83 = por %p81, %p82
    %p85 = scmp.ne.s32.totalorder %s68, %s84
    %p86 = scmp.eq.s32.totalorder %s16, 0
    %p87 = por %p85, %p86
    %s89 = sadd.s32 %s88, 1
    %p92 = scmp.eq.s32.totalorder %s10, 3
    %p93 = scmp.ne.s32.totalorder %s88, %s90
    %p94 = scmp.eq.s32.totalorder %s10, 0
    %p95 = por %p93, %p94
    %p96 = scmp.ne.s32.totalorder %s88, %s90
    %p97 = scmp.eq.s32.totalorder %s15, 3
    %p98 = por %p96, %p97
    %p99 = scmp.ne.s32.totalorder %s90, %s91
    %p100 = scmp.eq.s32.totalorder %s15, 0
    %p101 = por %p99, %p100
    %p102 = scmp.ne.s32.totalorder %s90, %s91
    %p103 = scmp.eq.s32.totalorder %s16, 3
    %p104 = por %p102, %p103
    %p106 = scmp.ne.s32.totalorder %s91, %s105
    %p107 = scmp.eq.s32.totalorder %s16, 0
    %p108 = por %p106, %p107
    %s110 = sadd.s32 %s109, 1
    %p113 = scmp.eq.s32.totalorder %s10, 3
    %p114 = scmp.ne.s32.totalorder %s109, %s111
    %p115 = scmp.eq.s32.totalorder %s10, 0
    %p116 = por %p114, %p115
    %p117 = scmp.ne.s32.totalorder %s109, %s111
    %p118 = scmp.eq.s32.totalorder %s15, 3
    %p119 = por %p117, %p118
    %p120 = scmp.ne.s32.totalorder %s111, %s112
    %p121 = scmp.eq.s32.totalorder %s15, 0
    %p122 = por %p120, %p121
    %p123 = scmp.ne.s32.totalorder %s111, %s112
    %p124 = scmp.eq.s32.totalorder %s16, 3
    %p125 = por %p123, %p124
    %p127 = scmp.ne.s32.totalorder %s112, %s126
    %p128 = scmp.eq.s32.totalorder %s16, 0
    %p129 = por %p127, %p128
    %s130 = ssub.s32 %s17, %s29
    %s131 = ssub.s32 %s18, %s25
    %s132 = sor.u32 %s130, %s131
    %p133 = scmp.eq.s32.totalorder %s132, 0
    %s135 = sadd.s32 %s134, 1
    %s136 = scalar_select %p133, %s134, %s135
    %p139 = pneg %p133
    %p140 = scmp.eq.s32.totalorder %s10, 3
    %p141 = por %p139, %p140
    %p142 = scmp.ne.s32.totalorder %s134, %s137
    %p143 = scmp.eq.s32.totalorder %s10, 0
    %p144 = por %p142, %p143
    %p145 = scmp.ne.s32.totalorder %s134, %s137
    %p146 = scmp.eq.s32.totalorder %s15, 3
    %p147 = por %p145, %p146
    %p148 = scmp.ne.s32.totalorder %s137, %s138
    %p149 = scmp.eq.s32.totalorder %s15, 0
    %p150 = por %p148, %p149
    %p151 = scmp.ne.s32.totalorder %s137, %s138
    %p152 = scmp.eq.s32.totalorder %s16, 3
    %p153 = por %p151, %p152
    %p155 = scmp.ne.s32.totalorder %s138, %s154
    %p156 = scmp.eq.s32.totalorder %s16, 0
    %p157 = por %p155, %p156
    %p158 = scmp.le.s32.totalorder 1, %s10
    %p159 = scmp.lt.s32.totalorder %s10, 5
    %p160 = pnand %p158, %p159
    %p161 = pneg %p160
    // Predicated region
    $region9: #{resnet_generator_apply.9} parent=5 // pred_check
      _
    $region10: #{resnet_generator_apply.9} parent=5 // pred_check_branch
      %163 = sbr.rel (%p160) target = $region12
    $region11: #{resnet_generator_apply.9} parent=5 // pred_region
      %s164 = ssub.s32 %s10, 1
      // Predicated region
      $region13: #{resnet_generator_apply.9} parent=11 // pred_check
        %p165 = pneg %p101
      $region14: #{resnet_generator_apply.9} parent=11 // pred_check_branch
        %167 = sbr.rel (%p165) target = $region16
      $region15: #{resnet_generator_apply.9} parent=11 // pred_region
        _
      $region16: #{resnet_generator_apply.9} parent=11 // pred_fallthru
        _
      // Predicated region
      $region17: #{resnet_generator_apply.9} parent=11 // pred_check
        %p168 = pneg %p122
      $region18: #{resnet_generator_apply.9} parent=11 // pred_check_branch
        %170 = sbr.rel (%p168) target = $region20
      $region19: #{resnet_generator_apply.9} parent=11 // pred_region
        _
      $region20: #{resnet_generator_apply.9} parent=11 // pred_fallthru
        _
    $region12: #{resnet_generator_apply.9} parent=5 // pred_fallthru
      _
    %p171 = scmp.lt.s32.totalorder %s10, 4
    // Predicated region
    $region21: #{resnet_generator_apply.9} parent=5 // pred_check
      %p172 = pneg %p171
    $region22: #{resnet_generator_apply.9} parent=5 // pred_check_branch
      %174 = sbr.rel (%p172) target = $region24
    $region23: #{resnet_generator_apply.9} parent=5 // pred_region
      // Predicated region
      $region25: #{resnet_generator_apply.9} parent=23 // pred_check
        %p175 = pneg %p44
      $region26: #{resnet_generator_apply.9} parent=23 // pred_check_branch
        %177 = sbr.rel (%p175) target = $region28
      $region27: #{resnet_generator_apply.9} parent=23 // pred_region
        %s178 = smul.u32 8, %s18
        %p179 = scmp.lt.s32.totalorder %s17, 1
        %s180 = scalar_select %p179, %s17, 1
        %p181 = scmp.lt.s32.totalorder %s178, 23
        %s182 = scalar_select %p181, %s178, 23
        %s183 = smul.addr %s182, 3
        %s184 = smul.addr %s180, 72
        %s185 = sadd.s32 %s183, %s184
        %s186 = smul.addr %s185, 4
        %s187 = scalar_lea.vmem %s0, %s186
        %s188 = smul.u32 8, %s18
      $region28: #{resnet_generator_apply.9} parent=23 // pred_fallthru
        _
      // Predicated region
      $region29: #{resnet_generator_apply.9} parent=23 // pred_check
        %p189 = pneg %p74
      $region30: #{resnet_generator_apply.9} parent=23 // pred_check_branch
        %191 = sbr.rel (%p189) target = $region32
      $region31: #{resnet_generator_apply.9} parent=23 // pred_region
        %s192 = sadd.s32 %s18, 1
        %s193 = smul.u32 8, %s192
        %p194 = scmp.lt.s32.totalorder %s17, 1
        %s195 = scalar_select %p194, %s17, 1
        %p196 = scmp.lt.s32.totalorder %s193, 23
        %s197 = scalar_select %p196, %s193, 23
        %s198 = smul.addr %s197, 3
        %s199 = smul.addr %s195, 72
        %s200 = sadd.s32 %s198, %s199
        %s201 = smul.addr %s200, 4
        %s202 = scalar_lea.vmem %s1, %s201
        %s203 = sadd.s32 %s18, 1
        %s204 = smul.u32 8, %s203
      $region32: #{resnet_generator_apply.9} parent=23 // pred_fallthru
        _
    $region24: #{resnet_generator_apply.9} parent=5 // pred_fallthru
      _
    %p205 = scmp.le.s32.totalorder 1, %s10
    %p206 = scmp.lt.s32.totalorder %s10, 5
    %p207 = pnand %p205, %p206
    %p208 = pneg %p207
    // Predicated region
    $region33: #{resnet_generator_apply.9} parent=5 // pred_check
      _
    $region34: #{resnet_generator_apply.9} parent=5 // pred_check_branch
      %210 = sbr.rel (%p207) target = $region36
    $region35: #{resnet_generator_apply.9} parent=5 // pred_region
      %s211 = ssub.s32 %s10, 1
      %s212 = smul.u32 8, %s20
      %p213 = scmp.lt.s32.totalorder %s19, 1
      %s214 = scalar_select %p213, %s19, 1
      %p215 = scmp.lt.s32.totalorder %s212, 23
      %s216 = scalar_select %p215, %s212, 23
      %s217 = smul.addr %s216, 3
      %s218 = smul.addr %s214, 72
      %s219 = sadd.s32 %s217, %s218
      %s220 = smul.addr %s219, 4
      %s221 = scalar_lea.vmem %s0, %s220
      %p222 = pneg %p50
      %p223 = pneg %p47
      %s224 = sadd.s32 %s20, 1
      %s225 = smul.u32 8, %s224
      %p226 = scmp.lt.s32.totalorder %s19, 1
      %s227 = scalar_select %p226, %s19, 1
      %p228 = scmp.lt.s32.totalorder %s225, 23
      %s229 = scalar_select %p228, %s225, 23
      %s230 = smul.addr %s229, 3
      %s231 = smul.addr %s227, 72
      %s232 = sadd.s32 %s230, %s231
      %s233 = smul.addr %s232, 4
      %s234 = scalar_lea.vmem %s1, %s233
      %p235 = pneg %p80
      %p236 = pneg %p77
      %p237 = pneg %p101
      %p238 = pneg %p98
      %p239 = pneg %p122
      %p240 = pneg %p119
      %p241 = pneg %p150
      %p242 = pneg %p147
      %s243 = smul.u32 8, %s20
      %p244 = scmp.lt.s32.totalorder %s19, 1
      %s245 = scalar_select %p244, %s19, 1
      %p246 = scmp.lt.s32.totalorder %s243, 15
      %s247 = scalar_select %p246, %s243, 15
      %s248 = smul.addr %s247, 2
      %s249 = smul.addr %s245, 32
      %s250 = sadd.s32 %s248, %s249
      %s251 = smul.addr %s250, 4
      %s252 = scalar_lea.vmem %s4, %s251
      %s253 = smul.u32 8, %s20
      %p254 = scmp.lt.s32.totalorder %s19, 1
      %s255 = scalar_select %p254, %s19, 1
      %p256 = scmp.lt.s32.totalorder %s253, 23
      %s257 = scalar_select %p256, %s253, 23
      %s258 = smul.addr %s257, 3
      %s259 = smul.addr %s255, 72
      %s260 = sadd.s32 %s258, %s259
      %s261 = smul.addr %s260, 4
      %s262 = scalar_lea.vmem %s0, %s261
      %s263 = smul.u32 8, %s20
      %s264 = sadd.s32 %s20, 1
      %s265 = smul.u32 8, %s264
      %p266 = scmp.lt.s32.totalorder %s19, 1
      %s267 = scalar_select %p266, %s19, 1
      %p268 = scmp.lt.s32.totalorder %s265, 23
      %s269 = scalar_select %p268, %s265, 23
      %s270 = smul.addr %s269, 3
      %s271 = smul.addr %s267, 72
      %s272 = sadd.s32 %s270, %s271
      %s273 = smul.addr %s272, 4
      %s274 = scalar_lea.vmem %s1, %s273
      %s275 = sadd.s32 %s20, 1
      %s276 = smul.u32 8, %s275
      %s277 = smul.u32 8, %s20
      %p278 = scmp.lt.s32.totalorder %s19, 1
      %s279 = scalar_select %p278, %s19, 1
      %p280 = scmp.lt.s32.totalorder %s277, 15
      %s281 = scalar_select %p280, %s277, 15
      %s282 = smul.addr %s281, 2
      %s283 = smul.addr %s279, 32
      %s284 = sadd.s32 %s282, %s283
      %s285 = smul.addr %s284, 4
      %s286 = scalar_lea.vmem %s4, %s285
      %s287 = smul.u32 8, %s20
      %v289 = vld [vmem:[%s262] sm:$0xf]
      %v290 = vld [vmem:[%s262 + $0x4] sm:$0xf]
      %v291 = vld [vmem:[%s262 + $0x8] sm:$0x1]
      %v292 = vld [vmem:[%s262 + $0xc] sm:$0xf]
      %v293 = vld [vmem:[%s262 + $0x10] sm:$0xf]
      %v294 = vld [vmem:[%s262 + $0x14] sm:$0x1]
      %v295 = vld [vmem:[%s262 + $0x18] sm:$0xf]
      %v296 = vld [vmem:[%s262 + $0x1c] sm:$0xf]
      %v297 = vld [vmem:[%s262 + $0x20] sm:$0x1]
      %v298 = vld [vmem:[%s262 + $0x24] sm:$0xf]
      %v299 = vld [vmem:[%s262 + $0x28] sm:$0xf]
      %v300 = vld [vmem:[%s262 + $0x2c] sm:$0x1]
      %v301 = vld [vmem:[%s262 + $0x30] sm:$0xf]
      %v302 = vld [vmem:[%s262 + $0x34] sm:$0xf]
      %v303 = vld [vmem:[%s262 + $0x38] sm:$0x1]
      %v304 = vld [vmem:[%s262 + $0x3c] sm:$0xf]
      %v305 = vld [vmem:[%s262 + $0x40] sm:$0xf]
      %v306 = vld [vmem:[%s262 + $0x44] sm:$0x1]
      %v307 = vld [vmem:[%s262 + $0x48] sm:$0xf]
      %v308 = vld [vmem:[%s262 + $0x4c] sm:$0xf]
      %v309 = vld [vmem:[%s262 + $0x50] sm:$0x1]
      %v310 = vld [vmem:[%s262 + $0x54] sm:$0xf]
      %v311 = vld [vmem:[%s262 + $0x58] sm:$0xf]
      %v312 = vld [vmem:[%s262 + $0x5c] sm:$0x1]
      %v313 = vld [vmem:[%s274] sm:$0xf]
      %v314 = vld [vmem:[%s274 + $0x4] sm:$0xf]
      %v315 = vld [vmem:[%s274 + $0x8] sm:$0x1]
      %v316 = vld [vmem:[%s274 + $0xc] sm:$0xf]
      %v317 = vld [vmem:[%s274 + $0x10] sm:$0xf]
      %v318 = vld [vmem:[%s274 + $0x14] sm:$0x1]
      %vm319 = vsmask.f32 3328
      %vm320 = vsmask.f32 7440
      %vm321 = vmor %vm319, %vm320
      %v323 = vshrl.u32 %v289, 16
      %v325 = vrot.slane %v323, 4
      %v326 = vshll.u32 %v289, 16
      %v328 = vrot.slane %v326, 5
      %v329 = vor.u32 %v325, %v328
      %v330 = vrot.slane %v329, 4
      %v332 = vshll.u32 %v290, 16
      %v334 = vrot.slane %v332, 5
      %v335 = vsel %vm321, %v330, %v334
      %v336 = vshrl.u32 %v290, 16
      %v338 = vrot.slane %v336, 4
      %v339 = vor.u32 %v338, %v334
      %v340 = vrot.slane %v339, 4
      %v342 = vshll.u32 %v291, 16
      %v344 = vrot.slane %v342, 5
      %v345 = vsel %vm321, %v340, %v344
      %v347 = vshrl.u32 %v292, 16
      %v349 = vrot.slane %v347, 4
      %v350 = vshll.u32 %v292, 16
      %v352 = vrot.slane %v350, 5
      %v353 = vor.u32 %v349, %v352
      %v354 = vrot.slane %v353, 4
      %v356 = vshll.u32 %v293, 16
      %v358 = vrot.slane %v356, 5
      %v359 = vsel %vm321, %v354, %v358
      %v360 = vshrl.u32 %v293, 16
      %v362 = vrot.slane %v360, 4
      %v363 = vor.u32 %v362, %v358
      %v364 = vrot.slane %v363, 4
      %v366 = vshll.u32 %v294, 16
      %v368 = vrot.slane %v366, 5
      %v369 = vsel %vm321, %v364, %v368
      %v371 = vshrl.u32 %v295, 16
      %v373 = vrot.slane %v371, 4
      %v374 = vshll.u32 %v295, 16
      %v376 = vrot.slane %v374, 5
      %v377 = vor.u32 %v373, %v376
      %v378 = vrot.slane %v377, 4
      %v380 = vshll.u32 %v296, 16
      %v382 = vrot.slane %v380, 5
      %v383 = vsel %vm321, %v378, %v382
      %v384 = vshrl.u32 %v296, 16
      %v386 = vrot.slane %v384, 4
      %v387 = vor.u32 %v386, %v382
      %v388 = vrot.slane %v387, 4
      %v390 = vshll.u32 %v297, 16
      %v392 = vrot.slane %v390, 5
      %v393 = vsel %vm321, %v388, %v392
      %v395 = vshrl.u32 %v298, 16
      %v397 = vrot.slane %v395, 4
      %v398 = vshll.u32 %v298, 16
      %v400 = vrot.slane %v398, 5
      %v401 = vor.u32 %v397, %v400
      %v402 = vrot.slane %v401, 4
      %v404 = vshll.u32 %v299, 16
      %v406 = vrot.slane %v404, 5
      %v407 = vsel %vm321, %v402, %v406
      %v408 = vshrl.u32 %v299, 16
      %v410 = vrot.slane %v408, 4
      %v411 = vor.u32 %v410, %v406
      %v412 = vrot.slane %v411, 4
      %v414 = vshll.u32 %v300, 16
      %v416 = vrot.slane %v414, 5
      %v417 = vsel %vm321, %v412, %v416
      %v419 = vshrl.u32 %v301, 16
      %v421 = vrot.slane %v419, 4
      %v422 = vshll.u32 %v301, 16
      %v424 = vrot.slane %v422, 5
      %v425 = vor.u32 %v421, %v424
      %v426 = vrot.slane %v425, 4
      %v428 = vshll.u32 %v302, 16
      %v430 = vrot.slane %v428, 5
      %v431 = vsel %vm321, %v426, %v430
      %v432 = vshrl.u32 %v302, 16
      %v434 = vrot.slane %v432, 4
      %v435 = vor.u32 %v434, %v430
      %v436 = vrot.slane %v435, 4
      %v438 = vshll.u32 %v303, 16
      %v440 = vrot.slane %v438, 5
      %v441 = vsel %vm321, %v436, %v440
      %v443 = vshrl.u32 %v304, 16
      %v445 = vrot.slane %v443, 4
      %v446 = vshll.u32 %v304, 16
      %v448 = vrot.slane %v446, 5
      %v449 = vor.u32 %v445, %v448
      %v450 = vrot.slane %v449, 4
      %v452 = vshll.u32 %v305, 16
      %v454 = vrot.slane %v452, 5
      %v455 = vsel %vm321, %v450, %v454
      %v456 = vshrl.u32 %v305, 16
      %v458 = vrot.slane %v456, 4
      %v459 = vor.u32 %v458, %v454
      %v460 = vrot.slane %v459, 4
      %v462 = vshll.u32 %v306, 16
      %v464 = vrot.slane %v462, 5
      %v465 = vsel %vm321, %v460, %v464
      %v467 = vshrl.u32 %v307, 16
      %v469 = vrot.slane %v467, 4
      %v470 = vshll.u32 %v307, 16
      %v472 = vrot.slane %v470, 5
      %v473 = vor.u32 %v469, %v472
      %v474 = vrot.slane %v473, 4
      %v476 = vshll.u32 %v308, 16
      %v478 = vrot.slane %v476, 5
      %v479 = vsel %vm321, %v474, %v478
      %v480 = vshrl.u32 %v308, 16
      %v482 = vrot.slane %v480, 4
      %v483 = vor.u32 %v482, %v478
      %v484 = vrot.slane %v483, 4
      %v486 = vshll.u32 %v309, 16
      %v488 = vrot.slane %v486, 5
      %v489 = vsel %vm321, %v484, %v488
      %v491 = vshrl.u32 %v310, 16
      %v493 = vrot.slane %v491, 4
      %v494 = vshll.u32 %v310, 16
      %v496 = vrot.slane %v494, 5
      %v497 = vor.u32 %v493, %v496
      %v498 = vrot.slane %v497, 4
      %v500 = vshll.u32 %v311, 16
      %v502 = vrot.slane %v500, 5
      %v503 = vsel %vm321, %v498, %v502
      %v504 = vshrl.u32 %v311, 16
      %v506 = vrot.slane %v504, 4
      %v507 = vor.u32 %v506, %v502
      %v508 = vrot.slane %v507, 4
      %v510 = vshll.u32 %v312, 16
      %v512 = vrot.slane %v510, 5
      %v513 = vsel %vm321, %v508, %v512
      %vm538 = vcmask 1042432
      %vm539 = vcmask 1046532
      %vm540 = vmor %vm538, %vm539
      %v541 = vrot.slane %v289, 5
      %v542 = vrot.slane %v541, 4
      %v543 = vrot.slane %v290, 5
      %v544 = vsel %vm540, %v542, %v543
      %v545 = vrot.slane %v543, 4
      %v546 = vrot.slane %v291, 5
      %v547 = vsel %vm540, %v545, %v546
      %v548 = vrot.slane %v292, 5
      %v549 = vrot.slane %v548, 4
      %v550 = vrot.slane %v293, 5
      %v551 = vsel %vm540, %v549, %v550
      %v552 = vrot.slane %v550, 4
      %v553 = vrot.slane %v294, 5
      %v554 = vsel %vm540, %v552, %v553
      %v555 = vrot.slane %v295, 5
      %v556 = vrot.slane %v555, 4
      %v557 = vrot.slane %v296, 5
      %v558 = vsel %vm540, %v556, %v557
      %v559 = vrot.slane %v557, 4
      %v560 = vrot.slane %v297, 5
      %v561 = vsel %vm540, %v559, %v560
      %v562 = vrot.slane %v298, 5
      %v563 = vrot.slane %v562, 4
      %v564 = vrot.slane %v299, 5
      %v565 = vsel %vm540, %v563, %v564
      %v566 = vrot.slane %v564, 4
      %v567 = vrot.slane %v300, 5
      %v568 = vsel %vm540, %v566, %v567
      %v569 = vrot.slane %v301, 5
      %v570 = vrot.slane %v569, 4
      %v571 = vrot.slane %v302, 5
      %v572 = vsel %vm540, %v570, %v571
      %v573 = vrot.slane %v571, 4
      %v574 = vrot.slane %v303, 5
      %v575 = vsel %vm540, %v573, %v574
      %v576 = vrot.slane %v304, 5
      %v577 = vrot.slane %v576, 4
      %v578 = vrot.slane %v305, 5
      %v579 = vsel %vm540, %v577, %v578
      %v580 = vrot.slane %v578, 4
      %v581 = vrot.slane %v306, 5
      %v582 = vsel %vm540, %v580, %v581
      %v583 = vrot.slane %v307, 5
      %v584 = vrot.slane %v583, 4
      %v585 = vrot.slane %v308, 5
      %v586 = vsel %vm540, %v584, %v585
      %v587 = vrot.slane %v585, 4
      %v588 = vrot.slane %v309, 5
      %v589 = vsel %vm540, %v587, %v588
      %v590 = vrot.slane %v310, 5
      %v591 = vrot.slane %v590, 4
      %v592 = vrot.slane %v311, 5
      %v593 = vsel %vm540, %v591, %v592
      %v594 = vrot.slane %v592, 4
      %v595 = vrot.slane %v312, 5
      %v596 = vsel %vm540, %v594, %v595
      %v597 = vunpack.c.l.b16 %v289
      %v598 = vunpack.c.l.b16 %v290
      %v599 = vunpack.c.l.b16 %v292
      %v600 = vunpack.c.l.b16 %v293
      %v601 = vunpack.c.l.b16 %v295
      %v602 = vunpack.c.l.b16 %v296
      %v603 = vunpack.c.l.b16 %v298
      %v604 = vunpack.c.l.b16 %v299
      %v605 = vunpack.c.l.b16 %v301
      %v606 = vunpack.c.l.b16 %v302
      %v607 = vunpack.c.l.b16 %v304
      %v608 = vunpack.c.l.b16 %v305
      %v609 = vunpack.c.l.b16 %v307
      %v610 = vunpack.c.l.b16 %v308
      %v611 = vunpack.c.l.b16 %v310
      %v612 = vunpack.c.l.b16 %v311
      %v613 = vpack.c.b16 %v598, %v597
      %v614 = vpack.c.b16 %v600, %v599
      %v615 = vpack.c.b16 %v602, %v601
      %v616 = vpack.c.b16 %v604, %v603
      %v617 = vpack.c.b16 %v606, %v605
      %v618 = vpack.c.b16 %v608, %v607
      %v619 = vpack.c.b16 %v610, %v609
      %v620 = vpack.c.b16 %v612, %v611
      %v621 = vunpack.c.l.b16 %v335
      %v622 = vunpack.c.l.b16 %v345
      %v623 = vunpack.c.l.b16 %v359
      %v624 = vunpack.c.l.b16 %v369
      %v625 = vunpack.c.l.b16 %v383
      %v626 = vunpack.c.l.b16 %v393
      %v627 = vunpack.c.l.b16 %v407
      %v628 = vunpack.c.l.b16 %v417
      %v629 = vunpack.c.l.b16 %v431
      %v630 = vunpack.c.l.b16 %v441
      %v631 = vunpack.c.l.b16 %v455
      %v632 = vunpack.c.l.b16 %v465
      %v633 = vunpack.c.l.b16 %v479
      %v634 = vunpack.c.l.b16 %v489
      %v635 = vunpack.c.l.b16 %v503
      %v636 = vunpack.c.l.b16 %v513
      %v637 = vpack.c.b16 %v622, %v621
      %v638 = vpack.c.b16 %v624, %v623
      %v639 = vpack.c.b16 %v626, %v625
      %v640 = vpack.c.b16 %v628, %v627
      %v641 = vpack.c.b16 %v630, %v629
      %v642 = vpack.c.b16 %v632, %v631
      %v643 = vpack.c.b16 %v634, %v633
      %v644 = vpack.c.b16 %v636, %v635
      %645 = vrot.lane.b32.xlu0 %v637, 32
      %v646 = vpop.permute.xlu0 %645
      %647 = vrot.lane.b32.xlu0 %v638, 32
      %v648 = vpop.permute.xlu0 %647
      %649 = vrot.lane.b32.xlu0 %v639, 32
      %v650 = vpop.permute.xlu0 %649
      %651 = vrot.lane.b32.xlu0 %v640, 32
      %v652 = vpop.permute.xlu0 %651
      %653 = vrot.lane.b32.xlu0 %v641, 32
      %v654 = vpop.permute.xlu0 %653
      %655 = vrot.lane.b32.xlu0 %v642, 32
      %v656 = vpop.permute.xlu0 %655
      %657 = vrot.lane.b32.xlu0 %v643, 32
      %v658 = vpop.permute.xlu0 %657
      %659 = vrot.lane.b32.xlu0 %v644, 32
      %v660 = vpop.permute.xlu0 %659
      %v661 = vunpack.c.l.b16 %v544
      %v662 = vunpack.c.l.b16 %v547
      %v663 = vunpack.c.l.b16 %v551
      %v664 = vunpack.c.l.b16 %v554
      %v665 = vunpack.c.l.b16 %v558
      %v666 = vunpack.c.l.b16 %v561
      %v667 = vunpack.c.l.b16 %v565
      %v668 = vunpack.c.l.b16 %v568
      %v669 = vunpack.c.l.b16 %v572
      %v670 = vunpack.c.l.b16 %v575
      %v671 = vunpack.c.l.b16 %v579
      %v672 = vunpack.c.l.b16 %v582
      %v673 = vunpack.c.l.b16 %v586
      %v674 = vunpack.c.l.b16 %v589
      %v675 = vunpack.c.l.b16 %v593
      %v676 = vunpack.c.l.b16 %v596
      %v677 = vpack.c.b16 %v662, %v661
      %v678 = vpack.c.b16 %v664, %v663
      %v679 = vpack.c.b16 %v666, %v665
      %v680 = vpack.c.b16 %v668, %v667
      %v681 = vpack.c.b16 %v670, %v669
      %v682 = vpack.c.b16 %v672, %v671
      %v683 = vpack.c.b16 %v674, %v673
      %v684 = vpack.c.b16 %v676, %v675
      %685 = vrot.lane.b32.xlu0 %v677, 64
      %v686 = vpop.permute.xlu0 %685
      %687 = vrot.lane.b32.xlu0 %v678, 64
      %v688 = vpop.permute.xlu0 %687
      %689 = vrot.lane.b32.xlu0 %v679, 64
      %v690 = vpop.permute.xlu0 %689
      %691 = vrot.lane.b32.xlu0 %v680, 64
      %v692 = vpop.permute.xlu0 %691
      %693 = vrot.lane.b32.xlu0 %v681, 64
      %v694 = vpop.permute.xlu0 %693
      %695 = vrot.lane.b32.xlu0 %v682, 64
      %v696 = vpop.permute.xlu0 %695
      %697 = vrot.lane.b32.xlu0 %v683, 64
      %v698 = vpop.permute.xlu0 %697
      %699 = vrot.lane.b32.xlu0 %v684, 64
      %v700 = vpop.permute.xlu0 %699
      %vm701 = vcmask 261120
      %v704 = vsel %vm701, %v613, %v646
      %v707 = vsel %vm701, %v614, %v648
      %v710 = vsel %vm701, %v615, %v650
      %v713 = vsel %vm701, %v616, %v652
      %v716 = vsel %vm701, %v617, %v654
      %v719 = vsel %vm701, %v618, %v656
      %v722 = vsel %vm701, %v619, %v658
      %v725 = vsel %vm701, %v620, %v660
      %vm726 = vcmask 523264
      %v728 = vsel %vm726, %v704, %v686
      %v730 = vsel %vm726, %v707, %v688
      %v732 = vsel %vm726, %v710, %v690
      %v734 = vsel %vm726, %v713, %v692
      %v736 = vsel %vm726, %v716, %v694
      %v738 = vsel %vm726, %v719, %v696
      %v740 = vsel %vm726, %v722, %v698
      %v742 = vsel %vm726, %v725, %v700
      %v743 = vld [vmem:[%s2] sm:$0xf]
      %v744 = vld [vmem:[%s2 + $0x4] sm:$0xf]
      %v745 = vld [vmem:[%s2 + $0x8] sm:$0xf]
      %v746 = vld [vmem:[%s2 + $0xc] sm:$0xf]
      %v747 = vld [vmem:[%s2 + $0x10] sm:$0xf]
      %v748 = vld [vmem:[%s2 + $0x14] sm:$0xf]
      %v749 = vld [vmem:[%s2 + $0x18] sm:$0xf]
      %v750 = vld [vmem:[%s2 + $0x1c] sm:$0xf]
      %v751 = vld [vmem:[%s2 + $0x20] sm:$0xf]
      %v752 = vld [vmem:[%s2 + $0x24] sm:$0xf]
      %v753 = vld [vmem:[%s2 + $0x28] sm:$0xf]
      %v754 = vld [vmem:[%s2 + $0x2c] sm:$0xf]
      %v756 = vshrl.u32 %v313, 16
      %v758 = vrot.slane %v756, 4
      %v759 = vshll.u32 %v313, 16
      %v761 = vrot.slane %v759, 5
      %v762 = vor.u32 %v758, %v761
      %v763 = vrot.slane %v762, 4
      %v765 = vshll.u32 %v314, 16
      %v767 = vrot.slane %v765, 5
      %v768 = vsel %vm321, %v763, %v767
      %v769 = vshrl.u32 %v314, 16
      %v771 = vrot.slane %v769, 4
      %v772 = vor.u32 %v771, %v767
      %v773 = vrot.slane %v772, 4
      %v775 = vshll.u32 %v315, 16
      %v777 = vrot.slane %v775, 5
      %v778 = vsel %vm321, %v773, %v777
      %v782 = vrot.slane %v313, 5
      %v783 = vrot.slane %v782, 4
      %v784 = vrot.slane %v314, 5
      %v785 = vsel %vm540, %v783, %v784
      %v786 = vrot.slane %v784, 4
      %v787 = vrot.slane %v315, 5
      %v788 = vsel %vm540, %v786, %v787
      %v789 = vunpack.c.l.b16 %v313
      %v790 = vunpack.c.l.b16 %v314
      %v791 = vpack.c.b16 %v790, %v789
      %v792 = vunpack.c.l.b16 %v768
      %v793 = vunpack.c.l.b16 %v778
      %v794 = vpack.c.b16 %v793, %v792
      %795 = vrot.lane.b32.xlu0 %v794, 32
      %v796 = vpop.permute.xlu0 %795
      %v797 = vunpack.c.l.b16 %v785
      %v798 = vunpack.c.l.b16 %v788
      %v799 = vpack.c.b16 %v798, %v797
      %800 = vrot.lane.b32.xlu0 %v799, 64
      %v801 = vpop.permute.xlu0 %800
      %v804 = vsel %vm701, %v791, %v796
      %v806 = vsel %vm726, %v804, %v801
      %s807 = scalar_lea.vmem %s2, 48
      %v808 = vld [vmem:[%s807] sm:$0xf]
      %v809 = vld [vmem:[%s807 + $0x4] sm:$0xf]
      %v810 = vld [vmem:[%s807 + $0x8] sm:$0xf]
      %v811 = vld [vmem:[%s807 + $0xc] sm:$0xf]
      %v812 = vld [vmem:[%s807 + $0x10] sm:$0xf]
      %v813 = vld [vmem:[%s807 + $0x14] sm:$0xf]
      %v814 = vld [vmem:[%s807 + $0x18] sm:$0xf]
      %v815 = vld [vmem:[%s807 + $0x1c] sm:$0xf]
      %v816 = vld [vmem:[%s807 + $0x20] sm:$0xf]
      %v817 = vld [vmem:[%s807 + $0x24] sm:$0xf]
      %v818 = vld [vmem:[%s807 + $0x28] sm:$0xf]
      %v819 = vld [vmem:[%s807 + $0x2c] sm:$0xf]
      %v832 = vunpack.c.l.b16 %v808
      %v833 = vunpack.c.l.b16 %v809
      %v834 = vunpack.c.l.b16 %v810
      %v835 = vunpack.c.l.b16 %v811
      %v836 = vunpack.c.l.b16 %v812
      %v837 = vunpack.c.l.b16 %v813
      %v838 = vunpack.c.l.b16 %v814
      %v839 = vunpack.c.l.b16 %v815
      %v840 = vunpack.c.l.b16 %v816
      %v841 = vunpack.c.l.b16 %v817
      %v842 = vunpack.c.l.b16 %v818
      %v843 = vunpack.c.l.b16 %v819
      %v844 = vpack.c.b16 %v833, %v832
      %v845 = vpack.c.b16 %v835, %v834
      %v846 = vpack.c.b16 %v837, %v836
      %v847 = vpack.c.b16 %v839, %v838
      %v848 = vpack.c.b16 %v841, %v840
      %v849 = vpack.c.b16 %v843, %v842
      %vm856 = vcmask 785408
      %v857 = vsel %vm856, %v730, 0
      %v859 = vsel %vm856, %v732, 0
      %v861 = vsel %vm856, %v734, 0
      %v863 = vsel %vm856, %v736, 0
      %v865 = vsel %vm856, %v738, 0
      %v867 = vsel %vm856, %v740, 0
      %v869 = vsel %vm856, %v742, 0
      %v871 = vsel %vm856, %v806, 0
      %873 = vmatprep.subr.bf16.mxu0 0
      %874 = vmatpush1.bf16.msra.mxu0 %v844
      %875 = vmatprep.subr.bf16.mxu0 0
      %876 = vmatpush1.bf16.msra.mxu0 %v845
      %877 = vmatprep.subr.bf16.mxu0 0
      %878 = vmatpush1.bf16.msra.mxu0 %v846
      %879 = vmatprep.subr.bf16.mxu0 0
      %880 = vmatpush1.bf16.msra.mxu0 %v847
      %881 = vmatprep.subr.bf16.mxu0 0
      %882 = vmatpush1.bf16.msra.mxu0 %v848
      %883 = vmatprep.subr.bf16.mxu0 0
      %884 = vmatpush1.bf16.msra.mxu0 %v849
      %885 = vmatprep.subr.bf16.mxu0 0
      %886 = vmatpush1.bf16.msra.mxu0 0
      %887 = vmatprep.subr.bf16.mxu0 0
      %888 = vmatpush1.bf16.msra.mxu0 0
      %889 = vmatprep.subr.bf16.mxu0 0
      %890 = vmatpush1.bf16.msra.mxu0 0
      %891 = vmatprep.subr.bf16.mxu0 0
      %892 = vmatpush1.bf16.msra.mxu0 0
      %893 = vmatprep.subr.bf16.mxu0 0
      %894 = vmatpush1.bf16.msra.mxu0 0
      %895 = vmatprep.subr.bf16.mxu0 0
      %896 = vmatpush1.bf16.msra.mxu0 0
      %897 = vmatprep.subr.bf16.mxu0 0
      %898 = vmatpush1.bf16.msra.mxu0 0
      %899 = vmatprep.subr.bf16.mxu0 0
      %900 = vmatpush1.bf16.msra.mxu0 0
      %901 = vmatprep.subr.bf16.mxu0 0
      %902 = vmatpush1.bf16.msra.mxu0 0
      %903 = vmatprep.subr.bf16.mxu0 0
      %904 = vmatpush1.bf16.msra.mxu0 0
      %905 = vmatprep.mubr.bf16.mxu0 0
      %906 = vmatmul.mubr.bf16.gmra.mrb[0].mxu0 %v857
      %v907 = vpop.f32.mrb[0].mxu0
      %v908 = vadd.f32 0.0, %v907
      %v909 = vpop.f32.mrb[0].mxu0
      %v910 = vpop.f32.mrb[0].mxu0
      %v911 = vadd.f32 0.0, %v910
      %v912 = vpop.f32.mrb[0].mxu0
      %913 = vmatprep.mubr.bf16.mxu0 0
      %914 = vmatmul.mubr.bf16.gmra.mrb[0].mxu0 %v859
      %v915 = vpop.f32.mrb[0].mxu0
      %v916 = vadd.f32 0.0, %v915
      %v917 = vpop.f32.mrb[0].mxu0
      %v918 = vpop.f32.mrb[0].mxu0
      %v919 = vadd.f32 0.0, %v918
      %v920 = vpop.f32.mrb[0].mxu0
      %921 = vmatprep.mubr.bf16.mxu0 0
      %922 = vmatmul.mubr.bf16.gmra.mrb[0].mxu0 %v861
      %v923 = vpop.f32.mrb[0].mxu0
      %v924 = vadd.f32 0.0, %v923
      %v925 = vpop.f32.mrb[0].mxu0
      %v926 = vpop.f32.mrb[0].mxu0
      %v927 = vadd.f32 0.0, %v926
      %v928 = vpop.f32.mrb[0].mxu0
      %929 = vmatprep.mubr.bf16.mxu0 0
      %930 = vmatmul.mubr.bf16.gmra.mrb[0].mxu0 %v863
      %v931 = vpop.f32.mrb[0].mxu0
      %v932 = vadd.f32 0.0, %v931
      %v933 = vpop.f32.mrb[0].mxu0
      %v934 = vpop.f32.mrb[0].mxu0
      %v935 = vadd.f32 0.0, %v934
      %v936 = vpop.f32.mrb[0].mxu0
      %937 = vmatprep.mubr.bf16.mxu0 0
      %938 = vmatmul.mubr.bf16.gmra.mrb[0].mxu0 %v865
      %v939 = vpop.f32.mrb[0].mxu0
      %v940 = vadd.f32 0.0, %v939
      %v941 = vpop.f32.mrb[0].mxu0
      %v942 = vpop.f32.mrb[0].mxu0
      %v943 = vadd.f32 0.0, %v942
      %v944 = vpop.f32.mrb[0].mxu0
      %945 = vmatprep.mubr.bf16.mxu0 0
      %946 = vmatmul.mubr.bf16.gmra.mrb[0].mxu0 %v867
      %v947 = vpop.f32.mrb[0].mxu0
      %v948 = vadd.f32 0.0, %v947
      %v949 = vpop.f32.mrb[0].mxu0
      %v950 = vpop.f32.mrb[0].mxu0
      %v951 = vadd.f32 0.0, %v950
      %v952 = vpop.f32.mrb[0].mxu0
      %953 = vmatprep.mubr.bf16.mxu0 0
      %954 = vmatmul.mubr.bf16.gmra.mrb[0].mxu0 %v869
      %v955 = vpop.f32.mrb[0].mxu0
      %v956 = vadd.f32 0.0, %v955
      %v957 = vpop.f32.mrb[0].mxu0
      %v958 = vpop.f32.mrb[0].mxu0
      %v959 = vadd.f32 0.0, %v958
      %v960 = vpop.f32.mrb[0].mxu0
      %961 = vmatprep.mubr.bf16.mxu0 0
      %962 = vmatmul.mubr.bf16.gmra.mrb[0].mxu0 %v871
      %v963 = vpop.f32.mrb[0].mxu0
      %v964 = vadd.f32 0.0, %v963
      %v965 = vpop.f32.mrb[0].mxu0
      %v966 = vpop.f32.mrb[0].mxu0
      %v967 = vadd.f32 0.0, %v966
      %v968 = vpop.f32.mrb[0].mxu0
      %969 = vdwg.mxu0
      %v982 = vunpack.c.l.b16 %v743
      %v983 = vunpack.c.l.b16 %v744
      %v984 = vunpack.c.l.b16 %v745
      %v985 = vunpack.c.l.b16 %v746
      %v986 = vunpack.c.l.b16 %v747
      %v987 = vunpack.c.l.b16 %v748
      %v988 = vunpack.c.l.b16 %v749
      %v989 = vunpack.c.l.b16 %v750
      %v990 = vunpack.c.l.b16 %v751
      %v991 = vunpack.c.l.b16 %v752
      %v992 = vunpack.c.l.b16 %v753
      %v993 = vunpack.c.l.b16 %v754
      %v994 = vpack.c.b16 %v983, %v982
      %v995 = vpack.c.b16 %v985, %v984
      %v996 = vpack.c.b16 %v987, %v986
      %v997 = vpack.c.b16 %v989, %v988
      %v998 = vpack.c.b16 %v991, %v990
      %v999 = vpack.c.b16 %v993, %v992
      %v1006 = vsel %vm856, %v728, 0
      %1008 = vmatprep.subr.bf16.mxu0 0
      %1009 = vmatpush1.bf16.msra.mxu0 %v994
      %1010 = vmatprep.subr.bf16.mxu0 0
      %1011 = vmatpush1.bf16.msra.mxu0 %v995
      %1012 = vmatprep.subr.bf16.mxu0 0
      %1013 = vmatpush1.bf16.msra.mxu0 %v996
      %1014 = vmatprep.subr.bf16.mxu0 0
      %1015 = vmatpush1.bf16.msra.mxu0 %v997
      %1016 = vmatprep.subr.bf16.mxu0 0
      %1017 = vmatpush1.bf16.msra.mxu0 %v998
      %1018 = vmatprep.subr.bf16.mxu0 0
      %1019 = vmatpush1.bf16.msra.mxu0 %v999
      %1020 = vmatprep.subr.bf16.mxu0 0
      %1021 = vmatpush1.bf16.msra.mxu0 0
      %1022 = vmatprep.subr.bf16.mxu0 0
      %1023 = vmatpush1.bf16.msra.mxu0 0
      %1024 = vmatprep.subr.bf16.mxu0 0
      %1025 = vmatpush1.bf16.msra.mxu0 0
      %1026 = vmatprep.subr.bf16.mxu0 0
      %1027 = vmatpush1.bf16.msra.mxu0 0
      %1028 = vmatprep.subr.bf16.mxu0 0
      %1029 = vmatpush1.bf16.msra.mxu0 0
      %1030 = vmatprep.subr.bf16.mxu0 0
      %1031 = vmatpush1.bf16.msra.mxu0 0
      %1032 = vmatprep.subr.bf16.mxu0 0
      %1033 = vmatpush1.bf16.msra.mxu0 0
      %1034 = vmatprep.subr.bf16.mxu0 0
      %1035 = vmatpush1.bf16.msra.mxu0 0
      %1036 = vmatprep.subr.bf16.mxu0 0
      %1037 = vmatpush1.bf16.msra.mxu0 0
      %1038 = vmatprep.subr.bf16.mxu0 0
      %1039 = vmatpush1.bf16.msra.mxu0 0
      %1040 = vmatprep.mubr.bf16.mxu0 0
      %1041 = vmatmul.mubr.bf16.gmra.mrb[0].mxu0 %v1006
      %v1042 = vpop.f32.mrb[0].mxu0
      %v1043 = vadd.f32 %v908, %v1042
      %v1044 = vpop.f32.mrb[0].mxu0
      %v1045 = vpop.f32.mrb[0].mxu0
      %v1046 = vadd.f32 %v911, %v1045
      %v1047 = vpop.f32.mrb[0].mxu0
      %1048 = vmatprep.mubr.bf16.mxu0 0
      %1049 = vmatmul.mubr.bf16.gmra.mrb[0].mxu0 %v857
      %v1050 = vpop.f32.mrb[0].mxu0
      %v1051 = vadd.f32 %v916, %v1050
      %v1052 = vpop.f32.mrb[0].mxu0
      %v1053 = vpop.f32.mrb[0].mxu0
      %v1054 = vadd.f32 %v919, %v1053
      %v1055 = vpop.f32.mrb[0].mxu0
      %1056 = vmatprep.mubr.bf16.mxu0 0
      %1057 = vmatmul.mubr.bf16.gmra.mrb[0].mxu0 %v859
      %v1058 = vpop.f32.mrb[0].mxu0
      %v1059 = vadd.f32 %v924, %v1058
      %v1060 = vpop.f32.mrb[0].mxu0
      %v1061 = vpop.f32.mrb[0].mxu0
      %v1062 = vadd.f32 %v927, %v1061
      %v1063 = vpop.f32.mrb[0].mxu0
      %1064 = vmatprep.mubr.bf16.mxu0 0
      %1065 = vmatmul.mubr.bf16.gmra.mrb[0].mxu0 %v861
      %v1066 = vpop.f32.mrb[0].mxu0
      %v1067 = vadd.f32 %v932, %v1066
      %v1068 = vpop.f32.mrb[0].mxu0
      %v1069 = vpop.f32.mrb[0].mxu0
      %v1070 = vadd.f32 %v935, %v1069
      %v1071 = vpop.f32.mrb[0].mxu0
      %1072 = vmatprep.mubr.bf16.mxu0 0
      %1073 = vmatmul.mubr.bf16.gmra.mrb[0].mxu0 %v863
      %v1074 = vpop.f32.mrb[0].mxu0
      %v1075 = vadd.f32 %v940, %v1074
      %v1076 = vpop.f32.mrb[0].mxu0
      %v1077 = vpop.f32.mrb[0].mxu0
      %v1078 = vadd.f32 %v943, %v1077
      %v1079 = vpop.f32.mrb[0].mxu0
      %1080 = vmatprep.mubr.bf16.mxu0 0
      %1081 = vmatmul.mubr.bf16.gmra.mrb[0].mxu0 %v865
      %v1082 = vpop.f32.mrb[0].mxu0
      %v1083 = vadd.f32 %v948, %v1082
      %v1084 = vpop.f32.mrb[0].mxu0
      %v1085 = vpop.f32.mrb[0].mxu0
      %v1086 = vadd.f32 %v951, %v1085
      %v1087 = vpop.f32.mrb[0].mxu0
      %1088 = vmatprep.mubr.bf16.mxu0 0
      %1089 = vmatmul.mubr.bf16.gmra.mrb[0].mxu0 %v867
      %v1090 = vpop.f32.mrb[0].mxu0
      %v1091 = vadd.f32 %v956, %v1090
      %v1092 = vpop.f32.mrb[0].mxu0
      %v1093 = vpop.f32.mrb[0].mxu0
      %v1094 = vadd.f32 %v959, %v1093
      %v1095 = vpop.f32.mrb[0].mxu0
      %1096 = vmatprep.mubr.bf16.mxu0 0
      %1097 = vmatmul.mubr.bf16.gmra.mrb[0].mxu0 %v869
      %v1098 = vpop.f32.mrb[0].mxu0
      %v1099 = vadd.f32 %v964, %v1098
      %v1100 = vpop.f32.mrb[0].mxu0
      %v1101 = vpop.f32.mrb[0].mxu0
      %v1102 = vadd.f32 %v967, %v1101
      %v1103 = vpop.f32.mrb[0].mxu0
      %1104 = vdwg.mxu0
      %v1106 = vshrl.u32 %v316, 16
      %v1108 = vrot.slane %v1106, 4
      %v1109 = vshll.u32 %v316, 16
      %v1111 = vrot.slane %v1109, 5
      %v1112 = vor.u32 %v1108, %v1111
      %v1113 = vrot.slane %v1112, 4
      %v1115 = vshll.u32 %v317, 16
      %v1117 = vrot.slane %v1115, 5
      %v1118 = vsel %vm321, %v1113, %v1117
      %v1119 = vshrl.u32 %v317, 16
      %v1121 = vrot.slane %v1119, 4
      %v1122 = vor.u32 %v1121, %v1117
      %v1123 = vrot.slane %v1122, 4
      %v1125 = vshll.u32 %v318, 16
      %v1127 = vrot.slane %v1125, 5
      %v1128 = vsel %vm321, %v1123, %v1127
      %v1132 = vrot.slane %v316, 5
      %v1133 = vrot.slane %v1132, 4
      %v1134 = vrot.slane %v317, 5
      %v1135 = vsel %vm540, %v1133, %v1134
      %v1136 = vrot.slane %v1134, 4
      %v1137 = vrot.slane %v318, 5
      %v1138 = vsel %vm540, %v1136, %v1137
      %v1139 = vunpack.c.l.b16 %v316
      %v1140 = vunpack.c.l.b16 %v317
      %v1141 = vpack.c.b16 %v1140, %v1139
      %v1142 = vunpack.c.l.b16 %v1118
      %v1143 = vunpack.c.l.b16 %v1128
      %v1144 = vpack.c.b16 %v1143, %v1142
      %1145 = vrot.lane.b32.xlu0 %v1144, 32
      %v1146 = vpop.permute.xlu0 %1145
      %v1147 = vunpack.c.l.b16 %v1135
      %v1148 = vunpack.c.l.b16 %v1138
      %v1149 = vpack.c.b16 %v1148, %v1147
      %1150 = vrot.lane.b32.xlu0 %v1149, 64
      %v1151 = vpop.permute.xlu0 %1150
      %v1154 = vsel %vm701, %v1141, %v1146
      %v1156 = vsel %vm726, %v1154, %v1151
      %s1157 = scalar_lea.vmem %s2, 96
      %v1158 = vld [vmem:[%s1157] sm:$0xf]
      %v1159 = vld [vmem:[%s1157 + $0x4] sm:$0xf]
      %v1160 = vld [vmem:[%s1157 + $0x8] sm:$0xf]
      %v1161 = vld [vmem:[%s1157 + $0xc] sm:$0xf]
      %v1162 = vld [vmem:[%s1157 + $0x10] sm:$0xf]
      %v1163 = vld [vmem:[%s1157 + $0x14] sm:$0xf]
      %v1164 = vld [vmem:[%s1157 + $0x18] sm:$0xf]
      %v1165 = vld [vmem:[%s1157 + $0x1c] sm:$0xf]
      %v1166 = vld [vmem:[%s1157 + $0x20] sm:$0xf]
      %v1167 = vld [vmem:[%s1157 + $0x24] sm:$0xf]
      %v1168 = vld [vmem:[%s1157 + $0x28] sm:$0xf]
      %v1169 = vld [vmem:[%s1157 + $0x2c] sm:$0xf]
      %v1182 = vunpack.c.l.b16 %v1158
      %v1183 = vunpack.c.l.b16 %v1159
      %v1184 = vunpack.c.l.b16 %v1160
      %v1185 = vunpack.c.l.b16 %v1161
      %v1186 = vunpack.c.l.b16 %v1162
      %v1187 = vunpack.c.l.b16 %v1163
      %v1188 = vunpack.c.l.b16 %v1164
      %v1189 = vunpack.c.l.b16 %v1165
      %v1190 = vunpack.c.l.b16 %v1166
      %v1191 = vunpack.c.l.b16 %v1167
      %v1192 = vunpack.c.l.b16 %v1168
      %v1193 = vunpack.c.l.b16 %v1169
      %v1194 = vpack.c.b16 %v1183, %v1182
      %v1195 = vpack.c.b16 %v1185, %v1184
      %v1196 = vpack.c.b16 %v1187, %v1186
      %v1197 = vpack.c.b16 %v1189, %v1188
      %v1198 = vpack.c.b16 %v1191, %v1190
      %v1199 = vpack.c.b16 %v1193, %v1192
      %v1206 = vsel %vm856, %v1156, 0
      %1208 = vmatprep.subr.bf16.mxu0 0
      %1209 = vmatpush1.bf16.msra.mxu0 %v1194
      %1210 = vmatprep.subr.bf16.mxu0 0
      %1211 = vmatpush1.bf16.msra.mxu0 %v1195
      %1212 = vmatprep.subr.bf16.mxu0 0
      %1213 = vmatpush1.bf16.msra.mxu0 %v1196
      %1214 = vmatprep.subr.bf16.mxu0 0
      %1215 = vmatpush1.bf16.msra.mxu0 %v1197
      %1216 = vmatprep.subr.bf16.mxu0 0
      %1217 = vmatpush1.bf16.msra.mxu0 %v1198
      %1218 = vmatprep.subr.bf16.mxu0 0
      %1219 = vmatpush1.bf16.msra.mxu0 %v1199
      %1220 = vmatprep.subr.bf16.mxu0 0
      %1221 = vmatpush1.bf16.msra.mxu0 0
      %1222 = vmatprep.subr.bf16.mxu0 0
      %1223 = vmatpush1.bf16.msra.mxu0 0
      %1224 = vmatprep.subr.bf16.mxu0 0
      %1225 = vmatpush1.bf16.msra.mxu0 0
      %1226 = vmatprep.subr.bf16.mxu0 0
      %1227 = vmatpush1.bf16.msra.mxu0 0
      %1228 = vmatprep.subr.bf16.mxu0 0
      %1229 = vmatpush1.bf16.msra.mxu0 0
      %1230 = vmatprep.subr.bf16.mxu0 0
      %1231 = vmatpush1.bf16.msra.mxu0 0
      %1232 = vmatprep.subr.bf16.mxu0 0
      %1233 = vmatpush1.bf16.msra.mxu0 0
      %1234 = vmatprep.subr.bf16.mxu0 0
      %1235 = vmatpush1.bf16.msra.mxu0 0
      %1236 = vmatprep.subr.bf16.mxu0 0
      %1237 = vmatpush1.bf16.msra.mxu0 0
      %1238 = vmatprep.subr.bf16.mxu0 0
      %1239 = vmatpush1.bf16.msra.mxu0 0
      %1240 = vmatprep.mubr.bf16.mxu0 0
      %1241 = vmatmul.mubr.bf16.gmra.mrb[0].mxu0 %v859
      %v1242 = vpop.f32.mrb[0].mxu0
      %v1243 = vadd.f32 0.0, %v1242
      %v1244 = vpop.f32.mrb[0].mxu0
      %v1245 = vpop.f32.mrb[0].mxu0
      %v1246 = vadd.f32 0.0, %v1245
      %v1247 = vpop.f32.mrb[0].mxu0
      %1248 = vmatprep.mubr.bf16.mxu0 0
      %1249 = vmatmul.mubr.bf16.gmra.mrb[0].mxu0 %v861
      %v1250 = vpop.f32.mrb[0].mxu0
      %v1251 = vadd.f32 0.0, %v1250
      %v1252 = vpop.f32.mrb[0].mxu0
      %v1253 = vpop.f32.mrb[0].mxu0
      %v1254 = vadd.f32 0.0, %v1253
      %v1255 = vpop.f32.mrb[0].mxu0
      %1256 = vmatprep.mubr.bf16.mxu0 0
      %1257 = vmatmul.mubr.bf16.gmra.mrb[0].mxu0 %v863
      %v1258 = vpop.f32.mrb[0].mxu0
      %v1259 = vadd.f32 0.0, %v1258
      %v1260 = vpop.f32.mrb[0].mxu0
      %v1261 = vpop.f32.mrb[0].mxu0
      %v1262 = vadd.f32 0.0, %v1261
      %v1263 = vpop.f32.mrb[0].mxu0
      %1264 = vmatprep.mubr.bf16.mxu0 0
      %1265 = vmatmul.mubr.bf16.gmra.mrb[0].mxu0 %v865
      %v1266 = vpop.f32.mrb[0].mxu0
      %v1267 = vadd.f32 0.0, %v1266
      %v1268 = vpop.f32.mrb[0].mxu0
      %v1269 = vpop.f32.mrb[0].mxu0
      %v1270 = vadd.f32 0.0, %v1269
      %v1271 = vpop.f32.mrb[0].mxu0
      %1272 = vmatprep.mubr.bf16.mxu0 0
      %1273 = vmatmul.mubr.bf16.gmra.mrb[0].mxu0 %v867
      %v1274 = vpop.f32.mrb[0].mxu0
      %v1275 = vadd.f32 0.0, %v1274
      %v1276 = vpop.f32.mrb[0].mxu0
      %v1277 = vpop.f32.mrb[0].mxu0
      %v1278 = vadd.f32 0.0, %v1277
      %v1279 = vpop.f32.mrb[0].mxu0
      %1280 = vmatprep.mubr.bf16.mxu0 0
      %1281 = vmatmul.mubr.bf16.gmra.mrb[0].mxu0 %v869
      %v1282 = vpop.f32.mrb[0].mxu0
      %v1283 = vadd.f32 0.0, %v1282
      %v1284 = vpop.f32.mrb[0].mxu0
      %v1285 = vpop.f32.mrb[0].mxu0
      %v1286 = vadd.f32 0.0, %v1285
      %v1287 = vpop.f32.mrb[0].mxu0
      %1288 = vmatprep.mubr.bf16.mxu0 0
      %1289 = vmatmul.mubr.bf16.gmra.mrb[0].mxu0 %v871
      %v1290 = vpop.f32.mrb[0].mxu0
      %v1291 = vadd.f32 0.0, %v1290
      %v1292 = vpop.f32.mrb[0].mxu0
      %v1293 = vpop.f32.mrb[0].mxu0
      %v1294 = vadd.f32 0.0, %v1293
      %v1295 = vpop.f32.mrb[0].mxu0
      %1296 = vmatprep.mubr.bf16.mxu0 0
      %1297 = vmatmul.mubr.bf16.gmra.mrb[0].mxu0 %v1206
      %v1298 = vpop.f32.mrb[0].mxu0
      %v1299 = vadd.f32 0.0, %v1298
      %v1300 = vpop.f32.mrb[0].mxu0
      %v1301 = vpop.f32.mrb[0].mxu0
      %v1302 = vadd.f32 0.0, %v1301
      %v1303 = vpop.f32.mrb[0].mxu0
      %1304 = vdwg.mxu0
      %v1305 = vadd.f32 %v1043, %v1243
      %v1306 = vadd.f32 %v1046, %v1246
      %v1307 = vadd.f32 %v1051, %v1251
      %v1308 = vadd.f32 %v1054, %v1254
      %v1309 = vadd.f32 %v1059, %v1259
      %v1310 = vadd.f32 %v1062, %v1262
      %v1311 = vadd.f32 %v1067, %v1267
      %v1312 = vadd.f32 %v1070, %v1270
      %v1313 = vadd.f32 %v1075, %v1275
      %v1314 = vadd.f32 %v1078, %v1278
      %v1315 = vadd.f32 %v1083, %v1283
      %v1316 = vadd.f32 %v1086, %v1286
      %v1317 = vadd.f32 %v1091, %v1291
      %v1318 = vadd.f32 %v1094, %v1294
      %v1319 = vadd.f32 %v1099, %v1299
      %v1320 = vadd.f32 %v1102, %v1302
      %v1321 = vld [vmem:[%s3] sm:$0x1]
      %v1323 = vlaneseq
      %v1324 = vshrl.u32 %v1323, 7
      %v1325 = vsub.s32 0, %v1324
      %v1326 = vrot.slane %v1321, %v1325
      %v1328 = vadd.f32 %v1305, %v1326
      %v1329 = vadd.f32 %v1306, %v1326
      %v1330 = vadd.f32 %v1307, %v1326
      %v1331 = vadd.f32 %v1308, %v1326
      %v1332 = vadd.f32 %v1309, %v1326
      %v1333 = vadd.f32 %v1310, %v1326
      %v1334 = vadd.f32 %v1311, %v1326
      %v1335 = vadd.f32 %v1312, %v1326
      %v1336 = vadd.f32 %v1313, %v1326
      %v1337 = vadd.f32 %v1314, %v1326
      %v1338 = vadd.f32 %v1315, %v1326
      %v1339 = vadd.f32 %v1316, %v1326
      %v1340 = vadd.f32 %v1317, %v1326
      %v1341 = vadd.f32 %v1318, %v1326
      %v1342 = vadd.f32 %v1319, %v1326
      %v1343 = vadd.f32 %v1320, %v1326
      %v1344 = vmax.f32 %v1328, 0.0
      %v1345 = vmax.f32 %v1329, 0.0
      %v1346 = vmax.f32 %v1330, 0.0
      %v1347 = vmax.f32 %v1331, 0.0
      %v1348 = vmax.f32 %v1332, 0.0
      %v1349 = vmax.f32 %v1333, 0.0
      %v1350 = vmax.f32 %v1334, 0.0
      %v1351 = vmax.f32 %v1335, 0.0
      %v1352 = vmax.f32 %v1336, 0.0
      %v1353 = vmax.f32 %v1337, 0.0
      %v1354 = vmax.f32 %v1338, 0.0
      %v1355 = vmax.f32 %v1339, 0.0
      %v1356 = vmax.f32 %v1340, 0.0
      %v1357 = vmax.f32 %v1341, 0.0
      %v1358 = vmax.f32 %v1342, 0.0
      %v1359 = vmax.f32 %v1343, 0.0
      %v1360 = vpack.c.bf16 %v1345, %v1344
      %v1361 = vpack.c.bf16 %v1347, %v1346
      %v1362 = vpack.c.bf16 %v1349, %v1348
      %v1363 = vpack.c.bf16 %v1351, %v1350
      %v1364 = vpack.c.bf16 %v1353, %v1352
      %v1365 = vpack.c.bf16 %v1355, %v1354
      %v1366 = vpack.c.bf16 %v1357, %v1356
      %v1367 = vpack.c.bf16 %v1359, %v1358
      %v1376 = vunpack.c.l.b16 %v1360
      %v1377 = vunpack.c.h.b16 %v1360
      %v1378 = vunpack.c.l.b16 %v1361
      %v1379 = vunpack.c.h.b16 %v1361
      %v1380 = vunpack.c.l.b16 %v1362
      %v1381 = vunpack.c.h.b16 %v1362
      %v1382 = vunpack.c.l.b16 %v1363
      %v1383 = vunpack.c.h.b16 %v1363
      %v1384 = vunpack.c.l.b16 %v1364
      %v1385 = vunpack.c.h.b16 %v1364
      %v1386 = vunpack.c.l.b16 %v1365
      %v1387 = vunpack.c.h.b16 %v1365
      %v1388 = vunpack.c.l.b16 %v1366
      %v1389 = vunpack.c.h.b16 %v1366
      %v1390 = vunpack.c.l.b16 %v1367
      %v1391 = vunpack.c.h.b16 %v1367
      %v1392 = vpack.c.b16 %v1376, %v1376
      %v1393 = vpack.c.b16 %v1377, %v1377
      %v1394 = vpack.c.b16 %v1378, %v1378
      %v1395 = vpack.c.b16 %v1379, %v1379
      %v1396 = vpack.c.b16 %v1380, %v1380
      %v1397 = vpack.c.b16 %v1381, %v1381
      %v1398 = vpack.c.b16 %v1382, %v1382
      %v1399 = vpack.c.b16 %v1383, %v1383
      %v1400 = vpack.c.b16 %v1384, %v1384
      %v1401 = vpack.c.b16 %v1385, %v1385
      %v1402 = vpack.c.b16 %v1386, %v1386
      %v1403 = vpack.c.b16 %v1387, %v1387
      %v1404 = vpack.c.b16 %v1388, %v1388
      %v1405 = vpack.c.b16 %v1389, %v1389
      %v1406 = vpack.c.b16 %v1390, %v1390
      %v1407 = vpack.c.b16 %v1391, %v1391
      %vm1424 = vcmask 257024
      %1425 = vst.msk [vmem:[%s286] sm:$0xf] %vm1424, %v1392
      %1426 = vst.msk [vmem:[%s286 + $0x4] sm:$0xf] %vm1424, %v1393
      %1427 = vst.msk [vmem:[%s286 + $0x8] sm:$0xf] %vm1424, %v1394
      %1428 = vst.msk [vmem:[%s286 + $0xc] sm:$0xf] %vm1424, %v1395
      %1429 = vst.msk [vmem:[%s286 + $0x10] sm:$0xf] %vm1424, %v1396
      %1430 = vst.msk [vmem:[%s286 + $0x14] sm:$0xf] %vm1424, %v1397
      %1431 = vst.msk [vmem:[%s286 + $0x18] sm:$0xf] %vm1424, %v1398
      %1432 = vst.msk [vmem:[%s286 + $0x1c] sm:$0xf] %vm1424, %v1399
      %1433 = vst.msk [vmem:[%s286 + $0x20] sm:$0xf] %vm1424, %v1400
      %1434 = vst.msk [vmem:[%s286 + $0x24] sm:$0xf] %vm1424, %v1401
      %1435 = vst.msk [vmem:[%s286 + $0x28] sm:$0xf] %vm1424, %v1402
      %1436 = vst.msk [vmem:[%s286 + $0x2c] sm:$0xf] %vm1424, %v1403
      %1437 = vst.msk [vmem:[%s286 + $0x30] sm:$0xf] %vm1424, %v1404
      %1438 = vst.msk [vmem:[%s286 + $0x34] sm:$0xf] %vm1424, %v1405
      %1439 = vst.msk [vmem:[%s286 + $0x38] sm:$0xf] %vm1424, %v1406
      %1440 = vst.msk [vmem:[%s286 + $0x3c] sm:$0xf] %vm1424, %v1407
      %s1441 = smul.u32 8, %s20
      %p1442 = scmp.lt.s32.totalorder %s19, 1
      %s1443 = scalar_select %p1442, %s19, 1
      %p1444 = scmp.lt.s32.totalorder %s1441, 15
      %s1445 = scalar_select %p1444, %s1441, 15
      %s1446 = smul.addr %s1445, 2
      %s1447 = smul.addr %s1443, 32
      %s1448 = sadd.s32 %s1446, %s1447
      %s1449 = smul.addr %s1448, 4
      %s1450 = scalar_lea.vmem %s4, %s1449
      // Predicated region
      $region37: #{resnet_generator_apply.9} parent=35 // pred_check
        %p1451 = pneg %p147
      $region38: #{resnet_generator_apply.9} parent=35 // pred_check_branch
        %1453 = sbr.rel (%p1451) target = $region40
      $region39: #{resnet_generator_apply.9} parent=35 // pred_region
        %s1454 = smul.u32 8, %s20
      $region40: #{resnet_generator_apply.9} parent=35 // pred_fallthru
        _
    $region36: #{resnet_generator_apply.9} parent=5 // pred_fallthru
      _
    %p1455 = scmp.le.s32.totalorder 2, %s10
    // Predicated region
    $region41: #{resnet_generator_apply.9} parent=5 // pred_check
      %p1456 = pneg %p1455
    $region42: #{resnet_generator_apply.9} parent=5 // pred_check_branch
      %1458 = sbr.rel (%p1456) target = $region44
    $region43: #{resnet_generator_apply.9} parent=5 // pred_region
      %s1459 = ssub.s32 %s10, 2
      // Predicated region
      $region45: #{resnet_generator_apply.9} parent=43 // pred_check
        %p1460 = pneg %p153
      $region46: #{resnet_generator_apply.9} parent=43 // pred_check_branch
        %1462 = sbr.rel (%p1460) target = $region48
      $region47: #{resnet_generator_apply.9} parent=43 // pred_region
        %s1463 = smul.u32 8, %s22
        %p1464 = scmp.lt.s32.totalorder %s21, 1
        %s1465 = scalar_select %p1464, %s21, 1
        %p1466 = scmp.lt.s32.totalorder %s1463, 15
        %s1467 = scalar_select %p1466, %s1463, 15
        %s1468 = smul.addr %s1467, 2
        %s1469 = smul.addr %s1465, 32
        %s1470 = sadd.s32 %s1468, %s1469
        %s1471 = smul.addr %s1470, 4
        %s1472 = scalar_lea.vmem %s4, %s1471
      $region48: #{resnet_generator_apply.9} parent=43 // pred_fallthru
        _
    $region44: #{resnet_generator_apply.9} parent=5 // pred_fallthru
      _
  $region6: #{resnet_generator_apply.9} parent=0 // loop_footer
    %s14 = sadd.s32 1, %s10
  $region7: #{resnet_generator_apply.9} parent=0 // loop_footer_branch
    %9 = sbr.rel target = $region3
  $region8: #{resnet_generator_apply.9} parent=0 // loop_exit
    _

// kernel: resnet_generator_apply.10
$region0: #{resnet_generator_apply.10}
  #allocation0 [shape = 'u32[]', space=smem, size = 0x4, offset = 0x4, fixed_abs, tag = 'smem constant byte address 0x4 - core index']
  #allocation1 [shape = 'u32[144,128]{1,0:T(1,128)}', space=vmem, size = 0x12000, scoped, tag = 'internal scratch']
  %s0 = inlined_call_operand.vmem [shape: bf16[2,24,18,32], index: 0, kind: input, shape index: {}, may-alias: {0,1}]
  %s1 = inlined_call_operand.vmem [shape: bf16[2,24,18,32], index: 1, kind: input, shape index: {}, may-alias: {0,1}]
  %s2 = inlined_call_operand.vmem [shape: bf16[3,96,32], index: 2, kind: input, shape index: {}]
  %s3 = inlined_call_operand.vmem [shape: f32[1,32], index: 3, kind: input, shape index: {}]
  %s4 = inlined_call_operand.vmem [shape: bf16[2,16,16,32], index: 4, kind: input, shape index: {}]
  %s5 = inlined_call_operand.vmem [shape: bf16[2,16,16,32], index: 5, kind: output, shape index: {}]
  %s6 = sld [smem:[#allocation0]]
  $region53: #{resnet_generator_apply.10} parent=0
    _
  %s8 = ssub.s32 1, %s6
  %s9 = scalar_select 0, %s8, %s6
  loop: start=0, step=1, limit=6
  $region2: #{resnet_generator_apply.10} parent=0 // loop_pre_header
    _
  $region3: #{resnet_generator_apply.10} parent=0 // loop_header
    %s11 = sphi 0, %s15
    %p12 = scmp.ge.s32.totalorder %s11, 6
    %s18 = sphi 0, %s30
    %s19 = sphi 0, %s26
    %s20 = sphi 0, %s18
    %s21 = sphi 0, %s19
    %s22 = sphi 0, %s20
    %s23 = sphi 0, %s21
    %s35 = sphi 0, %s37
    %s38 = sphi 0, %s35
    %s39 = sphi 0, %s38
    %s55 = sphi 0, %s39
    %s65 = sphi 0, %s67
    %s68 = sphi 0, %s65
    %s69 = sphi 0, %s68
    %s85 = sphi 0, %s69
    %s89 = sphi 0, %s89
    %s91 = sphi 0, %s89
    %s92 = sphi 0, %s91
    %s106 = sphi 0, %s92
    %s110 = sphi 0, %s110
    %s112 = sphi 0, %s110
    %s113 = sphi 0, %s112
    %s127 = sphi 0, %s113
    %s135 = sphi 0, %s137
    %s138 = sphi 0, %s135
    %s139 = sphi 0, %s138
    %s155 = sphi 0, %s139
    %s163 = sphi 0, %s165
    %s166 = sphi 0, %s163
    %s167 = sphi 0, %s166
    %s183 = sphi 0, %s167
  $region4: #{resnet_generator_apply.10} parent=0 // loop_header_branch
    %14 = sbr.rel (%p12) target = $region8
  $region5: #{resnet_generator_apply.10} parent=0 // loop_body
    %s16 = ssub.s32 %s11, 1
    %s17 = ssub.s32 %s11, 2
    %s24 = sadd.s32 1, %s19
    %p25 = scmp.ge.s32.totalorder %s24, 2
    %s26 = scalar_select %p25, 0, %s24
    %s27 = sadd.s32 1, %s18
    %s28 = scalar_select %p25, %s27, %s18
    %p29 = scmp.ge.s32.totalorder %s28, 2
    %s30 = scalar_select %p29, 0, %s28
    %s31 = ssub.s32 %s18, %s30
    %s32 = ssub.s32 %s19, %s26
    %s33 = sor.u32 %s31, %s32
    %p34 = scmp.eq.s32.totalorder %s33, 0
    %s36 = sadd.s32 %s35, 1
    %s37 = scalar_select %p34, %s35, %s36
    %p40 = pneg %p34
    %p41 = scmp.eq.s32.totalorder %s11, 3
    %p42 = por %p40, %p41
    %p43 = scmp.ne.s32.totalorder %s35, %s38
    %p44 = scmp.eq.s32.totalorder %s11, 0
    %p45 = por %p43, %p44
    %p46 = scmp.ne.s32.totalorder %s35, %s38
    %p47 = scmp.eq.s32.totalorder %s16, 3
    %p48 = por %p46, %p47
    %p49 = scmp.ne.s32.totalorder %s38, %s39
    %p50 = scmp.eq.s32.totalorder %s16, 0
    %p51 = por %p49, %p50
    %p52 = scmp.ne.s32.totalorder %s38, %s39
    %p53 = scmp.eq.s32.totalorder %s17, 3
    %p54 = por %p52, %p53
    %p56 = scmp.ne.s32.totalorder %s39, %s55
    %p57 = scmp.eq.s32.totalorder %s17, 0
    %p58 = por %p56, %p57
    %s59 = sadd.s32 %s19, 1
    %s60 = sadd.s32 %s26, 1
    %s61 = ssub.s32 %s18, %s30
    %s62 = ssub.s32 %s59, %s60
    %s63 = sor.u32 %s61, %s62
    %p64 = scmp.eq.s32.totalorder %s63, 0
    %s66 = sadd.s32 %s65, 1
    %s67 = scalar_select %p64, %s65, %s66
    %p70 = pneg %p64
    %p71 = scmp.eq.s32.totalorder %s11, 3
    %p72 = por %p70, %p71
    %p73 = scmp.ne.s32.totalorder %s65, %s68
    %p74 = scmp.eq.s32.totalorder %s11, 0
    %p75 = por %p73, %p74
    %p76 = scmp.ne.s32.totalorder %s65, %s68
    %p77 = scmp.eq.s32.totalorder %s16, 3
    %p78 = por %p76, %p77
    %p79 = scmp.ne.s32.totalorder %s68, %s69
    %p80 = scmp.eq.s32.totalorder %s16, 0
    %p81 = por %p79, %p80
    %p82 = scmp.ne.s32.totalorder %s68, %s69
    %p83 = scmp.eq.s32.totalorder %s17, 3
    %p84 = por %p82, %p83
    %p86 = scmp.ne.s32.totalorder %s69, %s85
    %p87 = scmp.eq.s32.totalorder %s17, 0
    %p88 = por %p86, %p87
    %s90 = sadd.s32 %s89, 1
    %p93 = scmp.eq.s32.totalorder %s11, 3
    %p94 = scmp.ne.s32.totalorder %s89, %s91
    %p95 = scmp.eq.s32.totalorder %s11, 0
    %p96 = por %p94, %p95
    %p97 = scmp.ne.s32.totalorder %s89, %s91
    %p98 = scmp.eq.s32.totalorder %s16, 3
    %p99 = por %p97, %p98
    %p100 = scmp.ne.s32.totalorder %s91, %s92
    %p101 = scmp.eq.s32.totalorder %s16, 0
    %p102 = por %p100, %p101
    %p103 = scmp.ne.s32.totalorder %s91, %s92
    %p104 = scmp.eq.s32.totalorder %s17, 3
    %p105 = por %p103, %p104
    %p107 = scmp.ne.s32.totalorder %s92, %s106
    %p108 = scmp.eq.s32.totalorder %s17, 0
    %p109 = por %p107, %p108
    %s111 = sadd.s32 %s110, 1
    %p114 = scmp.eq.s32.totalorder %s11, 3
    %p115 = scmp.ne.s32.totalorder %s110, %s112
    %p116 = scmp.eq.s32.totalorder %s11, 0
    %p117 = por %p115, %p116
    %p118 = scmp.ne.s32.totalorder %s110, %s112
    %p119 = scmp.eq.s32.totalorder %s16, 3
    %p120 = por %p118, %p119
    %p121 = scmp.ne.s32.totalorder %s112, %s113
    %p122 = scmp.eq.s32.totalorder %s16, 0
    %p123 = por %p121, %p122
    %p124 = scmp.ne.s32.totalorder %s112, %s113
    %p125 = scmp.eq.s32.totalorder %s17, 3
    %p126 = por %p124, %p125
    %p128 = scmp.ne.s32.totalorder %s113, %s127
    %p129 = scmp.eq.s32.totalorder %s17, 0
    %p130 = por %p128, %p129
    %s131 = ssub.s32 %s18, %s30
    %s132 = ssub.s32 %s19, %s26
    %s133 = sor.u32 %s131, %s132
    %p134 = scmp.eq.s32.totalorder %s133, 0
    %s136 = sadd.s32 %s135, 1
    %s137 = scalar_select %p134, %s135, %s136
    %p140 = pneg %p134
    %p141 = scmp.eq.s32.totalorder %s11, 3
    %p142 = por %p140, %p141
    %p143 = scmp.ne.s32.totalorder %s135, %s138
    %p144 = scmp.eq.s32.totalorder %s11, 0
    %p145 = por %p143, %p144
    %p146 = scmp.ne.s32.totalorder %s135, %s138
    %p147 = scmp.eq.s32.totalorder %s16, 3
    %p148 = por %p146, %p147
    %p149 = scmp.ne.s32.totalorder %s138, %s139
    %p150 = scmp.eq.s32.totalorder %s16, 0
    %p151 = por %p149, %p150
    %p152 = scmp.ne.s32.totalorder %s138, %s139
    %p153 = scmp.eq.s32.totalorder %s17, 3
    %p154 = por %p152, %p153
    %p156 = scmp.ne.s32.totalorder %s139, %s155
    %p157 = scmp.eq.s32.totalorder %s17, 0
    %p158 = por %p156, %p157
    %s159 = ssub.s32 %s18, %s30
    %s160 = ssub.s32 %s19, %s26
    %s161 = sor.u32 %s159, %s160
    %p162 = scmp.eq.s32.totalorder %s161, 0
    %s164 = sadd.s32 %s163, 1
    %s165 = scalar_select %p162, %s163, %s164
    %p168 = pneg %p162
    %p169 = scmp.eq.s32.totalorder %s11, 3
    %p170 = por %p168, %p169
    %p171 = scmp.ne.s32.totalorder %s163, %s166
    %p172 = scmp.eq.s32.totalorder %s11, 0
    %p173 = por %p171, %p172
    %p174 = scmp.ne.s32.totalorder %s163, %s166
    %p175 = scmp.eq.s32.totalorder %s16, 3
    %p176 = por %p174, %p175
    %p177 = scmp.ne.s32.totalorder %s166, %s167
    %p178 = scmp.eq.s32.totalorder %s16, 0
    %p179 = por %p177, %p178
    %p180 = scmp.ne.s32.totalorder %s166, %s167
    %p181 = scmp.eq.s32.totalorder %s17, 3
    %p182 = por %p180, %p181
    %p184 = scmp.ne.s32.totalorder %s167, %s183
    %p185 = scmp.eq.s32.totalorder %s17, 0
    %p186 = por %p184, %p185
    %p187 = scmp.le.s32.totalorder 1, %s11
    %p188 = scmp.lt.s32.totalorder %s11, 5
    %p189 = pnand %p187, %p188
    %p190 = pneg %p189
    // Predicated region
    $region9: #{resnet_generator_apply.10} parent=5 // pred_check
      _
    $region10: #{resnet_generator_apply.10} parent=5 // pred_check_branch
      %192 = sbr.rel (%p189) target = $region12
    $region11: #{resnet_generator_apply.10} parent=5 // pred_region
      %s193 = ssub.s32 %s11, 1
      // Predicated region
      $region13: #{resnet_generator_apply.10} parent=11 // pred_check
        %p194 = pneg %p102
      $region14: #{resnet_generator_apply.10} parent=11 // pred_check_branch
        %196 = sbr.rel (%p194) target = $region16
      $region15: #{resnet_generator_apply.10} parent=11 // pred_region
        _
      $region16: #{resnet_generator_apply.10} parent=11 // pred_fallthru
        _
      // Predicated region
      $region17: #{resnet_generator_apply.10} parent=11 // pred_check
        %p197 = pneg %p123
      $region18: #{resnet_generator_apply.10} parent=11 // pred_check_branch
        %199 = sbr.rel (%p197) target = $region20
      $region19: #{resnet_generator_apply.10} parent=11 // pred_region
        _
      $region20: #{resnet_generator_apply.10} parent=11 // pred_fallthru
        _
    $region12: #{resnet_generator_apply.10} parent=5 // pred_fallthru
      _
    %p200 = scmp.lt.s32.totalorder %s11, 4
    // Predicated region
    $region21: #{resnet_generator_apply.10} parent=5 // pred_check
      %p201 = pneg %p200
    $region22: #{resnet_generator_apply.10} parent=5 // pred_check_branch
      %203 = sbr.rel (%p201) target = $region24
    $region23: #{resnet_generator_apply.10} parent=5 // pred_region
      // Predicated region
      $region25: #{resnet_generator_apply.10} parent=23 // pred_check
        %p204 = pneg %p45
      $region26: #{resnet_generator_apply.10} parent=23 // pred_check_branch
        %206 = sbr.rel (%p204) target = $region28
      $region27: #{resnet_generator_apply.10} parent=23 // pred_region
        %s207 = smul.u32 8, %s19
        %p208 = scmp.lt.s32.totalorder %s18, 1
        %s209 = scalar_select %p208, %s18, 1
        %p210 = scmp.lt.s32.totalorder %s207, 23
        %s211 = scalar_select %p210, %s207, 23
        %s212 = smul.addr %s211, 3
        %s213 = smul.addr %s209, 72
        %s214 = sadd.s32 %s212, %s213
        %s215 = smul.addr %s214, 4
        %s216 = scalar_lea.vmem %s0, %s215
        %s217 = smul.u32 8, %s19
      $region28: #{resnet_generator_apply.10} parent=23 // pred_fallthru
        _
      // Predicated region
      $region29: #{resnet_generator_apply.10} parent=23 // pred_check
        %p218 = pneg %p75
      $region30: #{resnet_generator_apply.10} parent=23 // pred_check_branch
        %220 = sbr.rel (%p218) target = $region32
      $region31: #{resnet_generator_apply.10} parent=23 // pred_region
        %s221 = sadd.s32 %s19, 1
        %s222 = smul.u32 8, %s221
        %p223 = scmp.lt.s32.totalorder %s18, 1
        %s224 = scalar_select %p223, %s18, 1
        %p225 = scmp.lt.s32.totalorder %s222, 23
        %s226 = scalar_select %p225, %s222, 23
        %s227 = smul.addr %s226, 3
        %s228 = smul.addr %s224, 72
        %s229 = sadd.s32 %s227, %s228
        %s230 = smul.addr %s229, 4
        %s231 = scalar_lea.vmem %s1, %s230
        %s232 = sadd.s32 %s19, 1
        %s233 = smul.u32 8, %s232
      $region32: #{resnet_generator_apply.10} parent=23 // pred_fallthru
        _
      // Predicated region
      $region33: #{resnet_generator_apply.10} parent=23 // pred_check
        %p234 = pneg %p145
      $region34: #{resnet_generator_apply.10} parent=23 // pred_check_branch
        %236 = sbr.rel (%p234) target = $region36
      $region35: #{resnet_generator_apply.10} parent=23 // pred_region
        %s237 = smul.u32 8, %s19
        %p238 = scmp.lt.s32.totalorder %s18, 1
        %s239 = scalar_select %p238, %s18, 1
        %p240 = scmp.lt.s32.totalorder %s237, 15
        %s241 = scalar_select %p240, %s237, 15
        %s242 = smul.addr %s241, 2
        %s243 = smul.addr %s239, 32
        %s244 = sadd.s32 %s242, %s243
        %s245 = smul.addr %s244, 4
        %s246 = scalar_lea.vmem %s4, %s245
        %s247 = smul.u32 8, %s19
      $region36: #{resnet_generator_apply.10} parent=23 // pred_fallthru
        _
    $region24: #{resnet_generator_apply.10} parent=5 // pred_fallthru
      _
    %p248 = scmp.le.s32.totalorder 1, %s11
    %p249 = scmp.lt.s32.totalorder %s11, 5
    %p250 = pnand %p248, %p249
    %p251 = pneg %p250
    // Predicated region
    $region37: #{resnet_generator_apply.10} parent=5 // pred_check
      _
    $region38: #{resnet_generator_apply.10} parent=5 // pred_check_branch
      %253 = sbr.rel (%p250) target = $region40
    $region39: #{resnet_generator_apply.10} parent=5 // pred_region
      %s254 = ssub.s32 %s11, 1
      %s255 = smul.u32 8, %s21
      %p256 = scmp.lt.s32.totalorder %s20, 1
      %s257 = scalar_select %p256, %s20, 1
      %p258 = scmp.lt.s32.totalorder %s255, 23
      %s259 = scalar_select %p258, %s255, 23
      %s260 = smul.addr %s259, 3
      %s261 = smul.addr %s257, 72
      %s262 = sadd.s32 %s260, %s261
      %s263 = smul.addr %s262, 4
      %s264 = scalar_lea.vmem %s0, %s263
      %p265 = pneg %p51
      %p266 = pneg %p48
      %s267 = sadd.s32 %s21, 1
      %s268 = smul.u32 8, %s267
      %p269 = scmp.lt.s32.totalorder %s20, 1
      %s270 = scalar_select %p269, %s20, 1
      %p271 = scmp.lt.s32.totalorder %s268, 23
      %s272 = scalar_select %p271, %s268, 23
      %s273 = smul.addr %s272, 3
      %s274 = smul.addr %s270, 72
      %s275 = sadd.s32 %s273, %s274
      %s276 = smul.addr %s275, 4
      %s277 = scalar_lea.vmem %s1, %s276
      %p278 = pneg %p81
      %p279 = pneg %p78
      %p280 = pneg %p102
      %p281 = pneg %p99
      %p282 = pneg %p123
      %p283 = pneg %p120
      %s284 = smul.u32 8, %s21
      %p285 = scmp.lt.s32.totalorder %s20, 1
      %s286 = scalar_select %p285, %s20, 1
      %p287 = scmp.lt.s32.totalorder %s284, 15
      %s288 = scalar_select %p287, %s284, 15
      %s289 = smul.addr %s288, 2
      %s290 = smul.addr %s286, 32
      %s291 = sadd.s32 %s289, %s290
      %s292 = smul.addr %s291, 4
      %s293 = scalar_lea.vmem %s4, %s292
      %p294 = pneg %p151
      %p295 = pneg %p148
      %p296 = pneg %p179
      %p297 = pneg %p176
      %s298 = smul.u32 8, %s21
      %p299 = scmp.lt.s32.totalorder %s20, 1
      %s300 = scalar_select %p299, %s20, 1
      %p301 = scmp.lt.s32.totalorder %s298, 15
      %s302 = scalar_select %p301, %s298, 15
      %s303 = smul.addr %s302, 2
      %s304 = smul.addr %s300, 32
      %s305 = sadd.s32 %s303, %s304
      %s306 = smul.addr %s305, 4
      %s307 = scalar_lea.vmem %s5, %s306
      %s308 = smul.u32 8, %s21
      %p309 = scmp.lt.s32.totalorder %s20, 1
      %s310 = scalar_select %p309, %s20, 1
      %p311 = scmp.lt.s32.totalorder %s308, 23
      %s312 = scalar_select %p311, %s308, 23
      %s313 = smul.addr %s312, 3
      %s314 = smul.addr %s310, 72
      %s315 = sadd.s32 %s313, %s314
      %s316 = smul.addr %s315, 4
      %s317 = scalar_lea.vmem %s0, %s316
      %s318 = smul.u32 8, %s21
      %s319 = sadd.s32 %s21, 1
      %s320 = smul.u32 8, %s319
      %p321 = scmp.lt.s32.totalorder %s20, 1
      %s322 = scalar_select %p321, %s20, 1
      %p323 = scmp.lt.s32.totalorder %s320, 23
      %s324 = scalar_select %p323, %s320, 23
      %s325 = smul.addr %s324, 3
      %s326 = smul.addr %s322, 72
      %s327 = sadd.s32 %s325, %s326
      %s328 = smul.addr %s327, 4
      %s329 = scalar_lea.vmem %s1, %s328
      %s330 = sadd.s32 %s21, 1
      %s331 = smul.u32 8, %s330
      %s332 = smul.u32 8, %s21
      %p333 = scmp.lt.s32.totalorder %s20, 1
      %s334 = scalar_select %p333, %s20, 1
      %p335 = scmp.lt.s32.totalorder %s332, 15
      %s336 = scalar_select %p335, %s332, 15
      %s337 = smul.addr %s336, 2
      %s338 = smul.addr %s334, 32
      %s339 = sadd.s32 %s337, %s338
      %s340 = smul.addr %s339, 4
      %s341 = scalar_lea.vmem %s4, %s340
      %s342 = smul.u32 8, %s21
      %s343 = smul.u32 8, %s21
      %p344 = scmp.lt.s32.totalorder %s20, 1
      %s345 = scalar_select %p344, %s20, 1
      %p346 = scmp.lt.s32.totalorder %s343, 15
      %s347 = scalar_select %p346, %s343, 15
      %s348 = smul.addr %s347, 2
      %s349 = smul.addr %s345, 32
      %s350 = sadd.s32 %s348, %s349
      %s351 = smul.addr %s350, 4
      %s352 = scalar_lea.vmem %s5, %s351
      %s353 = smul.u32 8, %s21
      %v355 = vld [vmem:[%s317] sm:$0xf]
      %v356 = vld [vmem:[%s317 + $0x4] sm:$0xf]
      %v357 = vld [vmem:[%s317 + $0x8] sm:$0x1]
      %v358 = vld [vmem:[%s317 + $0xc] sm:$0xf]
      %v359 = vld [vmem:[%s317 + $0x10] sm:$0xf]
      %v360 = vld [vmem:[%s317 + $0x14] sm:$0x1]
      %v361 = vld [vmem:[%s317 + $0x18] sm:$0xf]
      %v362 = vld [vmem:[%s317 + $0x1c] sm:$0xf]
      %v363 = vld [vmem:[%s317 + $0x20] sm:$0x1]
      %v364 = vld [vmem:[%s317 + $0x24] sm:$0xf]
      %v365 = vld [vmem:[%s317 + $0x28] sm:$0xf]
      %v366 = vld [vmem:[%s317 + $0x2c] sm:$0x1]
      %v367 = vld [vmem:[%s317 + $0x30] sm:$0xf]
      %v368 = vld [vmem:[%s317 + $0x34] sm:$0xf]
      %v369 = vld [vmem:[%s317 + $0x38] sm:$0x1]
      %v370 = vld [vmem:[%s317 + $0x3c] sm:$0xf]
      %v371 = vld [vmem:[%s317 + $0x40] sm:$0xf]
      %v372 = vld [vmem:[%s317 + $0x44] sm:$0x1]
      %v373 = vld [vmem:[%s317 + $0x48] sm:$0xf]
      %v374 = vld [vmem:[%s317 + $0x4c] sm:$0xf]
      %v375 = vld [vmem:[%s317 + $0x50] sm:$0x1]
      %v376 = vld [vmem:[%s317 + $0x54] sm:$0xf]
      %v377 = vld [vmem:[%s317 + $0x58] sm:$0xf]
      %v378 = vld [vmem:[%s317 + $0x5c] sm:$0x1]
      %v379 = vld [vmem:[%s329] sm:$0xf]
      %v380 = vld [vmem:[%s329 + $0x4] sm:$0xf]
      %v381 = vld [vmem:[%s329 + $0x8] sm:$0x1]
      %v382 = vld [vmem:[%s329 + $0xc] sm:$0xf]
      %v383 = vld [vmem:[%s329 + $0x10] sm:$0xf]
      %v384 = vld [vmem:[%s329 + $0x14] sm:$0x1]
      %vm385 = vsmask.f32 3328
      %vm386 = vsmask.f32 7440
      %vm387 = vmor %vm385, %vm386
      %v389 = vshrl.u32 %v355, 16
      %v391 = vrot.slane %v389, 4
      %v392 = vshll.u32 %v355, 16
      %v394 = vrot.slane %v392, 5
      %v395 = vor.u32 %v391, %v394
      %v396 = vrot.slane %v395, 4
      %v398 = vshll.u32 %v356, 16
      %v400 = vrot.slane %v398, 5
      %v401 = vsel %vm387, %v396, %v400
      %v402 = vshrl.u32 %v356, 16
      %v404 = vrot.slane %v402, 4
      %v405 = vor.u32 %v404, %v400
      %v406 = vrot.slane %v405, 4
      %v408 = vshll.u32 %v357, 16
      %v410 = vrot.slane %v408, 5
      %v411 = vsel %vm387, %v406, %v410
      %v413 = vshrl.u32 %v358, 16
      %v415 = vrot.slane %v413, 4
      %v416 = vshll.u32 %v358, 16
      %v418 = vrot.slane %v416, 5
      %v419 = vor.u32 %v415, %v418
      %v420 = vrot.slane %v419, 4
      %v422 = vshll.u32 %v359, 16
      %v424 = vrot.slane %v422, 5
      %v425 = vsel %vm387, %v420, %v424
      %v426 = vshrl.u32 %v359, 16
      %v428 = vrot.slane %v426, 4
      %v429 = vor.u32 %v428, %v424
      %v430 = vrot.slane %v429, 4
      %v432 = vshll.u32 %v360, 16
      %v434 = vrot.slane %v432, 5
      %v435 = vsel %vm387, %v430, %v434
      %v437 = vshrl.u32 %v361, 16
      %v439 = vrot.slane %v437, 4
      %v440 = vshll.u32 %v361, 16
      %v442 = vrot.slane %v440, 5
      %v443 = vor.u32 %v439, %v442
      %v444 = vrot.slane %v443, 4
      %v446 = vshll.u32 %v362, 16
      %v448 = vrot.slane %v446, 5
      %v449 = vsel %vm387, %v444, %v448
      %v450 = vshrl.u32 %v362, 16
      %v452 = vrot.slane %v450, 4
      %v453 = vor.u32 %v452, %v448
      %v454 = vrot.slane %v453, 4
      %v456 = vshll.u32 %v363, 16
      %v458 = vrot.slane %v456, 5
      %v459 = vsel %vm387, %v454, %v458
      %v461 = vshrl.u32 %v364, 16
      %v463 = vrot.slane %v461, 4
      %v464 = vshll.u32 %v364, 16
      %v466 = vrot.slane %v464, 5
      %v467 = vor.u32 %v463, %v466
      %v468 = vrot.slane %v467, 4
      %v470 = vshll.u32 %v365, 16
      %v472 = vrot.slane %v470, 5
      %v473 = vsel %vm387, %v468, %v472
      %v474 = vshrl.u32 %v365, 16
      %v476 = vrot.slane %v474, 4
      %v477 = vor.u32 %v476, %v472
      %v478 = vrot.slane %v477, 4
      %v480 = vshll.u32 %v366, 16
      %v482 = vrot.slane %v480, 5
      %v483 = vsel %vm387, %v478, %v482
      %v485 = vshrl.u32 %v367, 16
      %v487 = vrot.slane %v485, 4
      %v488 = vshll.u32 %v367, 16
      %v490 = vrot.slane %v488, 5
      %v491 = vor.u32 %v487, %v490
      %v492 = vrot.slane %v491, 4
      %v494 = vshll.u32 %v368, 16
      %v496 = vrot.slane %v494, 5
      %v497 = vsel %vm387, %v492, %v496
      %v498 = vshrl.u32 %v368, 16
      %v500 = vrot.slane %v498, 4
      %v501 = vor.u32 %v500, %v496
      %v502 = vrot.slane %v501, 4
      %v504 = vshll.u32 %v369, 16
      %v506 = vrot.slane %v504, 5
      %v507 = vsel %vm387, %v502, %v506
      %v509 = vshrl.u32 %v370, 16
      %v511 = vrot.slane %v509, 4
      %v512 = vshll.u32 %v370, 16
      %v514 = vrot.slane %v512, 5
      %v515 = vor.u32 %v511, %v514
      %v516 = vrot.slane %v515, 4
      %v518 = vshll.u32 %v371, 16
      %v520 = vrot.slane %v518, 5
      %v521 = vsel %vm387, %v516, %v520
      %v522 = vshrl.u32 %v371, 16
      %v524 = vrot.slane %v522, 4
      %v525 = vor.u32 %v524, %v520
      %v526 = vrot.slane %v525, 4
      %v528 = vshll.u32 %v372, 16
      %v530 = vrot.slane %v528, 5
      %v531 = vsel %vm387, %v526, %v530
      %v533 = vshrl.u32 %v373, 16
      %v535 = vrot.slane %v533, 4
      %v536 = vshll.u32 %v373, 16
      %v538 = vrot.slane %v536, 5
      %v539 = vor.u32 %v535, %v538
      %v540 = vrot.slane %v539, 4
      %v542 = vshll.u32 %v374, 16
      %v544 = vrot.slane %v542, 5
      %v545 = vsel %vm387, %v540, %v544
      %v546 = vshrl.u32 %v374, 16
      %v548 = vrot.slane %v546, 4
      %v549 = vor.u32 %v548, %v544
      %v550 = vrot.slane %v549, 4
      %v552 = vshll.u32 %v375, 16
      %v554 = vrot.slane %v552, 5
      %v555 = vsel %vm387, %v550, %v554
      %v557 = vshrl.u32 %v376, 16
      %v559 = vrot.slane %v557, 4
      %v560 = vshll.u32 %v376, 16
      %v562 = vrot.slane %v560, 5
      %v563 = vor.u32 %v559, %v562
      %v564 = vrot.slane %v563, 4
      %v566 = vshll.u32 %v377, 16
      %v568 = vrot.slane %v566, 5
      %v569 = vsel %vm387, %v564, %v568
      %v570 = vshrl.u32 %v377, 16
      %v572 = vrot.slane %v570, 4
      %v573 = vor.u32 %v572, %v568
      %v574 = vrot.slane %v573, 4
      %v576 = vshll.u32 %v378, 16
      %v578 = vrot.slane %v576, 5
      %v579 = vsel %vm387, %v574, %v578
      %vm604 = vcmask 1042432
      %vm605 = vcmask 1046532
      %vm606 = vmor %vm604, %vm605
      %v607 = vrot.slane %v355, 5
      %v608 = vrot.slane %v607, 4
      %v609 = vrot.slane %v356, 5
      %v610 = vsel %vm606, %v608, %v609
      %v611 = vrot.slane %v609, 4
      %v612 = vrot.slane %v357, 5
      %v613 = vsel %vm606, %v611, %v612
      %v614 = vrot.slane %v358, 5
      %v615 = vrot.slane %v614, 4
      %v616 = vrot.slane %v359, 5
      %v617 = vsel %vm606, %v615, %v616
      %v618 = vrot.slane %v616, 4
      %v619 = vrot.slane %v360, 5
      %v620 = vsel %vm606, %v618, %v619
      %v621 = vrot.slane %v361, 5
      %v622 = vrot.slane %v621, 4
      %v623 = vrot.slane %v362, 5
      %v624 = vsel %vm606, %v622, %v623
      %v625 = vrot.slane %v623, 4
      %v626 = vrot.slane %v363, 5
      %v627 = vsel %vm606, %v625, %v626
      %v628 = vrot.slane %v364, 5
      %v629 = vrot.slane %v628, 4
      %v630 = vrot.slane %v365, 5
      %v631 = vsel %vm606, %v629, %v630
      %v632 = vrot.slane %v630, 4
      %v633 = vrot.slane %v366, 5
      %v634 = vsel %vm606, %v632, %v633
      %v635 = vrot.slane %v367, 5
      %v636 = vrot.slane %v635, 4
      %v637 = vrot.slane %v368, 5
      %v638 = vsel %vm606, %v636, %v637
      %v639 = vrot.slane %v637, 4
      %v640 = vrot.slane %v369, 5
      %v641 = vsel %vm606, %v639, %v640
      %v642 = vrot.slane %v370, 5
      %v643 = vrot.slane %v642, 4
      %v644 = vrot.slane %v371, 5
      %v645 = vsel %vm606, %v643, %v644
      %v646 = vrot.slane %v644, 4
      %v647 = vrot.slane %v372, 5
      %v648 = vsel %vm606, %v646, %v647
      %v649 = vrot.slane %v373, 5
      %v650 = vrot.slane %v649, 4
      %v651 = vrot.slane %v374, 5
      %v652 = vsel %vm606, %v650, %v651
      %v653 = vrot.slane %v651, 4
      %v654 = vrot.slane %v375, 5
      %v655 = vsel %vm606, %v653, %v654
      %v656 = vrot.slane %v376, 5
      %v657 = vrot.slane %v656, 4
      %v658 = vrot.slane %v377, 5
      %v659 = vsel %vm606, %v657, %v658
      %v660 = vrot.slane %v658, 4
      %v661 = vrot.slane %v378, 5
      %v662 = vsel %vm606, %v660, %v661
      %v663 = vunpack.c.l.b16 %v355
      %v664 = vunpack.c.l.b16 %v356
      %v665 = vunpack.c.l.b16 %v358
      %v666 = vunpack.c.l.b16 %v359
      %v667 = vunpack.c.l.b16 %v361
      %v668 = vunpack.c.l.b16 %v362
      %v669 = vunpack.c.l.b16 %v364
      %v670 = vunpack.c.l.b16 %v365
      %v671 = vunpack.c.l.b16 %v367
      %v672 = vunpack.c.l.b16 %v368
      %v673 = vunpack.c.l.b16 %v370
      %v674 = vunpack.c.l.b16 %v371
      %v675 = vunpack.c.l.b16 %v373
      %v676 = vunpack.c.l.b16 %v374
      %v677 = vunpack.c.l.b16 %v376
      %v678 = vunpack.c.l.b16 %v377
      %v679 = vpack.c.b16 %v664, %v663
      %v680 = vpack.c.b16 %v666, %v665
      %v681 = vpack.c.b16 %v668, %v667
      %v682 = vpack.c.b16 %v670, %v669
      %v683 = vpack.c.b16 %v672, %v671
      %v684 = vpack.c.b16 %v674, %v673
      %v685 = vpack.c.b16 %v676, %v675
      %v686 = vpack.c.b16 %v678, %v677
      %v687 = vunpack.c.l.b16 %v401
      %v688 = vunpack.c.l.b16 %v411
      %v689 = vunpack.c.l.b16 %v425
      %v690 = vunpack.c.l.b16 %v435
      %v691 = vunpack.c.l.b16 %v449
      %v692 = vunpack.c.l.b16 %v459
      %v693 = vunpack.c.l.b16 %v473
      %v694 = vunpack.c.l.b16 %v483
      %v695 = vunpack.c.l.b16 %v497
      %v696 = vunpack.c.l.b16 %v507
      %v697 = vunpack.c.l.b16 %v521
      %v698 = vunpack.c.l.b16 %v531
      %v699 = vunpack.c.l.b16 %v545
      %v700 = vunpack.c.l.b16 %v555
      %v701 = vunpack.c.l.b16 %v569
      %v702 = vunpack.c.l.b16 %v579
      %v703 = vpack.c.b16 %v688, %v687
      %v704 = vpack.c.b16 %v690, %v689
      %v705 = vpack.c.b16 %v692, %v691
      %v706 = vpack.c.b16 %v694, %v693
      %v707 = vpack.c.b16 %v696, %v695
      %v708 = vpack.c.b16 %v698, %v697
      %v709 = vpack.c.b16 %v700, %v699
      %v710 = vpack.c.b16 %v702, %v701
      %711 = vrot.lane.b32.xlu0 %v703, 32
      %v712 = vpop.permute.xlu0 %711
      %713 = vrot.lane.b32.xlu0 %v704, 32
      %v714 = vpop.permute.xlu0 %713
      %715 = vrot.lane.b32.xlu0 %v705, 32
      %v716 = vpop.permute.xlu0 %715
      %717 = vrot.lane.b32.xlu0 %v706, 32
      %v718 = vpop.permute.xlu0 %717
      %719 = vrot.lane.b32.xlu0 %v707, 32
      %v720 = vpop.permute.xlu0 %719
      %721 = vrot.lane.b32.xlu0 %v708, 32
      %v722 = vpop.permute.xlu0 %721
      %723 = vrot.lane.b32.xlu0 %v709, 32
      %v724 = vpop.permute.xlu0 %723
      %725 = vrot.lane.b32.xlu0 %v710, 32
      %v726 = vpop.permute.xlu0 %725
      %v727 = vunpack.c.l.b16 %v610
      %v728 = vunpack.c.l.b16 %v613
      %v729 = vunpack.c.l.b16 %v617
      %v730 = vunpack.c.l.b16 %v620
      %v731 = vunpack.c.l.b16 %v624
      %v732 = vunpack.c.l.b16 %v627
      %v733 = vunpack.c.l.b16 %v631
      %v734 = vunpack.c.l.b16 %v634
      %v735 = vunpack.c.l.b16 %v638
      %v736 = vunpack.c.l.b16 %v641
      %v737 = vunpack.c.l.b16 %v645
      %v738 = vunpack.c.l.b16 %v648
      %v739 = vunpack.c.l.b16 %v652
      %v740 = vunpack.c.l.b16 %v655
      %v741 = vunpack.c.l.b16 %v659
      %v742 = vunpack.c.l.b16 %v662
      %v743 = vpack.c.b16 %v728, %v727
      %v744 = vpack.c.b16 %v730, %v729
      %v745 = vpack.c.b16 %v732, %v731
      %v746 = vpack.c.b16 %v734, %v733
      %v747 = vpack.c.b16 %v736, %v735
      %v748 = vpack.c.b16 %v738, %v737
      %v749 = vpack.c.b16 %v740, %v739
      %v750 = vpack.c.b16 %v742, %v741
      %751 = vrot.lane.b32.xlu0 %v743, 64
      %v752 = vpop.permute.xlu0 %751
      %753 = vrot.lane.b32.xlu0 %v744, 64
      %v754 = vpop.permute.xlu0 %753
      %755 = vrot.lane.b32.xlu0 %v745, 64
      %v756 = vpop.permute.xlu0 %755
      %757 = vrot.lane.b32.xlu0 %v746, 64
      %v758 = vpop.permute.xlu0 %757
      %759 = vrot.lane.b32.xlu0 %v747, 64
      %v760 = vpop.permute.xlu0 %759
      %761 = vrot.lane.b32.xlu0 %v748, 64
      %v762 = vpop.permute.xlu0 %761
      %763 = vrot.lane.b32.xlu0 %v749, 64
      %v764 = vpop.permute.xlu0 %763
      %765 = vrot.lane.b32.xlu0 %v750, 64
      %v766 = vpop.permute.xlu0 %765
      %vm767 = vcmask 261120
      %v770 = vsel %vm767, %v679, %v712
      %v773 = vsel %vm767, %v680, %v714
      %v776 = vsel %vm767, %v681, %v716
      %v779 = vsel %vm767, %v682, %v718
      %v782 = vsel %vm767, %v683, %v720
      %v785 = vsel %vm767, %v684, %v722
      %v788 = vsel %vm767, %v685, %v724
      %v791 = vsel %vm767, %v686, %v726
      %vm792 = vcmask 523264
      %v794 = vsel %vm792, %v770, %v752
      %v796 = vsel %vm792, %v773, %v754
      %v798 = vsel %vm792, %v776, %v756
      %v800 = vsel %vm792, %v779, %v758
      %v802 = vsel %vm792, %v782, %v760
      %v804 = vsel %vm792, %v785, %v762
      %v806 = vsel %vm792, %v788, %v764
      %v808 = vsel %vm792, %v791, %v766
      %v809 = vld [vmem:[%s2] sm:$0xf]
      %v810 = vld [vmem:[%s2 + $0x4] sm:$0xf]
      %v811 = vld [vmem:[%s2 + $0x8] sm:$0xf]
      %v812 = vld [vmem:[%s2 + $0xc] sm:$0xf]
      %v813 = vld [vmem:[%s2 + $0x10] sm:$0xf]
      %v814 = vld [vmem:[%s2 + $0x14] sm:$0xf]
      %v815 = vld [vmem:[%s2 + $0x18] sm:$0xf]
      %v816 = vld [vmem:[%s2 + $0x1c] sm:$0xf]
      %v817 = vld [vmem:[%s2 + $0x20] sm:$0xf]
      %v818 = vld [vmem:[%s2 + $0x24] sm:$0xf]
      %v819 = vld [vmem:[%s2 + $0x28] sm:$0xf]
      %v820 = vld [vmem:[%s2 + $0x2c] sm:$0xf]
      %v822 = vshrl.u32 %v379, 16
      %v824 = vrot.slane %v822, 4
      %v825 = vshll.u32 %v379, 16
      %v827 = vrot.slane %v825, 5
      %v828 = vor.u32 %v824, %v827
      %v829 = vrot.slane %v828, 4
      %v831 = vshll.u32 %v380, 16
      %v833 = vrot.slane %v831, 5
      %v834 = vsel %vm387, %v829, %v833
      %v835 = vshrl.u32 %v380, 16
      %v837 = vrot.slane %v835, 4
      %v838 = vor.u32 %v837, %v833
      %v839 = vrot.slane %v838, 4
      %v841 = vshll.u32 %v381, 16
      %v843 = vrot.slane %v841, 5
      %v844 = vsel %vm387, %v839, %v843
      %v848 = vrot.slane %v379, 5
      %v849 = vrot.slane %v848, 4
      %v850 = vrot.slane %v380, 5
      %v851 = vsel %vm606, %v849, %v850
      %v852 = vrot.slane %v850, 4
      %v853 = vrot.slane %v381, 5
      %v854 = vsel %vm606, %v852, %v853
      %v855 = vunpack.c.l.b16 %v379
      %v856 = vunpack.c.l.b16 %v380
      %v857 = vpack.c.b16 %v856, %v855
      %v858 = vunpack.c.l.b16 %v834
      %v859 = vunpack.c.l.b16 %v844
      %v860 = vpack.c.b16 %v859, %v858
      %861 = vrot.lane.b32.xlu0 %v860, 32
      %v862 = vpop.permute.xlu0 %861
      %v863 = vunpack.c.l.b16 %v851
      %v864 = vunpack.c.l.b16 %v854
      %v865 = vpack.c.b16 %v864, %v863
      %866 = vrot.lane.b32.xlu0 %v865, 64
      %v867 = vpop.permute.xlu0 %866
      %v870 = vsel %vm767, %v857, %v862
      %v872 = vsel %vm792, %v870, %v867
      %s873 = scalar_lea.vmem %s2, 48
      %v874 = vld [vmem:[%s873] sm:$0xf]
      %v875 = vld [vmem:[%s873 + $0x4] sm:$0xf]
      %v876 = vld [vmem:[%s873 + $0x8] sm:$0xf]
      %v877 = vld [vmem:[%s873 + $0xc] sm:$0xf]
      %v878 = vld [vmem:[%s873 + $0x10] sm:$0xf]
      %v879 = vld [vmem:[%s873 + $0x14] sm:$0xf]
      %v880 = vld [vmem:[%s873 + $0x18] sm:$0xf]
      %v881 = vld [vmem:[%s873 + $0x1c] sm:$0xf]
      %v882 = vld [vmem:[%s873 + $0x20] sm:$0xf]
      %v883 = vld [vmem:[%s873 + $0x24] sm:$0xf]
      %v884 = vld [vmem:[%s873 + $0x28] sm:$0xf]
      %v885 = vld [vmem:[%s873 + $0x2c] sm:$0xf]
      %v898 = vunpack.c.l.b16 %v874
      %v899 = vunpack.c.l.b16 %v875
      %v900 = vunpack.c.l.b16 %v876
      %v901 = vunpack.c.l.b16 %v877
      %v902 = vunpack.c.l.b16 %v878
      %v903 = vunpack.c.l.b16 %v879
      %v904 = vunpack.c.l.b16 %v880
      %v905 = vunpack.c.l.b16 %v881
      %v906 = vunpack.c.l.b16 %v882
      %v907 = vunpack.c.l.b16 %v883
      %v908 = vunpack.c.l.b16 %v884
      %v909 = vunpack.c.l.b16 %v885
      %v910 = vpack.c.b16 %v899, %v898
      %v911 = vpack.c.b16 %v901, %v900
      %v912 = vpack.c.b16 %v903, %v902
      %v913 = vpack.c.b16 %v905, %v904
      %v914 = vpack.c.b16 %v907, %v906
      %v915 = vpack.c.b16 %v909, %v908
      %vm922 = vcmask 785408
      %v923 = vsel %vm922, %v796, 0
      %v925 = vsel %vm922, %v798, 0
      %v927 = vsel %vm922, %v800, 0
      %v929 = vsel %vm922, %v802, 0
      %v931 = vsel %vm922, %v804, 0
      %v933 = vsel %vm922, %v806, 0
      %v935 = vsel %vm922, %v808, 0
      %v937 = vsel %vm922, %v872, 0
      %939 = vmatprep.subr.bf16.mxu0 0
      %940 = vmatpush1.bf16.msra.mxu0 %v910
      %941 = vmatprep.subr.bf16.mxu0 0
      %942 = vmatpush1.bf16.msra.mxu0 %v911
      %943 = vmatprep.subr.bf16.mxu0 0
      %944 = vmatpush1.bf16.msra.mxu0 %v912
      %945 = vmatprep.subr.bf16.mxu0 0
      %946 = vmatpush1.bf16.msra.mxu0 %v913
      %947 = vmatprep.subr.bf16.mxu0 0
      %948 = vmatpush1.bf16.msra.mxu0 %v914
      %949 = vmatprep.subr.bf16.mxu0 0
      %950 = vmatpush1.bf16.msra.mxu0 %v915
      %951 = vmatprep.subr.bf16.mxu0 0
      %952 = vmatpush1.bf16.msra.mxu0 0
      %953 = vmatprep.subr.bf16.mxu0 0
      %954 = vmatpush1.bf16.msra.mxu0 0
      %955 = vmatprep.subr.bf16.mxu0 0
      %956 = vmatpush1.bf16.msra.mxu0 0
      %957 = vmatprep.subr.bf16.mxu0 0
      %958 = vmatpush1.bf16.msra.mxu0 0
      %959 = vmatprep.subr.bf16.mxu0 0
      %960 = vmatpush1.bf16.msra.mxu0 0
      %961 = vmatprep.subr.bf16.mxu0 0
      %962 = vmatpush1.bf16.msra.mxu0 0
      %963 = vmatprep.subr.bf16.mxu0 0
      %964 = vmatpush1.bf16.msra.mxu0 0
      %965 = vmatprep.subr.bf16.mxu0 0
      %966 = vmatpush1.bf16.msra.mxu0 0
      %967 = vmatprep.subr.bf16.mxu0 0
      %968 = vmatpush1.bf16.msra.mxu0 0
      %969 = vmatprep.subr.bf16.mxu0 0
      %970 = vmatpush1.bf16.msra.mxu0 0
      %971 = vmatprep.mubr.bf16.mxu0 0
      %972 = vmatmul.mubr.bf16.gmra.mrb[0].mxu0 %v923
      %v973 = vpop.f32.mrb[0].mxu0
      %v974 = vadd.f32 0.0, %v973
      %v975 = vpop.f32.mrb[0].mxu0
      %v976 = vpop.f32.mrb[0].mxu0
      %v977 = vadd.f32 0.0, %v976
      %v978 = vpop.f32.mrb[0].mxu0
      %979 = vmatprep.mubr.bf16.mxu0 0
      %980 = vmatmul.mubr.bf16.gmra.mrb[0].mxu0 %v925
      %v981 = vpop.f32.mrb[0].mxu0
      %v982 = vadd.f32 0.0, %v981
      %v983 = vpop.f32.mrb[0].mxu0
      %v984 = vpop.f32.mrb[0].mxu0
      %v985 = vadd.f32 0.0, %v984
      %v986 = vpop.f32.mrb[0].mxu0
      %987 = vmatprep.mubr.bf16.mxu0 0
      %988 = vmatmul.mubr.bf16.gmra.mrb[0].mxu0 %v927
      %v989 = vpop.f32.mrb[0].mxu0
      %v990 = vadd.f32 0.0, %v989
      %v991 = vpop.f32.mrb[0].mxu0
      %v992 = vpop.f32.mrb[0].mxu0
      %v993 = vadd.f32 0.0, %v992
      %v994 = vpop.f32.mrb[0].mxu0
      %995 = vmatprep.mubr.bf16.mxu0 0
      %996 = vmatmul.mubr.bf16.gmra.mrb[0].mxu0 %v929
      %v997 = vpop.f32.mrb[0].mxu0
      %v998 = vadd.f32 0.0, %v997
      %v999 = vpop.f32.mrb[0].mxu0
      %v1000 = vpop.f32.mrb[0].mxu0
      %v1001 = vadd.f32 0.0, %v1000
      %v1002 = vpop.f32.mrb[0].mxu0
      %1003 = vmatprep.mubr.bf16.mxu0 0
      %1004 = vmatmul.mubr.bf16.gmra.mrb[0].mxu0 %v931
      %v1005 = vpop.f32.mrb[0].mxu0
      %v1006 = vadd.f32 0.0, %v1005
      %v1007 = vpop.f32.mrb[0].mxu0
      %v1008 = vpop.f32.mrb[0].mxu0
      %v1009 = vadd.f32 0.0, %v1008
      %v1010 = vpop.f32.mrb[0].mxu0
      %1011 = vmatprep.mubr.bf16.mxu0 0
      %1012 = vmatmul.mubr.bf16.gmra.mrb[0].mxu0 %v933
      %v1013 = vpop.f32.mrb[0].mxu0
      %v1014 = vadd.f32 0.0, %v1013
      %v1015 = vpop.f32.mrb[0].mxu0
      %v1016 = vpop.f32.mrb[0].mxu0
      %v1017 = vadd.f32 0.0, %v1016
      %v1018 = vpop.f32.mrb[0].mxu0
      %1019 = vmatprep.mubr.bf16.mxu0 0
      %1020 = vmatmul.mubr.bf16.gmra.mrb[0].mxu0 %v935
      %v1021 = vpop.f32.mrb[0].mxu0
      %v1022 = vadd.f32 0.0, %v1021
      %v1023 = vpop.f32.mrb[0].mxu0
      %v1024 = vpop.f32.mrb[0].mxu0
      %v1025 = vadd.f32 0.0, %v1024
      %v1026 = vpop.f32.mrb[0].mxu0
      %1027 = vmatprep.mubr.bf16.mxu0 0
      %1028 = vmatmul.mubr.bf16.gmra.mrb[0].mxu0 %v937
      %v1029 = vpop.f32.mrb[0].mxu0
      %v1030 = vadd.f32 0.0, %v1029
      %v1031 = vpop.f32.mrb[0].mxu0
      %v1032 = vpop.f32.mrb[0].mxu0
      %v1033 = vadd.f32 0.0, %v1032
      %v1034 = vpop.f32.mrb[0].mxu0
      %1035 = vdwg.mxu0
      %v1048 = vunpack.c.l.b16 %v809
      %v1049 = vunpack.c.l.b16 %v810
      %v1050 = vunpack.c.l.b16 %v811
      %v1051 = vunpack.c.l.b16 %v812
      %v1052 = vunpack.c.l.b16 %v813
      %v1053 = vunpack.c.l.b16 %v814
      %v1054 = vunpack.c.l.b16 %v815
      %v1055 = vunpack.c.l.b16 %v816
      %v1056 = vunpack.c.l.b16 %v817
      %v1057 = vunpack.c.l.b16 %v818
      %v1058 = vunpack.c.l.b16 %v819
      %v1059 = vunpack.c.l.b16 %v820
      %v1060 = vpack.c.b16 %v1049, %v1048
      %v1061 = vpack.c.b16 %v1051, %v1050
      %v1062 = vpack.c.b16 %v1053, %v1052
      %v1063 = vpack.c.b16 %v1055, %v1054
      %v1064 = vpack.c.b16 %v1057, %v1056
      %v1065 = vpack.c.b16 %v1059, %v1058
      %v1072 = vsel %vm922, %v794, 0
      %1074 = vmatprep.subr.bf16.mxu0 0
      %1075 = vmatpush1.bf16.msra.mxu0 %v1060
      %1076 = vmatprep.subr.bf16.mxu0 0
      %1077 = vmatpush1.bf16.msra.mxu0 %v1061
      %1078 = vmatprep.subr.bf16.mxu0 0
      %1079 = vmatpush1.bf16.msra.mxu0 %v1062
      %1080 = vmatprep.subr.bf16.mxu0 0
      %1081 = vmatpush1.bf16.msra.mxu0 %v1063
      %1082 = vmatprep.subr.bf16.mxu0 0
      %1083 = vmatpush1.bf16.msra.mxu0 %v1064
      %1084 = vmatprep.subr.bf16.mxu0 0
      %1085 = vmatpush1.bf16.msra.mxu0 %v1065
      %1086 = vmatprep.subr.bf16.mxu0 0
      %1087 = vmatpush1.bf16.msra.mxu0 0
      %1088 = vmatprep.subr.bf16.mxu0 0
      %1089 = vmatpush1.bf16.msra.mxu0 0
      %1090 = vmatprep.subr.bf16.mxu0 0
      %1091 = vmatpush1.bf16.msra.mxu0 0
      %1092 = vmatprep.subr.bf16.mxu0 0
      %1093 = vmatpush1.bf16.msra.mxu0 0
      %1094 = vmatprep.subr.bf16.mxu0 0
      %1095 = vmatpush1.bf16.msra.mxu0 0
      %1096 = vmatprep.subr.bf16.mxu0 0
      %1097 = vmatpush1.bf16.msra.mxu0 0
      %1098 = vmatprep.subr.bf16.mxu0 0
      %1099 = vmatpush1.bf16.msra.mxu0 0
      %1100 = vmatprep.subr.bf16.mxu0 0
      %1101 = vmatpush1.bf16.msra.mxu0 0
      %1102 = vmatprep.subr.bf16.mxu0 0
      %1103 = vmatpush1.bf16.msra.mxu0 0
      %1104 = vmatprep.subr.bf16.mxu0 0
      %1105 = vmatpush1.bf16.msra.mxu0 0
      %1106 = vmatprep.mubr.bf16.mxu0 0
      %1107 = vmatmul.mubr.bf16.gmra.mrb[0].mxu0 %v1072
      %v1108 = vpop.f32.mrb[0].mxu0
      %v1109 = vadd.f32 %v974, %v1108
      %v1110 = vpop.f32.mrb[0].mxu0
      %v1111 = vpop.f32.mrb[0].mxu0
      %v1112 = vadd.f32 %v977, %v1111
      %v1113 = vpop.f32.mrb[0].mxu0
      %1114 = vmatprep.mubr.bf16.mxu0 0
      %1115 = vmatmul.mubr.bf16.gmra.mrb[0].mxu0 %v923
      %v1116 = vpop.f32.mrb[0].mxu0
      %v1117 = vadd.f32 %v982, %v1116
      %v1118 = vpop.f32.mrb[0].mxu0
      %v1119 = vpop.f32.mrb[0].mxu0
      %v1120 = vadd.f32 %v985, %v1119
      %v1121 = vpop.f32.mrb[0].mxu0
      %1122 = vmatprep.mubr.bf16.mxu0 0
      %1123 = vmatmul.mubr.bf16.gmra.mrb[0].mxu0 %v925
      %v1124 = vpop.f32.mrb[0].mxu0
      %v1125 = vadd.f32 %v990, %v1124
      %v1126 = vpop.f32.mrb[0].mxu0
      %v1127 = vpop.f32.mrb[0].mxu0
      %v1128 = vadd.f32 %v993, %v1127
      %v1129 = vpop.f32.mrb[0].mxu0
      %1130 = vmatprep.mubr.bf16.mxu0 0
      %1131 = vmatmul.mubr.bf16.gmra.mrb[0].mxu0 %v927
      %v1132 = vpop.f32.mrb[0].mxu0
      %v1133 = vadd.f32 %v998, %v1132
      %v1134 = vpop.f32.mrb[0].mxu0
      %v1135 = vpop.f32.mrb[0].mxu0
      %v1136 = vadd.f32 %v1001, %v1135
      %v1137 = vpop.f32.mrb[0].mxu0
      %1138 = vmatprep.mubr.bf16.mxu0 0
      %1139 = vmatmul.mubr.bf16.gmra.mrb[0].mxu0 %v929
      %v1140 = vpop.f32.mrb[0].mxu0
      %v1141 = vadd.f32 %v1006, %v1140
      %v1142 = vpop.f32.mrb[0].mxu0
      %v1143 = vpop.f32.mrb[0].mxu0
      %v1144 = vadd.f32 %v1009, %v1143
      %v1145 = vpop.f32.mrb[0].mxu0
      %1146 = vmatprep.mubr.bf16.mxu0 0
      %1147 = vmatmul.mubr.bf16.gmra.mrb[0].mxu0 %v931
      %v1148 = vpop.f32.mrb[0].mxu0
      %v1149 = vadd.f32 %v1014, %v1148
      %v1150 = vpop.f32.mrb[0].mxu0
      %v1151 = vpop.f32.mrb[0].mxu0
      %v1152 = vadd.f32 %v1017, %v1151
      %v1153 = vpop.f32.mrb[0].mxu0
      %1154 = vmatprep.mubr.bf16.mxu0 0
      %1155 = vmatmul.mubr.bf16.gmra.mrb[0].mxu0 %v933
      %v1156 = vpop.f32.mrb[0].mxu0
      %v1157 = vadd.f32 %v1022, %v1156
      %v1158 = vpop.f32.mrb[0].mxu0
      %v1159 = vpop.f32.mrb[0].mxu0
      %v1160 = vadd.f32 %v1025, %v1159
      %v1161 = vpop.f32.mrb[0].mxu0
      %1162 = vmatprep.mubr.bf16.mxu0 0
      %1163 = vmatmul.mubr.bf16.gmra.mrb[0].mxu0 %v935
      %v1164 = vpop.f32.mrb[0].mxu0
      %v1165 = vadd.f32 %v1030, %v1164
      %v1166 = vpop.f32.mrb[0].mxu0
      %v1167 = vpop.f32.mrb[0].mxu0
      %v1168 = vadd.f32 %v1033, %v1167
      %v1169 = vpop.f32.mrb[0].mxu0
      %1170 = vdwg.mxu0
      %v1172 = vshrl.u32 %v382, 16
      %v1174 = vrot.slane %v1172, 4
      %v1175 = vshll.u32 %v382, 16
      %v1177 = vrot.slane %v1175, 5
      %v1178 = vor.u32 %v1174, %v1177
      %v1179 = vrot.slane %v1178, 4
      %v1181 = vshll.u32 %v383, 16
      %v1183 = vrot.slane %v1181, 5
      %v1184 = vsel %vm387, %v1179, %v1183
      %v1185 = vshrl.u32 %v383, 16
      %v1187 = vrot.slane %v1185, 4
      %v1188 = vor.u32 %v1187, %v1183
      %v1189 = vrot.slane %v1188, 4
      %v1191 = vshll.u32 %v384, 16
      %v1193 = vrot.slane %v1191, 5
      %v1194 = vsel %vm387, %v1189, %v1193
      %v1198 = vrot.slane %v382, 5
      %v1199 = vrot.slane %v1198, 4
      %v1200 = vrot.slane %v383, 5
      %v1201 = vsel %vm606, %v1199, %v1200
      %v1202 = vrot.slane %v1200, 4
      %v1203 = vrot.slane %v384, 5
      %v1204 = vsel %vm606, %v1202, %v1203
      %v1205 = vunpack.c.l.b16 %v382
      %v1206 = vunpack.c.l.b16 %v383
      %v1207 = vpack.c.b16 %v1206, %v1205
      %v1208 = vunpack.c.l.b16 %v1184
      %v1209 = vunpack.c.l.b16 %v1194
      %v1210 = vpack.c.b16 %v1209, %v1208
      %1211 = vrot.lane.b32.xlu0 %v1210, 32
      %v1212 = vpop.permute.xlu0 %1211
      %v1213 = vunpack.c.l.b16 %v1201
      %v1214 = vunpack.c.l.b16 %v1204
      %v1215 = vpack.c.b16 %v1214, %v1213
      %1216 = vrot.lane.b32.xlu0 %v1215, 64
      %v1217 = vpop.permute.xlu0 %1216
      %v1220 = vsel %vm767, %v1207, %v1212
      %v1222 = vsel %vm792, %v1220, %v1217
      %s1223 = scalar_lea.vmem %s2, 96
      %v1224 = vld [vmem:[%s1223] sm:$0xf]
      %v1225 = vld [vmem:[%s1223 + $0x4] sm:$0xf]
      %v1226 = vld [vmem:[%s1223 + $0x8] sm:$0xf]
      %v1227 = vld [vmem:[%s1223 + $0xc] sm:$0xf]
      %v1228 = vld [vmem:[%s1223 + $0x10] sm:$0xf]
      %v1229 = vld [vmem:[%s1223 + $0x14] sm:$0xf]
      %v1230 = vld [vmem:[%s1223 + $0x18] sm:$0xf]
      %v1231 = vld [vmem:[%s1223 + $0x1c] sm:$0xf]
      %v1232 = vld [vmem:[%s1223 + $0x20] sm:$0xf]
      %v1233 = vld [vmem:[%s1223 + $0x24] sm:$0xf]
      %v1234 = vld [vmem:[%s1223 + $0x28] sm:$0xf]
      %v1235 = vld [vmem:[%s1223 + $0x2c] sm:$0xf]
      %v1248 = vunpack.c.l.b16 %v1224
      %v1249 = vunpack.c.l.b16 %v1225
      %v1250 = vunpack.c.l.b16 %v1226
      %v1251 = vunpack.c.l.b16 %v1227
      %v1252 = vunpack.c.l.b16 %v1228
      %v1253 = vunpack.c.l.b16 %v1229
      %v1254 = vunpack.c.l.b16 %v1230
      %v1255 = vunpack.c.l.b16 %v1231
      %v1256 = vunpack.c.l.b16 %v1232
      %v1257 = vunpack.c.l.b16 %v1233
      %v1258 = vunpack.c.l.b16 %v1234
      %v1259 = vunpack.c.l.b16 %v1235
      %v1260 = vpack.c.b16 %v1249, %v1248
      %v1261 = vpack.c.b16 %v1251, %v1250
      %v1262 = vpack.c.b16 %v1253, %v1252
      %v1263 = vpack.c.b16 %v1255, %v1254
      %v1264 = vpack.c.b16 %v1257, %v1256
      %v1265 = vpack.c.b16 %v1259, %v1258
      %v1272 = vsel %vm922, %v1222, 0
      %1274 = vmatprep.subr.bf16.mxu0 0
      %1275 = vmatpush1.bf16.msra.mxu0 %v1260
      %1276 = vmatprep.subr.bf16.mxu0 0
      %1277 = vmatpush1.bf16.msra.mxu0 %v1261
      %1278 = vmatprep.subr.bf16.mxu0 0
      %1279 = vmatpush1.bf16.msra.mxu0 %v1262
      %1280 = vmatprep.subr.bf16.mxu0 0
      %1281 = vmatpush1.bf16.msra.mxu0 %v1263
      %1282 = vmatprep.subr.bf16.mxu0 0
      %1283 = vmatpush1.bf16.msra.mxu0 %v1264
      %1284 = vmatprep.subr.bf16.mxu0 0
      %1285 = vmatpush1.bf16.msra.mxu0 %v1265
      %1286 = vmatprep.subr.bf16.mxu0 0
      %1287 = vmatpush1.bf16.msra.mxu0 0
      %1288 = vmatprep.subr.bf16.mxu0 0
      %1289 = vmatpush1.bf16.msra.mxu0 0
      %1290 = vmatprep.subr.bf16.mxu0 0
      %1291 = vmatpush1.bf16.msra.mxu0 0
      %1292 = vmatprep.subr.bf16.mxu0 0
      %1293 = vmatpush1.bf16.msra.mxu0 0
      %1294 = vmatprep.subr.bf16.mxu0 0
      %1295 = vmatpush1.bf16.msra.mxu0 0
      %1296 = vmatprep.subr.bf16.mxu0 0
      %1297 = vmatpush1.bf16.msra.mxu0 0
      %1298 = vmatprep.subr.bf16.mxu0 0
      %1299 = vmatpush1.bf16.msra.mxu0 0
      %1300 = vmatprep.subr.bf16.mxu0 0
      %1301 = vmatpush1.bf16.msra.mxu0 0
      %1302 = vmatprep.subr.bf16.mxu0 0
      %1303 = vmatpush1.bf16.msra.mxu0 0
      %1304 = vmatprep.subr.bf16.mxu0 0
      %1305 = vmatpush1.bf16.msra.mxu0 0
      %1306 = vmatprep.mubr.bf16.mxu0 0
      %1307 = vmatmul.mubr.bf16.gmra.mrb[0].mxu0 %v925
      %v1308 = vpop.f32.mrb[0].mxu0
      %v1309 = vadd.f32 0.0, %v1308
      %v1310 = vpop.f32.mrb[0].mxu0
      %v1311 = vpop.f32.mrb[0].mxu0
      %v1312 = vadd.f32 0.0, %v1311
      %v1313 = vpop.f32.mrb[0].mxu0
      %1314 = vmatprep.mubr.bf16.mxu0 0
      %1315 = vmatmul.mubr.bf16.gmra.mrb[0].mxu0 %v927
      %v1316 = vpop.f32.mrb[0].mxu0
      %v1317 = vadd.f32 0.0, %v1316
      %v1318 = vpop.f32.mrb[0].mxu0
      %v1319 = vpop.f32.mrb[0].mxu0
      %v1320 = vadd.f32 0.0, %v1319
      %v1321 = vpop.f32.mrb[0].mxu0
      %1322 = vmatprep.mubr.bf16.mxu0 0
      %1323 = vmatmul.mubr.bf16.gmra.mrb[0].mxu0 %v929
      %v1324 = vpop.f32.mrb[0].mxu0
      %v1325 = vadd.f32 0.0, %v1324
      %v1326 = vpop.f32.mrb[0].mxu0
      %v1327 = vpop.f32.mrb[0].mxu0
      %v1328 = vadd.f32 0.0, %v1327
      %v1329 = vpop.f32.mrb[0].mxu0
      %1330 = vmatprep.mubr.bf16.mxu0 0
      %1331 = vmatmul.mubr.bf16.gmra.mrb[0].mxu0 %v931
      %v1332 = vpop.f32.mrb[0].mxu0
      %v1333 = vadd.f32 0.0, %v1332
      %v1334 = vpop.f32.mrb[0].mxu0
      %v1335 = vpop.f32.mrb[0].mxu0
      %v1336 = vadd.f32 0.0, %v1335
      %v1337 = vpop.f32.mrb[0].mxu0
      %1338 = vmatprep.mubr.bf16.mxu0 0
      %1339 = vmatmul.mubr.bf16.gmra.mrb[0].mxu0 %v933
      %v1340 = vpop.f32.mrb[0].mxu0
      %v1341 = vadd.f32 0.0, %v1340
      %v1342 = vpop.f32.mrb[0].mxu0
      %v1343 = vpop.f32.mrb[0].mxu0
      %v1344 = vadd.f32 0.0, %v1343
      %v1345 = vpop.f32.mrb[0].mxu0
      %1346 = vmatprep.mubr.bf16.mxu0 0
      %1347 = vmatmul.mubr.bf16.gmra.mrb[0].mxu0 %v935
      %v1348 = vpop.f32.mrb[0].mxu0
      %v1349 = vadd.f32 0.0, %v1348
      %v1350 = vpop.f32.mrb[0].mxu0
      %v1351 = vpop.f32.mrb[0].mxu0
      %v1352 = vadd.f32 0.0, %v1351
      %v1353 = vpop.f32.mrb[0].mxu0
      %1354 = vmatprep.mubr.bf16.mxu0 0
      %1355 = vmatmul.mubr.bf16.gmra.mrb[0].mxu0 %v937
      %v1356 = vpop.f32.mrb[0].mxu0
      %v1357 = vadd.f32 0.0, %v1356
      %v1358 = vpop.f32.mrb[0].mxu0
      %v1359 = vpop.f32.mrb[0].mxu0
      %v1360 = vadd.f32 0.0, %v1359
      %v1361 = vpop.f32.mrb[0].mxu0
      %1362 = vmatprep.mubr.bf16.mxu0 0
      %1363 = vmatmul.mubr.bf16.gmra.mrb[0].mxu0 %v1272
      %v1364 = vpop.f32.mrb[0].mxu0
      %v1365 = vadd.f32 0.0, %v1364
      %v1366 = vpop.f32.mrb[0].mxu0
      %v1367 = vpop.f32.mrb[0].mxu0
      %v1368 = vadd.f32 0.0, %v1367
      %v1369 = vpop.f32.mrb[0].mxu0
      %1370 = vdwg.mxu0
      %v1371 = vadd.f32 %v1109, %v1309
      %v1372 = vadd.f32 %v1112, %v1312
      %v1373 = vadd.f32 %v1117, %v1317
      %v1374 = vadd.f32 %v1120, %v1320
      %v1375 = vadd.f32 %v1125, %v1325
      %v1376 = vadd.f32 %v1128, %v1328
      %v1377 = vadd.f32 %v1133, %v1333
      %v1378 = vadd.f32 %v1136, %v1336
      %v1379 = vadd.f32 %v1141, %v1341
      %v1380 = vadd.f32 %v1144, %v1344
      %v1381 = vadd.f32 %v1149, %v1349
      %v1382 = vadd.f32 %v1152, %v1352
      %v1383 = vadd.f32 %v1157, %v1357
      %v1384 = vadd.f32 %v1160, %v1360
      %v1385 = vadd.f32 %v1165, %v1365
      %v1386 = vadd.f32 %v1168, %v1368
      %v1387 = vld [vmem:[%s3] sm:$0x1]
      %v1389 = vlaneseq
      %v1390 = vshrl.u32 %v1389, 7
      %v1391 = vsub.s32 0, %v1390
      %v1392 = vrot.slane %v1387, %v1391
      %v1394 = vadd.f32 %v1371, %v1392
      %v1395 = vadd.f32 %v1372, %v1392
      %v1396 = vadd.f32 %v1373, %v1392
      %v1397 = vadd.f32 %v1374, %v1392
      %v1398 = vadd.f32 %v1375, %v1392
      %v1399 = vadd.f32 %v1376, %v1392
      %v1400 = vadd.f32 %v1377, %v1392
      %v1401 = vadd.f32 %v1378, %v1392
      %v1402 = vadd.f32 %v1379, %v1392
      %v1403 = vadd.f32 %v1380, %v1392
      %v1404 = vadd.f32 %v1381, %v1392
      %v1405 = vadd.f32 %v1382, %v1392
      %v1406 = vadd.f32 %v1383, %v1392
      %v1407 = vadd.f32 %v1384, %v1392
      %v1408 = vadd.f32 %v1385, %v1392
      %v1409 = vadd.f32 %v1386, %v1392
      %v1410 = vld [vmem:[%s341] sm:$0xf]
      %v1411 = vld [vmem:[%s341 + $0x4] sm:$0xf]
      %v1412 = vld [vmem:[%s341 + $0x8] sm:$0xf]
      %v1413 = vld [vmem:[%s341 + $0xc] sm:$0xf]
      %v1414 = vld [vmem:[%s341 + $0x10] sm:$0xf]
      %v1415 = vld [vmem:[%s341 + $0x14] sm:$0xf]
      %v1416 = vld [vmem:[%s341 + $0x18] sm:$0xf]
      %v1417 = vld [vmem:[%s341 + $0x1c] sm:$0xf]
      %v1418 = vld [vmem:[%s341 + $0x20] sm:$0xf]
      %v1419 = vld [vmem:[%s341 + $0x24] sm:$0xf]
      %v1420 = vld [vmem:[%s341 + $0x28] sm:$0xf]
      %v1421 = vld [vmem:[%s341 + $0x2c] sm:$0xf]
      %v1422 = vld [vmem:[%s341 + $0x30] sm:$0xf]
      %v1423 = vld [vmem:[%s341 + $0x34] sm:$0xf]
      %v1424 = vld [vmem:[%s341 + $0x38] sm:$0xf]
      %v1425 = vld [vmem:[%s341 + $0x3c] sm:$0xf]
      %v1426 = vunpack.c.l.bf16 %v1410
      %v1427 = vunpack.c.l.bf16 %v1411
      %v1428 = vunpack.c.l.bf16 %v1412
      %v1429 = vunpack.c.l.bf16 %v1413
      %v1430 = vunpack.c.l.bf16 %v1414
      %v1431 = vunpack.c.l.bf16 %v1415
      %v1432 = vunpack.c.l.bf16 %v1416
      %v1433 = vunpack.c.l.bf16 %v1417
      %v1434 = vunpack.c.l.bf16 %v1418
      %v1435 = vunpack.c.l.bf16 %v1419
      %v1436 = vunpack.c.l.bf16 %v1420
      %v1437 = vunpack.c.l.bf16 %v1421
      %v1438 = vunpack.c.l.bf16 %v1422
      %v1439 = vunpack.c.l.bf16 %v1423
      %v1440 = vunpack.c.l.bf16 %v1424
      %v1441 = vunpack.c.l.bf16 %v1425
      %v1442 = vadd.f32 %v1394, %v1426
      %v1443 = vadd.f32 %v1395, %v1427
      %v1444 = vadd.f32 %v1396, %v1428
      %v1445 = vadd.f32 %v1397, %v1429
      %v1446 = vadd.f32 %v1398, %v1430
      %v1447 = vadd.f32 %v1399, %v1431
      %v1448 = vadd.f32 %v1400, %v1432
      %v1449 = vadd.f32 %v1401, %v1433
      %v1450 = vadd.f32 %v1402, %v1434
      %v1451 = vadd.f32 %v1403, %v1435
      %v1452 = vadd.f32 %v1404, %v1436
      %v1453 = vadd.f32 %v1405, %v1437
      %v1454 = vadd.f32 %v1406, %v1438
      %v1455 = vadd.f32 %v1407, %v1439
      %v1456 = vadd.f32 %v1408, %v1440
      %v1457 = vadd.f32 %v1409, %v1441
      %v1458 = vmax.f32 %v1442, 0.0
      %v1459 = vmax.f32 %v1443, 0.0
      %v1460 = vmax.f32 %v1444, 0.0
      %v1461 = vmax.f32 %v1445, 0.0
      %v1462 = vmax.f32 %v1446, 0.0
      %v1463 = vmax.f32 %v1447, 0.0
      %v1464 = vmax.f32 %v1448, 0.0
      %v1465 = vmax.f32 %v1449, 0.0
      %v1466 = vmax.f32 %v1450, 0.0
      %v1467 = vmax.f32 %v1451, 0.0
      %v1468 = vmax.f32 %v1452, 0.0
      %v1469 = vmax.f32 %v1453, 0.0
      %v1470 = vmax.f32 %v1454, 0.0
      %v1471 = vmax.f32 %v1455, 0.0
      %v1472 = vmax.f32 %v1456, 0.0
      %v1473 = vmax.f32 %v1457, 0.0
      %v1474 = vpack.c.bf16 %v1459, %v1458
      %v1475 = vpack.c.bf16 %v1461, %v1460
      %v1476 = vpack.c.bf16 %v1463, %v1462
      %v1477 = vpack.c.bf16 %v1465, %v1464
      %v1478 = vpack.c.bf16 %v1467, %v1466
      %v1479 = vpack.c.bf16 %v1469, %v1468
      %v1480 = vpack.c.bf16 %v1471, %v1470
      %v1481 = vpack.c.bf16 %v1473, %v1472
      %v1490 = vunpack.c.l.b16 %v1474
      %v1491 = vunpack.c.h.b16 %v1474
      %v1492 = vunpack.c.l.b16 %v1475
      %v1493 = vunpack.c.h.b16 %v1475
      %v1494 = vunpack.c.l.b16 %v1476
      %v1495 = vunpack.c.h.b16 %v1476
      %v1496 = vunpack.c.l.b16 %v1477
      %v1497 = vunpack.c.h.b16 %v1477
      %v1498 = vunpack.c.l.b16 %v1478
      %v1499 = vunpack.c.h.b16 %v1478
      %v1500 = vunpack.c.l.b16 %v1479
      %v1501 = vunpack.c.h.b16 %v1479
      %v1502 = vunpack.c.l.b16 %v1480
      %v1503 = vunpack.c.h.b16 %v1480
      %v1504 = vunpack.c.l.b16 %v1481
      %v1505 = vunpack.c.h.b16 %v1481
      %v1506 = vpack.c.b16 %v1490, %v1490
      %v1507 = vpack.c.b16 %v1491, %v1491
      %v1508 = vpack.c.b16 %v1492, %v1492
      %v1509 = vpack.c.b16 %v1493, %v1493
      %v1510 = vpack.c.b16 %v1494, %v1494
      %v1511 = vpack.c.b16 %v1495, %v1495
      %v1512 = vpack.c.b16 %v1496, %v1496
      %v1513 = vpack.c.b16 %v1497, %v1497
      %v1514 = vpack.c.b16 %v1498, %v1498
      %v1515 = vpack.c.b16 %v1499, %v1499
      %v1516 = vpack.c.b16 %v1500, %v1500
      %v1517 = vpack.c.b16 %v1501, %v1501
      %v1518 = vpack.c.b16 %v1502, %v1502
      %v1519 = vpack.c.b16 %v1503, %v1503
      %v1520 = vpack.c.b16 %v1504, %v1504
      %v1521 = vpack.c.b16 %v1505, %v1505
      %vm1538 = vcmask 257024
      %1539 = vst.msk [vmem:[%s352] sm:$0xf] %vm1538, %v1506
      %1540 = vst.msk [vmem:[%s352 + $0x4] sm:$0xf] %vm1538, %v1507
      %1541 = vst.msk [vmem:[%s352 + $0x8] sm:$0xf] %vm1538, %v1508
      %1542 = vst.msk [vmem:[%s352 + $0xc] sm:$0xf] %vm1538, %v1509
      %1543 = vst.msk [vmem:[%s352 + $0x10] sm:$0xf] %vm1538, %v1510
      %1544 = vst.msk [vmem:[%s352 + $0x14] sm:$0xf] %vm1538, %v1511
      %1545 = vst.msk [vmem:[%s352 + $0x18] sm:$0xf] %vm1538, %v1512
      %1546 = vst.msk [vmem:[%s352 + $0x1c] sm:$0xf] %vm1538, %v1513
      %1547 = vst.msk [vmem:[%s352 + $0x20] sm:$0xf] %vm1538, %v1514
      %1548 = vst.msk [vmem:[%s352 + $0x24] sm:$0xf] %vm1538, %v1515
      %1549 = vst.msk [vmem:[%s352 + $0x28] sm:$0xf] %vm1538, %v1516
      %1550 = vst.msk [vmem:[%s352 + $0x2c] sm:$0xf] %vm1538, %v1517
      %1551 = vst.msk [vmem:[%s352 + $0x30] sm:$0xf] %vm1538, %v1518
      %1552 = vst.msk [vmem:[%s352 + $0x34] sm:$0xf] %vm1538, %v1519
      %1553 = vst.msk [vmem:[%s352 + $0x38] sm:$0xf] %vm1538, %v1520
      %1554 = vst.msk [vmem:[%s352 + $0x3c] sm:$0xf] %vm1538, %v1521
      %s1555 = smul.u32 8, %s21
      %p1556 = scmp.lt.s32.totalorder %s20, 1
      %s1557 = scalar_select %p1556, %s20, 1
      %p1558 = scmp.lt.s32.totalorder %s1555, 15
      %s1559 = scalar_select %p1558, %s1555, 15
      %s1560 = smul.addr %s1559, 2
      %s1561 = smul.addr %s1557, 32
      %s1562 = sadd.s32 %s1560, %s1561
      %s1563 = smul.addr %s1562, 4
      %s1564 = scalar_lea.vmem %s5, %s1563
      // Predicated region
      $region41: #{resnet_generator_apply.10} parent=39 // pred_check
        %p1565 = pneg %p176
      $region42: #{resnet_generator_apply.10} parent=39 // pred_check_branch
        %1567 = sbr.rel (%p1565) target = $region44
      $region43: #{resnet_generator_apply.10} parent=39 // pred_region
        %s1568 = smul.u32 8, %s21
      $region44: #{resnet_generator_apply.10} parent=39 // pred_fallthru
        _
    $region40: #{resnet_generator_apply.10} parent=5 // pred_fallthru
      _
    %p1569 = scmp.le.s32.totalorder 2, %s11
    // Predicated region
    $region45: #{resnet_generator_apply.10} parent=5 // pred_check
      %p1570 = pneg %p1569
    $region46: #{resnet_generator_apply.10} parent=5 // pred_check_branch
      %1572 = sbr.rel (%p1570) target = $region48
    $region47: #{resnet_generator_apply.10} parent=5 // pred_region
      %s1573 = ssub.s32 %s11, 2
      // Predicated region
      $region49: #{resnet_generator_apply.10} parent=47 // pred_check
        %p1574 = pneg %p182
      $region50: #{resnet_generator_apply.10} parent=47 // pred_check_branch
        %1576 = sbr.rel (%p1574) target = $region52
      $region51: #{resnet_generator_apply.10} parent=47 // pred_region
        %s1577 = smul.u32 8, %s23
        %p1578 = scmp.lt.s32.totalorder %s22, 1
        %s1579 = scalar_select %p1578, %s22, 1
        %p1580 = scmp.lt.s32.totalorder %s1577, 15
        %s1581 = scalar_select %p1580, %s1577, 15
        %s1582 = smul.addr %s1581, 2
        %s1583 = smul.addr %s1579, 32
        %s1584 = sadd.s32 %s1582, %s1583
        %s1585 = smul.addr %s1584, 4
        %s1586 = scalar_lea.vmem %s5, %s1585
      $region52: #{resnet_generator_apply.10} parent=47 // pred_fallthru
        _
    $region48: #{resnet_generator_apply.10} parent=5 // pred_fallthru
      _
  $region6: #{resnet_generator_apply.10} parent=0 // loop_footer
    %s15 = sadd.s32 1, %s11
  $region7: #{resnet_generator_apply.10} parent=0 // loop_footer_branch
    %10 = sbr.rel target = $region3
  $region8: #{resnet_generator_apply.10} parent=0 // loop_exit
    _

// kernel: resnet_generator_apply.8
$region0: #{resnet_generator_apply.8}
  #allocation0 [shape = 'u32[]', space=smem, size = 0x4, offset = 0x4, fixed_abs, tag = 'smem constant byte address 0x4 - core index']
  #allocation1 [shape = 'u32[144,128]{1,0:T(1,128)}', space=vmem, size = 0x12000, scoped, tag = 'internal scratch']
  %s0 = inlined_call_operand.vmem [shape: bf16[2,24,24,16], index: 0, kind: input, shape index: {}, may-alias: {0,1}]
  %s1 = inlined_call_operand.vmem [shape: bf16[2,24,24,16], index: 1, kind: input, shape index: {}, may-alias: {0,1}]
  %s2 = inlined_call_operand.vmem [shape: bf16[9,144,32], index: 2, kind: input, shape index: {}]
  %s3 = inlined_call_operand.vmem [shape: f32[1,32], index: 3, kind: input, shape index: {}]
  %s4 = inlined_call_operand.vmem [shape: bf16[2,16,16,32], index: 4, kind: output, shape index: {}]
  %s5 = sld [smem:[#allocation0]]
  $region49: #{resnet_generator_apply.8} parent=0
    _
  %s7 = ssub.s32 1, %s5
  %s8 = scalar_select 0, %s7, %s5
  loop: start=0, step=1, limit=6
  $region2: #{resnet_generator_apply.8} parent=0 // loop_pre_header
    _
  $region3: #{resnet_generator_apply.8} parent=0 // loop_header
    %s10 = sphi 0, %s14
    %p11 = scmp.ge.s32.totalorder %s10, 6
    %s17 = sphi 0, %s29
    %s18 = sphi 0, %s25
    %s19 = sphi 0, %s17
    %s20 = sphi 0, %s18
    %s21 = sphi 0, %s19
    %s22 = sphi 0, %s20
    %s34 = sphi 0, %s36
    %s37 = sphi 0, %s34
    %s38 = sphi 0, %s37
    %s54 = sphi 0, %s38
    %s64 = sphi 0, %s66
    %s67 = sphi 0, %s64
    %s68 = sphi 0, %s67
    %s84 = sphi 0, %s68
    %s88 = sphi 0, %s88
    %s90 = sphi 0, %s88
    %s91 = sphi 0, %s90
    %s105 = sphi 0, %s91
    %s109 = sphi 0, %s109
    %s111 = sphi 0, %s109
    %s112 = sphi 0, %s111
    %s126 = sphi 0, %s112
    %s134 = sphi 0, %s136
    %s137 = sphi 0, %s134
    %s138 = sphi 0, %s137
    %s154 = sphi 0, %s138
  $region4: #{resnet_generator_apply.8} parent=0 // loop_header_branch
    %13 = sbr.rel (%p11) target = $region8
  $region5: #{resnet_generator_apply.8} parent=0 // loop_body
    %s15 = ssub.s32 %s10, 1
    %s16 = ssub.s32 %s10, 2
    %s23 = sadd.s32 1, %s18
    %p24 = scmp.ge.s32.totalorder %s23, 2
    %s25 = scalar_select %p24, 0, %s23
    %s26 = sadd.s32 1, %s17
    %s27 = scalar_select %p24, %s26, %s17
    %p28 = scmp.ge.s32.totalorder %s27, 2
    %s29 = scalar_select %p28, 0, %s27
    %s30 = ssub.s32 %s17, %s29
    %s31 = ssub.s32 %s18, %s25
    %s32 = sor.u32 %s30, %s31
    %p33 = scmp.eq.s32.totalorder %s32, 0
    %s35 = sadd.s32 %s34, 1
    %s36 = scalar_select %p33, %s34, %s35
    %p39 = pneg %p33
    %p40 = scmp.eq.s32.totalorder %s10, 3
    %p41 = por %p39, %p40
    %p42 = scmp.ne.s32.totalorder %s34, %s37
    %p43 = scmp.eq.s32.totalorder %s10, 0
    %p44 = por %p42, %p43
    %p45 = scmp.ne.s32.totalorder %s34, %s37
    %p46 = scmp.eq.s32.totalorder %s15, 3
    %p47 = por %p45, %p46
    %p48 = scmp.ne.s32.totalorder %s37, %s38
    %p49 = scmp.eq.s32.totalorder %s15, 0
    %p50 = por %p48, %p49
    %p51 = scmp.ne.s32.totalorder %s37, %s38
    %p52 = scmp.eq.s32.totalorder %s16, 3
    %p53 = por %p51, %p52
    %p55 = scmp.ne.s32.totalorder %s38, %s54
    %p56 = scmp.eq.s32.totalorder %s16, 0
    %p57 = por %p55, %p56
    %s58 = sadd.s32 %s18, 1
    %s59 = sadd.s32 %s25, 1
    %s60 = ssub.s32 %s17, %s29
    %s61 = ssub.s32 %s58, %s59
    %s62 = sor.u32 %s60, %s61
    %p63 = scmp.eq.s32.totalorder %s62, 0
    %s65 = sadd.s32 %s64, 1
    %s66 = scalar_select %p63, %s64, %s65
    %p69 = pneg %p63
    %p70 = scmp.eq.s32.totalorder %s10, 3
    %p71 = por %p69, %p70
    %p72 = scmp.ne.s32.totalorder %s64, %s67
    %p73 = scmp.eq.s32.totalorder %s10, 0
    %p74 = por %p72, %p73
    %p75 = scmp.ne.s32.totalorder %s64, %s67
    %p76 = scmp.eq.s32.totalorder %s15, 3
    %p77 = por %p75, %p76
    %p78 = scmp.ne.s32.totalorder %s67, %s68
    %p79 = scmp.eq.s32.totalorder %s15, 0
    %p80 = por %p78, %p79
    %p81 = scmp.ne.s32.totalorder %s67, %s68
    %p82 = scmp.eq.s32.totalorder %s16, 3
    %p83 = por %p81, %p82
    %p85 = scmp.ne.s32.totalorder %s68, %s84
    %p86 = scmp.eq.s32.totalorder %s16, 0
    %p87 = por %p85, %p86
    %s89 = sadd.s32 %s88, 1
    %p92 = scmp.eq.s32.totalorder %s10, 3
    %p93 = scmp.ne.s32.totalorder %s88, %s90
    %p94 = scmp.eq.s32.totalorder %s10, 0
    %p95 = por %p93, %p94
    %p96 = scmp.ne.s32.totalorder %s88, %s90
    %p97 = scmp.eq.s32.totalorder %s15, 3
    %p98 = por %p96, %p97
    %p99 = scmp.ne.s32.totalorder %s90, %s91
    %p100 = scmp.eq.s32.totalorder %s15, 0
    %p101 = por %p99, %p100
    %p102 = scmp.ne.s32.totalorder %s90, %s91
    %p103 = scmp.eq.s32.totalorder %s16, 3
    %p104 = por %p102, %p103
    %p106 = scmp.ne.s32.totalorder %s91, %s105
    %p107 = scmp.eq.s32.totalorder %s16, 0
    %p108 = por %p106, %p107
    %s110 = sadd.s32 %s109, 1
    %p113 = scmp.eq.s32.totalorder %s10, 3
    %p114 = scmp.ne.s32.totalorder %s109, %s111
    %p115 = scmp.eq.s32.totalorder %s10, 0
    %p116 = por %p114, %p115
    %p117 = scmp.ne.s32.totalorder %s109, %s111
    %p118 = scmp.eq.s32.totalorder %s15, 3
    %p119 = por %p117, %p118
    %p120 = scmp.ne.s32.totalorder %s111, %s112
    %p121 = scmp.eq.s32.totalorder %s15, 0
    %p122 = por %p120, %p121
    %p123 = scmp.ne.s32.totalorder %s111, %s112
    %p124 = scmp.eq.s32.totalorder %s16, 3
    %p125 = por %p123, %p124
    %p127 = scmp.ne.s32.totalorder %s112, %s126
    %p128 = scmp.eq.s32.totalorder %s16, 0
    %p129 = por %p127, %p128
    %s130 = ssub.s32 %s17, %s29
    %s131 = ssub.s32 %s18, %s25
    %s132 = sor.u32 %s130, %s131
    %p133 = scmp.eq.s32.totalorder %s132, 0
    %s135 = sadd.s32 %s134, 1
    %s136 = scalar_select %p133, %s134, %s135
    %p139 = pneg %p133
    %p140 = scmp.eq.s32.totalorder %s10, 3
    %p141 = por %p139, %p140
    %p142 = scmp.ne.s32.totalorder %s134, %s137
    %p143 = scmp.eq.s32.totalorder %s10, 0
    %p144 = por %p142, %p143
    %p145 = scmp.ne.s32.totalorder %s134, %s137
    %p146 = scmp.eq.s32.totalorder %s15, 3
    %p147 = por %p145, %p146
    %p148 = scmp.ne.s32.totalorder %s137, %s138
    %p149 = scmp.eq.s32.totalorder %s15, 0
    %p150 = por %p148, %p149
    %p151 = scmp.ne.s32.totalorder %s137, %s138
    %p152 = scmp.eq.s32.totalorder %s16, 3
    %p153 = por %p151, %p152
    %p155 = scmp.ne.s32.totalorder %s138, %s154
    %p156 = scmp.eq.s32.totalorder %s16, 0
    %p157 = por %p155, %p156
    %p158 = scmp.le.s32.totalorder 1, %s10
    %p159 = scmp.lt.s32.totalorder %s10, 5
    %p160 = pnand %p158, %p159
    %p161 = pneg %p160
    // Predicated region
    $region9: #{resnet_generator_apply.8} parent=5 // pred_check
      _
    $region10: #{resnet_generator_apply.8} parent=5 // pred_check_branch
      %163 = sbr.rel (%p160) target = $region12
    $region11: #{resnet_generator_apply.8} parent=5 // pred_region
      %s164 = ssub.s32 %s10, 1
      // Predicated region
      $region13: #{resnet_generator_apply.8} parent=11 // pred_check
        %p165 = pneg %p101
      $region14: #{resnet_generator_apply.8} parent=11 // pred_check_branch
        %167 = sbr.rel (%p165) target = $region16
      $region15: #{resnet_generator_apply.8} parent=11 // pred_region
        _
      $region16: #{resnet_generator_apply.8} parent=11 // pred_fallthru
        _
      // Predicated region
      $region17: #{resnet_generator_apply.8} parent=11 // pred_check
        %p168 = pneg %p122
      $region18: #{resnet_generator_apply.8} parent=11 // pred_check_branch
        %170 = sbr.rel (%p168) target = $region20
      $region19: #{resnet_generator_apply.8} parent=11 // pred_region
        _
      $region20: #{resnet_generator_apply.8} parent=11 // pred_fallthru
        _
    $region12: #{resnet_generator_apply.8} parent=5 // pred_fallthru
      _
    %p171 = scmp.lt.s32.totalorder %s10, 4
    // Predicated region
    $region21: #{resnet_generator_apply.8} parent=5 // pred_check
      %p172 = pneg %p171
    $region22: #{resnet_generator_apply.8} parent=5 // pred_check_branch
      %174 = sbr.rel (%p172) target = $region24
    $region23: #{resnet_generator_apply.8} parent=5 // pred_region
      // Predicated region
      $region25: #{resnet_generator_apply.8} parent=23 // pred_check
        %p175 = pneg %p44
      $region26: #{resnet_generator_apply.8} parent=23 // pred_check_branch
        %177 = sbr.rel (%p175) target = $region28
      $region27: #{resnet_generator_apply.8} parent=23 // pred_region
        %s178 = smul.u32 8, %s18
        %p179 = scmp.lt.s32.totalorder %s17, 1
        %s180 = scalar_select %p179, %s17, 1
        %p181 = scmp.lt.s32.totalorder %s178, 23
        %s182 = scalar_select %p181, %s178, 23
        %s183 = smul.addr %s182, 3
        %s184 = smul.addr %s180, 72
        %s185 = sadd.s32 %s183, %s184
        %s186 = smul.addr %s185, 4
        %s187 = scalar_lea.vmem %s0, %s186
        %s188 = smul.u32 8, %s18
      $region28: #{resnet_generator_apply.8} parent=23 // pred_fallthru
        _
      // Predicated region
      $region29: #{resnet_generator_apply.8} parent=23 // pred_check
        %p189 = pneg %p74
      $region30: #{resnet_generator_apply.8} parent=23 // pred_check_branch
        %191 = sbr.rel (%p189) target = $region32
      $region31: #{resnet_generator_apply.8} parent=23 // pred_region
        %s192 = sadd.s32 %s18, 1
        %s193 = smul.u32 8, %s192
        %p194 = scmp.lt.s32.totalorder %s17, 1
        %s195 = scalar_select %p194, %s17, 1
        %p196 = scmp.lt.s32.totalorder %s193, 23
        %s197 = scalar_select %p196, %s193, 23
        %s198 = smul.addr %s197, 3
        %s199 = smul.addr %s195, 72
        %s200 = sadd.s32 %s198, %s199
        %s201 = smul.addr %s200, 4
        %s202 = scalar_lea.vmem %s1, %s201
        %s203 = sadd.s32 %s18, 1
        %s204 = smul.u32 8, %s203
      $region32: #{resnet_generator_apply.8} parent=23 // pred_fallthru
        _
    $region24: #{resnet_generator_apply.8} parent=5 // pred_fallthru
      _
    %p205 = scmp.le.s32.totalorder 1, %s10
    %p206 = scmp.lt.s32.totalorder %s10, 5
    %p207 = pnand %p205, %p206
    %p208 = pneg %p207
    // Predicated region
    $region33: #{resnet_generator_apply.8} parent=5 // pred_check
      _
    $region34: #{resnet_generator_apply.8} parent=5 // pred_check_branch
      %210 = sbr.rel (%p207) target = $region36
    $region35: #{resnet_generator_apply.8} parent=5 // pred_region
      %s211 = ssub.s32 %s10, 1
      %s212 = smul.u32 8, %s20
      %p213 = scmp.lt.s32.totalorder %s19, 1
      %s214 = scalar_select %p213, %s19, 1
      %p215 = scmp.lt.s32.totalorder %s212, 23
      %s216 = scalar_select %p215, %s212, 23
      %s217 = smul.addr %s216, 3
      %s218 = smul.addr %s214, 72
      %s219 = sadd.s32 %s217, %s218
      %s220 = smul.addr %s219, 4
      %s221 = scalar_lea.vmem %s0, %s220
      %p222 = pneg %p50
      %p223 = pneg %p47
      %s224 = sadd.s32 %s20, 1
      %s225 = smul.u32 8, %s224
      %p226 = scmp.lt.s32.totalorder %s19, 1
      %s227 = scalar_select %p226, %s19, 1
      %p228 = scmp.lt.s32.totalorder %s225, 23
      %s229 = scalar_select %p228, %s225, 23
      %s230 = smul.addr %s229, 3
      %s231 = smul.addr %s227, 72
      %s232 = sadd.s32 %s230, %s231
      %s233 = smul.addr %s232, 4
      %s234 = scalar_lea.vmem %s1, %s233
      %p235 = pneg %p80
      %p236 = pneg %p77
      %p237 = pneg %p101
      %p238 = pneg %p98
      %p239 = pneg %p122
      %p240 = pneg %p119
      %p241 = pneg %p150
      %p242 = pneg %p147
      %s243 = smul.u32 8, %s20
      %p244 = scmp.lt.s32.totalorder %s19, 1
      %s245 = scalar_select %p244, %s19, 1
      %p246 = scmp.lt.s32.totalorder %s243, 15
      %s247 = scalar_select %p246, %s243, 15
      %s248 = smul.addr %s247, 2
      %s249 = smul.addr %s245, 32
      %s250 = sadd.s32 %s248, %s249
      %s251 = smul.addr %s250, 4
      %s252 = scalar_lea.vmem %s4, %s251
      %s253 = smul.u32 8, %s20
      %p254 = scmp.lt.s32.totalorder %s19, 1
      %s255 = scalar_select %p254, %s19, 1
      %p256 = scmp.lt.s32.totalorder %s253, 23
      %s257 = scalar_select %p256, %s253, 23
      %s258 = smul.addr %s257, 3
      %s259 = smul.addr %s255, 72
      %s260 = sadd.s32 %s258, %s259
      %s261 = smul.addr %s260, 4
      %s262 = scalar_lea.vmem %s0, %s261
      %s263 = smul.u32 8, %s20
      %s264 = sadd.s32 %s20, 1
      %s265 = smul.u32 8, %s264
      %p266 = scmp.lt.s32.totalorder %s19, 1
      %s267 = scalar_select %p266, %s19, 1
      %p268 = scmp.lt.s32.totalorder %s265, 23
      %s269 = scalar_select %p268, %s265, 23
      %s270 = smul.addr %s269, 3
      %s271 = smul.addr %s267, 72
      %s272 = sadd.s32 %s270, %s271
      %s273 = smul.addr %s272, 4
      %s274 = scalar_lea.vmem %s1, %s273
      %s275 = sadd.s32 %s20, 1
      %s276 = smul.u32 8, %s275
      %s277 = smul.u32 8, %s20
      %p278 = scmp.lt.s32.totalorder %s19, 1
      %s279 = scalar_select %p278, %s19, 1
      %p280 = scmp.lt.s32.totalorder %s277, 15
      %s281 = scalar_select %p280, %s277, 15
      %s282 = smul.addr %s281, 2
      %s283 = smul.addr %s279, 32
      %s284 = sadd.s32 %s282, %s283
      %s285 = smul.addr %s284, 4
      %s286 = scalar_lea.vmem %s4, %s285
      %s287 = smul.u32 8, %s20
      %v289 = vld [vmem:[%s262] sm:$0xf]
      %v290 = vld [vmem:[%s262 + $0x4] sm:$0xf]
      %v291 = vld [vmem:[%s262 + $0x8] sm:$0xf]
      %v292 = vld [vmem:[%s262 + $0xc] sm:$0xf]
      %v293 = vld [vmem:[%s262 + $0x10] sm:$0xf]
      %v294 = vld [vmem:[%s262 + $0x14] sm:$0xf]
      %v295 = vld [vmem:[%s262 + $0x18] sm:$0xf]
      %v296 = vld [vmem:[%s262 + $0x1c] sm:$0xf]
      %v297 = vld [vmem:[%s262 + $0x20] sm:$0xf]
      %v298 = vld [vmem:[%s262 + $0x24] sm:$0xf]
      %v299 = vld [vmem:[%s262 + $0x28] sm:$0xf]
      %v300 = vld [vmem:[%s262 + $0x2c] sm:$0xf]
      %v301 = vld [vmem:[%s262 + $0x30] sm:$0xf]
      %v302 = vld [vmem:[%s262 + $0x34] sm:$0xf]
      %v303 = vld [vmem:[%s262 + $0x38] sm:$0xf]
      %v304 = vld [vmem:[%s262 + $0x3c] sm:$0xf]
      %v305 = vld [vmem:[%s262 + $0x40] sm:$0xf]
      %v306 = vld [vmem:[%s262 + $0x44] sm:$0xf]
      %v307 = vld [vmem:[%s262 + $0x48] sm:$0xf]
      %v308 = vld [vmem:[%s262 + $0x4c] sm:$0xf]
      %v309 = vld [vmem:[%s262 + $0x50] sm:$0xf]
      %v310 = vld [vmem:[%s262 + $0x54] sm:$0xf]
      %v311 = vld [vmem:[%s262 + $0x58] sm:$0xf]
      %v312 = vld [vmem:[%s262 + $0x5c] sm:$0xf]
      %v313 = vld [vmem:[%s274] sm:$0xf]
      %v314 = vld [vmem:[%s274 + $0x4] sm:$0xf]
      %v315 = vld [vmem:[%s274 + $0x8] sm:$0xf]
      %v316 = vld [vmem:[%s274 + $0xc] sm:$0xf]
      %v317 = vld [vmem:[%s274 + $0x10] sm:$0xf]
      %v318 = vld [vmem:[%s274 + $0x14] sm:$0xf]
      %v319 = vld [vmem:[%s274 + $0x18] sm:$0xf]
      %v320 = vld [vmem:[%s274 + $0x1c] sm:$0xf]
      %v321 = vld [vmem:[%s274 + $0x20] sm:$0xf]
      %v322 = vld [vmem:[%s274 + $0x24] sm:$0xf]
      %v323 = vld [vmem:[%s274 + $0x28] sm:$0xf]
      %v324 = vld [vmem:[%s274 + $0x2c] sm:$0xf]
      %v325 = vld [vmem:[%s274 + $0x30] sm:$0xf]
      %v326 = vld [vmem:[%s274 + $0x34] sm:$0xf]
      %v327 = vld [vmem:[%s274 + $0x38] sm:$0xf]
      %v328 = vld [vmem:[%s274 + $0x3c] sm:$0xf]
      %v329 = vld [vmem:[%s274 + $0x40] sm:$0xf]
      %v330 = vld [vmem:[%s274 + $0x44] sm:$0xf]
      %v331 = vld [vmem:[%s274 + $0x48] sm:$0xf]
      %v332 = vld [vmem:[%s274 + $0x4c] sm:$0xf]
      %v333 = vld [vmem:[%s274 + $0x50] sm:$0xf]
      %v334 = vld [vmem:[%s274 + $0x54] sm:$0xf]
      %v335 = vld [vmem:[%s274 + $0x58] sm:$0xf]
      %v336 = vld [vmem:[%s274 + $0x5c] sm:$0xf]
      %vm337 = vsmask.f32 3328
      %vm338 = vsmask.f32 7440
      %vm339 = vmor %vm337, %vm338
      %v341 = vshrl.u32 %v289, 16
      %v343 = vrot.slane %v341, 4
      %v344 = vshll.u32 %v289, 16
      %v346 = vrot.slane %v344, 5
      %v347 = vor.u32 %v343, %v346
      %v348 = vrot.slane %v347, 4
      %v350 = vshll.u32 %v290, 16
      %v352 = vrot.slane %v350, 5
      %v353 = vsel %vm339, %v348, %v352
      %v354 = vshrl.u32 %v290, 16
      %v356 = vrot.slane %v354, 4
      %v357 = vor.u32 %v356, %v352
      %v358 = vrot.slane %v357, 4
      %v360 = vshll.u32 %v291, 16
      %v362 = vrot.slane %v360, 5
      %v363 = vsel %vm339, %v358, %v362
      %v365 = vshrl.u32 %v292, 16
      %v367 = vrot.slane %v365, 4
      %v368 = vshll.u32 %v292, 16
      %v370 = vrot.slane %v368, 5
      %v371 = vor.u32 %v367, %v370
      %v372 = vrot.slane %v371, 4
      %v374 = vshll.u32 %v293, 16
      %v376 = vrot.slane %v374, 5
      %v377 = vsel %vm339, %v372, %v376
      %v378 = vshrl.u32 %v293, 16
      %v380 = vrot.slane %v378, 4
      %v381 = vor.u32 %v380, %v376
      %v382 = vrot.slane %v381, 4
      %v384 = vshll.u32 %v294, 16
      %v386 = vrot.slane %v384, 5
      %v387 = vsel %vm339, %v382, %v386
      %v389 = vshrl.u32 %v295, 16
      %v391 = vrot.slane %v389, 4
      %v392 = vshll.u32 %v295, 16
      %v394 = vrot.slane %v392, 5
      %v395 = vor.u32 %v391, %v394
      %v396 = vrot.slane %v395, 4
      %v398 = vshll.u32 %v296, 16
      %v400 = vrot.slane %v398, 5
      %v401 = vsel %vm339, %v396, %v400
      %v402 = vshrl.u32 %v296, 16
      %v404 = vrot.slane %v402, 4
      %v405 = vor.u32 %v404, %v400
      %v406 = vrot.slane %v405, 4
      %v408 = vshll.u32 %v297, 16
      %v410 = vrot.slane %v408, 5
      %v411 = vsel %vm339, %v406, %v410
      %v413 = vshrl.u32 %v298, 16
      %v415 = vrot.slane %v413, 4
      %v416 = vshll.u32 %v298, 16
      %v418 = vrot.slane %v416, 5
      %v419 = vor.u32 %v415, %v418
      %v420 = vrot.slane %v419, 4
      %v422 = vshll.u32 %v299, 16
      %v424 = vrot.slane %v422, 5
      %v425 = vsel %vm339, %v420, %v424
      %v426 = vshrl.u32 %v299, 16
      %v428 = vrot.slane %v426, 4
      %v429 = vor.u32 %v428, %v424
      %v430 = vrot.slane %v429, 4
      %v432 = vshll.u32 %v300, 16
      %v434 = vrot.slane %v432, 5
      %v435 = vsel %vm339, %v430, %v434
      %v437 = vshrl.u32 %v301, 16
      %v439 = vrot.slane %v437, 4
      %v440 = vshll.u32 %v301, 16
      %v442 = vrot.slane %v440, 5
      %v443 = vor.u32 %v439, %v442
      %v444 = vrot.slane %v443, 4
      %v446 = vshll.u32 %v302, 16
      %v448 = vrot.slane %v446, 5
      %v449 = vsel %vm339, %v444, %v448
      %v450 = vshrl.u32 %v302, 16
      %v452 = vrot.slane %v450, 4
      %v453 = vor.u32 %v452, %v448
      %v454 = vrot.slane %v453, 4
      %v456 = vshll.u32 %v303, 16
      %v458 = vrot.slane %v456, 5
      %v459 = vsel %vm339, %v454, %v458
      %v461 = vshrl.u32 %v304, 16
      %v463 = vrot.slane %v461, 4
      %v464 = vshll.u32 %v304, 16
      %v466 = vrot.slane %v464, 5
      %v467 = vor.u32 %v463, %v466
      %v468 = vrot.slane %v467, 4
      %v470 = vshll.u32 %v305, 16
      %v472 = vrot.slane %v470, 5
      %v473 = vsel %vm339, %v468, %v472
      %v474 = vshrl.u32 %v305, 16
      %v476 = vrot.slane %v474, 4
      %v477 = vor.u32 %v476, %v472
      %v478 = vrot.slane %v477, 4
      %v480 = vshll.u32 %v306, 16
      %v482 = vrot.slane %v480, 5
      %v483 = vsel %vm339, %v478, %v482
      %v485 = vshrl.u32 %v307, 16
      %v487 = vrot.slane %v485, 4
      %v488 = vshll.u32 %v307, 16
      %v490 = vrot.slane %v488, 5
      %v491 = vor.u32 %v487, %v490
      %v492 = vrot.slane %v491, 4
      %v494 = vshll.u32 %v308, 16
      %v496 = vrot.slane %v494, 5
      %v497 = vsel %vm339, %v492, %v496
      %v498 = vshrl.u32 %v308, 16
      %v500 = vrot.slane %v498, 4
      %v501 = vor.u32 %v500, %v496
      %v502 = vrot.slane %v501, 4
      %v504 = vshll.u32 %v309, 16
      %v506 = vrot.slane %v504, 5
      %v507 = vsel %vm339, %v502, %v506
      %v509 = vshrl.u32 %v310, 16
      %v511 = vrot.slane %v509, 4
      %v512 = vshll.u32 %v310, 16
      %v514 = vrot.slane %v512, 5
      %v515 = vor.u32 %v511, %v514
      %v516 = vrot.slane %v515, 4
      %v518 = vshll.u32 %v311, 16
      %v520 = vrot.slane %v518, 5
      %v521 = vsel %vm339, %v516, %v520
      %v522 = vshrl.u32 %v311, 16
      %v524 = vrot.slane %v522, 4
      %v525 = vor.u32 %v524, %v520
      %v526 = vrot.slane %v525, 4
      %v528 = vshll.u32 %v312, 16
      %v530 = vrot.slane %v528, 5
      %v531 = vsel %vm339, %v526, %v530
      %vm556 = vcmask 1042432
      %vm557 = vcmask 1046532
      %vm558 = vmor %vm556, %vm557
      %v559 = vrot.slane %v289, 5
      %v560 = vrot.slane %v559, 4
      %v561 = vrot.slane %v290, 5
      %v562 = vsel %vm558, %v560, %v561
      %v563 = vrot.slane %v561, 4
      %v564 = vrot.slane %v291, 5
      %v565 = vsel %vm558, %v563, %v564
      %v566 = vrot.slane %v292, 5
      %v567 = vrot.slane %v566, 4
      %v568 = vrot.slane %v293, 5
      %v569 = vsel %vm558, %v567, %v568
      %v570 = vrot.slane %v568, 4
      %v571 = vrot.slane %v294, 5
      %v572 = vsel %vm558, %v570, %v571
      %v573 = vrot.slane %v295, 5
      %v574 = vrot.slane %v573, 4
      %v575 = vrot.slane %v296, 5
      %v576 = vsel %vm558, %v574, %v575
      %v577 = vrot.slane %v575, 4
      %v578 = vrot.slane %v297, 5
      %v579 = vsel %vm558, %v577, %v578
      %v580 = vrot.slane %v298, 5
      %v581 = vrot.slane %v580, 4
      %v582 = vrot.slane %v299, 5
      %v583 = vsel %vm558, %v581, %v582
      %v584 = vrot.slane %v582, 4
      %v585 = vrot.slane %v300, 5
      %v586 = vsel %vm558, %v584, %v585
      %v587 = vrot.slane %v301, 5
      %v588 = vrot.slane %v587, 4
      %v589 = vrot.slane %v302, 5
      %v590 = vsel %vm558, %v588, %v589
      %v591 = vrot.slane %v589, 4
      %v592 = vrot.slane %v303, 5
      %v593 = vsel %vm558, %v591, %v592
      %v594 = vrot.slane %v304, 5
      %v595 = vrot.slane %v594, 4
      %v596 = vrot.slane %v305, 5
      %v597 = vsel %vm558, %v595, %v596
      %v598 = vrot.slane %v596, 4
      %v599 = vrot.slane %v306, 5
      %v600 = vsel %vm558, %v598, %v599
      %v601 = vrot.slane %v307, 5
      %v602 = vrot.slane %v601, 4
      %v603 = vrot.slane %v308, 5
      %v604 = vsel %vm558, %v602, %v603
      %v605 = vrot.slane %v603, 4
      %v606 = vrot.slane %v309, 5
      %v607 = vsel %vm558, %v605, %v606
      %v608 = vrot.slane %v310, 5
      %v609 = vrot.slane %v608, 4
      %v610 = vrot.slane %v311, 5
      %v611 = vsel %vm558, %v609, %v610
      %v612 = vrot.slane %v610, 4
      %v613 = vrot.slane %v312, 5
      %v614 = vsel %vm558, %v612, %v613
      %vm615 = vsmask.f32 2304
      %vm616 = vsmask.f32 6416
      %vm617 = vmor %vm615, %vm616
      %v618 = vrot.slane %v341, 5
      %v619 = vrot.slane %v344, 6
      %v620 = vor.u32 %v618, %v619
      %v621 = vrot.slane %v620, 4
      %v622 = vrot.slane %v354, 5
      %v623 = vrot.slane %v350, 6
      %v624 = vor.u32 %v622, %v623
      %v625 = vsel %vm617, %v621, %v624
      %v626 = vrot.slane %v624, 4
      %v627 = vshrl.u32 %v291, 16
      %v629 = vrot.slane %v627, 5
      %v630 = vrot.slane %v360, 6
      %v631 = vor.u32 %v629, %v630
      %v632 = vsel %vm617, %v626, %v631
      %v633 = vrot.slane %v365, 5
      %v634 = vrot.slane %v368, 6
      %v635 = vor.u32 %v633, %v634
      %v636 = vrot.slane %v635, 4
      %v637 = vrot.slane %v378, 5
      %v638 = vrot.slane %v374, 6
      %v639 = vor.u32 %v637, %v638
      %v640 = vsel %vm617, %v636, %v639
      %v641 = vrot.slane %v639, 4
      %v642 = vshrl.u32 %v294, 16
      %v644 = vrot.slane %v642, 5
      %v645 = vrot.slane %v384, 6
      %v646 = vor.u32 %v644, %v645
      %v647 = vsel %vm617, %v641, %v646
      %v648 = vrot.slane %v389, 5
      %v649 = vrot.slane %v392, 6
      %v650 = vor.u32 %v648, %v649
      %v651 = vrot.slane %v650, 4
      %v652 = vrot.slane %v402, 5
      %v653 = vrot.slane %v398, 6
      %v654 = vor.u32 %v652, %v653
      %v655 = vsel %vm617, %v651, %v654
      %v656 = vrot.slane %v654, 4
      %v657 = vshrl.u32 %v297, 16
      %v659 = vrot.slane %v657, 5
      %v660 = vrot.slane %v408, 6
      %v661 = vor.u32 %v659, %v660
      %v662 = vsel %vm617, %v656, %v661
      %v663 = vrot.slane %v413, 5
      %v664 = vrot.slane %v416, 6
      %v665 = vor.u32 %v663, %v664
      %v666 = vrot.slane %v665, 4
      %v667 = vrot.slane %v426, 5
      %v668 = vrot.slane %v422, 6
      %v669 = vor.u32 %v667, %v668
      %v670 = vsel %vm617, %v666, %v669
      %v671 = vrot.slane %v669, 4
      %v672 = vshrl.u32 %v300, 16
      %v674 = vrot.slane %v672, 5
      %v675 = vrot.slane %v432, 6
      %v676 = vor.u32 %v674, %v675
      %v677 = vsel %vm617, %v671, %v676
      %v678 = vrot.slane %v437, 5
      %v679 = vrot.slane %v440, 6
      %v680 = vor.u32 %v678, %v679
      %v681 = vrot.slane %v680, 4
      %v682 = vrot.slane %v450, 5
      %v683 = vrot.slane %v446, 6
      %v684 = vor.u32 %v682, %v683
      %v685 = vsel %vm617, %v681, %v684
      %v686 = vrot.slane %v684, 4
      %v687 = vshrl.u32 %v303, 16
      %v689 = vrot.slane %v687, 5
      %v690 = vrot.slane %v456, 6
      %v691 = vor.u32 %v689, %v690
      %v692 = vsel %vm617, %v686, %v691
      %v693 = vrot.slane %v461, 5
      %v694 = vrot.slane %v464, 6
      %v695 = vor.u32 %v693, %v694
      %v696 = vrot.slane %v695, 4
      %v697 = vrot.slane %v474, 5
      %v698 = vrot.slane %v470, 6
      %v699 = vor.u32 %v697, %v698
      %v700 = vsel %vm617, %v696, %v699
      %v701 = vrot.slane %v699, 4
      %v702 = vshrl.u32 %v306, 16
      %v704 = vrot.slane %v702, 5
      %v705 = vrot.slane %v480, 6
      %v706 = vor.u32 %v704, %v705
      %v707 = vsel %vm617, %v701, %v706
      %v708 = vrot.slane %v485, 5
      %v709 = vrot.slane %v488, 6
      %v710 = vor.u32 %v708, %v709
      %v711 = vrot.slane %v710, 4
      %v712 = vrot.slane %v498, 5
      %v713 = vrot.slane %v494, 6
      %v714 = vor.u32 %v712, %v713
      %v715 = vsel %vm617, %v711, %v714
      %v716 = vrot.slane %v714, 4
      %v717 = vshrl.u32 %v309, 16
      %v719 = vrot.slane %v717, 5
      %v720 = vrot.slane %v504, 6
      %v721 = vor.u32 %v719, %v720
      %v722 = vsel %vm617, %v716, %v721
      %v723 = vrot.slane %v509, 5
      %v724 = vrot.slane %v512, 6
      %v725 = vor.u32 %v723, %v724
      %v726 = vrot.slane %v725, 4
      %v727 = vrot.slane %v522, 5
      %v728 = vrot.slane %v518, 6
      %v729 = vor.u32 %v727, %v728
      %v730 = vsel %vm617, %v726, %v729
      %v731 = vrot.slane %v729, 4
      %v732 = vshrl.u32 %v312, 16
      %v734 = vrot.slane %v732, 5
      %v735 = vrot.slane %v528, 6
      %v736 = vor.u32 %v734, %v735
      %v737 = vsel %vm617, %v731, %v736
      %vm738 = vcmask 1041408
      %vm739 = vcmask 1045508
      %vm740 = vmor %vm738, %vm739
      %v741 = vrot.slane %v289, 6
      %v742 = vrot.slane %v741, 4
      %v743 = vrot.slane %v290, 6
      %v744 = vsel %vm740, %v742, %v743
      %v745 = vrot.slane %v743, 4
      %v746 = vrot.slane %v291, 6
      %v747 = vsel %vm740, %v745, %v746
      %v748 = vrot.slane %v292, 6
      %v749 = vrot.slane %v748, 4
      %v750 = vrot.slane %v293, 6
      %v751 = vsel %vm740, %v749, %v750
      %v752 = vrot.slane %v750, 4
      %v753 = vrot.slane %v294, 6
      %v754 = vsel %vm740, %v752, %v753
      %v755 = vrot.slane %v295, 6
      %v756 = vrot.slane %v755, 4
      %v757 = vrot.slane %v296, 6
      %v758 = vsel %vm740, %v756, %v757
      %v759 = vrot.slane %v757, 4
      %v760 = vrot.slane %v297, 6
      %v761 = vsel %vm740, %v759, %v760
      %v762 = vrot.slane %v298, 6
      %v763 = vrot.slane %v762, 4
      %v764 = vrot.slane %v299, 6
      %v765 = vsel %vm740, %v763, %v764
      %v766 = vrot.slane %v764, 4
      %v767 = vrot.slane %v300, 6
      %v768 = vsel %vm740, %v766, %v767
      %v769 = vrot.slane %v301, 6
      %v770 = vrot.slane %v769, 4
      %v771 = vrot.slane %v302, 6
      %v772 = vsel %vm740, %v770, %v771
      %v773 = vrot.slane %v771, 4
      %v774 = vrot.slane %v303, 6
      %v775 = vsel %vm740, %v773, %v774
      %v776 = vrot.slane %v304, 6
      %v777 = vrot.slane %v776, 4
      %v778 = vrot.slane %v305, 6
      %v779 = vsel %vm740, %v777, %v778
      %v780 = vrot.slane %v778, 4
      %v781 = vrot.slane %v306, 6
      %v782 = vsel %vm740, %v780, %v781
      %v783 = vrot.slane %v307, 6
      %v784 = vrot.slane %v783, 4
      %v785 = vrot.slane %v308, 6
      %v786 = vsel %vm740, %v784, %v785
      %v787 = vrot.slane %v785, 4
      %v788 = vrot.slane %v309, 6
      %v789 = vsel %vm740, %v787, %v788
      %v790 = vrot.slane %v310, 6
      %v791 = vrot.slane %v790, 4
      %v792 = vrot.slane %v311, 6
      %v793 = vsel %vm740, %v791, %v792
      %v794 = vrot.slane %v792, 4
      %v795 = vrot.slane %v312, 6
      %v796 = vsel %vm740, %v794, %v795
      %vm797 = vsmask.f32 1280
      %vm798 = vsmask.f32 5392
      %vm799 = vmor %vm797, %vm798
      %v800 = vrot.slane %v341, 6
      %v801 = vrot.slane %v344, 7
      %v802 = vor.u32 %v800, %v801
      %v803 = vrot.slane %v802, 4
      %v804 = vrot.slane %v354, 6
      %v805 = vrot.slane %v350, 7
      %v806 = vor.u32 %v804, %v805
      %v807 = vsel %vm799, %v803, %v806
      %v808 = vrot.slane %v806, 4
      %v809 = vrot.slane %v627, 6
      %v810 = vrot.slane %v360, 7
      %v811 = vor.u32 %v809, %v810
      %v812 = vsel %vm799, %v808, %v811
      %v813 = vrot.slane %v365, 6
      %v814 = vrot.slane %v368, 7
      %v815 = vor.u32 %v813, %v814
      %v816 = vrot.slane %v815, 4
      %v817 = vrot.slane %v378, 6
      %v818 = vrot.slane %v374, 7
      %v819 = vor.u32 %v817, %v818
      %v820 = vsel %vm799, %v816, %v819
      %v821 = vrot.slane %v819, 4
      %v822 = vrot.slane %v642, 6
      %v823 = vrot.slane %v384, 7
      %v824 = vor.u32 %v822, %v823
      %v825 = vsel %vm799, %v821, %v824
      %v826 = vrot.slane %v389, 6
      %v827 = vrot.slane %v392, 7
      %v828 = vor.u32 %v826, %v827
      %v829 = vrot.slane %v828, 4
      %v830 = vrot.slane %v402, 6
      %v831 = vrot.slane %v398, 7
      %v832 = vor.u32 %v830, %v831
      %v833 = vsel %vm799, %v829, %v832
      %v834 = vrot.slane %v832, 4
      %v835 = vrot.slane %v657, 6
      %v836 = vrot.slane %v408, 7
      %v837 = vor.u32 %v835, %v836
      %v838 = vsel %vm799, %v834, %v837
      %v839 = vrot.slane %v413, 6
      %v840 = vrot.slane %v416, 7
      %v841 = vor.u32 %v839, %v840
      %v842 = vrot.slane %v841, 4
      %v843 = vrot.slane %v426, 6
      %v844 = vrot.slane %v422, 7
      %v845 = vor.u32 %v843, %v844
      %v846 = vsel %vm799, %v842, %v845
      %v847 = vrot.slane %v845, 4
      %v848 = vrot.slane %v672, 6
      %v849 = vrot.slane %v432, 7
      %v850 = vor.u32 %v848, %v849
      %v851 = vsel %vm799, %v847, %v850
      %v852 = vrot.slane %v437, 6
      %v853 = vrot.slane %v440, 7
      %v854 = vor.u32 %v852, %v853
      %v855 = vrot.slane %v854, 4
      %v856 = vrot.slane %v450, 6
      %v857 = vrot.slane %v446, 7
      %v858 = vor.u32 %v856, %v857
      %v859 = vsel %vm799, %v855, %v858
      %v860 = vrot.slane %v858, 4
      %v861 = vrot.slane %v687, 6
      %v862 = vrot.slane %v456, 7
      %v863 = vor.u32 %v861, %v862
      %v864 = vsel %vm799, %v860, %v863
      %v865 = vrot.slane %v461, 6
      %v866 = vrot.slane %v464, 7
      %v867 = vor.u32 %v865, %v866
      %v868 = vrot.slane %v867, 4
      %v869 = vrot.slane %v474, 6
      %v870 = vrot.slane %v470, 7
      %v871 = vor.u32 %v869, %v870
      %v872 = vsel %vm799, %v868, %v871
      %v873 = vrot.slane %v871, 4
      %v874 = vrot.slane %v702, 6
      %v875 = vrot.slane %v480, 7
      %v876 = vor.u32 %v874, %v875
      %v877 = vsel %vm799, %v873, %v876
      %v878 = vrot.slane %v485, 6
      %v879 = vrot.slane %v488, 7
      %v880 = vor.u32 %v878, %v879
      %v881 = vrot.slane %v880, 4
      %v882 = vrot.slane %v498, 6
      %v883 = vrot.slane %v494, 7
      %v884 = vor.u32 %v882, %v883
      %v885 = vsel %vm799, %v881, %v884
      %v886 = vrot.slane %v884, 4
      %v887 = vrot.slane %v717, 6
      %v888 = vrot.slane %v504, 7
      %v889 = vor.u32 %v887, %v888
      %v890 = vsel %vm799, %v886, %v889
      %v891 = vrot.slane %v509, 6
      %v892 = vrot.slane %v512, 7
      %v893 = vor.u32 %v891, %v892
      %v894 = vrot.slane %v893, 4
      %v895 = vrot.slane %v522, 6
      %v896 = vrot.slane %v518, 7
      %v897 = vor.u32 %v895, %v896
      %v898 = vsel %vm799, %v894, %v897
      %v899 = vrot.slane %v897, 4
      %v900 = vrot.slane %v732, 6
      %v901 = vrot.slane %v528, 7
      %v902 = vor.u32 %v900, %v901
      %v903 = vsel %vm799, %v899, %v902
      %vm904 = vcmask 1040384
      %vm905 = vcmask 1044484
      %vm906 = vmor %vm904, %vm905
      %v907 = vrot.slane %v289, 7
      %v908 = vrot.slane %v907, 4
      %v909 = vrot.slane %v290, 7
      %v910 = vsel %vm906, %v908, %v909
      %v911 = vrot.slane %v909, 4
      %v912 = vrot.slane %v291, 7
      %v913 = vsel %vm906, %v911, %v912
      %v914 = vrot.slane %v292, 7
      %v915 = vrot.slane %v914, 4
      %v916 = vrot.slane %v293, 7
      %v917 = vsel %vm906, %v915, %v916
      %v918 = vrot.slane %v916, 4
      %v919 = vrot.slane %v294, 7
      %v920 = vsel %vm906, %v918, %v919
      %v921 = vrot.slane %v295, 7
      %v922 = vrot.slane %v921, 4
      %v923 = vrot.slane %v296, 7
      %v924 = vsel %vm906, %v922, %v923
      %v925 = vrot.slane %v923, 4
      %v926 = vrot.slane %v297, 7
      %v927 = vsel %vm906, %v925, %v926
      %v928 = vrot.slane %v298, 7
      %v929 = vrot.slane %v928, 4
      %v930 = vrot.slane %v299, 7
      %v931 = vsel %vm906, %v929, %v930
      %v932 = vrot.slane %v930, 4
      %v933 = vrot.slane %v300, 7
      %v934 = vsel %vm906, %v932, %v933
      %v935 = vrot.slane %v301, 7
      %v936 = vrot.slane %v935, 4
      %v937 = vrot.slane %v302, 7
      %v938 = vsel %vm906, %v936, %v937
      %v939 = vrot.slane %v937, 4
      %v940 = vrot.slane %v303, 7
      %v941 = vsel %vm906, %v939, %v940
      %v942 = vrot.slane %v304, 7
      %v943 = vrot.slane %v942, 4
      %v944 = vrot.slane %v305, 7
      %v945 = vsel %vm906, %v943, %v944
      %v946 = vrot.slane %v944, 4
      %v947 = vrot.slane %v306, 7
      %v948 = vsel %vm906, %v946, %v947
      %v949 = vrot.slane %v307, 7
      %v950 = vrot.slane %v949, 4
      %v951 = vrot.slane %v308, 7
      %v952 = vsel %vm906, %v950, %v951
      %v953 = vrot.slane %v951, 4
      %v954 = vrot.slane %v309, 7
      %v955 = vsel %vm906, %v953, %v954
      %v956 = vrot.slane %v310, 7
      %v957 = vrot.slane %v956, 4
      %v958 = vrot.slane %v311, 7
      %v959 = vsel %vm906, %v957, %v958
      %v960 = vrot.slane %v958, 4
      %v961 = vrot.slane %v312, 7
      %v962 = vsel %vm906, %v960, %v961
      %vm963 = vsmask.f32 256
      %vm964 = vsmask.f32 4368
      %vm965 = vmor %vm963, %vm964
      %v966 = vrot.slane %v341, 7
      %v967 = vrot.slane %v966, 4
      %v968 = vrot.slane %v354, 7
      %v969 = vor.u32 %v968, %v350
      %v970 = vsel %vm965, %v967, %v969
      %v971 = vrot.slane %v968, 4
      %v972 = vrot.slane %v627, 7
      %v973 = vor.u32 %v972, %v360
      %v974 = vsel %vm965, %v971, %v973
      %v975 = vrot.slane %v365, 7
      %v976 = vrot.slane %v975, 4
      %v977 = vrot.slane %v378, 7
      %v978 = vor.u32 %v977, %v374
      %v979 = vsel %vm965, %v976, %v978
      %v980 = vrot.slane %v977, 4
      %v981 = vrot.slane %v642, 7
      %v982 = vor.u32 %v981, %v384
      %v983 = vsel %vm965, %v980, %v982
      %v984 = vrot.slane %v389, 7
      %v985 = vrot.slane %v984, 4
      %v986 = vrot.slane %v402, 7
      %v987 = vor.u32 %v986, %v398
      %v988 = vsel %vm965, %v985, %v987
      %v989 = vrot.slane %v986, 4
      %v990 = vrot.slane %v657, 7
      %v991 = vor.u32 %v990, %v408
      %v992 = vsel %vm965, %v989, %v991
      %v993 = vrot.slane %v413, 7
      %v994 = vrot.slane %v993, 4
      %v995 = vrot.slane %v426, 7
      %v996 = vor.u32 %v995, %v422
      %v997 = vsel %vm965, %v994, %v996
      %v998 = vrot.slane %v995, 4
      %v999 = vrot.slane %v672, 7
      %v1000 = vor.u32 %v999, %v432
      %v1001 = vsel %vm965, %v998, %v1000
      %v1002 = vrot.slane %v437, 7
      %v1003 = vrot.slane %v1002, 4
      %v1004 = vrot.slane %v450, 7
      %v1005 = vor.u32 %v1004, %v446
      %v1006 = vsel %vm965, %v1003, %v1005
      %v1007 = vrot.slane %v1004, 4
      %v1008 = vrot.slane %v687, 7
      %v1009 = vor.u32 %v1008, %v456
      %v1010 = vsel %vm965, %v1007, %v1009
      %v1011 = vrot.slane %v461, 7
      %v1012 = vrot.slane %v1011, 4
      %v1013 = vrot.slane %v474, 7
      %v1014 = vor.u32 %v1013, %v470
      %v1015 = vsel %vm965, %v1012, %v1014
      %v1016 = vrot.slane %v1013, 4
      %v1017 = vrot.slane %v702, 7
      %v1018 = vor.u32 %v1017, %v480
      %v1019 = vsel %vm965, %v1016, %v1018
      %v1020 = vrot.slane %v485, 7
      %v1021 = vrot.slane %v1020, 4
      %v1022 = vrot.slane %v498, 7
      %v1023 = vor.u32 %v1022, %v494
      %v1024 = vsel %vm965, %v1021, %v1023
      %v1025 = vrot.slane %v1022, 4
      %v1026 = vrot.slane %v717, 7
      %v1027 = vor.u32 %v1026, %v504
      %v1028 = vsel %vm965, %v1025, %v1027
      %v1029 = vrot.slane %v509, 7
      %v1030 = vrot.slane %v1029, 4
      %v1031 = vrot.slane %v522, 7
      %v1032 = vor.u32 %v1031, %v518
      %v1033 = vsel %vm965, %v1030, %v1032
      %v1034 = vrot.slane %v1031, 4
      %v1035 = vrot.slane %v732, 7
      %v1036 = vor.u32 %v1035, %v528
      %v1037 = vsel %vm965, %v1034, %v1036
      %v1038 = vunpack.c.l.b16 %v289
      %v1039 = vunpack.c.l.b16 %v290
      %v1040 = vunpack.c.l.b16 %v292
      %v1041 = vunpack.c.l.b16 %v293
      %v1042 = vunpack.c.l.b16 %v295
      %v1043 = vunpack.c.l.b16 %v296
      %v1044 = vunpack.c.l.b16 %v298
      %v1045 = vunpack.c.l.b16 %v299
      %v1046 = vunpack.c.l.b16 %v301
      %v1047 = vunpack.c.l.b16 %v302
      %v1048 = vunpack.c.l.b16 %v304
      %v1049 = vunpack.c.l.b16 %v305
      %v1050 = vunpack.c.l.b16 %v307
      %v1051 = vunpack.c.l.b16 %v308
      %v1052 = vunpack.c.l.b16 %v310
      %v1053 = vunpack.c.l.b16 %v311
      %v1054 = vpack.c.b16 %v1039, %v1038
      %v1055 = vpack.c.b16 %v1041, %v1040
      %v1056 = vpack.c.b16 %v1043, %v1042
      %v1057 = vpack.c.b16 %v1045, %v1044
      %v1058 = vpack.c.b16 %v1047, %v1046
      %v1059 = vpack.c.b16 %v1049, %v1048
      %v1060 = vpack.c.b16 %v1051, %v1050
      %v1061 = vpack.c.b16 %v1053, %v1052
      %v1062 = vunpack.c.l.b16 %v353
      %v1063 = vunpack.c.l.b16 %v363
      %v1064 = vunpack.c.l.b16 %v377
      %v1065 = vunpack.c.l.b16 %v387
      %v1066 = vunpack.c.l.b16 %v401
      %v1067 = vunpack.c.l.b16 %v411
      %v1068 = vunpack.c.l.b16 %v425
      %v1069 = vunpack.c.l.b16 %v435
      %v1070 = vunpack.c.l.b16 %v449
      %v1071 = vunpack.c.l.b16 %v459
      %v1072 = vunpack.c.l.b16 %v473
      %v1073 = vunpack.c.l.b16 %v483
      %v1074 = vunpack.c.l.b16 %v497
      %v1075 = vunpack.c.l.b16 %v507
      %v1076 = vunpack.c.l.b16 %v521
      %v1077 = vunpack.c.l.b16 %v531
      %v1078 = vpack.c.b16 %v1063, %v1062
      %v1079 = vpack.c.b16 %v1065, %v1064
      %v1080 = vpack.c.b16 %v1067, %v1066
      %v1081 = vpack.c.b16 %v1069, %v1068
      %v1082 = vpack.c.b16 %v1071, %v1070
      %v1083 = vpack.c.b16 %v1073, %v1072
      %v1084 = vpack.c.b16 %v1075, %v1074
      %v1085 = vpack.c.b16 %v1077, %v1076
      %1086 = vrot.lane.b32.xlu0 %v1078, 16
      %v1087 = vpop.permute.xlu0 %1086
      %1088 = vrot.lane.b32.xlu0 %v1079, 16
      %v1089 = vpop.permute.xlu0 %1088
      %1090 = vrot.lane.b32.xlu0 %v1080, 16
      %v1091 = vpop.permute.xlu0 %1090
      %1092 = vrot.lane.b32.xlu0 %v1081, 16
      %v1093 = vpop.permute.xlu0 %1092
      %1094 = vrot.lane.b32.xlu0 %v1082, 16
      %v1095 = vpop.permute.xlu0 %1094
      %1096 = vrot.lane.b32.xlu0 %v1083, 16
      %v1097 = vpop.permute.xlu0 %1096
      %1098 = vrot.lane.b32.xlu0 %v1084, 16
      %v1099 = vpop.permute.xlu0 %1098
      %1100 = vrot.lane.b32.xlu0 %v1085, 16
      %v1101 = vpop.permute.xlu0 %1100
      %v1102 = vunpack.c.l.b16 %v562
      %v1103 = vunpack.c.l.b16 %v565
      %v1104 = vunpack.c.l.b16 %v569
      %v1105 = vunpack.c.l.b16 %v572
      %v1106 = vunpack.c.l.b16 %v576
      %v1107 = vunpack.c.l.b16 %v579
      %v1108 = vunpack.c.l.b16 %v583
      %v1109 = vunpack.c.l.b16 %v586
      %v1110 = vunpack.c.l.b16 %v590
      %v1111 = vunpack.c.l.b16 %v593
      %v1112 = vunpack.c.l.b16 %v597
      %v1113 = vunpack.c.l.b16 %v600
      %v1114 = vunpack.c.l.b16 %v604
      %v1115 = vunpack.c.l.b16 %v607
      %v1116 = vunpack.c.l.b16 %v611
      %v1117 = vunpack.c.l.b16 %v614
      %v1118 = vpack.c.b16 %v1103, %v1102
      %v1119 = vpack.c.b16 %v1105, %v1104
      %v1120 = vpack.c.b16 %v1107, %v1106
      %v1121 = vpack.c.b16 %v1109, %v1108
      %v1122 = vpack.c.b16 %v1111, %v1110
      %v1123 = vpack.c.b16 %v1113, %v1112
      %v1124 = vpack.c.b16 %v1115, %v1114
      %v1125 = vpack.c.b16 %v1117, %v1116
      %1126 = vrot.lane.b32.xlu0 %v1118, 32
      %v1127 = vpop.permute.xlu0 %1126
      %1128 = vrot.lane.b32.xlu0 %v1119, 32
      %v1129 = vpop.permute.xlu0 %1128
      %1130 = vrot.lane.b32.xlu0 %v1120, 32
      %v1131 = vpop.permute.xlu0 %1130
      %1132 = vrot.lane.b32.xlu0 %v1121, 32
      %v1133 = vpop.permute.xlu0 %1132
      %1134 = vrot.lane.b32.xlu0 %v1122, 32
      %v1135 = vpop.permute.xlu0 %1134
      %1136 = vrot.lane.b32.xlu0 %v1123, 32
      %v1137 = vpop.permute.xlu0 %1136
      %1138 = vrot.lane.b32.xlu0 %v1124, 32
      %v1139 = vpop.permute.xlu0 %1138
      %1140 = vrot.lane.b32.xlu0 %v1125, 32
      %v1141 = vpop.permute.xlu0 %1140
      %v1142 = vunpack.c.l.b16 %v625
      %v1143 = vunpack.c.l.b16 %v632
      %v1144 = vunpack.c.l.b16 %v640
      %v1145 = vunpack.c.l.b16 %v647
      %v1146 = vunpack.c.l.b16 %v655
      %v1147 = vunpack.c.l.b16 %v662
      %v1148 = vunpack.c.l.b16 %v670
      %v1149 = vunpack.c.l.b16 %v677
      %v1150 = vunpack.c.l.b16 %v685
      %v1151 = vunpack.c.l.b16 %v692
      %v1152 = vunpack.c.l.b16 %v700
      %v1153 = vunpack.c.l.b16 %v707
      %v1154 = vunpack.c.l.b16 %v715
      %v1155 = vunpack.c.l.b16 %v722
      %v1156 = vunpack.c.l.b16 %v730
      %v1157 = vunpack.c.l.b16 %v737
      %v1158 = vpack.c.b16 %v1143, %v1142
      %v1159 = vpack.c.b16 %v1145, %v1144
      %v1160 = vpack.c.b16 %v1147, %v1146
      %v1161 = vpack.c.b16 %v1149, %v1148
      %v1162 = vpack.c.b16 %v1151, %v1150
      %v1163 = vpack.c.b16 %v1153, %v1152
      %v1164 = vpack.c.b16 %v1155, %v1154
      %v1165 = vpack.c.b16 %v1157, %v1156
      %1166 = vrot.lane.b32.xlu0 %v1158, 48
      %v1167 = vpop.permute.xlu0 %1166
      %1168 = vrot.lane.b32.xlu0 %v1159, 48
      %v1169 = vpop.permute.xlu0 %1168
      %1170 = vrot.lane.b32.xlu0 %v1160, 48
      %v1171 = vpop.permute.xlu0 %1170
      %1172 = vrot.lane.b32.xlu0 %v1161, 48
      %v1173 = vpop.permute.xlu0 %1172
      %1174 = vrot.lane.b32.xlu0 %v1162, 48
      %v1175 = vpop.permute.xlu0 %1174
      %1176 = vrot.lane.b32.xlu0 %v1163, 48
      %v1177 = vpop.permute.xlu0 %1176
      %1178 = vrot.lane.b32.xlu0 %v1164, 48
      %v1179 = vpop.permute.xlu0 %1178
      %1180 = vrot.lane.b32.xlu0 %v1165, 48
      %v1181 = vpop.permute.xlu0 %1180
      %v1182 = vunpack.c.l.b16 %v744
      %v1183 = vunpack.c.l.b16 %v747
      %v1184 = vunpack.c.l.b16 %v751
      %v1185 = vunpack.c.l.b16 %v754
      %v1186 = vunpack.c.l.b16 %v758
      %v1187 = vunpack.c.l.b16 %v761
      %v1188 = vunpack.c.l.b16 %v765
      %v1189 = vunpack.c.l.b16 %v768
      %v1190 = vunpack.c.l.b16 %v772
      %v1191 = vunpack.c.l.b16 %v775
      %v1192 = vunpack.c.l.b16 %v779
      %v1193 = vunpack.c.l.b16 %v782
      %v1194 = vunpack.c.l.b16 %v786
      %v1195 = vunpack.c.l.b16 %v789
      %v1196 = vunpack.c.l.b16 %v793
      %v1197 = vunpack.c.l.b16 %v796
      %v1198 = vpack.c.b16 %v1183, %v1182
      %v1199 = vpack.c.b16 %v1185, %v1184
      %v1200 = vpack.c.b16 %v1187, %v1186
      %v1201 = vpack.c.b16 %v1189, %v1188
      %v1202 = vpack.c.b16 %v1191, %v1190
      %v1203 = vpack.c.b16 %v1193, %v1192
      %v1204 = vpack.c.b16 %v1195, %v1194
      %v1205 = vpack.c.b16 %v1197, %v1196
      %1206 = vrot.lane.b32.xlu0 %v1198, 64
      %v1207 = vpop.permute.xlu0 %1206
      %1208 = vrot.lane.b32.xlu0 %v1199, 64
      %v1209 = vpop.permute.xlu0 %1208
      %1210 = vrot.lane.b32.xlu0 %v1200, 64
      %v1211 = vpop.permute.xlu0 %1210
      %1212 = vrot.lane.b32.xlu0 %v1201, 64
      %v1213 = vpop.permute.xlu0 %1212
      %1214 = vrot.lane.b32.xlu0 %v1202, 64
      %v1215 = vpop.permute.xlu0 %1214
      %1216 = vrot.lane.b32.xlu0 %v1203, 64
      %v1217 = vpop.permute.xlu0 %1216
      %1218 = vrot.lane.b32.xlu0 %v1204, 64
      %v1219 = vpop.permute.xlu0 %1218
      %1220 = vrot.lane.b32.xlu0 %v1205, 64
      %v1221 = vpop.permute.xlu0 %1220
      %v1222 = vunpack.c.l.b16 %v807
      %v1223 = vunpack.c.l.b16 %v812
      %v1224 = vunpack.c.l.b16 %v820
      %v1225 = vunpack.c.l.b16 %v825
      %v1226 = vunpack.c.l.b16 %v833
      %v1227 = vunpack.c.l.b16 %v838
      %v1228 = vunpack.c.l.b16 %v846
      %v1229 = vunpack.c.l.b16 %v851
      %v1230 = vunpack.c.l.b16 %v859
      %v1231 = vunpack.c.l.b16 %v864
      %v1232 = vunpack.c.l.b16 %v872
      %v1233 = vunpack.c.l.b16 %v877
      %v1234 = vunpack.c.l.b16 %v885
      %v1235 = vunpack.c.l.b16 %v890
      %v1236 = vunpack.c.l.b16 %v898
      %v1237 = vunpack.c.l.b16 %v903
      %v1238 = vpack.c.b16 %v1223, %v1222
      %v1239 = vpack.c.b16 %v1225, %v1224
      %v1240 = vpack.c.b16 %v1227, %v1226
      %v1241 = vpack.c.b16 %v1229, %v1228
      %v1242 = vpack.c.b16 %v1231, %v1230
      %v1243 = vpack.c.b16 %v1233, %v1232
      %v1244 = vpack.c.b16 %v1235, %v1234
      %v1245 = vpack.c.b16 %v1237, %v1236
      %1246 = vrot.lane.b32.xlu0 %v1238, 80
      %v1247 = vpop.permute.xlu0 %1246
      %1248 = vrot.lane.b32.xlu0 %v1239, 80
      %v1249 = vpop.permute.xlu0 %1248
      %1250 = vrot.lane.b32.xlu0 %v1240, 80
      %v1251 = vpop.permute.xlu0 %1250
      %1252 = vrot.lane.b32.xlu0 %v1241, 80
      %v1253 = vpop.permute.xlu0 %1252
      %1254 = vrot.lane.b32.xlu0 %v1242, 80
      %v1255 = vpop.permute.xlu0 %1254
      %1256 = vrot.lane.b32.xlu0 %v1243, 80
      %v1257 = vpop.permute.xlu0 %1256
      %1258 = vrot.lane.b32.xlu0 %v1244, 80
      %v1259 = vpop.permute.xlu0 %1258
      %1260 = vrot.lane.b32.xlu0 %v1245, 80
      %v1261 = vpop.permute.xlu0 %1260
      %v1262 = vunpack.c.l.b16 %v910
      %v1263 = vunpack.c.l.b16 %v913
      %v1264 = vunpack.c.l.b16 %v917
      %v1265 = vunpack.c.l.b16 %v920
      %v1266 = vunpack.c.l.b16 %v924
      %v1267 = vunpack.c.l.b16 %v927
      %v1268 = vunpack.c.l.b16 %v931
      %v1269 = vunpack.c.l.b16 %v934
      %v1270 = vunpack.c.l.b16 %v938
      %v1271 = vunpack.c.l.b16 %v941
      %v1272 = vunpack.c.l.b16 %v945
      %v1273 = vunpack.c.l.b16 %v948
      %v1274 = vunpack.c.l.b16 %v952
      %v1275 = vunpack.c.l.b16 %v955
      %v1276 = vunpack.c.l.b16 %v959
      %v1277 = vunpack.c.l.b16 %v962
      %v1278 = vpack.c.b16 %v1263, %v1262
      %v1279 = vpack.c.b16 %v1265, %v1264
      %v1280 = vpack.c.b16 %v1267, %v1266
      %v1281 = vpack.c.b16 %v1269, %v1268
      %v1282 = vpack.c.b16 %v1271, %v1270
      %v1283 = vpack.c.b16 %v1273, %v1272
      %v1284 = vpack.c.b16 %v1275, %v1274
      %v1285 = vpack.c.b16 %v1277, %v1276
      %1286 = vrot.lane.b32.xlu0 %v1278, 96
      %v1287 = vpop.permute.xlu0 %1286
      %1288 = vrot.lane.b32.xlu0 %v1279, 96
      %v1289 = vpop.permute.xlu0 %1288
      %1290 = vrot.lane.b32.xlu0 %v1280, 96
      %v1291 = vpop.permute.xlu0 %1290
      %1292 = vrot.lane.b32.xlu0 %v1281, 96
      %v1293 = vpop.permute.xlu0 %1292
      %1294 = vrot.lane.b32.xlu0 %v1282, 96
      %v1295 = vpop.permute.xlu0 %1294
      %1296 = vrot.lane.b32.xlu0 %v1283, 96
      %v1297 = vpop.permute.xlu0 %1296
      %1298 = vrot.lane.b32.xlu0 %v1284, 96
      %v1299 = vpop.permute.xlu0 %1298
      %1300 = vrot.lane.b32.xlu0 %v1285, 96
      %v1301 = vpop.permute.xlu0 %1300
      %v1302 = vunpack.c.l.b16 %v970
      %v1303 = vunpack.c.l.b16 %v974
      %v1304 = vunpack.c.l.b16 %v979
      %v1305 = vunpack.c.l.b16 %v983
      %v1306 = vunpack.c.l.b16 %v988
      %v1307 = vunpack.c.l.b16 %v992
      %v1308 = vunpack.c.l.b16 %v997
      %v1309 = vunpack.c.l.b16 %v1001
      %v1310 = vunpack.c.l.b16 %v1006
      %v1311 = vunpack.c.l.b16 %v1010
      %v1312 = vunpack.c.l.b16 %v1015
      %v1313 = vunpack.c.l.b16 %v1019
      %v1314 = vunpack.c.l.b16 %v1024
      %v1315 = vunpack.c.l.b16 %v1028
      %v1316 = vunpack.c.l.b16 %v1033
      %v1317 = vunpack.c.l.b16 %v1037
      %v1318 = vpack.c.b16 %v1303, %v1302
      %v1319 = vpack.c.b16 %v1305, %v1304
      %v1320 = vpack.c.b16 %v1307, %v1306
      %v1321 = vpack.c.b16 %v1309, %v1308
      %v1322 = vpack.c.b16 %v1311, %v1310
      %v1323 = vpack.c.b16 %v1313, %v1312
      %v1324 = vpack.c.b16 %v1315, %v1314
      %v1325 = vpack.c.b16 %v1317, %v1316
      %1326 = vrot.lane.b32.xlu0 %v1318, 112
      %v1327 = vpop.permute.xlu0 %1326
      %1328 = vrot.lane.b32.xlu0 %v1319, 112
      %v1329 = vpop.permute.xlu0 %1328
      %1330 = vrot.lane.b32.xlu0 %v1320, 112
      %v1331 = vpop.permute.xlu0 %1330
      %1332 = vrot.lane.b32.xlu0 %v1321, 112
      %v1333 = vpop.permute.xlu0 %1332
      %1334 = vrot.lane.b32.xlu0 %v1322, 112
      %v1335 = vpop.permute.xlu0 %1334
      %1336 = vrot.lane.b32.xlu0 %v1323, 112
      %v1337 = vpop.permute.xlu0 %1336
      %1338 = vrot.lane.b32.xlu0 %v1324, 112
      %v1339 = vpop.permute.xlu0 %1338
      %1340 = vrot.lane.b32.xlu0 %v1325, 112
      %v1341 = vpop.permute.xlu0 %1340
      %v1342 = vunpack.c.l.b16 %v291
      %v1343 = vunpack.c.l.b16 %v294
      %v1344 = vunpack.c.l.b16 %v297
      %v1345 = vunpack.c.l.b16 %v300
      %v1346 = vunpack.c.l.b16 %v303
      %v1347 = vunpack.c.l.b16 %v306
      %v1348 = vunpack.c.l.b16 %v309
      %v1349 = vunpack.c.l.b16 %v312
      %v1350 = vpack.c.b16 %v1342, %v1039
      %v1351 = vpack.c.b16 %v1343, %v1041
      %v1352 = vpack.c.b16 %v1344, %v1043
      %v1353 = vpack.c.b16 %v1345, %v1045
      %v1354 = vpack.c.b16 %v1346, %v1047
      %v1355 = vpack.c.b16 %v1347, %v1049
      %v1356 = vpack.c.b16 %v1348, %v1051
      %v1357 = vpack.c.b16 %v1349, %v1053
      %vm1358 = vcmask 130048
      %v1361 = vsel %vm1358, %v1054, %v1087
      %v1364 = vsel %vm1358, %v1055, %v1089
      %v1367 = vsel %vm1358, %v1056, %v1091
      %v1370 = vsel %vm1358, %v1057, %v1093
      %v1373 = vsel %vm1358, %v1058, %v1095
      %v1376 = vsel %vm1358, %v1059, %v1097
      %v1379 = vsel %vm1358, %v1060, %v1099
      %v1382 = vsel %vm1358, %v1061, %v1101
      %vm1383 = vcmask 261120
      %v1385 = vsel %vm1383, %v1361, %v1127
      %v1387 = vsel %vm1383, %v1364, %v1129
      %v1389 = vsel %vm1383, %v1367, %v1131
      %v1391 = vsel %vm1383, %v1370, %v1133
      %v1393 = vsel %vm1383, %v1373, %v1135
      %v1395 = vsel %vm1383, %v1376, %v1137
      %v1397 = vsel %vm1383, %v1379, %v1139
      %v1399 = vsel %vm1383, %v1382, %v1141
      %vm1400 = vcmask 392192
      %v1402 = vsel %vm1400, %v1385, %v1167
      %v1404 = vsel %vm1400, %v1387, %v1169
      %v1406 = vsel %vm1400, %v1389, %v1171
      %v1408 = vsel %vm1400, %v1391, %v1173
      %v1410 = vsel %vm1400, %v1393, %v1175
      %v1412 = vsel %vm1400, %v1395, %v1177
      %v1414 = vsel %vm1400, %v1397, %v1179
      %v1416 = vsel %vm1400, %v1399, %v1181
      %vm1417 = vcmask 523264
      %v1419 = vsel %vm1417, %v1402, %v1207
      %v1421 = vsel %vm1417, %v1404, %v1209
      %v1423 = vsel %vm1417, %v1406, %v1211
      %v1425 = vsel %vm1417, %v1408, %v1213
      %v1427 = vsel %vm1417, %v1410, %v1215
      %v1429 = vsel %vm1417, %v1412, %v1217
      %v1431 = vsel %vm1417, %v1414, %v1219
      %v1433 = vsel %vm1417, %v1416, %v1221
      %vm1434 = vcmask 654336
      %v1436 = vsel %vm1434, %v1419, %v1247
      %v1438 = vsel %vm1434, %v1421, %v1249
      %v1440 = vsel %vm1434, %v1423, %v1251
      %v1442 = vsel %vm1434, %v1425, %v1253
      %v1444 = vsel %vm1434, %v1427, %v1255
      %v1446 = vsel %vm1434, %v1429, %v1257
      %v1448 = vsel %vm1434, %v1431, %v1259
      %v1450 = vsel %vm1434, %v1433, %v1261
      %vm1451 = vcmask 785408
      %v1453 = vsel %vm1451, %v1436, %v1287
      %v1455 = vsel %vm1451, %v1438, %v1289
      %v1457 = vsel %vm1451, %v1440, %v1291
      %v1459 = vsel %vm1451, %v1442, %v1293
      %v1461 = vsel %vm1451, %v1444, %v1295
      %v1463 = vsel %vm1451, %v1446, %v1297
      %v1465 = vsel %vm1451, %v1448, %v1299
      %v1467 = vsel %vm1451, %v1450, %v1301
      %vm1468 = vcmask 916480
      %v1470 = vsel %vm1468, %v1453, %v1327
      %v1473 = vsel %vm1468, %v1455, %v1329
      %v1476 = vsel %vm1468, %v1457, %v1331
      %v1479 = vsel %vm1468, %v1459, %v1333
      %v1482 = vsel %vm1468, %v1461, %v1335
      %v1485 = vsel %vm1468, %v1463, %v1337
      %v1488 = vsel %vm1468, %v1465, %v1339
      %v1491 = vsel %vm1468, %v1467, %v1341
      %v1493 = vld [vmem:[%s2] sm:$0xf]
      %v1494 = vld [vmem:[%s2 + $0x4] sm:$0xf]
      %v1495 = vld [vmem:[%s2 + $0x8] sm:$0xf]
      %v1496 = vld [vmem:[%s2 + $0xc] sm:$0xf]
      %v1497 = vld [vmem:[%s2 + $0x10] sm:$0xf]
      %v1498 = vld [vmem:[%s2 + $0x14] sm:$0xf]
      %v1499 = vld [vmem:[%s2 + $0x18] sm:$0xf]
      %v1500 = vld [vmem:[%s2 + $0x1c] sm:$0xf]
      %v1501 = vld [vmem:[%s2 + $0x20] sm:$0xf]
      %v1502 = vld [vmem:[%s2 + $0x24] sm:$0xf]
      %v1503 = vld [vmem:[%s2 + $0x28] sm:$0xf]
      %v1504 = vld [vmem:[%s2 + $0x2c] sm:$0xf]
      %v1505 = vld [vmem:[%s2 + $0x30] sm:$0xf]
      %v1506 = vld [vmem:[%s2 + $0x34] sm:$0xf]
      %v1507 = vld [vmem:[%s2 + $0x38] sm:$0xf]
      %v1508 = vld [vmem:[%s2 + $0x3c] sm:$0xf]
      %v1509 = vld [vmem:[%s2 + $0x40] sm:$0xf]
      %v1510 = vld [vmem:[%s2 + $0x44] sm:$0xf]
      %v1512 = vshrl.u32 %v313, 16
      %v1514 = vrot.slane %v1512, 4
      %v1515 = vshll.u32 %v313, 16
      %v1517 = vrot.slane %v1515, 5
      %v1518 = vor.u32 %v1514, %v1517
      %v1519 = vrot.slane %v1518, 4
      %v1521 = vshll.u32 %v314, 16
      %v1523 = vrot.slane %v1521, 5
      %v1524 = vsel %vm339, %v1519, %v1523
      %v1525 = vshrl.u32 %v314, 16
      %v1527 = vrot.slane %v1525, 4
      %v1528 = vor.u32 %v1527, %v1523
      %v1529 = vrot.slane %v1528, 4
      %v1531 = vshll.u32 %v315, 16
      %v1533 = vrot.slane %v1531, 5
      %v1534 = vsel %vm339, %v1529, %v1533
      %v1538 = vrot.slane %v313, 5
      %v1539 = vrot.slane %v1538, 4
      %v1540 = vrot.slane %v314, 5
      %v1541 = vsel %vm558, %v1539, %v1540
      %v1542 = vrot.slane %v1540, 4
      %v1543 = vrot.slane %v315, 5
      %v1544 = vsel %vm558, %v1542, %v1543
      %v1545 = vrot.slane %v1512, 5
      %v1546 = vrot.slane %v1515, 6
      %v1547 = vor.u32 %v1545, %v1546
      %v1548 = vrot.slane %v1547, 4
      %v1549 = vrot.slane %v1525, 5
      %v1550 = vrot.slane %v1521, 6
      %v1551 = vor.u32 %v1549, %v1550
      %v1552 = vsel %vm617, %v1548, %v1551
      %v1553 = vrot.slane %v1551, 4
      %v1554 = vshrl.u32 %v315, 16
      %v1556 = vrot.slane %v1554, 5
      %v1557 = vrot.slane %v1531, 6
      %v1558 = vor.u32 %v1556, %v1557
      %v1559 = vsel %vm617, %v1553, %v1558
      %v1560 = vrot.slane %v313, 6
      %v1561 = vrot.slane %v1560, 4
      %v1562 = vrot.slane %v314, 6
      %v1563 = vsel %vm740, %v1561, %v1562
      %v1564 = vrot.slane %v1562, 4
      %v1565 = vrot.slane %v315, 6
      %v1566 = vsel %vm740, %v1564, %v1565
      %v1567 = vrot.slane %v1512, 6
      %v1568 = vrot.slane %v1515, 7
      %v1569 = vor.u32 %v1567, %v1568
      %v1570 = vrot.slane %v1569, 4
      %v1571 = vrot.slane %v1525, 6
      %v1572 = vrot.slane %v1521, 7
      %v1573 = vor.u32 %v1571, %v1572
      %v1574 = vsel %vm799, %v1570, %v1573
      %v1575 = vrot.slane %v1573, 4
      %v1576 = vrot.slane %v1554, 6
      %v1577 = vrot.slane %v1531, 7
      %v1578 = vor.u32 %v1576, %v1577
      %v1579 = vsel %vm799, %v1575, %v1578
      %v1580 = vrot.slane %v313, 7
      %v1581 = vrot.slane %v1580, 4
      %v1582 = vrot.slane %v314, 7
      %v1583 = vsel %vm906, %v1581, %v1582
      %v1584 = vrot.slane %v1582, 4
      %v1585 = vrot.slane %v315, 7
      %v1586 = vsel %vm906, %v1584, %v1585
      %v1587 = vrot.slane %v1512, 7
      %v1588 = vrot.slane %v1587, 4
      %v1589 = vrot.slane %v1525, 7
      %v1590 = vor.u32 %v1589, %v1521
      %v1591 = vsel %vm965, %v1588, %v1590
      %v1592 = vrot.slane %v1589, 4
      %v1593 = vrot.slane %v1554, 7
      %v1594 = vor.u32 %v1593, %v1531
      %v1595 = vsel %vm965, %v1592, %v1594
      %v1596 = vunpack.c.l.b16 %v313
      %v1597 = vunpack.c.l.b16 %v314
      %v1598 = vpack.c.b16 %v1597, %v1596
      %v1599 = vunpack.c.l.b16 %v1524
      %v1600 = vunpack.c.l.b16 %v1534
      %v1601 = vpack.c.b16 %v1600, %v1599
      %1602 = vrot.lane.b32.xlu0 %v1601, 16
      %v1603 = vpop.permute.xlu0 %1602
      %v1604 = vunpack.c.l.b16 %v1541
      %v1605 = vunpack.c.l.b16 %v1544
      %v1606 = vpack.c.b16 %v1605, %v1604
      %1607 = vrot.lane.b32.xlu0 %v1606, 32
      %v1608 = vpop.permute.xlu0 %1607
      %v1609 = vunpack.c.l.b16 %v1552
      %v1610 = vunpack.c.l.b16 %v1559
      %v1611 = vpack.c.b16 %v1610, %v1609
      %1612 = vrot.lane.b32.xlu0 %v1611, 48
      %v1613 = vpop.permute.xlu0 %1612
      %v1614 = vunpack.c.l.b16 %v1563
      %v1615 = vunpack.c.l.b16 %v1566
      %v1616 = vpack.c.b16 %v1615, %v1614
      %1617 = vrot.lane.b32.xlu0 %v1616, 64
      %v1618 = vpop.permute.xlu0 %1617
      %v1619 = vunpack.c.l.b16 %v1574
      %v1620 = vunpack.c.l.b16 %v1579
      %v1621 = vpack.c.b16 %v1620, %v1619
      %1622 = vrot.lane.b32.xlu0 %v1621, 80
      %v1623 = vpop.permute.xlu0 %1622
      %v1624 = vunpack.c.l.b16 %v1583
      %v1625 = vunpack.c.l.b16 %v1586
      %v1626 = vpack.c.b16 %v1625, %v1624
      %1627 = vrot.lane.b32.xlu0 %v1626, 96
      %v1628 = vpop.permute.xlu0 %1627
      %v1629 = vunpack.c.l.b16 %v1591
      %v1630 = vunpack.c.l.b16 %v1595
      %v1631 = vpack.c.b16 %v1630, %v1629
      %1632 = vrot.lane.b32.xlu0 %v1631, 112
      %v1633 = vpop.permute.xlu0 %1632
      %v1634 = vunpack.c.l.b16 %v315
      %v1635 = vpack.c.b16 %v1634, %v1597
      %v1638 = vsel %vm1358, %v1598, %v1603
      %v1640 = vsel %vm1383, %v1638, %v1608
      %v1642 = vsel %vm1400, %v1640, %v1613
      %v1644 = vsel %vm1417, %v1642, %v1618
      %v1646 = vsel %vm1434, %v1644, %v1623
      %v1648 = vsel %vm1451, %v1646, %v1628
      %v1650 = vsel %vm1468, %v1648, %v1633
      %s1652 = scalar_lea.vmem %s2, 72
      %v1653 = vld [vmem:[%s1652] sm:$0xf]
      %v1654 = vld [vmem:[%s1652 + $0x4] sm:$0xf]
      %v1655 = vld [vmem:[%s1652 + $0x8] sm:$0xf]
      %v1656 = vld [vmem:[%s1652 + $0xc] sm:$0xf]
      %v1657 = vld [vmem:[%s1652 + $0x10] sm:$0xf]
      %v1658 = vld [vmem:[%s1652 + $0x14] sm:$0xf]
      %v1659 = vld [vmem:[%s1652 + $0x18] sm:$0xf]
      %v1660 = vld [vmem:[%s1652 + $0x1c] sm:$0xf]
      %v1661 = vld [vmem:[%s1652 + $0x20] sm:$0xf]
      %v1662 = vld [vmem:[%s1652 + $0x24] sm:$0xf]
      %v1663 = vld [vmem:[%s1652 + $0x28] sm:$0xf]
      %v1664 = vld [vmem:[%s1652 + $0x2c] sm:$0xf]
      %v1665 = vld [vmem:[%s1652 + $0x30] sm:$0xf]
      %v1666 = vld [vmem:[%s1652 + $0x34] sm:$0xf]
      %v1667 = vld [vmem:[%s1652 + $0x38] sm:$0xf]
      %v1668 = vld [vmem:[%s1652 + $0x3c] sm:$0xf]
      %v1669 = vld [vmem:[%s1652 + $0x40] sm:$0xf]
      %v1670 = vld [vmem:[%s1652 + $0x44] sm:$0xf]
      %v1689 = vunpack.c.l.b16 %v1653
      %v1690 = vunpack.c.l.b16 %v1654
      %v1691 = vunpack.c.l.b16 %v1655
      %v1692 = vunpack.c.l.b16 %v1656
      %v1693 = vunpack.c.l.b16 %v1657
      %v1694 = vunpack.c.l.b16 %v1658
      %v1695 = vunpack.c.l.b16 %v1659
      %v1696 = vunpack.c.l.b16 %v1660
      %v1697 = vunpack.c.l.b16 %v1661
      %v1698 = vunpack.c.l.b16 %v1662
      %v1699 = vunpack.c.l.b16 %v1663
      %v1700 = vunpack.c.l.b16 %v1664
      %v1701 = vunpack.c.l.b16 %v1665
      %v1702 = vunpack.c.l.b16 %v1666
      %v1703 = vunpack.c.l.b16 %v1667
      %v1704 = vunpack.c.l.b16 %v1668
      %v1705 = vunpack.c.l.b16 %v1669
      %v1706 = vunpack.c.l.b16 %v1670
      %v1707 = vpack.c.b16 %v1690, %v1689
      %v1708 = vpack.c.b16 %v1692, %v1691
      %v1709 = vpack.c.b16 %v1694, %v1693
      %v1710 = vpack.c.b16 %v1696, %v1695
      %v1711 = vpack.c.b16 %v1698, %v1697
      %v1712 = vpack.c.b16 %v1700, %v1699
      %v1713 = vpack.c.b16 %v1702, %v1701
      %v1714 = vpack.c.b16 %v1704, %v1703
      %v1715 = vpack.c.b16 %v1706, %v1705
      %v1726 = vsel %vm1358, %v1351, 0
      %v1729 = vsel %vm1358, %v1352, 0
      %v1732 = vsel %vm1358, %v1353, 0
      %v1735 = vsel %vm1358, %v1354, 0
      %v1738 = vsel %vm1358, %v1355, 0
      %v1741 = vsel %vm1358, %v1356, 0
      %v1744 = vsel %vm1358, %v1357, 0
      %v1747 = vsel %vm1358, %v1635, 0
      %1749 = vmatprep.subr.bf16.mxu0 0
      %1750 = vmatpush1.bf16.msra.mxu0 %v1707
      %1751 = vmatprep.subr.bf16.mxu0 0
      %1752 = vmatpush1.bf16.msra.mxu0 %v1708
      %1753 = vmatprep.subr.bf16.mxu0 0
      %1754 = vmatpush1.bf16.msra.mxu0 %v1709
      %1755 = vmatprep.subr.bf16.mxu0 0
      %1756 = vmatpush1.bf16.msra.mxu0 %v1710
      %1757 = vmatprep.subr.bf16.mxu0 0
      %1758 = vmatpush1.bf16.msra.mxu0 %v1711
      %1759 = vmatprep.subr.bf16.mxu0 0
      %1760 = vmatpush1.bf16.msra.mxu0 %v1712
      %1761 = vmatprep.subr.bf16.mxu0 0
      %1762 = vmatpush1.bf16.msra.mxu0 %v1713
      %1763 = vmatprep.subr.bf16.mxu0 0
      %1764 = vmatpush1.bf16.msra.mxu0 %v1714
      %1765 = vmatprep.subr.bf16.mxu0 0
      %1766 = vmatpush1.bf16.msra.mxu0 %v1715
      %1767 = vmatprep.subr.bf16.mxu0 0
      %1768 = vmatpush1.bf16.msra.mxu0 0
      %1769 = vmatprep.subr.bf16.mxu0 0
      %1770 = vmatpush1.bf16.msra.mxu0 0
      %1771 = vmatprep.subr.bf16.mxu0 0
      %1772 = vmatpush1.bf16.msra.mxu0 0
      %1773 = vmatprep.subr.bf16.mxu0 0
      %1774 = vmatpush1.bf16.msra.mxu0 0
      %1775 = vmatprep.subr.bf16.mxu0 0
      %1776 = vmatpush1.bf16.msra.mxu0 0
      %1777 = vmatprep.subr.bf16.mxu0 0
      %1778 = vmatpush1.bf16.msra.mxu0 0
      %1779 = vmatprep.subr.bf16.mxu0 0
      %1780 = vmatpush1.bf16.msra.mxu0 0
      %1781 = vmatprep.mubr.bf16.mxu0 %v1726
      %1782 = vmatmul.mubr.bf16.gmra.mrb[0].mxu0 %v1473
      %v1783 = vpop.f32.mrb[0].mxu0
      %v1784 = vadd.f32 0.0, %v1783
      %v1785 = vpop.f32.mrb[0].mxu0
      %v1786 = vpop.f32.mrb[0].mxu0
      %v1787 = vadd.f32 0.0, %v1786
      %v1788 = vpop.f32.mrb[0].mxu0
      %1789 = vmatprep.mubr.bf16.mxu0 %v1729
      %1790 = vmatmul.mubr.bf16.gmra.mrb[0].mxu0 %v1476
      %v1791 = vpop.f32.mrb[0].mxu0
      %v1792 = vadd.f32 0.0, %v1791
      %v1793 = vpop.f32.mrb[0].mxu0
      %v1794 = vpop.f32.mrb[0].mxu0
      %v1795 = vadd.f32 0.0, %v1794
      %v1796 = vpop.f32.mrb[0].mxu0
      %1797 = vmatprep.mubr.bf16.mxu0 %v1732
      %1798 = vmatmul.mubr.bf16.gmra.mrb[0].mxu0 %v1479
      %v1799 = vpop.f32.mrb[0].mxu0
      %v1800 = vadd.f32 0.0, %v1799
      %v1801 = vpop.f32.mrb[0].mxu0
      %v1802 = vpop.f32.mrb[0].mxu0
      %v1803 = vadd.f32 0.0, %v1802
      %v1804 = vpop.f32.mrb[0].mxu0
      %1805 = vmatprep.mubr.bf16.mxu0 %v1735
      %1806 = vmatmul.mubr.bf16.gmra.mrb[0].mxu0 %v1482
      %v1807 = vpop.f32.mrb[0].mxu0
      %v1808 = vadd.f32 0.0, %v1807
      %v1809 = vpop.f32.mrb[0].mxu0
      %v1810 = vpop.f32.mrb[0].mxu0
      %v1811 = vadd.f32 0.0, %v1810
      %v1812 = vpop.f32.mrb[0].mxu0
      %1813 = vmatprep.mubr.bf16.mxu0 %v1738
      %1814 = vmatmul.mubr.bf16.gmra.mrb[0].mxu0 %v1485
      %v1815 = vpop.f32.mrb[0].mxu0
      %v1816 = vadd.f32 0.0, %v1815
      %v1817 = vpop.f32.mrb[0].mxu0
      %v1818 = vpop.f32.mrb[0].mxu0
      %v1819 = vadd.f32 0.0, %v1818
      %v1820 = vpop.f32.mrb[0].mxu0
      %1821 = vmatprep.mubr.bf16.mxu0 %v1741
      %1822 = vmatmul.mubr.bf16.gmra.mrb[0].mxu0 %v1488
      %v1823 = vpop.f32.mrb[0].mxu0
      %v1824 = vadd.f32 0.0, %v1823
      %v1825 = vpop.f32.mrb[0].mxu0
      %v1826 = vpop.f32.mrb[0].mxu0
      %v1827 = vadd.f32 0.0, %v1826
      %v1828 = vpop.f32.mrb[0].mxu0
      %1829 = vmatprep.mubr.bf16.mxu0 %v1744
      %1830 = vmatmul.mubr.bf16.gmra.mrb[0].mxu0 %v1491
      %v1831 = vpop.f32.mrb[0].mxu0
      %v1832 = vadd.f32 0.0, %v1831
      %v1833 = vpop.f32.mrb[0].mxu0
      %v1834 = vpop.f32.mrb[0].mxu0
      %v1835 = vadd.f32 0.0, %v1834
      %v1836 = vpop.f32.mrb[0].mxu0
      %1837 = vmatprep.mubr.bf16.mxu0 %v1747
      %1838 = vmatmul.mubr.bf16.gmra.mrb[0].mxu0 %v1650
      %v1839 = vpop.f32.mrb[0].mxu0
      %v1840 = vadd.f32 0.0, %v1839
      %v1841 = vpop.f32.mrb[0].mxu0
      %v1842 = vpop.f32.mrb[0].mxu0
      %v1843 = vadd.f32 0.0, %v1842
      %v1844 = vpop.f32.mrb[0].mxu0
      %1845 = vdwg.mxu0
      %v1864 = vunpack.c.l.b16 %v1493
      %v1865 = vunpack.c.l.b16 %v1494
      %v1866 = vunpack.c.l.b16 %v1495
      %v1867 = vunpack.c.l.b16 %v1496
      %v1868 = vunpack.c.l.b16 %v1497
      %v1869 = vunpack.c.l.b16 %v1498
      %v1870 = vunpack.c.l.b16 %v1499
      %v1871 = vunpack.c.l.b16 %v1500
      %v1872 = vunpack.c.l.b16 %v1501
      %v1873 = vunpack.c.l.b16 %v1502
      %v1874 = vunpack.c.l.b16 %v1503
      %v1875 = vunpack.c.l.b16 %v1504
      %v1876 = vunpack.c.l.b16 %v1505
      %v1877 = vunpack.c.l.b16 %v1506
      %v1878 = vunpack.c.l.b16 %v1507
      %v1879 = vunpack.c.l.b16 %v1508
      %v1880 = vunpack.c.l.b16 %v1509
      %v1881 = vunpack.c.l.b16 %v1510
      %v1882 = vpack.c.b16 %v1865, %v1864
      %v1883 = vpack.c.b16 %v1867, %v1866
      %v1884 = vpack.c.b16 %v1869, %v1868
      %v1885 = vpack.c.b16 %v1871, %v1870
      %v1886 = vpack.c.b16 %v1873, %v1872
      %v1887 = vpack.c.b16 %v1875, %v1874
      %v1888 = vpack.c.b16 %v1877, %v1876
      %v1889 = vpack.c.b16 %v1879, %v1878
      %v1890 = vpack.c.b16 %v1881, %v1880
      %v1901 = vsel %vm1358, %v1350, 0
      %1903 = vmatprep.subr.bf16.mxu0 0
      %1904 = vmatpush1.bf16.msra.mxu0 %v1882
      %1905 = vmatprep.subr.bf16.mxu0 0
      %1906 = vmatpush1.bf16.msra.mxu0 %v1883
      %1907 = vmatprep.subr.bf16.mxu0 0
      %1908 = vmatpush1.bf16.msra.mxu0 %v1884
      %1909 = vmatprep.subr.bf16.mxu0 0
      %1910 = vmatpush1.bf16.msra.mxu0 %v1885
      %1911 = vmatprep.subr.bf16.mxu0 0
      %1912 = vmatpush1.bf16.msra.mxu0 %v1886
      %1913 = vmatprep.subr.bf16.mxu0 0
      %1914 = vmatpush1.bf16.msra.mxu0 %v1887
      %1915 = vmatprep.subr.bf16.mxu0 0
      %1916 = vmatpush1.bf16.msra.mxu0 %v1888
      %1917 = vmatprep.subr.bf16.mxu0 0
      %1918 = vmatpush1.bf16.msra.mxu0 %v1889
      %1919 = vmatprep.subr.bf16.mxu0 0
      %1920 = vmatpush1.bf16.msra.mxu0 %v1890
      %1921 = vmatprep.subr.bf16.mxu0 0
      %1922 = vmatpush1.bf16.msra.mxu0 0
      %1923 = vmatprep.subr.bf16.mxu0 0
      %1924 = vmatpush1.bf16.msra.mxu0 0
      %1925 = vmatprep.subr.bf16.mxu0 0
      %1926 = vmatpush1.bf16.msra.mxu0 0
      %1927 = vmatprep.subr.bf16.mxu0 0
      %1928 = vmatpush1.bf16.msra.mxu0 0
      %1929 = vmatprep.subr.bf16.mxu0 0
      %1930 = vmatpush1.bf16.msra.mxu0 0
      %1931 = vmatprep.subr.bf16.mxu0 0
      %1932 = vmatpush1.bf16.msra.mxu0 0
      %1933 = vmatprep.subr.bf16.mxu0 0
      %1934 = vmatpush1.bf16.msra.mxu0 0
      %1935 = vmatprep.mubr.bf16.mxu0 %v1901
      %1936 = vmatmul.mubr.bf16.gmra.mrb[0].mxu0 %v1470
      %v1937 = vpop.f32.mrb[0].mxu0
      %v1938 = vadd.f32 %v1784, %v1937
      %v1939 = vpop.f32.mrb[0].mxu0
      %v1940 = vpop.f32.mrb[0].mxu0
      %v1941 = vadd.f32 %v1787, %v1940
      %v1942 = vpop.f32.mrb[0].mxu0
      %1943 = vmatprep.mubr.bf16.mxu0 %v1726
      %1944 = vmatmul.mubr.bf16.gmra.mrb[0].mxu0 %v1473
      %v1945 = vpop.f32.mrb[0].mxu0
      %v1946 = vadd.f32 %v1792, %v1945
      %v1947 = vpop.f32.mrb[0].mxu0
      %v1948 = vpop.f32.mrb[0].mxu0
      %v1949 = vadd.f32 %v1795, %v1948
      %v1950 = vpop.f32.mrb[0].mxu0
      %1951 = vmatprep.mubr.bf16.mxu0 %v1729
      %1952 = vmatmul.mubr.bf16.gmra.mrb[0].mxu0 %v1476
      %v1953 = vpop.f32.mrb[0].mxu0
      %v1954 = vadd.f32 %v1800, %v1953
      %v1955 = vpop.f32.mrb[0].mxu0
      %v1956 = vpop.f32.mrb[0].mxu0
      %v1957 = vadd.f32 %v1803, %v1956
      %v1958 = vpop.f32.mrb[0].mxu0
      %1959 = vmatprep.mubr.bf16.mxu0 %v1732
      %1960 = vmatmul.mubr.bf16.gmra.mrb[0].mxu0 %v1479
      %v1961 = vpop.f32.mrb[0].mxu0
      %v1962 = vadd.f32 %v1808, %v1961
      %v1963 = vpop.f32.mrb[0].mxu0
      %v1964 = vpop.f32.mrb[0].mxu0
      %v1965 = vadd.f32 %v1811, %v1964
      %v1966 = vpop.f32.mrb[0].mxu0
      %1967 = vmatprep.mubr.bf16.mxu0 %v1735
      %1968 = vmatmul.mubr.bf16.gmra.mrb[0].mxu0 %v1482
      %v1969 = vpop.f32.mrb[0].mxu0
      %v1970 = vadd.f32 %v1816, %v1969
      %v1971 = vpop.f32.mrb[0].mxu0
      %v1972 = vpop.f32.mrb[0].mxu0
      %v1973 = vadd.f32 %v1819, %v1972
      %v1974 = vpop.f32.mrb[0].mxu0
      %1975 = vmatprep.mubr.bf16.mxu0 %v1738
      %1976 = vmatmul.mubr.bf16.gmra.mrb[0].mxu0 %v1485
      %v1977 = vpop.f32.mrb[0].mxu0
      %v1978 = vadd.f32 %v1824, %v1977
      %v1979 = vpop.f32.mrb[0].mxu0
      %v1980 = vpop.f32.mrb[0].mxu0
      %v1981 = vadd.f32 %v1827, %v1980
      %v1982 = vpop.f32.mrb[0].mxu0
      %1983 = vmatprep.mubr.bf16.mxu0 %v1741
      %1984 = vmatmul.mubr.bf16.gmra.mrb[0].mxu0 %v1488
      %v1985 = vpop.f32.mrb[0].mxu0
      %v1986 = vadd.f32 %v1832, %v1985
      %v1987 = vpop.f32.mrb[0].mxu0
      %v1988 = vpop.f32.mrb[0].mxu0
      %v1989 = vadd.f32 %v1835, %v1988
      %v1990 = vpop.f32.mrb[0].mxu0
      %1991 = vmatprep.mubr.bf16.mxu0 %v1744
      %1992 = vmatmul.mubr.bf16.gmra.mrb[0].mxu0 %v1491
      %v1993 = vpop.f32.mrb[0].mxu0
      %v1994 = vadd.f32 %v1840, %v1993
      %v1995 = vpop.f32.mrb[0].mxu0
      %v1996 = vpop.f32.mrb[0].mxu0
      %v1997 = vadd.f32 %v1843, %v1996
      %v1998 = vpop.f32.mrb[0].mxu0
      %1999 = vdwg.mxu0
      %v2001 = vshrl.u32 %v316, 16
      %v2003 = vrot.slane %v2001, 4
      %v2004 = vshll.u32 %v316, 16
      %v2006 = vrot.slane %v2004, 5
      %v2007 = vor.u32 %v2003, %v2006
      %v2008 = vrot.slane %v2007, 4
      %v2010 = vshll.u32 %v317, 16
      %v2012 = vrot.slane %v2010, 5
      %v2013 = vsel %vm339, %v2008, %v2012
      %v2014 = vshrl.u32 %v317, 16
      %v2016 = vrot.slane %v2014, 4
      %v2017 = vor.u32 %v2016, %v2012
      %v2018 = vrot.slane %v2017, 4
      %v2020 = vshll.u32 %v318, 16
      %v2022 = vrot.slane %v2020, 5
      %v2023 = vsel %vm339, %v2018, %v2022
      %v2027 = vrot.slane %v316, 5
      %v2028 = vrot.slane %v2027, 4
      %v2029 = vrot.slane %v317, 5
      %v2030 = vsel %vm558, %v2028, %v2029
      %v2031 = vrot.slane %v2029, 4
      %v2032 = vrot.slane %v318, 5
      %v2033 = vsel %vm558, %v2031, %v2032
      %v2034 = vrot.slane %v2001, 5
      %v2035 = vrot.slane %v2004, 6
      %v2036 = vor.u32 %v2034, %v2035
      %v2037 = vrot.slane %v2036, 4
      %v2038 = vrot.slane %v2014, 5
      %v2039 = vrot.slane %v2010, 6
      %v2040 = vor.u32 %v2038, %v2039
      %v2041 = vsel %vm617, %v2037, %v2040
      %v2042 = vrot.slane %v2040, 4
      %v2043 = vshrl.u32 %v318, 16
      %v2045 = vrot.slane %v2043, 5
      %v2046 = vrot.slane %v2020, 6
      %v2047 = vor.u32 %v2045, %v2046
      %v2048 = vsel %vm617, %v2042, %v2047
      %v2049 = vrot.slane %v316, 6
      %v2050 = vrot.slane %v2049, 4
      %v2051 = vrot.slane %v317, 6
      %v2052 = vsel %vm740, %v2050, %v2051
      %v2053 = vrot.slane %v2051, 4
      %v2054 = vrot.slane %v318, 6
      %v2055 = vsel %vm740, %v2053, %v2054
      %v2056 = vrot.slane %v2001, 6
      %v2057 = vrot.slane %v2004, 7
      %v2058 = vor.u32 %v2056, %v2057
      %v2059 = vrot.slane %v2058, 4
      %v2060 = vrot.slane %v2014, 6
      %v2061 = vrot.slane %v2010, 7
      %v2062 = vor.u32 %v2060, %v2061
      %v2063 = vsel %vm799, %v2059, %v2062
      %v2064 = vrot.slane %v2062, 4
      %v2065 = vrot.slane %v2043, 6
      %v2066 = vrot.slane %v2020, 7
      %v2067 = vor.u32 %v2065, %v2066
      %v2068 = vsel %vm799, %v2064, %v2067
      %v2069 = vrot.slane %v316, 7
      %v2070 = vrot.slane %v2069, 4
      %v2071 = vrot.slane %v317, 7
      %v2072 = vsel %vm906, %v2070, %v2071
      %v2073 = vrot.slane %v2071, 4
      %v2074 = vrot.slane %v318, 7
      %v2075 = vsel %vm906, %v2073, %v2074
      %v2076 = vrot.slane %v2001, 7
      %v2077 = vrot.slane %v2076, 4
      %v2078 = vrot.slane %v2014, 7
      %v2079 = vor.u32 %v2078, %v2010
      %v2080 = vsel %vm965, %v2077, %v2079
      %v2081 = vrot.slane %v2078, 4
      %v2082 = vrot.slane %v2043, 7
      %v2083 = vor.u32 %v2082, %v2020
      %v2084 = vsel %vm965, %v2081, %v2083
      %v2085 = vunpack.c.l.b16 %v316
      %v2086 = vunpack.c.l.b16 %v317
      %v2087 = vpack.c.b16 %v2086, %v2085
      %v2088 = vunpack.c.l.b16 %v2013
      %v2089 = vunpack.c.l.b16 %v2023
      %v2090 = vpack.c.b16 %v2089, %v2088
      %2091 = vrot.lane.b32.xlu0 %v2090, 16
      %v2092 = vpop.permute.xlu0 %2091
      %v2093 = vunpack.c.l.b16 %v2030
      %v2094 = vunpack.c.l.b16 %v2033
      %v2095 = vpack.c.b16 %v2094, %v2093
      %2096 = vrot.lane.b32.xlu0 %v2095, 32
      %v2097 = vpop.permute.xlu0 %2096
      %v2098 = vunpack.c.l.b16 %v2041
      %v2099 = vunpack.c.l.b16 %v2048
      %v2100 = vpack.c.b16 %v2099, %v2098
      %2101 = vrot.lane.b32.xlu0 %v2100, 48
      %v2102 = vpop.permute.xlu0 %2101
      %v2103 = vunpack.c.l.b16 %v2052
      %v2104 = vunpack.c.l.b16 %v2055
      %v2105 = vpack.c.b16 %v2104, %v2103
      %2106 = vrot.lane.b32.xlu0 %v2105, 64
      %v2107 = vpop.permute.xlu0 %2106
      %v2108 = vunpack.c.l.b16 %v2063
      %v2109 = vunpack.c.l.b16 %v2068
      %v2110 = vpack.c.b16 %v2109, %v2108
      %2111 = vrot.lane.b32.xlu0 %v2110, 80
      %v2112 = vpop.permute.xlu0 %2111
      %v2113 = vunpack.c.l.b16 %v2072
      %v2114 = vunpack.c.l.b16 %v2075
      %v2115 = vpack.c.b16 %v2114, %v2113
      %2116 = vrot.lane.b32.xlu0 %v2115, 96
      %v2117 = vpop.permute.xlu0 %2116
      %v2118 = vunpack.c.l.b16 %v2080
      %v2119 = vunpack.c.l.b16 %v2084
      %v2120 = vpack.c.b16 %v2119, %v2118
      %2121 = vrot.lane.b32.xlu0 %v2120, 112
      %v2122 = vpop.permute.xlu0 %2121
      %v2123 = vunpack.c.l.b16 %v318
      %v2124 = vpack.c.b16 %v2123, %v2086
      %v2127 = vsel %vm1358, %v2087, %v2092
      %v2129 = vsel %vm1383, %v2127, %v2097
      %v2131 = vsel %vm1400, %v2129, %v2102
      %v2133 = vsel %vm1417, %v2131, %v2107
      %v2135 = vsel %vm1434, %v2133, %v2112
      %v2137 = vsel %vm1451, %v2135, %v2117
      %v2139 = vsel %vm1468, %v2137, %v2122
      %s2141 = scalar_lea.vmem %s2, 144
      %v2142 = vld [vmem:[%s2141] sm:$0xf]
      %v2143 = vld [vmem:[%s2141 + $0x4] sm:$0xf]
      %v2144 = vld [vmem:[%s2141 + $0x8] sm:$0xf]
      %v2145 = vld [vmem:[%s2141 + $0xc] sm:$0xf]
      %v2146 = vld [vmem:[%s2141 + $0x10] sm:$0xf]
      %v2147 = vld [vmem:[%s2141 + $0x14] sm:$0xf]
      %v2148 = vld [vmem:[%s2141 + $0x18] sm:$0xf]
      %v2149 = vld [vmem:[%s2141 + $0x1c] sm:$0xf]
      %v2150 = vld [vmem:[%s2141 + $0x20] sm:$0xf]
      %v2151 = vld [vmem:[%s2141 + $0x24] sm:$0xf]
      %v2152 = vld [vmem:[%s2141 + $0x28] sm:$0xf]
      %v2153 = vld [vmem:[%s2141 + $0x2c] sm:$0xf]
      %v2154 = vld [vmem:[%s2141 + $0x30] sm:$0xf]
      %v2155 = vld [vmem:[%s2141 + $0x34] sm:$0xf]
      %v2156 = vld [vmem:[%s2141 + $0x38] sm:$0xf]
      %v2157 = vld [vmem:[%s2141 + $0x3c] sm:$0xf]
      %v2158 = vld [vmem:[%s2141 + $0x40] sm:$0xf]
      %v2159 = vld [vmem:[%s2141 + $0x44] sm:$0xf]
      %v2178 = vunpack.c.l.b16 %v2142
      %v2179 = vunpack.c.l.b16 %v2143
      %v2180 = vunpack.c.l.b16 %v2144
      %v2181 = vunpack.c.l.b16 %v2145
      %v2182 = vunpack.c.l.b16 %v2146
      %v2183 = vunpack.c.l.b16 %v2147
      %v2184 = vunpack.c.l.b16 %v2148
      %v2185 = vunpack.c.l.b16 %v2149
      %v2186 = vunpack.c.l.b16 %v2150
      %v2187 = vunpack.c.l.b16 %v2151
      %v2188 = vunpack.c.l.b16 %v2152
      %v2189 = vunpack.c.l.b16 %v2153
      %v2190 = vunpack.c.l.b16 %v2154
      %v2191 = vunpack.c.l.b16 %v2155
      %v2192 = vunpack.c.l.b16 %v2156
      %v2193 = vunpack.c.l.b16 %v2157
      %v2194 = vunpack.c.l.b16 %v2158
      %v2195 = vunpack.c.l.b16 %v2159
      %v2196 = vpack.c.b16 %v2179, %v2178
      %v2197 = vpack.c.b16 %v2181, %v2180
      %v2198 = vpack.c.b16 %v2183, %v2182
      %v2199 = vpack.c.b16 %v2185, %v2184
      %v2200 = vpack.c.b16 %v2187, %v2186
      %v2201 = vpack.c.b16 %v2189, %v2188
      %v2202 = vpack.c.b16 %v2191, %v2190
      %v2203 = vpack.c.b16 %v2193, %v2192
      %v2204 = vpack.c.b16 %v2195, %v2194
      %v2215 = vsel %vm1358, %v2124, 0
      %2217 = vmatprep.subr.bf16.mxu0 0
      %2218 = vmatpush1.bf16.msra.mxu0 %v2196
      %2219 = vmatprep.subr.bf16.mxu0 0
      %2220 = vmatpush1.bf16.msra.mxu0 %v2197
      %2221 = vmatprep.subr.bf16.mxu0 0
      %2222 = vmatpush1.bf16.msra.mxu0 %v2198
      %2223 = vmatprep.subr.bf16.mxu0 0
      %2224 = vmatpush1.bf16.msra.mxu0 %v2199
      %2225 = vmatprep.subr.bf16.mxu0 0
      %2226 = vmatpush1.bf16.msra.mxu0 %v2200
      %2227 = vmatprep.subr.bf16.mxu0 0
      %2228 = vmatpush1.bf16.msra.mxu0 %v2201
      %2229 = vmatprep.subr.bf16.mxu0 0
      %2230 = vmatpush1.bf16.msra.mxu0 %v2202
      %2231 = vmatprep.subr.bf16.mxu0 0
      %2232 = vmatpush1.bf16.msra.mxu0 %v2203
      %2233 = vmatprep.subr.bf16.mxu0 0
      %2234 = vmatpush1.bf16.msra.mxu0 %v2204
      %2235 = vmatprep.subr.bf16.mxu0 0
      %2236 = vmatpush1.bf16.msra.mxu0 0
      %2237 = vmatprep.subr.bf16.mxu0 0
      %2238 = vmatpush1.bf16.msra.mxu0 0
      %2239 = vmatprep.subr.bf16.mxu0 0
      %2240 = vmatpush1.bf16.msra.mxu0 0
      %2241 = vmatprep.subr.bf16.mxu0 0
      %2242 = vmatpush1.bf16.msra.mxu0 0
      %2243 = vmatprep.subr.bf16.mxu0 0
      %2244 = vmatpush1.bf16.msra.mxu0 0
      %2245 = vmatprep.subr.bf16.mxu0 0
      %2246 = vmatpush1.bf16.msra.mxu0 0
      %2247 = vmatprep.subr.bf16.mxu0 0
      %2248 = vmatpush1.bf16.msra.mxu0 0
      %2249 = vmatprep.mubr.bf16.mxu0 %v1729
      %2250 = vmatmul.mubr.bf16.gmra.mrb[0].mxu0 %v1476
      %v2251 = vpop.f32.mrb[0].mxu0
      %v2252 = vadd.f32 0.0, %v2251
      %v2253 = vpop.f32.mrb[0].mxu0
      %v2254 = vpop.f32.mrb[0].mxu0
      %v2255 = vadd.f32 0.0, %v2254
      %v2256 = vpop.f32.mrb[0].mxu0
      %2257 = vmatprep.mubr.bf16.mxu0 %v1732
      %2258 = vmatmul.mubr.bf16.gmra.mrb[0].mxu0 %v1479
      %v2259 = vpop.f32.mrb[0].mxu0
      %v2260 = vadd.f32 0.0, %v2259
      %v2261 = vpop.f32.mrb[0].mxu0
      %v2262 = vpop.f32.mrb[0].mxu0
      %v2263 = vadd.f32 0.0, %v2262
      %v2264 = vpop.f32.mrb[0].mxu0
      %2265 = vmatprep.mubr.bf16.mxu0 %v1735
      %2266 = vmatmul.mubr.bf16.gmra.mrb[0].mxu0 %v1482
      %v2267 = vpop.f32.mrb[0].mxu0
      %v2268 = vadd.f32 0.0, %v2267
      %v2269 = vpop.f32.mrb[0].mxu0
      %v2270 = vpop.f32.mrb[0].mxu0
      %v2271 = vadd.f32 0.0, %v2270
      %v2272 = vpop.f32.mrb[0].mxu0
      %2273 = vmatprep.mubr.bf16.mxu0 %v1738
      %2274 = vmatmul.mubr.bf16.gmra.mrb[0].mxu0 %v1485
      %v2275 = vpop.f32.mrb[0].mxu0
      %v2276 = vadd.f32 0.0, %v2275
      %v2277 = vpop.f32.mrb[0].mxu0
      %v2278 = vpop.f32.mrb[0].mxu0
      %v2279 = vadd.f32 0.0, %v2278
      %v2280 = vpop.f32.mrb[0].mxu0
      %2281 = vmatprep.mubr.bf16.mxu0 %v1741
      %2282 = vmatmul.mubr.bf16.gmra.mrb[0].mxu0 %v1488
      %v2283 = vpop.f32.mrb[0].mxu0
      %v2284 = vadd.f32 0.0, %v2283
      %v2285 = vpop.f32.mrb[0].mxu0
      %v2286 = vpop.f32.mrb[0].mxu0
      %v2287 = vadd.f32 0.0, %v2286
      %v2288 = vpop.f32.mrb[0].mxu0
      %2289 = vmatprep.mubr.bf16.mxu0 %v1744
      %2290 = vmatmul.mubr.bf16.gmra.mrb[0].mxu0 %v1491
      %v2291 = vpop.f32.mrb[0].mxu0
      %v2292 = vadd.f32 0.0, %v2291
      %v2293 = vpop.f32.mrb[0].mxu0
      %v2294 = vpop.f32.mrb[0].mxu0
      %v2295 = vadd.f32 0.0, %v2294
      %v2296 = vpop.f32.mrb[0].mxu0
      %2297 = vmatprep.mubr.bf16.mxu0 %v1747
      %2298 = vmatmul.mubr.bf16.gmra.mrb[0].mxu0 %v1650
      %v2299 = vpop.f32.mrb[0].mxu0
      %v2300 = vadd.f32 0.0, %v2299
      %v2301 = vpop.f32.mrb[0].mxu0
      %v2302 = vpop.f32.mrb[0].mxu0
      %v2303 = vadd.f32 0.0, %v2302
      %v2304 = vpop.f32.mrb[0].mxu0
      %2305 = vmatprep.mubr.bf16.mxu0 %v2215
      %2306 = vmatmul.mubr.bf16.gmra.mrb[0].mxu0 %v2139
      %v2307 = vpop.f32.mrb[0].mxu0
      %v2308 = vadd.f32 0.0, %v2307
      %v2309 = vpop.f32.mrb[0].mxu0
      %v2310 = vpop.f32.mrb[0].mxu0
      %v2311 = vadd.f32 0.0, %v2310
      %v2312 = vpop.f32.mrb[0].mxu0
      %2313 = vdwg.mxu0
      %v2314 = vadd.f32 %v1938, %v2252
      %v2315 = vadd.f32 %v1941, %v2255
      %v2316 = vadd.f32 %v1946, %v2260
      %v2317 = vadd.f32 %v1949, %v2263
      %v2318 = vadd.f32 %v1954, %v2268
      %v2319 = vadd.f32 %v1957, %v2271
      %v2320 = vadd.f32 %v1962, %v2276
      %v2321 = vadd.f32 %v1965, %v2279
      %v2322 = vadd.f32 %v1970, %v2284
      %v2323 = vadd.f32 %v1973, %v2287
      %v2324 = vadd.f32 %v1978, %v2292
      %v2325 = vadd.f32 %v1981, %v2295
      %v2326 = vadd.f32 %v1986, %v2300
      %v2327 = vadd.f32 %v1989, %v2303
      %v2328 = vadd.f32 %v1994, %v2308
      %v2329 = vadd.f32 %v1997, %v2311
      %v2331 = vshrl.u32 %v319, 16
      %v2333 = vrot.slane %v2331, 4
      %v2334 = vshll.u32 %v319, 16
      %v2336 = vrot.slane %v2334, 5
      %v2337 = vor.u32 %v2333, %v2336
      %v2338 = vrot.slane %v2337, 4
      %v2340 = vshll.u32 %v320, 16
      %v2342 = vrot.slane %v2340, 5
      %v2343 = vsel %vm339, %v2338, %v2342
      %v2344 = vshrl.u32 %v320, 16
      %v2346 = vrot.slane %v2344, 4
      %v2347 = vor.u32 %v2346, %v2342
      %v2348 = vrot.slane %v2347, 4
      %v2350 = vshll.u32 %v321, 16
      %v2352 = vrot.slane %v2350, 5
      %v2353 = vsel %vm339, %v2348, %v2352
      %v2357 = vrot.slane %v319, 5
      %v2358 = vrot.slane %v2357, 4
      %v2359 = vrot.slane %v320, 5
      %v2360 = vsel %vm558, %v2358, %v2359
      %v2361 = vrot.slane %v2359, 4
      %v2362 = vrot.slane %v321, 5
      %v2363 = vsel %vm558, %v2361, %v2362
      %v2364 = vrot.slane %v2331, 5
      %v2365 = vrot.slane %v2334, 6
      %v2366 = vor.u32 %v2364, %v2365
      %v2367 = vrot.slane %v2366, 4
      %v2368 = vrot.slane %v2344, 5
      %v2369 = vrot.slane %v2340, 6
      %v2370 = vor.u32 %v2368, %v2369
      %v2371 = vsel %vm617, %v2367, %v2370
      %v2372 = vrot.slane %v2370, 4
      %v2373 = vshrl.u32 %v321, 16
      %v2375 = vrot.slane %v2373, 5
      %v2376 = vrot.slane %v2350, 6
      %v2377 = vor.u32 %v2375, %v2376
      %v2378 = vsel %vm617, %v2372, %v2377
      %v2379 = vrot.slane %v319, 6
      %v2380 = vrot.slane %v2379, 4
      %v2381 = vrot.slane %v320, 6
      %v2382 = vsel %vm740, %v2380, %v2381
      %v2383 = vrot.slane %v2381, 4
      %v2384 = vrot.slane %v321, 6
      %v2385 = vsel %vm740, %v2383, %v2384
      %v2386 = vrot.slane %v2331, 6
      %v2387 = vrot.slane %v2334, 7
      %v2388 = vor.u32 %v2386, %v2387
      %v2389 = vrot.slane %v2388, 4
      %v2390 = vrot.slane %v2344, 6
      %v2391 = vrot.slane %v2340, 7
      %v2392 = vor.u32 %v2390, %v2391
      %v2393 = vsel %vm799, %v2389, %v2392
      %v2394 = vrot.slane %v2392, 4
      %v2395 = vrot.slane %v2373, 6
      %v2396 = vrot.slane %v2350, 7
      %v2397 = vor.u32 %v2395, %v2396
      %v2398 = vsel %vm799, %v2394, %v2397
      %v2399 = vrot.slane %v319, 7
      %v2400 = vrot.slane %v2399, 4
      %v2401 = vrot.slane %v320, 7
      %v2402 = vsel %vm906, %v2400, %v2401
      %v2403 = vrot.slane %v2401, 4
      %v2404 = vrot.slane %v321, 7
      %v2405 = vsel %vm906, %v2403, %v2404
      %v2406 = vrot.slane %v2331, 7
      %v2407 = vrot.slane %v2406, 4
      %v2408 = vrot.slane %v2344, 7
      %v2409 = vor.u32 %v2408, %v2340
      %v2410 = vsel %vm965, %v2407, %v2409
      %v2411 = vrot.slane %v2408, 4
      %v2412 = vrot.slane %v2373, 7
      %v2413 = vor.u32 %v2412, %v2350
      %v2414 = vsel %vm965, %v2411, %v2413
      %v2415 = vunpack.c.l.b16 %v319
      %v2416 = vunpack.c.l.b16 %v320
      %v2417 = vpack.c.b16 %v2416, %v2415
      %v2418 = vunpack.c.l.b16 %v2343
      %v2419 = vunpack.c.l.b16 %v2353
      %v2420 = vpack.c.b16 %v2419, %v2418
      %2421 = vrot.lane.b32.xlu0 %v2420, 16
      %v2422 = vpop.permute.xlu0 %2421
      %v2423 = vunpack.c.l.b16 %v2360
      %v2424 = vunpack.c.l.b16 %v2363
      %v2425 = vpack.c.b16 %v2424, %v2423
      %2426 = vrot.lane.b32.xlu0 %v2425, 32
      %v2427 = vpop.permute.xlu0 %2426
      %v2428 = vunpack.c.l.b16 %v2371
      %v2429 = vunpack.c.l.b16 %v2378
      %v2430 = vpack.c.b16 %v2429, %v2428
      %2431 = vrot.lane.b32.xlu0 %v2430, 48
      %v2432 = vpop.permute.xlu0 %2431
      %v2433 = vunpack.c.l.b16 %v2382
      %v2434 = vunpack.c.l.b16 %v2385
      %v2435 = vpack.c.b16 %v2434, %v2433
      %2436 = vrot.lane.b32.xlu0 %v2435, 64
      %v2437 = vpop.permute.xlu0 %2436
      %v2438 = vunpack.c.l.b16 %v2393
      %v2439 = vunpack.c.l.b16 %v2398
      %v2440 = vpack.c.b16 %v2439, %v2438
      %2441 = vrot.lane.b32.xlu0 %v2440, 80
      %v2442 = vpop.permute.xlu0 %2441
      %v2443 = vunpack.c.l.b16 %v2402
      %v2444 = vunpack.c.l.b16 %v2405
      %v2445 = vpack.c.b16 %v2444, %v2443
      %2446 = vrot.lane.b32.xlu0 %v2445, 96
      %v2447 = vpop.permute.xlu0 %2446
      %v2448 = vunpack.c.l.b16 %v2410
      %v2449 = vunpack.c.l.b16 %v2414
      %v2450 = vpack.c.b16 %v2449, %v2448
      %2451 = vrot.lane.b32.xlu0 %v2450, 112
      %v2452 = vpop.permute.xlu0 %2451
      %v2453 = vunpack.c.l.b16 %v321
      %v2454 = vpack.c.b16 %v2453, %v2416
      %v2457 = vsel %vm1358, %v2417, %v2422
      %v2459 = vsel %vm1383, %v2457, %v2427
      %v2461 = vsel %vm1400, %v2459, %v2432
      %v2463 = vsel %vm1417, %v2461, %v2437
      %v2465 = vsel %vm1434, %v2463, %v2442
      %v2467 = vsel %vm1451, %v2465, %v2447
      %v2469 = vsel %vm1468, %v2467, %v2452
      %s2471 = scalar_lea.vmem %s2, 216
      %v2472 = vld [vmem:[%s2471] sm:$0xf]
      %v2473 = vld [vmem:[%s2471 + $0x4] sm:$0xf]
      %v2474 = vld [vmem:[%s2471 + $0x8] sm:$0xf]
      %v2475 = vld [vmem:[%s2471 + $0xc] sm:$0xf]
      %v2476 = vld [vmem:[%s2471 + $0x10] sm:$0xf]
      %v2477 = vld [vmem:[%s2471 + $0x14] sm:$0xf]
      %v2478 = vld [vmem:[%s2471 + $0x18] sm:$0xf]
      %v2479 = vld [vmem:[%s2471 + $0x1c] sm:$0xf]
      %v2480 = vld [vmem:[%s2471 + $0x20] sm:$0xf]
      %v2481 = vld [vmem:[%s2471 + $0x24] sm:$0xf]
      %v2482 = vld [vmem:[%s2471 + $0x28] sm:$0xf]
      %v2483 = vld [vmem:[%s2471 + $0x2c] sm:$0xf]
      %v2484 = vld [vmem:[%s2471 + $0x30] sm:$0xf]
      %v2485 = vld [vmem:[%s2471 + $0x34] sm:$0xf]
      %v2486 = vld [vmem:[%s2471 + $0x38] sm:$0xf]
      %v2487 = vld [vmem:[%s2471 + $0x3c] sm:$0xf]
      %v2488 = vld [vmem:[%s2471 + $0x40] sm:$0xf]
      %v2489 = vld [vmem:[%s2471 + $0x44] sm:$0xf]
      %v2508 = vunpack.c.l.b16 %v2472
      %v2509 = vunpack.c.l.b16 %v2473
      %v2510 = vunpack.c.l.b16 %v2474
      %v2511 = vunpack.c.l.b16 %v2475
      %v2512 = vunpack.c.l.b16 %v2476
      %v2513 = vunpack.c.l.b16 %v2477
      %v2514 = vunpack.c.l.b16 %v2478
      %v2515 = vunpack.c.l.b16 %v2479
      %v2516 = vunpack.c.l.b16 %v2480
      %v2517 = vunpack.c.l.b16 %v2481
      %v2518 = vunpack.c.l.b16 %v2482
      %v2519 = vunpack.c.l.b16 %v2483
      %v2520 = vunpack.c.l.b16 %v2484
      %v2521 = vunpack.c.l.b16 %v2485
      %v2522 = vunpack.c.l.b16 %v2486
      %v2523 = vunpack.c.l.b16 %v2487
      %v2524 = vunpack.c.l.b16 %v2488
      %v2525 = vunpack.c.l.b16 %v2489
      %v2526 = vpack.c.b16 %v2509, %v2508
      %v2527 = vpack.c.b16 %v2511, %v2510
      %v2528 = vpack.c.b16 %v2513, %v2512
      %v2529 = vpack.c.b16 %v2515, %v2514
      %v2530 = vpack.c.b16 %v2517, %v2516
      %v2531 = vpack.c.b16 %v2519, %v2518
      %v2532 = vpack.c.b16 %v2521, %v2520
      %v2533 = vpack.c.b16 %v2523, %v2522
      %v2534 = vpack.c.b16 %v2525, %v2524
      %v2545 = vsel %vm1358, %v2454, 0
      %2547 = vmatprep.subr.bf16.mxu0 0
      %2548 = vmatpush1.bf16.msra.mxu0 %v2526
      %2549 = vmatprep.subr.bf16.mxu0 0
      %2550 = vmatpush1.bf16.msra.mxu0 %v2527
      %2551 = vmatprep.subr.bf16.mxu0 0
      %2552 = vmatpush1.bf16.msra.mxu0 %v2528
      %2553 = vmatprep.subr.bf16.mxu0 0
      %2554 = vmatpush1.bf16.msra.mxu0 %v2529
      %2555 = vmatprep.subr.bf16.mxu0 0
      %2556 = vmatpush1.bf16.msra.mxu0 %v2530
      %2557 = vmatprep.subr.bf16.mxu0 0
      %2558 = vmatpush1.bf16.msra.mxu0 %v2531
      %2559 = vmatprep.subr.bf16.mxu0 0
      %2560 = vmatpush1.bf16.msra.mxu0 %v2532
      %2561 = vmatprep.subr.bf16.mxu0 0
      %2562 = vmatpush1.bf16.msra.mxu0 %v2533
      %2563 = vmatprep.subr.bf16.mxu0 0
      %2564 = vmatpush1.bf16.msra.mxu0 %v2534
      %2565 = vmatprep.subr.bf16.mxu0 0
      %2566 = vmatpush1.bf16.msra.mxu0 0
      %2567 = vmatprep.subr.bf16.mxu0 0
      %2568 = vmatpush1.bf16.msra.mxu0 0
      %2569 = vmatprep.subr.bf16.mxu0 0
      %2570 = vmatpush1.bf16.msra.mxu0 0
      %2571 = vmatprep.subr.bf16.mxu0 0
      %2572 = vmatpush1.bf16.msra.mxu0 0
      %2573 = vmatprep.subr.bf16.mxu0 0
      %2574 = vmatpush1.bf16.msra.mxu0 0
      %2575 = vmatprep.subr.bf16.mxu0 0
      %2576 = vmatpush1.bf16.msra.mxu0 0
      %2577 = vmatprep.subr.bf16.mxu0 0
      %2578 = vmatpush1.bf16.msra.mxu0 0
      %2579 = vmatprep.mubr.bf16.mxu0 %v1732
      %2580 = vmatmul.mubr.bf16.gmra.mrb[0].mxu0 %v1479
      %v2581 = vpop.f32.mrb[0].mxu0
      %v2582 = vadd.f32 0.0, %v2581
      %v2583 = vpop.f32.mrb[0].mxu0
      %v2584 = vpop.f32.mrb[0].mxu0
      %v2585 = vadd.f32 0.0, %v2584
      %v2586 = vpop.f32.mrb[0].mxu0
      %2587 = vmatprep.mubr.bf16.mxu0 %v1735
      %2588 = vmatmul.mubr.bf16.gmra.mrb[0].mxu0 %v1482
      %v2589 = vpop.f32.mrb[0].mxu0
      %v2590 = vadd.f32 0.0, %v2589
      %v2591 = vpop.f32.mrb[0].mxu0
      %v2592 = vpop.f32.mrb[0].mxu0
      %v2593 = vadd.f32 0.0, %v2592
      %v2594 = vpop.f32.mrb[0].mxu0
      %2595 = vmatprep.mubr.bf16.mxu0 %v1738
      %2596 = vmatmul.mubr.bf16.gmra.mrb[0].mxu0 %v1485
      %v2597 = vpop.f32.mrb[0].mxu0
      %v2598 = vadd.f32 0.0, %v2597
      %v2599 = vpop.f32.mrb[0].mxu0
      %v2600 = vpop.f32.mrb[0].mxu0
      %v2601 = vadd.f32 0.0, %v2600
      %v2602 = vpop.f32.mrb[0].mxu0
      %2603 = vmatprep.mubr.bf16.mxu0 %v1741
      %2604 = vmatmul.mubr.bf16.gmra.mrb[0].mxu0 %v1488
      %v2605 = vpop.f32.mrb[0].mxu0
      %v2606 = vadd.f32 0.0, %v2605
      %v2607 = vpop.f32.mrb[0].mxu0
      %v2608 = vpop.f32.mrb[0].mxu0
      %v2609 = vadd.f32 0.0, %v2608
      %v2610 = vpop.f32.mrb[0].mxu0
      %2611 = vmatprep.mubr.bf16.mxu0 %v1744
      %2612 = vmatmul.mubr.bf16.gmra.mrb[0].mxu0 %v1491
      %v2613 = vpop.f32.mrb[0].mxu0
      %v2614 = vadd.f32 0.0, %v2613
      %v2615 = vpop.f32.mrb[0].mxu0
      %v2616 = vpop.f32.mrb[0].mxu0
      %v2617 = vadd.f32 0.0, %v2616
      %v2618 = vpop.f32.mrb[0].mxu0
      %2619 = vmatprep.mubr.bf16.mxu0 %v1747
      %2620 = vmatmul.mubr.bf16.gmra.mrb[0].mxu0 %v1650
      %v2621 = vpop.f32.mrb[0].mxu0
      %v2622 = vadd.f32 0.0, %v2621
      %v2623 = vpop.f32.mrb[0].mxu0
      %v2624 = vpop.f32.mrb[0].mxu0
      %v2625 = vadd.f32 0.0, %v2624
      %v2626 = vpop.f32.mrb[0].mxu0
      %2627 = vmatprep.mubr.bf16.mxu0 %v2215
      %2628 = vmatmul.mubr.bf16.gmra.mrb[0].mxu0 %v2139
      %v2629 = vpop.f32.mrb[0].mxu0
      %v2630 = vadd.f32 0.0, %v2629
      %v2631 = vpop.f32.mrb[0].mxu0
      %v2632 = vpop.f32.mrb[0].mxu0
      %v2633 = vadd.f32 0.0, %v2632
      %v2634 = vpop.f32.mrb[0].mxu0
      %2635 = vmatprep.mubr.bf16.mxu0 %v2545
      %2636 = vmatmul.mubr.bf16.gmra.mrb[0].mxu0 %v2469
      %v2637 = vpop.f32.mrb[0].mxu0
      %v2638 = vadd.f32 0.0, %v2637
      %v2639 = vpop.f32.mrb[0].mxu0
      %v2640 = vpop.f32.mrb[0].mxu0
      %v2641 = vadd.f32 0.0, %v2640
      %v2642 = vpop.f32.mrb[0].mxu0
      %2643 = vdwg.mxu0
      %v2644 = vadd.f32 %v2314, %v2582
      %v2645 = vadd.f32 %v2315, %v2585
      %v2646 = vadd.f32 %v2316, %v2590
      %v2647 = vadd.f32 %v2317, %v2593
      %v2648 = vadd.f32 %v2318, %v2598
      %v2649 = vadd.f32 %v2319, %v2601
      %v2650 = vadd.f32 %v2320, %v2606
      %v2651 = vadd.f32 %v2321, %v2609
      %v2652 = vadd.f32 %v2322, %v2614
      %v2653 = vadd.f32 %v2323, %v2617
      %v2654 = vadd.f32 %v2324, %v2622
      %v2655 = vadd.f32 %v2325, %v2625
      %v2656 = vadd.f32 %v2326, %v2630
      %v2657 = vadd.f32 %v2327, %v2633
      %v2658 = vadd.f32 %v2328, %v2638
      %v2659 = vadd.f32 %v2329, %v2641
      %v2661 = vshrl.u32 %v322, 16
      %v2663 = vrot.slane %v2661, 4
      %v2664 = vshll.u32 %v322, 16
      %v2666 = vrot.slane %v2664, 5
      %v2667 = vor.u32 %v2663, %v2666
      %v2668 = vrot.slane %v2667, 4
      %v2670 = vshll.u32 %v323, 16
      %v2672 = vrot.slane %v2670, 5
      %v2673 = vsel %vm339, %v2668, %v2672
      %v2674 = vshrl.u32 %v323, 16
      %v2676 = vrot.slane %v2674, 4
      %v2677 = vor.u32 %v2676, %v2672
      %v2678 = vrot.slane %v2677, 4
      %v2680 = vshll.u32 %v324, 16
      %v2682 = vrot.slane %v2680, 5
      %v2683 = vsel %vm339, %v2678, %v2682
      %v2687 = vrot.slane %v322, 5
      %v2688 = vrot.slane %v2687, 4
      %v2689 = vrot.slane %v323, 5
      %v2690 = vsel %vm558, %v2688, %v2689
      %v2691 = vrot.slane %v2689, 4
      %v2692 = vrot.slane %v324, 5
      %v2693 = vsel %vm558, %v2691, %v2692
      %v2694 = vrot.slane %v2661, 5
      %v2695 = vrot.slane %v2664, 6
      %v2696 = vor.u32 %v2694, %v2695
      %v2697 = vrot.slane %v2696, 4
      %v2698 = vrot.slane %v2674, 5
      %v2699 = vrot.slane %v2670, 6
      %v2700 = vor.u32 %v2698, %v2699
      %v2701 = vsel %vm617, %v2697, %v2700
      %v2702 = vrot.slane %v2700, 4
      %v2703 = vshrl.u32 %v324, 16
      %v2705 = vrot.slane %v2703, 5
      %v2706 = vrot.slane %v2680, 6
      %v2707 = vor.u32 %v2705, %v2706
      %v2708 = vsel %vm617, %v2702, %v2707
      %v2709 = vrot.slane %v322, 6
      %v2710 = vrot.slane %v2709, 4
      %v2711 = vrot.slane %v323, 6
      %v2712 = vsel %vm740, %v2710, %v2711
      %v2713 = vrot.slane %v2711, 4
      %v2714 = vrot.slane %v324, 6
      %v2715 = vsel %vm740, %v2713, %v2714
      %v2716 = vrot.slane %v2661, 6
      %v2717 = vrot.slane %v2664, 7
      %v2718 = vor.u32 %v2716, %v2717
      %v2719 = vrot.slane %v2718, 4
      %v2720 = vrot.slane %v2674, 6
      %v2721 = vrot.slane %v2670, 7
      %v2722 = vor.u32 %v2720, %v2721
      %v2723 = vsel %vm799, %v2719, %v2722
      %v2724 = vrot.slane %v2722, 4
      %v2725 = vrot.slane %v2703, 6
      %v2726 = vrot.slane %v2680, 7
      %v2727 = vor.u32 %v2725, %v2726
      %v2728 = vsel %vm799, %v2724, %v2727
      %v2729 = vrot.slane %v322, 7
      %v2730 = vrot.slane %v2729, 4
      %v2731 = vrot.slane %v323, 7
      %v2732 = vsel %vm906, %v2730, %v2731
      %v2733 = vrot.slane %v2731, 4
      %v2734 = vrot.slane %v324, 7
      %v2735 = vsel %vm906, %v2733, %v2734
      %v2736 = vrot.slane %v2661, 7
      %v2737 = vrot.slane %v2736, 4
      %v2738 = vrot.slane %v2674, 7
      %v2739 = vor.u32 %v2738, %v2670
      %v2740 = vsel %vm965, %v2737, %v2739
      %v2741 = vrot.slane %v2738, 4
      %v2742 = vrot.slane %v2703, 7
      %v2743 = vor.u32 %v2742, %v2680
      %v2744 = vsel %vm965, %v2741, %v2743
      %v2745 = vunpack.c.l.b16 %v322
      %v2746 = vunpack.c.l.b16 %v323
      %v2747 = vpack.c.b16 %v2746, %v2745
      %v2748 = vunpack.c.l.b16 %v2673
      %v2749 = vunpack.c.l.b16 %v2683
      %v2750 = vpack.c.b16 %v2749, %v2748
      %2751 = vrot.lane.b32.xlu0 %v2750, 16
      %v2752 = vpop.permute.xlu0 %2751
      %v2753 = vunpack.c.l.b16 %v2690
      %v2754 = vunpack.c.l.b16 %v2693
      %v2755 = vpack.c.b16 %v2754, %v2753
      %2756 = vrot.lane.b32.xlu0 %v2755, 32
      %v2757 = vpop.permute.xlu0 %2756
      %v2758 = vunpack.c.l.b16 %v2701
      %v2759 = vunpack.c.l.b16 %v2708
      %v2760 = vpack.c.b16 %v2759, %v2758
      %2761 = vrot.lane.b32.xlu0 %v2760, 48
      %v2762 = vpop.permute.xlu0 %2761
      %v2763 = vunpack.c.l.b16 %v2712
      %v2764 = vunpack.c.l.b16 %v2715
      %v2765 = vpack.c.b16 %v2764, %v2763
      %2766 = vrot.lane.b32.xlu0 %v2765, 64
      %v2767 = vpop.permute.xlu0 %2766
      %v2768 = vunpack.c.l.b16 %v2723
      %v2769 = vunpack.c.l.b16 %v2728
      %v2770 = vpack.c.b16 %v2769, %v2768
      %2771 = vrot.lane.b32.xlu0 %v2770, 80
      %v2772 = vpop.permute.xlu0 %2771
      %v2773 = vunpack.c.l.b16 %v2732
      %v2774 = vunpack.c.l.b16 %v2735
      %v2775 = vpack.c.b16 %v2774, %v2773
      %2776 = vrot.lane.b32.xlu0 %v2775, 96
      %v2777 = vpop.permute.xlu0 %2776
      %v2778 = vunpack.c.l.b16 %v2740
      %v2779 = vunpack.c.l.b16 %v2744
      %v2780 = vpack.c.b16 %v2779, %v2778
      %2781 = vrot.lane.b32.xlu0 %v2780, 112
      %v2782 = vpop.permute.xlu0 %2781
      %v2783 = vunpack.c.l.b16 %v324
      %v2784 = vpack.c.b16 %v2783, %v2746
      %v2787 = vsel %vm1358, %v2747, %v2752
      %v2789 = vsel %vm1383, %v2787, %v2757
      %v2791 = vsel %vm1400, %v2789, %v2762
      %v2793 = vsel %vm1417, %v2791, %v2767
      %v2795 = vsel %vm1434, %v2793, %v2772
      %v2797 = vsel %vm1451, %v2795, %v2777
      %v2799 = vsel %vm1468, %v2797, %v2782
      %s2801 = scalar_lea.vmem %s2, 288
      %v2802 = vld [vmem:[%s2801] sm:$0xf]
      %v2803 = vld [vmem:[%s2801 + $0x4] sm:$0xf]
      %v2804 = vld [vmem:[%s2801 + $0x8] sm:$0xf]
      %v2805 = vld [vmem:[%s2801 + $0xc] sm:$0xf]
      %v2806 = vld [vmem:[%s2801 + $0x10] sm:$0xf]
      %v2807 = vld [vmem:[%s2801 + $0x14] sm:$0xf]
      %v2808 = vld [vmem:[%s2801 + $0x18] sm:$0xf]
      %v2809 = vld [vmem:[%s2801 + $0x1c] sm:$0xf]
      %v2810 = vld [vmem:[%s2801 + $0x20] sm:$0xf]
      %v2811 = vld [vmem:[%s2801 + $0x24] sm:$0xf]
      %v2812 = vld [vmem:[%s2801 + $0x28] sm:$0xf]
      %v2813 = vld [vmem:[%s2801 + $0x2c] sm:$0xf]
      %v2814 = vld [vmem:[%s2801 + $0x30] sm:$0xf]
      %v2815 = vld [vmem:[%s2801 + $0x34] sm:$0xf]
      %v2816 = vld [vmem:[%s2801 + $0x38] sm:$0xf]
      %v2817 = vld [vmem:[%s2801 + $0x3c] sm:$0xf]
      %v2818 = vld [vmem:[%s2801 + $0x40] sm:$0xf]
      %v2819 = vld [vmem:[%s2801 + $0x44] sm:$0xf]
      %v2838 = vunpack.c.l.b16 %v2802
      %v2839 = vunpack.c.l.b16 %v2803
      %v2840 = vunpack.c.l.b16 %v2804
      %v2841 = vunpack.c.l.b16 %v2805
      %v2842 = vunpack.c.l.b16 %v2806
      %v2843 = vunpack.c.l.b16 %v2807
      %v2844 = vunpack.c.l.b16 %v2808
      %v2845 = vunpack.c.l.b16 %v2809
      %v2846 = vunpack.c.l.b16 %v2810
      %v2847 = vunpack.c.l.b16 %v2811
      %v2848 = vunpack.c.l.b16 %v2812
      %v2849 = vunpack.c.l.b16 %v2813
      %v2850 = vunpack.c.l.b16 %v2814
      %v2851 = vunpack.c.l.b16 %v2815
      %v2852 = vunpack.c.l.b16 %v2816
      %v2853 = vunpack.c.l.b16 %v2817
      %v2854 = vunpack.c.l.b16 %v2818
      %v2855 = vunpack.c.l.b16 %v2819
      %v2856 = vpack.c.b16 %v2839, %v2838
      %v2857 = vpack.c.b16 %v2841, %v2840
      %v2858 = vpack.c.b16 %v2843, %v2842
      %v2859 = vpack.c.b16 %v2845, %v2844
      %v2860 = vpack.c.b16 %v2847, %v2846
      %v2861 = vpack.c.b16 %v2849, %v2848
      %v2862 = vpack.c.b16 %v2851, %v2850
      %v2863 = vpack.c.b16 %v2853, %v2852
      %v2864 = vpack.c.b16 %v2855, %v2854
      %v2875 = vsel %vm1358, %v2784, 0
      %2877 = vmatprep.subr.bf16.mxu0 0
      %2878 = vmatpush1.bf16.msra.mxu0 %v2856
      %2879 = vmatprep.subr.bf16.mxu0 0
      %2880 = vmatpush1.bf16.msra.mxu0 %v2857
      %2881 = vmatprep.subr.bf16.mxu0 0
      %2882 = vmatpush1.bf16.msra.mxu0 %v2858
      %2883 = vmatprep.subr.bf16.mxu0 0
      %2884 = vmatpush1.bf16.msra.mxu0 %v2859
      %2885 = vmatprep.subr.bf16.mxu0 0
      %2886 = vmatpush1.bf16.msra.mxu0 %v2860
      %2887 = vmatprep.subr.bf16.mxu0 0
      %2888 = vmatpush1.bf16.msra.mxu0 %v2861
      %2889 = vmatprep.subr.bf16.mxu0 0
      %2890 = vmatpush1.bf16.msra.mxu0 %v2862
      %2891 = vmatprep.subr.bf16.mxu0 0
      %2892 = vmatpush1.bf16.msra.mxu0 %v2863
      %2893 = vmatprep.subr.bf16.mxu0 0
      %2894 = vmatpush1.bf16.msra.mxu0 %v2864
      %2895 = vmatprep.subr.bf16.mxu0 0
      %2896 = vmatpush1.bf16.msra.mxu0 0
      %2897 = vmatprep.subr.bf16.mxu0 0
      %2898 = vmatpush1.bf16.msra.mxu0 0
      %2899 = vmatprep.subr.bf16.mxu0 0
      %2900 = vmatpush1.bf16.msra.mxu0 0
      %2901 = vmatprep.subr.bf16.mxu0 0
      %2902 = vmatpush1.bf16.msra.mxu0 0
      %2903 = vmatprep.subr.bf16.mxu0 0
      %2904 = vmatpush1.bf16.msra.mxu0 0
      %2905 = vmatprep.subr.bf16.mxu0 0
      %2906 = vmatpush1.bf16.msra.mxu0 0
      %2907 = vmatprep.subr.bf16.mxu0 0
      %2908 = vmatpush1.bf16.msra.mxu0 0
      %2909 = vmatprep.mubr.bf16.mxu0 %v1735
      %2910 = vmatmul.mubr.bf16.gmra.mrb[0].mxu0 %v1482
      %v2911 = vpop.f32.mrb[0].mxu0
      %v2912 = vadd.f32 0.0, %v2911
      %v2913 = vpop.f32.mrb[0].mxu0
      %v2914 = vpop.f32.mrb[0].mxu0
      %v2915 = vadd.f32 0.0, %v2914
      %v2916 = vpop.f32.mrb[0].mxu0
      %2917 = vmatprep.mubr.bf16.mxu0 %v1738
      %2918 = vmatmul.mubr.bf16.gmra.mrb[0].mxu0 %v1485
      %v2919 = vpop.f32.mrb[0].mxu0
      %v2920 = vadd.f32 0.0, %v2919
      %v2921 = vpop.f32.mrb[0].mxu0
      %v2922 = vpop.f32.mrb[0].mxu0
      %v2923 = vadd.f32 0.0, %v2922
      %v2924 = vpop.f32.mrb[0].mxu0
      %2925 = vmatprep.mubr.bf16.mxu0 %v1741
      %2926 = vmatmul.mubr.bf16.gmra.mrb[0].mxu0 %v1488
      %v2927 = vpop.f32.mrb[0].mxu0
      %v2928 = vadd.f32 0.0, %v2927
      %v2929 = vpop.f32.mrb[0].mxu0
      %v2930 = vpop.f32.mrb[0].mxu0
      %v2931 = vadd.f32 0.0, %v2930
      %v2932 = vpop.f32.mrb[0].mxu0
      %2933 = vmatprep.mubr.bf16.mxu0 %v1744
      %2934 = vmatmul.mubr.bf16.gmra.mrb[0].mxu0 %v1491
      %v2935 = vpop.f32.mrb[0].mxu0
      %v2936 = vadd.f32 0.0, %v2935
      %v2937 = vpop.f32.mrb[0].mxu0
      %v2938 = vpop.f32.mrb[0].mxu0
      %v2939 = vadd.f32 0.0, %v2938
      %v2940 = vpop.f32.mrb[0].mxu0
      %2941 = vmatprep.mubr.bf16.mxu0 %v1747
      %2942 = vmatmul.mubr.bf16.gmra.mrb[0].mxu0 %v1650
      %v2943 = vpop.f32.mrb[0].mxu0
      %v2944 = vadd.f32 0.0, %v2943
      %v2945 = vpop.f32.mrb[0].mxu0
      %v2946 = vpop.f32.mrb[0].mxu0
      %v2947 = vadd.f32 0.0, %v2946
      %v2948 = vpop.f32.mrb[0].mxu0
      %2949 = vmatprep.mubr.bf16.mxu0 %v2215
      %2950 = vmatmul.mubr.bf16.gmra.mrb[0].mxu0 %v2139
      %v2951 = vpop.f32.mrb[0].mxu0
      %v2952 = vadd.f32 0.0, %v2951
      %v2953 = vpop.f32.mrb[0].mxu0
      %v2954 = vpop.f32.mrb[0].mxu0
      %v2955 = vadd.f32 0.0, %v2954
      %v2956 = vpop.f32.mrb[0].mxu0
      %2957 = vmatprep.mubr.bf16.mxu0 %v2545
      %2958 = vmatmul.mubr.bf16.gmra.mrb[0].mxu0 %v2469
      %v2959 = vpop.f32.mrb[0].mxu0
      %v2960 = vadd.f32 0.0, %v2959
      %v2961 = vpop.f32.mrb[0].mxu0
      %v2962 = vpop.f32.mrb[0].mxu0
      %v2963 = vadd.f32 0.0, %v2962
      %v2964 = vpop.f32.mrb[0].mxu0
      %2965 = vmatprep.mubr.bf16.mxu0 %v2875
      %2966 = vmatmul.mubr.bf16.gmra.mrb[0].mxu0 %v2799
      %v2967 = vpop.f32.mrb[0].mxu0
      %v2968 = vadd.f32 0.0, %v2967
      %v2969 = vpop.f32.mrb[0].mxu0
      %v2970 = vpop.f32.mrb[0].mxu0
      %v2971 = vadd.f32 0.0, %v2970
      %v2972 = vpop.f32.mrb[0].mxu0
      %2973 = vdwg.mxu0
      %v2974 = vadd.f32 %v2644, %v2912
      %v2975 = vadd.f32 %v2645, %v2915
      %v2976 = vadd.f32 %v2646, %v2920
      %v2977 = vadd.f32 %v2647, %v2923
      %v2978 = vadd.f32 %v2648, %v2928
      %v2979 = vadd.f32 %v2649, %v2931
      %v2980 = vadd.f32 %v2650, %v2936
      %v2981 = vadd.f32 %v2651, %v2939
      %v2982 = vadd.f32 %v2652, %v2944
      %v2983 = vadd.f32 %v2653, %v2947
      %v2984 = vadd.f32 %v2654, %v2952
      %v2985 = vadd.f32 %v2655, %v2955
      %v2986 = vadd.f32 %v2656, %v2960
      %v2987 = vadd.f32 %v2657, %v2963
      %v2988 = vadd.f32 %v2658, %v2968
      %v2989 = vadd.f32 %v2659, %v2971
      %v2991 = vshrl.u32 %v325, 16
      %v2993 = vrot.slane %v2991, 4
      %v2994 = vshll.u32 %v325, 16
      %v2996 = vrot.slane %v2994, 5
      %v2997 = vor.u32 %v2993, %v2996
      %v2998 = vrot.slane %v2997, 4
      %v3000 = vshll.u32 %v326, 16
      %v3002 = vrot.slane %v3000, 5
      %v3003 = vsel %vm339, %v2998, %v3002
      %v3004 = vshrl.u32 %v326, 16
      %v3006 = vrot.slane %v3004, 4
      %v3007 = vor.u32 %v3006, %v3002
      %v3008 = vrot.slane %v3007, 4
      %v3010 = vshll.u32 %v327, 16
      %v3012 = vrot.slane %v3010, 5
      %v3013 = vsel %vm339, %v3008, %v3012
      %v3017 = vrot.slane %v325, 5
      %v3018 = vrot.slane %v3017, 4
      %v3019 = vrot.slane %v326, 5
      %v3020 = vsel %vm558, %v3018, %v3019
      %v3021 = vrot.slane %v3019, 4
      %v3022 = vrot.slane %v327, 5
      %v3023 = vsel %vm558, %v3021, %v3022
      %v3024 = vrot.slane %v2991, 5
      %v3025 = vrot.slane %v2994, 6
      %v3026 = vor.u32 %v3024, %v3025
      %v3027 = vrot.slane %v3026, 4
      %v3028 = vrot.slane %v3004, 5
      %v3029 = vrot.slane %v3000, 6
      %v3030 = vor.u32 %v3028, %v3029
      %v3031 = vsel %vm617, %v3027, %v3030
      %v3032 = vrot.slane %v3030, 4
      %v3033 = vshrl.u32 %v327, 16
      %v3035 = vrot.slane %v3033, 5
      %v3036 = vrot.slane %v3010, 6
      %v3037 = vor.u32 %v3035, %v3036
      %v3038 = vsel %vm617, %v3032, %v3037
      %v3039 = vrot.slane %v325, 6
      %v3040 = vrot.slane %v3039, 4
      %v3041 = vrot.slane %v326, 6
      %v3042 = vsel %vm740, %v3040, %v3041
      %v3043 = vrot.slane %v3041, 4
      %v3044 = vrot.slane %v327, 6
      %v3045 = vsel %vm740, %v3043, %v3044
      %v3046 = vrot.slane %v2991, 6
      %v3047 = vrot.slane %v2994, 7
      %v3048 = vor.u32 %v3046, %v3047
      %v3049 = vrot.slane %v3048, 4
      %v3050 = vrot.slane %v3004, 6
      %v3051 = vrot.slane %v3000, 7
      %v3052 = vor.u32 %v3050, %v3051
      %v3053 = vsel %vm799, %v3049, %v3052
      %v3054 = vrot.slane %v3052, 4
      %v3055 = vrot.slane %v3033, 6
      %v3056 = vrot.slane %v3010, 7
      %v3057 = vor.u32 %v3055, %v3056
      %v3058 = vsel %vm799, %v3054, %v3057
      %v3059 = vrot.slane %v325, 7
      %v3060 = vrot.slane %v3059, 4
      %v3061 = vrot.slane %v326, 7
      %v3062 = vsel %vm906, %v3060, %v3061
      %v3063 = vrot.slane %v3061, 4
      %v3064 = vrot.slane %v327, 7
      %v3065 = vsel %vm906, %v3063, %v3064
      %v3066 = vrot.slane %v2991, 7
      %v3067 = vrot.slane %v3066, 4
      %v3068 = vrot.slane %v3004, 7
      %v3069 = vor.u32 %v3068, %v3000
      %v3070 = vsel %vm965, %v3067, %v3069
      %v3071 = vrot.slane %v3068, 4
      %v3072 = vrot.slane %v3033, 7
      %v3073 = vor.u32 %v3072, %v3010
      %v3074 = vsel %vm965, %v3071, %v3073
      %v3075 = vunpack.c.l.b16 %v325
      %v3076 = vunpack.c.l.b16 %v326
      %v3077 = vpack.c.b16 %v3076, %v3075
      %v3078 = vunpack.c.l.b16 %v3003
      %v3079 = vunpack.c.l.b16 %v3013
      %v3080 = vpack.c.b16 %v3079, %v3078
      %3081 = vrot.lane.b32.xlu0 %v3080, 16
      %v3082 = vpop.permute.xlu0 %3081
      %v3083 = vunpack.c.l.b16 %v3020
      %v3084 = vunpack.c.l.b16 %v3023
      %v3085 = vpack.c.b16 %v3084, %v3083
      %3086 = vrot.lane.b32.xlu0 %v3085, 32
      %v3087 = vpop.permute.xlu0 %3086
      %v3088 = vunpack.c.l.b16 %v3031
      %v3089 = vunpack.c.l.b16 %v3038
      %v3090 = vpack.c.b16 %v3089, %v3088
      %3091 = vrot.lane.b32.xlu0 %v3090, 48
      %v3092 = vpop.permute.xlu0 %3091
      %v3093 = vunpack.c.l.b16 %v3042
      %v3094 = vunpack.c.l.b16 %v3045
      %v3095 = vpack.c.b16 %v3094, %v3093
      %3096 = vrot.lane.b32.xlu0 %v3095, 64
      %v3097 = vpop.permute.xlu0 %3096
      %v3098 = vunpack.c.l.b16 %v3053
      %v3099 = vunpack.c.l.b16 %v3058
      %v3100 = vpack.c.b16 %v3099, %v3098
      %3101 = vrot.lane.b32.xlu0 %v3100, 80
      %v3102 = vpop.permute.xlu0 %3101
      %v3103 = vunpack.c.l.b16 %v3062
      %v3104 = vunpack.c.l.b16 %v3065
      %v3105 = vpack.c.b16 %v3104, %v3103
      %3106 = vrot.lane.b32.xlu0 %v3105, 96
      %v3107 = vpop.permute.xlu0 %3106
      %v3108 = vunpack.c.l.b16 %v3070
      %v3109 = vunpack.c.l.b16 %v3074
      %v3110 = vpack.c.b16 %v3109, %v3108
      %3111 = vrot.lane.b32.xlu0 %v3110, 112
      %v3112 = vpop.permute.xlu0 %3111
      %v3113 = vunpack.c.l.b16 %v327
      %v3114 = vpack.c.b16 %v3113, %v3076
      %v3117 = vsel %vm1358, %v3077, %v3082
      %v3119 = vsel %vm1383, %v3117, %v3087
      %v3121 = vsel %vm1400, %v3119, %v3092
      %v3123 = vsel %vm1417, %v3121, %v3097
      %v3125 = vsel %vm1434, %v3123, %v3102
      %v3127 = vsel %vm1451, %v3125, %v3107
      %v3129 = vsel %vm1468, %v3127, %v3112
      %s3131 = scalar_lea.vmem %s2, 360
      %v3132 = vld [vmem:[%s3131] sm:$0xf]
      %v3133 = vld [vmem:[%s3131 + $0x4] sm:$0xf]
      %v3134 = vld [vmem:[%s3131 + $0x8] sm:$0xf]
      %v3135 = vld [vmem:[%s3131 + $0xc] sm:$0xf]
      %v3136 = vld [vmem:[%s3131 + $0x10] sm:$0xf]
      %v3137 = vld [vmem:[%s3131 + $0x14] sm:$0xf]
      %v3138 = vld [vmem:[%s3131 + $0x18] sm:$0xf]
      %v3139 = vld [vmem:[%s3131 + $0x1c] sm:$0xf]
      %v3140 = vld [vmem:[%s3131 + $0x20] sm:$0xf]
      %v3141 = vld [vmem:[%s3131 + $0x24] sm:$0xf]
      %v3142 = vld [vmem:[%s3131 + $0x28] sm:$0xf]
      %v3143 = vld [vmem:[%s3131 + $0x2c] sm:$0xf]
      %v3144 = vld [vmem:[%s3131 + $0x30] sm:$0xf]
      %v3145 = vld [vmem:[%s3131 + $0x34] sm:$0xf]
      %v3146 = vld [vmem:[%s3131 + $0x38] sm:$0xf]
      %v3147 = vld [vmem:[%s3131 + $0x3c] sm:$0xf]
      %v3148 = vld [vmem:[%s3131 + $0x40] sm:$0xf]
      %v3149 = vld [vmem:[%s3131 + $0x44] sm:$0xf]
      %v3168 = vunpack.c.l.b16 %v3132
      %v3169 = vunpack.c.l.b16 %v3133
      %v3170 = vunpack.c.l.b16 %v3134
      %v3171 = vunpack.c.l.b16 %v3135
      %v3172 = vunpack.c.l.b16 %v3136
      %v3173 = vunpack.c.l.b16 %v3137
      %v3174 = vunpack.c.l.b16 %v3138
      %v3175 = vunpack.c.l.b16 %v3139
      %v3176 = vunpack.c.l.b16 %v3140
      %v3177 = vunpack.c.l.b16 %v3141
      %v3178 = vunpack.c.l.b16 %v3142
      %v3179 = vunpack.c.l.b16 %v3143
      %v3180 = vunpack.c.l.b16 %v3144
      %v3181 = vunpack.c.l.b16 %v3145
      %v3182 = vunpack.c.l.b16 %v3146
      %v3183 = vunpack.c.l.b16 %v3147
      %v3184 = vunpack.c.l.b16 %v3148
      %v3185 = vunpack.c.l.b16 %v3149
      %v3186 = vpack.c.b16 %v3169, %v3168
      %v3187 = vpack.c.b16 %v3171, %v3170
      %v3188 = vpack.c.b16 %v3173, %v3172
      %v3189 = vpack.c.b16 %v3175, %v3174
      %v3190 = vpack.c.b16 %v3177, %v3176
      %v3191 = vpack.c.b16 %v3179, %v3178
      %v3192 = vpack.c.b16 %v3181, %v3180
      %v3193 = vpack.c.b16 %v3183, %v3182
      %v3194 = vpack.c.b16 %v3185, %v3184
      %v3205 = vsel %vm1358, %v3114, 0
      %3207 = vmatprep.subr.bf16.mxu0 0
      %3208 = vmatpush1.bf16.msra.mxu0 %v3186
      %3209 = vmatprep.subr.bf16.mxu0 0
      %3210 = vmatpush1.bf16.msra.mxu0 %v3187
      %3211 = vmatprep.subr.bf16.mxu0 0
      %3212 = vmatpush1.bf16.msra.mxu0 %v3188
      %3213 = vmatprep.subr.bf16.mxu0 0
      %3214 = vmatpush1.bf16.msra.mxu0 %v3189
      %3215 = vmatprep.subr.bf16.mxu0 0
      %3216 = vmatpush1.bf16.msra.mxu0 %v3190
      %3217 = vmatprep.subr.bf16.mxu0 0
      %3218 = vmatpush1.bf16.msra.mxu0 %v3191
      %3219 = vmatprep.subr.bf16.mxu0 0
      %3220 = vmatpush1.bf16.msra.mxu0 %v3192
      %3221 = vmatprep.subr.bf16.mxu0 0
      %3222 = vmatpush1.bf16.msra.mxu0 %v3193
      %3223 = vmatprep.subr.bf16.mxu0 0
      %3224 = vmatpush1.bf16.msra.mxu0 %v3194
      %3225 = vmatprep.subr.bf16.mxu0 0
      %3226 = vmatpush1.bf16.msra.mxu0 0
      %3227 = vmatprep.subr.bf16.mxu0 0
      %3228 = vmatpush1.bf16.msra.mxu0 0
      %3229 = vmatprep.subr.bf16.mxu0 0
      %3230 = vmatpush1.bf16.msra.mxu0 0
      %3231 = vmatprep.subr.bf16.mxu0 0
      %3232 = vmatpush1.bf16.msra.mxu0 0
      %3233 = vmatprep.subr.bf16.mxu0 0
      %3234 = vmatpush1.bf16.msra.mxu0 0
      %3235 = vmatprep.subr.bf16.mxu0 0
      %3236 = vmatpush1.bf16.msra.mxu0 0
      %3237 = vmatprep.subr.bf16.mxu0 0
      %3238 = vmatpush1.bf16.msra.mxu0 0
      %3239 = vmatprep.mubr.bf16.mxu0 %v1738
      %3240 = vmatmul.mubr.bf16.gmra.mrb[0].mxu0 %v1485
      %v3241 = vpop.f32.mrb[0].mxu0
      %v3242 = vadd.f32 0.0, %v3241
      %v3243 = vpop.f32.mrb[0].mxu0
      %v3244 = vpop.f32.mrb[0].mxu0
      %v3245 = vadd.f32 0.0, %v3244
      %v3246 = vpop.f32.mrb[0].mxu0
      %3247 = vmatprep.mubr.bf16.mxu0 %v1741
      %3248 = vmatmul.mubr.bf16.gmra.mrb[0].mxu0 %v1488
      %v3249 = vpop.f32.mrb[0].mxu0
      %v3250 = vadd.f32 0.0, %v3249
      %v3251 = vpop.f32.mrb[0].mxu0
      %v3252 = vpop.f32.mrb[0].mxu0
      %v3253 = vadd.f32 0.0, %v3252
      %v3254 = vpop.f32.mrb[0].mxu0
      %3255 = vmatprep.mubr.bf16.mxu0 %v1744
      %3256 = vmatmul.mubr.bf16.gmra.mrb[0].mxu0 %v1491
      %v3257 = vpop.f32.mrb[0].mxu0
      %v3258 = vadd.f32 0.0, %v3257
      %v3259 = vpop.f32.mrb[0].mxu0
      %v3260 = vpop.f32.mrb[0].mxu0
      %v3261 = vadd.f32 0.0, %v3260
      %v3262 = vpop.f32.mrb[0].mxu0
      %3263 = vmatprep.mubr.bf16.mxu0 %v1747
      %3264 = vmatmul.mubr.bf16.gmra.mrb[0].mxu0 %v1650
      %v3265 = vpop.f32.mrb[0].mxu0
      %v3266 = vadd.f32 0.0, %v3265
      %v3267 = vpop.f32.mrb[0].mxu0
      %v3268 = vpop.f32.mrb[0].mxu0
      %v3269 = vadd.f32 0.0, %v3268
      %v3270 = vpop.f32.mrb[0].mxu0
      %3271 = vmatprep.mubr.bf16.mxu0 %v2215
      %3272 = vmatmul.mubr.bf16.gmra.mrb[0].mxu0 %v2139
      %v3273 = vpop.f32.mrb[0].mxu0
      %v3274 = vadd.f32 0.0, %v3273
      %v3275 = vpop.f32.mrb[0].mxu0
      %v3276 = vpop.f32.mrb[0].mxu0
      %v3277 = vadd.f32 0.0, %v3276
      %v3278 = vpop.f32.mrb[0].mxu0
      %3279 = vmatprep.mubr.bf16.mxu0 %v2545
      %3280 = vmatmul.mubr.bf16.gmra.mrb[0].mxu0 %v2469
      %v3281 = vpop.f32.mrb[0].mxu0
      %v3282 = vadd.f32 0.0, %v3281
      %v3283 = vpop.f32.mrb[0].mxu0
      %v3284 = vpop.f32.mrb[0].mxu0
      %v3285 = vadd.f32 0.0, %v3284
      %v3286 = vpop.f32.mrb[0].mxu0
      %3287 = vmatprep.mubr.bf16.mxu0 %v2875
      %3288 = vmatmul.mubr.bf16.gmra.mrb[0].mxu0 %v2799
      %v3289 = vpop.f32.mrb[0].mxu0
      %v3290 = vadd.f32 0.0, %v3289
      %v3291 = vpop.f32.mrb[0].mxu0
      %v3292 = vpop.f32.mrb[0].mxu0
      %v3293 = vadd.f32 0.0, %v3292
      %v3294 = vpop.f32.mrb[0].mxu0
      %3295 = vmatprep.mubr.bf16.mxu0 %v3205
      %3296 = vmatmul.mubr.bf16.gmra.mrb[0].mxu0 %v3129
      %v3297 = vpop.f32.mrb[0].mxu0
      %v3298 = vadd.f32 0.0, %v3297
      %v3299 = vpop.f32.mrb[0].mxu0
      %v3300 = vpop.f32.mrb[0].mxu0
      %v3301 = vadd.f32 0.0, %v3300
      %v3302 = vpop.f32.mrb[0].mxu0
      %3303 = vdwg.mxu0
      %v3304 = vadd.f32 %v2974, %v3242
      %v3305 = vadd.f32 %v2975, %v3245
      %v3306 = vadd.f32 %v2976, %v3250
      %v3307 = vadd.f32 %v2977, %v3253
      %v3308 = vadd.f32 %v2978, %v3258
      %v3309 = vadd.f32 %v2979, %v3261
      %v3310 = vadd.f32 %v2980, %v3266
      %v3311 = vadd.f32 %v2981, %v3269
      %v3312 = vadd.f32 %v2982, %v3274
      %v3313 = vadd.f32 %v2983, %v3277
      %v3314 = vadd.f32 %v2984, %v3282
      %v3315 = vadd.f32 %v2985, %v3285
      %v3316 = vadd.f32 %v2986, %v3290
      %v3317 = vadd.f32 %v2987, %v3293
      %v3318 = vadd.f32 %v2988, %v3298
      %v3319 = vadd.f32 %v2989, %v3301
      %v3321 = vshrl.u32 %v328, 16
      %v3323 = vrot.slane %v3321, 4
      %v3324 = vshll.u32 %v328, 16
      %v3326 = vrot.slane %v3324, 5
      %v3327 = vor.u32 %v3323, %v3326
      %v3328 = vrot.slane %v3327, 4
      %v3330 = vshll.u32 %v329, 16
      %v3332 = vrot.slane %v3330, 5
      %v3333 = vsel %vm339, %v3328, %v3332
      %v3334 = vshrl.u32 %v329, 16
      %v3336 = vrot.slane %v3334, 4
      %v3337 = vor.u32 %v3336, %v3332
      %v3338 = vrot.slane %v3337, 4
      %v3340 = vshll.u32 %v330, 16
      %v3342 = vrot.slane %v3340, 5
      %v3343 = vsel %vm339, %v3338, %v3342
      %v3347 = vrot.slane %v328, 5
      %v3348 = vrot.slane %v3347, 4
      %v3349 = vrot.slane %v329, 5
      %v3350 = vsel %vm558, %v3348, %v3349
      %v3351 = vrot.slane %v3349, 4
      %v3352 = vrot.slane %v330, 5
      %v3353 = vsel %vm558, %v3351, %v3352
      %v3354 = vrot.slane %v3321, 5
      %v3355 = vrot.slane %v3324, 6
      %v3356 = vor.u32 %v3354, %v3355
      %v3357 = vrot.slane %v3356, 4
      %v3358 = vrot.slane %v3334, 5
      %v3359 = vrot.slane %v3330, 6
      %v3360 = vor.u32 %v3358, %v3359
      %v3361 = vsel %vm617, %v3357, %v3360
      %v3362 = vrot.slane %v3360, 4
      %v3363 = vshrl.u32 %v330, 16
      %v3365 = vrot.slane %v3363, 5
      %v3366 = vrot.slane %v3340, 6
      %v3367 = vor.u32 %v3365, %v3366
      %v3368 = vsel %vm617, %v3362, %v3367
      %v3369 = vrot.slane %v328, 6
      %v3370 = vrot.slane %v3369, 4
      %v3371 = vrot.slane %v329, 6
      %v3372 = vsel %vm740, %v3370, %v3371
      %v3373 = vrot.slane %v3371, 4
      %v3374 = vrot.slane %v330, 6
      %v3375 = vsel %vm740, %v3373, %v3374
      %v3376 = vrot.slane %v3321, 6
      %v3377 = vrot.slane %v3324, 7
      %v3378 = vor.u32 %v3376, %v3377
      %v3379 = vrot.slane %v3378, 4
      %v3380 = vrot.slane %v3334, 6
      %v3381 = vrot.slane %v3330, 7
      %v3382 = vor.u32 %v3380, %v3381
      %v3383 = vsel %vm799, %v3379, %v3382
      %v3384 = vrot.slane %v3382, 4
      %v3385 = vrot.slane %v3363, 6
      %v3386 = vrot.slane %v3340, 7
      %v3387 = vor.u32 %v3385, %v3386
      %v3388 = vsel %vm799, %v3384, %v3387
      %v3389 = vrot.slane %v328, 7
      %v3390 = vrot.slane %v3389, 4
      %v3391 = vrot.slane %v329, 7
      %v3392 = vsel %vm906, %v3390, %v3391
      %v3393 = vrot.slane %v3391, 4
      %v3394 = vrot.slane %v330, 7
      %v3395 = vsel %vm906, %v3393, %v3394
      %v3396 = vrot.slane %v3321, 7
      %v3397 = vrot.slane %v3396, 4
      %v3398 = vrot.slane %v3334, 7
      %v3399 = vor.u32 %v3398, %v3330
      %v3400 = vsel %vm965, %v3397, %v3399
      %v3401 = vrot.slane %v3398, 4
      %v3402 = vrot.slane %v3363, 7
      %v3403 = vor.u32 %v3402, %v3340
      %v3404 = vsel %vm965, %v3401, %v3403
      %v3405 = vunpack.c.l.b16 %v328
      %v3406 = vunpack.c.l.b16 %v329
      %v3407 = vpack.c.b16 %v3406, %v3405
      %v3408 = vunpack.c.l.b16 %v3333
      %v3409 = vunpack.c.l.b16 %v3343
      %v3410 = vpack.c.b16 %v3409, %v3408
      %3411 = vrot.lane.b32.xlu0 %v3410, 16
      %v3412 = vpop.permute.xlu0 %3411
      %v3413 = vunpack.c.l.b16 %v3350
      %v3414 = vunpack.c.l.b16 %v3353
      %v3415 = vpack.c.b16 %v3414, %v3413
      %3416 = vrot.lane.b32.xlu0 %v3415, 32
      %v3417 = vpop.permute.xlu0 %3416
      %v3418 = vunpack.c.l.b16 %v3361
      %v3419 = vunpack.c.l.b16 %v3368
      %v3420 = vpack.c.b16 %v3419, %v3418
      %3421 = vrot.lane.b32.xlu0 %v3420, 48
      %v3422 = vpop.permute.xlu0 %3421
      %v3423 = vunpack.c.l.b16 %v3372
      %v3424 = vunpack.c.l.b16 %v3375
      %v3425 = vpack.c.b16 %v3424, %v3423
      %3426 = vrot.lane.b32.xlu0 %v3425, 64
      %v3427 = vpop.permute.xlu0 %3426
      %v3428 = vunpack.c.l.b16 %v3383
      %v3429 = vunpack.c.l.b16 %v3388
      %v3430 = vpack.c.b16 %v3429, %v3428
      %3431 = vrot.lane.b32.xlu0 %v3430, 80
      %v3432 = vpop.permute.xlu0 %3431
      %v3433 = vunpack.c.l.b16 %v3392
      %v3434 = vunpack.c.l.b16 %v3395
      %v3435 = vpack.c.b16 %v3434, %v3433
      %3436 = vrot.lane.b32.xlu0 %v3435, 96
      %v3437 = vpop.permute.xlu0 %3436
      %v3438 = vunpack.c.l.b16 %v3400
      %v3439 = vunpack.c.l.b16 %v3404
      %v3440 = vpack.c.b16 %v3439, %v3438
      %3441 = vrot.lane.b32.xlu0 %v3440, 112
      %v3442 = vpop.permute.xlu0 %3441
      %v3443 = vunpack.c.l.b16 %v330
      %v3444 = vpack.c.b16 %v3443, %v3406
      %v3447 = vsel %vm1358, %v3407, %v3412
      %v3449 = vsel %vm1383, %v3447, %v3417
      %v3451 = vsel %vm1400, %v3449, %v3422
      %v3453 = vsel %vm1417, %v3451, %v3427
      %v3455 = vsel %vm1434, %v3453, %v3432
      %v3457 = vsel %vm1451, %v3455, %v3437
      %v3459 = vsel %vm1468, %v3457, %v3442
      %s3461 = scalar_lea.vmem %s2, 432
      %v3462 = vld [vmem:[%s3461] sm:$0xf]
      %v3463 = vld [vmem:[%s3461 + $0x4] sm:$0xf]
      %v3464 = vld [vmem:[%s3461 + $0x8] sm:$0xf]
      %v3465 = vld [vmem:[%s3461 + $0xc] sm:$0xf]
      %v3466 = vld [vmem:[%s3461 + $0x10] sm:$0xf]
      %v3467 = vld [vmem:[%s3461 + $0x14] sm:$0xf]
      %v3468 = vld [vmem:[%s3461 + $0x18] sm:$0xf]
      %v3469 = vld [vmem:[%s3461 + $0x1c] sm:$0xf]
      %v3470 = vld [vmem:[%s3461 + $0x20] sm:$0xf]
      %v3471 = vld [vmem:[%s3461 + $0x24] sm:$0xf]
      %v3472 = vld [vmem:[%s3461 + $0x28] sm:$0xf]
      %v3473 = vld [vmem:[%s3461 + $0x2c] sm:$0xf]
      %v3474 = vld [vmem:[%s3461 + $0x30] sm:$0xf]
      %v3475 = vld [vmem:[%s3461 + $0x34] sm:$0xf]
      %v3476 = vld [vmem:[%s3461 + $0x38] sm:$0xf]
      %v3477 = vld [vmem:[%s3461 + $0x3c] sm:$0xf]
      %v3478 = vld [vmem:[%s3461 + $0x40] sm:$0xf]
      %v3479 = vld [vmem:[%s3461 + $0x44] sm:$0xf]
      %v3498 = vunpack.c.l.b16 %v3462
      %v3499 = vunpack.c.l.b16 %v3463
      %v3500 = vunpack.c.l.b16 %v3464
      %v3501 = vunpack.c.l.b16 %v3465
      %v3502 = vunpack.c.l.b16 %v3466
      %v3503 = vunpack.c.l.b16 %v3467
      %v3504 = vunpack.c.l.b16 %v3468
      %v3505 = vunpack.c.l.b16 %v3469
      %v3506 = vunpack.c.l.b16 %v3470
      %v3507 = vunpack.c.l.b16 %v3471
      %v3508 = vunpack.c.l.b16 %v3472
      %v3509 = vunpack.c.l.b16 %v3473
      %v3510 = vunpack.c.l.b16 %v3474
      %v3511 = vunpack.c.l.b16 %v3475
      %v3512 = vunpack.c.l.b16 %v3476
      %v3513 = vunpack.c.l.b16 %v3477
      %v3514 = vunpack.c.l.b16 %v3478
      %v3515 = vunpack.c.l.b16 %v3479
      %v3516 = vpack.c.b16 %v3499, %v3498
      %v3517 = vpack.c.b16 %v3501, %v3500
      %v3518 = vpack.c.b16 %v3503, %v3502
      %v3519 = vpack.c.b16 %v3505, %v3504
      %v3520 = vpack.c.b16 %v3507, %v3506
      %v3521 = vpack.c.b16 %v3509, %v3508
      %v3522 = vpack.c.b16 %v3511, %v3510
      %v3523 = vpack.c.b16 %v3513, %v3512
      %v3524 = vpack.c.b16 %v3515, %v3514
      %v3535 = vsel %vm1358, %v3444, 0
      %3537 = vmatprep.subr.bf16.mxu0 0
      %3538 = vmatpush1.bf16.msra.mxu0 %v3516
      %3539 = vmatprep.subr.bf16.mxu0 0
      %3540 = vmatpush1.bf16.msra.mxu0 %v3517
      %3541 = vmatprep.subr.bf16.mxu0 0
      %3542 = vmatpush1.bf16.msra.mxu0 %v3518
      %3543 = vmatprep.subr.bf16.mxu0 0
      %3544 = vmatpush1.bf16.msra.mxu0 %v3519
      %3545 = vmatprep.subr.bf16.mxu0 0
      %3546 = vmatpush1.bf16.msra.mxu0 %v3520
      %3547 = vmatprep.subr.bf16.mxu0 0
      %3548 = vmatpush1.bf16.msra.mxu0 %v3521
      %3549 = vmatprep.subr.bf16.mxu0 0
      %3550 = vmatpush1.bf16.msra.mxu0 %v3522
      %3551 = vmatprep.subr.bf16.mxu0 0
      %3552 = vmatpush1.bf16.msra.mxu0 %v3523
      %3553 = vmatprep.subr.bf16.mxu0 0
      %3554 = vmatpush1.bf16.msra.mxu0 %v3524
      %3555 = vmatprep.subr.bf16.mxu0 0
      %3556 = vmatpush1.bf16.msra.mxu0 0
      %3557 = vmatprep.subr.bf16.mxu0 0
      %3558 = vmatpush1.bf16.msra.mxu0 0
      %3559 = vmatprep.subr.bf16.mxu0 0
      %3560 = vmatpush1.bf16.msra.mxu0 0
      %3561 = vmatprep.subr.bf16.mxu0 0
      %3562 = vmatpush1.bf16.msra.mxu0 0
      %3563 = vmatprep.subr.bf16.mxu0 0
      %3564 = vmatpush1.bf16.msra.mxu0 0
      %3565 = vmatprep.subr.bf16.mxu0 0
      %3566 = vmatpush1.bf16.msra.mxu0 0
      %3567 = vmatprep.subr.bf16.mxu0 0
      %3568 = vmatpush1.bf16.msra.mxu0 0
      %3569 = vmatprep.mubr.bf16.mxu0 %v1741
      %3570 = vmatmul.mubr.bf16.gmra.mrb[0].mxu0 %v1488
      %v3571 = vpop.f32.mrb[0].mxu0
      %v3572 = vadd.f32 0.0, %v3571
      %v3573 = vpop.f32.mrb[0].mxu0
      %v3574 = vpop.f32.mrb[0].mxu0
      %v3575 = vadd.f32 0.0, %v3574
      %v3576 = vpop.f32.mrb[0].mxu0
      %3577 = vmatprep.mubr.bf16.mxu0 %v1744
      %3578 = vmatmul.mubr.bf16.gmra.mrb[0].mxu0 %v1491
      %v3579 = vpop.f32.mrb[0].mxu0
      %v3580 = vadd.f32 0.0, %v3579
      %v3581 = vpop.f32.mrb[0].mxu0
      %v3582 = vpop.f32.mrb[0].mxu0
      %v3583 = vadd.f32 0.0, %v3582
      %v3584 = vpop.f32.mrb[0].mxu0
      %3585 = vmatprep.mubr.bf16.mxu0 %v1747
      %3586 = vmatmul.mubr.bf16.gmra.mrb[0].mxu0 %v1650
      %v3587 = vpop.f32.mrb[0].mxu0
      %v3588 = vadd.f32 0.0, %v3587
      %v3589 = vpop.f32.mrb[0].mxu0
      %v3590 = vpop.f32.mrb[0].mxu0
      %v3591 = vadd.f32 0.0, %v3590
      %v3592 = vpop.f32.mrb[0].mxu0
      %3593 = vmatprep.mubr.bf16.mxu0 %v2215
      %3594 = vmatmul.mubr.bf16.gmra.mrb[0].mxu0 %v2139
      %v3595 = vpop.f32.mrb[0].mxu0
      %v3596 = vadd.f32 0.0, %v3595
      %v3597 = vpop.f32.mrb[0].mxu0
      %v3598 = vpop.f32.mrb[0].mxu0
      %v3599 = vadd.f32 0.0, %v3598
      %v3600 = vpop.f32.mrb[0].mxu0
      %3601 = vmatprep.mubr.bf16.mxu0 %v2545
      %3602 = vmatmul.mubr.bf16.gmra.mrb[0].mxu0 %v2469
      %v3603 = vpop.f32.mrb[0].mxu0
      %v3604 = vadd.f32 0.0, %v3603
      %v3605 = vpop.f32.mrb[0].mxu0
      %v3606 = vpop.f32.mrb[0].mxu0
      %v3607 = vadd.f32 0.0, %v3606
      %v3608 = vpop.f32.mrb[0].mxu0
      %3609 = vmatprep.mubr.bf16.mxu0 %v2875
      %3610 = vmatmul.mubr.bf16.gmra.mrb[0].mxu0 %v2799
      %v3611 = vpop.f32.mrb[0].mxu0
      %v3612 = vadd.f32 0.0, %v3611
      %v3613 = vpop.f32.mrb[0].mxu0
      %v3614 = vpop.f32.mrb[0].mxu0
      %v3615 = vadd.f32 0.0, %v3614
      %v3616 = vpop.f32.mrb[0].mxu0
      %3617 = vmatprep.mubr.bf16.mxu0 %v3205
      %3618 = vmatmul.mubr.bf16.gmra.mrb[0].mxu0 %v3129
      %v3619 = vpop.f32.mrb[0].mxu0
      %v3620 = vadd.f32 0.0, %v3619
      %v3621 = vpop.f32.mrb[0].mxu0
      %v3622 = vpop.f32.mrb[0].mxu0
      %v3623 = vadd.f32 0.0, %v3622
      %v3624 = vpop.f32.mrb[0].mxu0
      %3625 = vmatprep.mubr.bf16.mxu0 %v3535
      %3626 = vmatmul.mubr.bf16.gmra.mrb[0].mxu0 %v3459
      %v3627 = vpop.f32.mrb[0].mxu0
      %v3628 = vadd.f32 0.0, %v3627
      %v3629 = vpop.f32.mrb[0].mxu0
      %v3630 = vpop.f32.mrb[0].mxu0
      %v3631 = vadd.f32 0.0, %v3630
      %v3632 = vpop.f32.mrb[0].mxu0
      %3633 = vdwg.mxu0
      %v3634 = vadd.f32 %v3304, %v3572
      %v3635 = vadd.f32 %v3305, %v3575
      %v3636 = vadd.f32 %v3306, %v3580
      %v3637 = vadd.f32 %v3307, %v3583
      %v3638 = vadd.f32 %v3308, %v3588
      %v3639 = vadd.f32 %v3309, %v3591
      %v3640 = vadd.f32 %v3310, %v3596
      %v3641 = vadd.f32 %v3311, %v3599
      %v3642 = vadd.f32 %v3312, %v3604
      %v3643 = vadd.f32 %v3313, %v3607
      %v3644 = vadd.f32 %v3314, %v3612
      %v3645 = vadd.f32 %v3315, %v3615
      %v3646 = vadd.f32 %v3316, %v3620
      %v3647 = vadd.f32 %v3317, %v3623
      %v3648 = vadd.f32 %v3318, %v3628
      %v3649 = vadd.f32 %v3319, %v3631
      %v3651 = vshrl.u32 %v331, 16
      %v3653 = vrot.slane %v3651, 4
      %v3654 = vshll.u32 %v331, 16
      %v3656 = vrot.slane %v3654, 5
      %v3657 = vor.u32 %v3653, %v3656
      %v3658 = vrot.slane %v3657, 4
      %v3660 = vshll.u32 %v332, 16
      %v3662 = vrot.slane %v3660, 5
      %v3663 = vsel %vm339, %v3658, %v3662
      %v3664 = vshrl.u32 %v332, 16
      %v3666 = vrot.slane %v3664, 4
      %v3667 = vor.u32 %v3666, %v3662
      %v3668 = vrot.slane %v3667, 4
      %v3670 = vshll.u32 %v333, 16
      %v3672 = vrot.slane %v3670, 5
      %v3673 = vsel %vm339, %v3668, %v3672
      %v3677 = vrot.slane %v331, 5
      %v3678 = vrot.slane %v3677, 4
      %v3679 = vrot.slane %v332, 5
      %v3680 = vsel %vm558, %v3678, %v3679
      %v3681 = vrot.slane %v3679, 4
      %v3682 = vrot.slane %v333, 5
      %v3683 = vsel %vm558, %v3681, %v3682
      %v3684 = vrot.slane %v3651, 5
      %v3685 = vrot.slane %v3654, 6
      %v3686 = vor.u32 %v3684, %v3685
      %v3687 = vrot.slane %v3686, 4
      %v3688 = vrot.slane %v3664, 5
      %v3689 = vrot.slane %v3660, 6
      %v3690 = vor.u32 %v3688, %v3689
      %v3691 = vsel %vm617, %v3687, %v3690
      %v3692 = vrot.slane %v3690, 4
      %v3693 = vshrl.u32 %v333, 16
      %v3695 = vrot.slane %v3693, 5
      %v3696 = vrot.slane %v3670, 6
      %v3697 = vor.u32 %v3695, %v3696
      %v3698 = vsel %vm617, %v3692, %v3697
      %v3699 = vrot.slane %v331, 6
      %v3700 = vrot.slane %v3699, 4
      %v3701 = vrot.slane %v332, 6
      %v3702 = vsel %vm740, %v3700, %v3701
      %v3703 = vrot.slane %v3701, 4
      %v3704 = vrot.slane %v333, 6
      %v3705 = vsel %vm740, %v3703, %v3704
      %v3706 = vrot.slane %v3651, 6
      %v3707 = vrot.slane %v3654, 7
      %v3708 = vor.u32 %v3706, %v3707
      %v3709 = vrot.slane %v3708, 4
      %v3710 = vrot.slane %v3664, 6
      %v3711 = vrot.slane %v3660, 7
      %v3712 = vor.u32 %v3710, %v3711
      %v3713 = vsel %vm799, %v3709, %v3712
      %v3714 = vrot.slane %v3712, 4
      %v3715 = vrot.slane %v3693, 6
      %v3716 = vrot.slane %v3670, 7
      %v3717 = vor.u32 %v3715, %v3716
      %v3718 = vsel %vm799, %v3714, %v3717
      %v3719 = vrot.slane %v331, 7
      %v3720 = vrot.slane %v3719, 4
      %v3721 = vrot.slane %v332, 7
      %v3722 = vsel %vm906, %v3720, %v3721
      %v3723 = vrot.slane %v3721, 4
      %v3724 = vrot.slane %v333, 7
      %v3725 = vsel %vm906, %v3723, %v3724
      %v3726 = vrot.slane %v3651, 7
      %v3727 = vrot.slane %v3726, 4
      %v3728 = vrot.slane %v3664, 7
      %v3729 = vor.u32 %v3728, %v3660
      %v3730 = vsel %vm965, %v3727, %v3729
      %v3731 = vrot.slane %v3728, 4
      %v3732 = vrot.slane %v3693, 7
      %v3733 = vor.u32 %v3732, %v3670
      %v3734 = vsel %vm965, %v3731, %v3733
      %v3735 = vunpack.c.l.b16 %v331
      %v3736 = vunpack.c.l.b16 %v332
      %v3737 = vpack.c.b16 %v3736, %v3735
      %v3738 = vunpack.c.l.b16 %v3663
      %v3739 = vunpack.c.l.b16 %v3673
      %v3740 = vpack.c.b16 %v3739, %v3738
      %3741 = vrot.lane.b32.xlu0 %v3740, 16
      %v3742 = vpop.permute.xlu0 %3741
      %v3743 = vunpack.c.l.b16 %v3680
      %v3744 = vunpack.c.l.b16 %v3683
      %v3745 = vpack.c.b16 %v3744, %v3743
      %3746 = vrot.lane.b32.xlu0 %v3745, 32
      %v3747 = vpop.permute.xlu0 %3746
      %v3748 = vunpack.c.l.b16 %v3691
      %v3749 = vunpack.c.l.b16 %v3698
      %v3750 = vpack.c.b16 %v3749, %v3748
      %3751 = vrot.lane.b32.xlu0 %v3750, 48
      %v3752 = vpop.permute.xlu0 %3751
      %v3753 = vunpack.c.l.b16 %v3702
      %v3754 = vunpack.c.l.b16 %v3705
      %v3755 = vpack.c.b16 %v3754, %v3753
      %3756 = vrot.lane.b32.xlu0 %v3755, 64
      %v3757 = vpop.permute.xlu0 %3756
      %v3758 = vunpack.c.l.b16 %v3713
      %v3759 = vunpack.c.l.b16 %v3718
      %v3760 = vpack.c.b16 %v3759, %v3758
      %3761 = vrot.lane.b32.xlu0 %v3760, 80
      %v3762 = vpop.permute.xlu0 %3761
      %v3763 = vunpack.c.l.b16 %v3722
      %v3764 = vunpack.c.l.b16 %v3725
      %v3765 = vpack.c.b16 %v3764, %v3763
      %3766 = vrot.lane.b32.xlu0 %v3765, 96
      %v3767 = vpop.permute.xlu0 %3766
      %v3768 = vunpack.c.l.b16 %v3730
      %v3769 = vunpack.c.l.b16 %v3734
      %v3770 = vpack.c.b16 %v3769, %v3768
      %3771 = vrot.lane.b32.xlu0 %v3770, 112
      %v3772 = vpop.permute.xlu0 %3771
      %v3773 = vunpack.c.l.b16 %v333
      %v3774 = vpack.c.b16 %v3773, %v3736
      %v3777 = vsel %vm1358, %v3737, %v3742
      %v3779 = vsel %vm1383, %v3777, %v3747
      %v3781 = vsel %vm1400, %v3779, %v3752
      %v3783 = vsel %vm1417, %v3781, %v3757
      %v3785 = vsel %vm1434, %v3783, %v3762
      %v3787 = vsel %vm1451, %v3785, %v3767
      %v3789 = vsel %vm1468, %v3787, %v3772
      %s3791 = scalar_lea.vmem %s2, 504
      %v3792 = vld [vmem:[%s3791] sm:$0xf]
      %v3793 = vld [vmem:[%s3791 + $0x4] sm:$0xf]
      %v3794 = vld [vmem:[%s3791 + $0x8] sm:$0xf]
      %v3795 = vld [vmem:[%s3791 + $0xc] sm:$0xf]
      %v3796 = vld [vmem:[%s3791 + $0x10] sm:$0xf]
      %v3797 = vld [vmem:[%s3791 + $0x14] sm:$0xf]
      %v3798 = vld [vmem:[%s3791 + $0x18] sm:$0xf]
      %v3799 = vld [vmem:[%s3791 + $0x1c] sm:$0xf]
      %v3800 = vld [vmem:[%s3791 + $0x20] sm:$0xf]
      %v3801 = vld [vmem:[%s3791 + $0x24] sm:$0xf]
      %v3802 = vld [vmem:[%s3791 + $0x28] sm:$0xf]
      %v3803 = vld [vmem:[%s3791 + $0x2c] sm:$0xf]
      %v3804 = vld [vmem:[%s3791 + $0x30] sm:$0xf]
      %v3805 = vld [vmem:[%s3791 + $0x34] sm:$0xf]
      %v3806 = vld [vmem:[%s3791 + $0x38] sm:$0xf]
      %v3807 = vld [vmem:[%s3791 + $0x3c] sm:$0xf]
      %v3808 = vld [vmem:[%s3791 + $0x40] sm:$0xf]
      %v3809 = vld [vmem:[%s3791 + $0x44] sm:$0xf]
      %v3828 = vunpack.c.l.b16 %v3792
      %v3829 = vunpack.c.l.b16 %v3793
      %v3830 = vunpack.c.l.b16 %v3794
      %v3831 = vunpack.c.l.b16 %v3795
      %v3832 = vunpack.c.l.b16 %v3796
      %v3833 = vunpack.c.l.b16 %v3797
      %v3834 = vunpack.c.l.b16 %v3798
      %v3835 = vunpack.c.l.b16 %v3799
      %v3836 = vunpack.c.l.b16 %v3800
      %v3837 = vunpack.c.l.b16 %v3801
      %v3838 = vunpack.c.l.b16 %v3802
      %v3839 = vunpack.c.l.b16 %v3803
      %v3840 = vunpack.c.l.b16 %v3804
      %v3841 = vunpack.c.l.b16 %v3805
      %v3842 = vunpack.c.l.b16 %v3806
      %v3843 = vunpack.c.l.b16 %v3807
      %v3844 = vunpack.c.l.b16 %v3808
      %v3845 = vunpack.c.l.b16 %v3809
      %v3846 = vpack.c.b16 %v3829, %v3828
      %v3847 = vpack.c.b16 %v3831, %v3830
      %v3848 = vpack.c.b16 %v3833, %v3832
      %v3849 = vpack.c.b16 %v3835, %v3834
      %v3850 = vpack.c.b16 %v3837, %v3836
      %v3851 = vpack.c.b16 %v3839, %v3838
      %v3852 = vpack.c.b16 %v3841, %v3840
      %v3853 = vpack.c.b16 %v3843, %v3842
      %v3854 = vpack.c.b16 %v3845, %v3844
      %v3865 = vsel %vm1358, %v3774, 0
      %3867 = vmatprep.subr.bf16.mxu0 0
      %3868 = vmatpush1.bf16.msra.mxu0 %v3846
      %3869 = vmatprep.subr.bf16.mxu0 0
      %3870 = vmatpush1.bf16.msra.mxu0 %v3847
      %3871 = vmatprep.subr.bf16.mxu0 0
      %3872 = vmatpush1.bf16.msra.mxu0 %v3848
      %3873 = vmatprep.subr.bf16.mxu0 0
      %3874 = vmatpush1.bf16.msra.mxu0 %v3849
      %3875 = vmatprep.subr.bf16.mxu0 0
      %3876 = vmatpush1.bf16.msra.mxu0 %v3850
      %3877 = vmatprep.subr.bf16.mxu0 0
      %3878 = vmatpush1.bf16.msra.mxu0 %v3851
      %3879 = vmatprep.subr.bf16.mxu0 0
      %3880 = vmatpush1.bf16.msra.mxu0 %v3852
      %3881 = vmatprep.subr.bf16.mxu0 0
      %3882 = vmatpush1.bf16.msra.mxu0 %v3853
      %3883 = vmatprep.subr.bf16.mxu0 0
      %3884 = vmatpush1.bf16.msra.mxu0 %v3854
      %3885 = vmatprep.subr.bf16.mxu0 0
      %3886 = vmatpush1.bf16.msra.mxu0 0
      %3887 = vmatprep.subr.bf16.mxu0 0
      %3888 = vmatpush1.bf16.msra.mxu0 0
      %3889 = vmatprep.subr.bf16.mxu0 0
      %3890 = vmatpush1.bf16.msra.mxu0 0
      %3891 = vmatprep.subr.bf16.mxu0 0
      %3892 = vmatpush1.bf16.msra.mxu0 0
      %3893 = vmatprep.subr.bf16.mxu0 0
      %3894 = vmatpush1.bf16.msra.mxu0 0
      %3895 = vmatprep.subr.bf16.mxu0 0
      %3896 = vmatpush1.bf16.msra.mxu0 0
      %3897 = vmatprep.subr.bf16.mxu0 0
      %3898 = vmatpush1.bf16.msra.mxu0 0
      %3899 = vmatprep.mubr.bf16.mxu0 %v1744
      %3900 = vmatmul.mubr.bf16.gmra.mrb[0].mxu0 %v1491
      %v3901 = vpop.f32.mrb[0].mxu0
      %v3902 = vadd.f32 0.0, %v3901
      %v3903 = vpop.f32.mrb[0].mxu0
      %v3904 = vpop.f32.mrb[0].mxu0
      %v3905 = vadd.f32 0.0, %v3904
      %v3906 = vpop.f32.mrb[0].mxu0
      %3907 = vmatprep.mubr.bf16.mxu0 %v1747
      %3908 = vmatmul.mubr.bf16.gmra.mrb[0].mxu0 %v1650
      %v3909 = vpop.f32.mrb[0].mxu0
      %v3910 = vadd.f32 0.0, %v3909
      %v3911 = vpop.f32.mrb[0].mxu0
      %v3912 = vpop.f32.mrb[0].mxu0
      %v3913 = vadd.f32 0.0, %v3912
      %v3914 = vpop.f32.mrb[0].mxu0
      %3915 = vmatprep.mubr.bf16.mxu0 %v2215
      %3916 = vmatmul.mubr.bf16.gmra.mrb[0].mxu0 %v2139
      %v3917 = vpop.f32.mrb[0].mxu0
      %v3918 = vadd.f32 0.0, %v3917
      %v3919 = vpop.f32.mrb[0].mxu0
      %v3920 = vpop.f32.mrb[0].mxu0
      %v3921 = vadd.f32 0.0, %v3920
      %v3922 = vpop.f32.mrb[0].mxu0
      %3923 = vmatprep.mubr.bf16.mxu0 %v2545
      %3924 = vmatmul.mubr.bf16.gmra.mrb[0].mxu0 %v2469
      %v3925 = vpop.f32.mrb[0].mxu0
      %v3926 = vadd.f32 0.0, %v3925
      %v3927 = vpop.f32.mrb[0].mxu0
      %v3928 = vpop.f32.mrb[0].mxu0
      %v3929 = vadd.f32 0.0, %v3928
      %v3930 = vpop.f32.mrb[0].mxu0
      %3931 = vmatprep.mubr.bf16.mxu0 %v2875
      %3932 = vmatmul.mubr.bf16.gmra.mrb[0].mxu0 %v2799
      %v3933 = vpop.f32.mrb[0].mxu0
      %v3934 = vadd.f32 0.0, %v3933
      %v3935 = vpop.f32.mrb[0].mxu0
      %v3936 = vpop.f32.mrb[0].mxu0
      %v3937 = vadd.f32 0.0, %v3936
      %v3938 = vpop.f32.mrb[0].mxu0
      %3939 = vmatprep.mubr.bf16.mxu0 %v3205
      %3940 = vmatmul.mubr.bf16.gmra.mrb[0].mxu0 %v3129
      %v3941 = vpop.f32.mrb[0].mxu0
      %v3942 = vadd.f32 0.0, %v3941
      %v3943 = vpop.f32.mrb[0].mxu0
      %v3944 = vpop.f32.mrb[0].mxu0
      %v3945 = vadd.f32 0.0, %v3944
      %v3946 = vpop.f32.mrb[0].mxu0
      %3947 = vmatprep.mubr.bf16.mxu0 %v3535
      %3948 = vmatmul.mubr.bf16.gmra.mrb[0].mxu0 %v3459
      %v3949 = vpop.f32.mrb[0].mxu0
      %v3950 = vadd.f32 0.0, %v3949
      %v3951 = vpop.f32.mrb[0].mxu0
      %v3952 = vpop.f32.mrb[0].mxu0
      %v3953 = vadd.f32 0.0, %v3952
      %v3954 = vpop.f32.mrb[0].mxu0
      %3955 = vmatprep.mubr.bf16.mxu0 %v3865
      %3956 = vmatmul.mubr.bf16.gmra.mrb[0].mxu0 %v3789
      %v3957 = vpop.f32.mrb[0].mxu0
      %v3958 = vadd.f32 0.0, %v3957
      %v3959 = vpop.f32.mrb[0].mxu0
      %v3960 = vpop.f32.mrb[0].mxu0
      %v3961 = vadd.f32 0.0, %v3960
      %v3962 = vpop.f32.mrb[0].mxu0
      %3963 = vdwg.mxu0
      %v3964 = vadd.f32 %v3634, %v3902
      %v3965 = vadd.f32 %v3635, %v3905
      %v3966 = vadd.f32 %v3636, %v3910
      %v3967 = vadd.f32 %v3637, %v3913
      %v3968 = vadd.f32 %v3638, %v3918
      %v3969 = vadd.f32 %v3639, %v3921
      %v3970 = vadd.f32 %v3640, %v3926
      %v3971 = vadd.f32 %v3641, %v3929
      %v3972 = vadd.f32 %v3642, %v3934
      %v3973 = vadd.f32 %v3643, %v3937
      %v3974 = vadd.f32 %v3644, %v3942
      %v3975 = vadd.f32 %v3645, %v3945
      %v3976 = vadd.f32 %v3646, %v3950
      %v3977 = vadd.f32 %v3647, %v3953
      %v3978 = vadd.f32 %v3648, %v3958
      %v3979 = vadd.f32 %v3649, %v3961
      %v3981 = vshrl.u32 %v334, 16
      %v3983 = vrot.slane %v3981, 4
      %v3984 = vshll.u32 %v334, 16
      %v3986 = vrot.slane %v3984, 5
      %v3987 = vor.u32 %v3983, %v3986
      %v3988 = vrot.slane %v3987, 4
      %v3990 = vshll.u32 %v335, 16
      %v3992 = vrot.slane %v3990, 5
      %v3993 = vsel %vm339, %v3988, %v3992
      %v3994 = vshrl.u32 %v335, 16
      %v3996 = vrot.slane %v3994, 4
      %v3997 = vor.u32 %v3996, %v3992
      %v3998 = vrot.slane %v3997, 4
      %v4000 = vshll.u32 %v336, 16
      %v4002 = vrot.slane %v4000, 5
      %v4003 = vsel %vm339, %v3998, %v4002
      %v4007 = vrot.slane %v334, 5
      %v4008 = vrot.slane %v4007, 4
      %v4009 = vrot.slane %v335, 5
      %v4010 = vsel %vm558, %v4008, %v4009
      %v4011 = vrot.slane %v4009, 4
      %v4012 = vrot.slane %v336, 5
      %v4013 = vsel %vm558, %v4011, %v4012
      %v4014 = vrot.slane %v3981, 5
      %v4015 = vrot.slane %v3984, 6
      %v4016 = vor.u32 %v4014, %v4015
      %v4017 = vrot.slane %v4016, 4
      %v4018 = vrot.slane %v3994, 5
      %v4019 = vrot.slane %v3990, 6
      %v4020 = vor.u32 %v4018, %v4019
      %v4021 = vsel %vm617, %v4017, %v4020
      %v4022 = vrot.slane %v4020, 4
      %v4023 = vshrl.u32 %v336, 16
      %v4025 = vrot.slane %v4023, 5
      %v4026 = vrot.slane %v4000, 6
      %v4027 = vor.u32 %v4025, %v4026
      %v4028 = vsel %vm617, %v4022, %v4027
      %v4029 = vrot.slane %v334, 6
      %v4030 = vrot.slane %v4029, 4
      %v4031 = vrot.slane %v335, 6
      %v4032 = vsel %vm740, %v4030, %v4031
      %v4033 = vrot.slane %v4031, 4
      %v4034 = vrot.slane %v336, 6
      %v4035 = vsel %vm740, %v4033, %v4034
      %v4036 = vrot.slane %v3981, 6
      %v4037 = vrot.slane %v3984, 7
      %v4038 = vor.u32 %v4036, %v4037
      %v4039 = vrot.slane %v4038, 4
      %v4040 = vrot.slane %v3994, 6
      %v4041 = vrot.slane %v3990, 7
      %v4042 = vor.u32 %v4040, %v4041
      %v4043 = vsel %vm799, %v4039, %v4042
      %v4044 = vrot.slane %v4042, 4
      %v4045 = vrot.slane %v4023, 6
      %v4046 = vrot.slane %v4000, 7
      %v4047 = vor.u32 %v4045, %v4046
      %v4048 = vsel %vm799, %v4044, %v4047
      %v4049 = vrot.slane %v334, 7
      %v4050 = vrot.slane %v4049, 4
      %v4051 = vrot.slane %v335, 7
      %v4052 = vsel %vm906, %v4050, %v4051
      %v4053 = vrot.slane %v4051, 4
      %v4054 = vrot.slane %v336, 7
      %v4055 = vsel %vm906, %v4053, %v4054
      %v4056 = vrot.slane %v3981, 7
      %v4057 = vrot.slane %v4056, 4
      %v4058 = vrot.slane %v3994, 7
      %v4059 = vor.u32 %v4058, %v3990
      %v4060 = vsel %vm965, %v4057, %v4059
      %v4061 = vrot.slane %v4058, 4
      %v4062 = vrot.slane %v4023, 7
      %v4063 = vor.u32 %v4062, %v4000
      %v4064 = vsel %vm965, %v4061, %v4063
      %v4065 = vunpack.c.l.b16 %v334
      %v4066 = vunpack.c.l.b16 %v335
      %v4067 = vpack.c.b16 %v4066, %v4065
      %v4068 = vunpack.c.l.b16 %v3993
      %v4069 = vunpack.c.l.b16 %v4003
      %v4070 = vpack.c.b16 %v4069, %v4068
      %4071 = vrot.lane.b32.xlu0 %v4070, 16
      %v4072 = vpop.permute.xlu0 %4071
      %v4073 = vunpack.c.l.b16 %v4010
      %v4074 = vunpack.c.l.b16 %v4013
      %v4075 = vpack.c.b16 %v4074, %v4073
      %4076 = vrot.lane.b32.xlu0 %v4075, 32
      %v4077 = vpop.permute.xlu0 %4076
      %v4078 = vunpack.c.l.b16 %v4021
      %v4079 = vunpack.c.l.b16 %v4028
      %v4080 = vpack.c.b16 %v4079, %v4078
      %4081 = vrot.lane.b32.xlu0 %v4080, 48
      %v4082 = vpop.permute.xlu0 %4081
      %v4083 = vunpack.c.l.b16 %v4032
      %v4084 = vunpack.c.l.b16 %v4035
      %v4085 = vpack.c.b16 %v4084, %v4083
      %4086 = vrot.lane.b32.xlu0 %v4085, 64
      %v4087 = vpop.permute.xlu0 %4086
      %v4088 = vunpack.c.l.b16 %v4043
      %v4089 = vunpack.c.l.b16 %v4048
      %v4090 = vpack.c.b16 %v4089, %v4088
      %4091 = vrot.lane.b32.xlu0 %v4090, 80
      %v4092 = vpop.permute.xlu0 %4091
      %v4093 = vunpack.c.l.b16 %v4052
      %v4094 = vunpack.c.l.b16 %v4055
      %v4095 = vpack.c.b16 %v4094, %v4093
      %4096 = vrot.lane.b32.xlu0 %v4095, 96
      %v4097 = vpop.permute.xlu0 %4096
      %v4098 = vunpack.c.l.b16 %v4060
      %v4099 = vunpack.c.l.b16 %v4064
      %v4100 = vpack.c.b16 %v4099, %v4098
      %4101 = vrot.lane.b32.xlu0 %v4100, 112
      %v4102 = vpop.permute.xlu0 %4101
      %v4103 = vunpack.c.l.b16 %v336
      %v4104 = vpack.c.b16 %v4103, %v4066
      %v4107 = vsel %vm1358, %v4067, %v4072
      %v4109 = vsel %vm1383, %v4107, %v4077
      %v4111 = vsel %vm1400, %v4109, %v4082
      %v4113 = vsel %vm1417, %v4111, %v4087
      %v4115 = vsel %vm1434, %v4113, %v4092
      %v4117 = vsel %vm1451, %v4115, %v4097
      %v4119 = vsel %vm1468, %v4117, %v4102
      %s4121 = scalar_lea.vmem %s2, 576
      %v4122 = vld [vmem:[%s4121] sm:$0xf]
      %v4123 = vld [vmem:[%s4121 + $0x4] sm:$0xf]
      %v4124 = vld [vmem:[%s4121 + $0x8] sm:$0xf]
      %v4125 = vld [vmem:[%s4121 + $0xc] sm:$0xf]
      %v4126 = vld [vmem:[%s4121 + $0x10] sm:$0xf]
      %v4127 = vld [vmem:[%s4121 + $0x14] sm:$0xf]
      %v4128 = vld [vmem:[%s4121 + $0x18] sm:$0xf]
      %v4129 = vld [vmem:[%s4121 + $0x1c] sm:$0xf]
      %v4130 = vld [vmem:[%s4121 + $0x20] sm:$0xf]
      %v4131 = vld [vmem:[%s4121 + $0x24] sm:$0xf]
      %v4132 = vld [vmem:[%s4121 + $0x28] sm:$0xf]
      %v4133 = vld [vmem:[%s4121 + $0x2c] sm:$0xf]
      %v4134 = vld [vmem:[%s4121 + $0x30] sm:$0xf]
      %v4135 = vld [vmem:[%s4121 + $0x34] sm:$0xf]
      %v4136 = vld [vmem:[%s4121 + $0x38] sm:$0xf]
      %v4137 = vld [vmem:[%s4121 + $0x3c] sm:$0xf]
      %v4138 = vld [vmem:[%s4121 + $0x40] sm:$0xf]
      %v4139 = vld [vmem:[%s4121 + $0x44] sm:$0xf]
      %v4158 = vunpack.c.l.b16 %v4122
      %v4159 = vunpack.c.l.b16 %v4123
      %v4160 = vunpack.c.l.b16 %v4124
      %v4161 = vunpack.c.l.b16 %v4125
      %v4162 = vunpack.c.l.b16 %v4126
      %v4163 = vunpack.c.l.b16 %v4127
      %v4164 = vunpack.c.l.b16 %v4128
      %v4165 = vunpack.c.l.b16 %v4129
      %v4166 = vunpack.c.l.b16 %v4130
      %v4167 = vunpack.c.l.b16 %v4131
      %v4168 = vunpack.c.l.b16 %v4132
      %v4169 = vunpack.c.l.b16 %v4133
      %v4170 = vunpack.c.l.b16 %v4134
      %v4171 = vunpack.c.l.b16 %v4135
      %v4172 = vunpack.c.l.b16 %v4136
      %v4173 = vunpack.c.l.b16 %v4137
      %v4174 = vunpack.c.l.b16 %v4138
      %v4175 = vunpack.c.l.b16 %v4139
      %v4176 = vpack.c.b16 %v4159, %v4158
      %v4177 = vpack.c.b16 %v4161, %v4160
      %v4178 = vpack.c.b16 %v4163, %v4162
      %v4179 = vpack.c.b16 %v4165, %v4164
      %v4180 = vpack.c.b16 %v4167, %v4166
      %v4181 = vpack.c.b16 %v4169, %v4168
      %v4182 = vpack.c.b16 %v4171, %v4170
      %v4183 = vpack.c.b16 %v4173, %v4172
      %v4184 = vpack.c.b16 %v4175, %v4174
      %v4195 = vsel %vm1358, %v4104, 0
      %4197 = vmatprep.subr.bf16.mxu0 0
      %4198 = vmatpush1.bf16.msra.mxu0 %v4176
      %4199 = vmatprep.subr.bf16.mxu0 0
      %4200 = vmatpush1.bf16.msra.mxu0 %v4177
      %4201 = vmatprep.subr.bf16.mxu0 0
      %4202 = vmatpush1.bf16.msra.mxu0 %v4178
      %4203 = vmatprep.subr.bf16.mxu0 0
      %4204 = vmatpush1.bf16.msra.mxu0 %v4179
      %4205 = vmatprep.subr.bf16.mxu0 0
      %4206 = vmatpush1.bf16.msra.mxu0 %v4180
      %4207 = vmatprep.subr.bf16.mxu0 0
      %4208 = vmatpush1.bf16.msra.mxu0 %v4181
      %4209 = vmatprep.subr.bf16.mxu0 0
      %4210 = vmatpush1.bf16.msra.mxu0 %v4182
      %4211 = vmatprep.subr.bf16.mxu0 0
      %4212 = vmatpush1.bf16.msra.mxu0 %v4183
      %4213 = vmatprep.subr.bf16.mxu0 0
      %4214 = vmatpush1.bf16.msra.mxu0 %v4184
      %4215 = vmatprep.subr.bf16.mxu0 0
      %4216 = vmatpush1.bf16.msra.mxu0 0
      %4217 = vmatprep.subr.bf16.mxu0 0
      %4218 = vmatpush1.bf16.msra.mxu0 0
      %4219 = vmatprep.subr.bf16.mxu0 0
      %4220 = vmatpush1.bf16.msra.mxu0 0
      %4221 = vmatprep.subr.bf16.mxu0 0
      %4222 = vmatpush1.bf16.msra.mxu0 0
      %4223 = vmatprep.subr.bf16.mxu0 0
      %4224 = vmatpush1.bf16.msra.mxu0 0
      %4225 = vmatprep.subr.bf16.mxu0 0
      %4226 = vmatpush1.bf16.msra.mxu0 0
      %4227 = vmatprep.subr.bf16.mxu0 0
      %4228 = vmatpush1.bf16.msra.mxu0 0
      %4229 = vmatprep.mubr.bf16.mxu0 %v1747
      %4230 = vmatmul.mubr.bf16.gmra.mrb[0].mxu0 %v1650
      %v4231 = vpop.f32.mrb[0].mxu0
      %v4232 = vadd.f32 0.0, %v4231
      %v4233 = vpop.f32.mrb[0].mxu0
      %v4234 = vpop.f32.mrb[0].mxu0
      %v4235 = vadd.f32 0.0, %v4234
      %v4236 = vpop.f32.mrb[0].mxu0
      %4237 = vmatprep.mubr.bf16.mxu0 %v2215
      %4238 = vmatmul.mubr.bf16.gmra.mrb[0].mxu0 %v2139
      %v4239 = vpop.f32.mrb[0].mxu0
      %v4240 = vadd.f32 0.0, %v4239
      %v4241 = vpop.f32.mrb[0].mxu0
      %v4242 = vpop.f32.mrb[0].mxu0
      %v4243 = vadd.f32 0.0, %v4242
      %v4244 = vpop.f32.mrb[0].mxu0
      %4245 = vmatprep.mubr.bf16.mxu0 %v2545
      %4246 = vmatmul.mubr.bf16.gmra.mrb[0].mxu0 %v2469
      %v4247 = vpop.f32.mrb[0].mxu0
      %v4248 = vadd.f32 0.0, %v4247
      %v4249 = vpop.f32.mrb[0].mxu0
      %v4250 = vpop.f32.mrb[0].mxu0
      %v4251 = vadd.f32 0.0, %v4250
      %v4252 = vpop.f32.mrb[0].mxu0
      %4253 = vmatprep.mubr.bf16.mxu0 %v2875
      %4254 = vmatmul.mubr.bf16.gmra.mrb[0].mxu0 %v2799
      %v4255 = vpop.f32.mrb[0].mxu0
      %v4256 = vadd.f32 0.0, %v4255
      %v4257 = vpop.f32.mrb[0].mxu0
      %v4258 = vpop.f32.mrb[0].mxu0
      %v4259 = vadd.f32 0.0, %v4258
      %v4260 = vpop.f32.mrb[0].mxu0
      %4261 = vmatprep.mubr.bf16.mxu0 %v3205
      %4262 = vmatmul.mubr.bf16.gmra.mrb[0].mxu0 %v3129
      %v4263 = vpop.f32.mrb[0].mxu0
      %v4264 = vadd.f32 0.0, %v4263
      %v4265 = vpop.f32.mrb[0].mxu0
      %v4266 = vpop.f32.mrb[0].mxu0
      %v4267 = vadd.f32 0.0, %v4266
      %v4268 = vpop.f32.mrb[0].mxu0
      %4269 = vmatprep.mubr.bf16.mxu0 %v3535
      %4270 = vmatmul.mubr.bf16.gmra.mrb[0].mxu0 %v3459
      %v4271 = vpop.f32.mrb[0].mxu0
      %v4272 = vadd.f32 0.0, %v4271
      %v4273 = vpop.f32.mrb[0].mxu0
      %v4274 = vpop.f32.mrb[0].mxu0
      %v4275 = vadd.f32 0.0, %v4274
      %v4276 = vpop.f32.mrb[0].mxu0
      %4277 = vmatprep.mubr.bf16.mxu0 %v3865
      %4278 = vmatmul.mubr.bf16.gmra.mrb[0].mxu0 %v3789
      %v4279 = vpop.f32.mrb[0].mxu0
      %v4280 = vadd.f32 0.0, %v4279
      %v4281 = vpop.f32.mrb[0].mxu0
      %v4282 = vpop.f32.mrb[0].mxu0
      %v4283 = vadd.f32 0.0, %v4282
      %v4284 = vpop.f32.mrb[0].mxu0
      %4285 = vmatprep.mubr.bf16.mxu0 %v4195
      %4286 = vmatmul.mubr.bf16.gmra.mrb[0].mxu0 %v4119
      %v4287 = vpop.f32.mrb[0].mxu0
      %v4288 = vadd.f32 0.0, %v4287
      %v4289 = vpop.f32.mrb[0].mxu0
      %v4290 = vpop.f32.mrb[0].mxu0
      %v4291 = vadd.f32 0.0, %v4290
      %v4292 = vpop.f32.mrb[0].mxu0
      %4293 = vdwg.mxu0
      %v4294 = vadd.f32 %v3964, %v4232
      %v4295 = vadd.f32 %v3965, %v4235
      %v4296 = vadd.f32 %v3966, %v4240
      %v4297 = vadd.f32 %v3967, %v4243
      %v4298 = vadd.f32 %v3968, %v4248
      %v4299 = vadd.f32 %v3969, %v4251
      %v4300 = vadd.f32 %v3970, %v4256
      %v4301 = vadd.f32 %v3971, %v4259
      %v4302 = vadd.f32 %v3972, %v4264
      %v4303 = vadd.f32 %v3973, %v4267
      %v4304 = vadd.f32 %v3974, %v4272
      %v4305 = vadd.f32 %v3975, %v4275
      %v4306 = vadd.f32 %v3976, %v4280
      %v4307 = vadd.f32 %v3977, %v4283
      %v4308 = vadd.f32 %v3978, %v4288
      %v4309 = vadd.f32 %v3979, %v4291
      %v4310 = vld [vmem:[%s3] sm:$0x1]
      %v4312 = vlaneseq
      %v4313 = vshrl.u32 %v4312, 7
      %v4314 = vsub.s32 0, %v4313
      %v4315 = vrot.slane %v4310, %v4314
      %v4317 = vadd.f32 %v4294, %v4315
      %v4318 = vadd.f32 %v4295, %v4315
      %v4319 = vadd.f32 %v4296, %v4315
      %v4320 = vadd.f32 %v4297, %v4315
      %v4321 = vadd.f32 %v4298, %v4315
      %v4322 = vadd.f32 %v4299, %v4315
      %v4323 = vadd.f32 %v4300, %v4315
      %v4324 = vadd.f32 %v4301, %v4315
      %v4325 = vadd.f32 %v4302, %v4315
      %v4326 = vadd.f32 %v4303, %v4315
      %v4327 = vadd.f32 %v4304, %v4315
      %v4328 = vadd.f32 %v4305, %v4315
      %v4329 = vadd.f32 %v4306, %v4315
      %v4330 = vadd.f32 %v4307, %v4315
      %v4331 = vadd.f32 %v4308, %v4315
      %v4332 = vadd.f32 %v4309, %v4315
      %v4333 = vmax.f32 %v4317, 0.0
      %v4334 = vmax.f32 %v4318, 0.0
      %v4335 = vmax.f32 %v4319, 0.0
      %v4336 = vmax.f32 %v4320, 0.0
      %v4337 = vmax.f32 %v4321, 0.0
      %v4338 = vmax.f32 %v4322, 0.0
      %v4339 = vmax.f32 %v4323, 0.0
      %v4340 = vmax.f32 %v4324, 0.0
      %v4341 = vmax.f32 %v4325, 0.0
      %v4342 = vmax.f32 %v4326, 0.0
      %v4343 = vmax.f32 %v4327, 0.0
      %v4344 = vmax.f32 %v4328, 0.0
      %v4345 = vmax.f32 %v4329, 0.0
      %v4346 = vmax.f32 %v4330, 0.0
      %v4347 = vmax.f32 %v4331, 0.0
      %v4348 = vmax.f32 %v4332, 0.0
      %v4349 = vpack.c.bf16 %v4334, %v4333
      %v4350 = vpack.c.bf16 %v4336, %v4335
      %v4351 = vpack.c.bf16 %v4338, %v4337
      %v4352 = vpack.c.bf16 %v4340, %v4339
      %v4353 = vpack.c.bf16 %v4342, %v4341
      %v4354 = vpack.c.bf16 %v4344, %v4343
      %v4355 = vpack.c.bf16 %v4346, %v4345
      %v4356 = vpack.c.bf16 %v4348, %v4347
      %v4365 = vunpack.c.l.b16 %v4349
      %v4366 = vunpack.c.h.b16 %v4349
      %v4367 = vunpack.c.l.b16 %v4350
      %v4368 = vunpack.c.h.b16 %v4350
      %v4369 = vunpack.c.l.b16 %v4351
      %v4370 = vunpack.c.h.b16 %v4351
      %v4371 = vunpack.c.l.b16 %v4352
      %v4372 = vunpack.c.h.b16 %v4352
      %v4373 = vunpack.c.l.b16 %v4353
      %v4374 = vunpack.c.h.b16 %v4353
      %v4375 = vunpack.c.l.b16 %v4354
      %v4376 = vunpack.c.h.b16 %v4354
      %v4377 = vunpack.c.l.b16 %v4355
      %v4378 = vunpack.c.h.b16 %v4355
      %v4379 = vunpack.c.l.b16 %v4356
      %v4380 = vunpack.c.h.b16 %v4356
      %v4381 = vpack.c.b16 %v4365, %v4365
      %v4382 = vpack.c.b16 %v4366, %v4366
      %v4383 = vpack.c.b16 %v4367, %v4367
      %v4384 = vpack.c.b16 %v4368, %v4368
      %v4385 = vpack.c.b16 %v4369, %v4369
      %v4386 = vpack.c.b16 %v4370, %v4370
      %v4387 = vpack.c.b16 %v4371, %v4371
      %v4388 = vpack.c.b16 %v4372, %v4372
      %v4389 = vpack.c.b16 %v4373, %v4373
      %v4390 = vpack.c.b16 %v4374, %v4374
      %v4391 = vpack.c.b16 %v4375, %v4375
      %v4392 = vpack.c.b16 %v4376, %v4376
      %v4393 = vpack.c.b16 %v4377, %v4377
      %v4394 = vpack.c.b16 %v4378, %v4378
      %v4395 = vpack.c.b16 %v4379, %v4379
      %v4396 = vpack.c.b16 %v4380, %v4380
      %vm4413 = vcmask 257024
      %4414 = vst.msk [vmem:[%s286] sm:$0xf] %vm4413, %v4381
      %4415 = vst.msk [vmem:[%s286 + $0x4] sm:$0xf] %vm4413, %v4382
      %4416 = vst.msk [vmem:[%s286 + $0x8] sm:$0xf] %vm4413, %v4383
      %4417 = vst.msk [vmem:[%s286 + $0xc] sm:$0xf] %vm4413, %v4384
      %4418 = vst.msk [vmem:[%s286 + $0x10] sm:$0xf] %vm4413, %v4385
      %4419 = vst.msk [vmem:[%s286 + $0x14] sm:$0xf] %vm4413, %v4386
      %4420 = vst.msk [vmem:[%s286 + $0x18] sm:$0xf] %vm4413, %v4387
      %4421 = vst.msk [vmem:[%s286 + $0x1c] sm:$0xf] %vm4413, %v4388
      %4422 = vst.msk [vmem:[%s286 + $0x20] sm:$0xf] %vm4413, %v4389
      %4423 = vst.msk [vmem:[%s286 + $0x24] sm:$0xf] %vm4413, %v4390
      %4424 = vst.msk [vmem:[%s286 + $0x28] sm:$0xf] %vm4413, %v4391
      %4425 = vst.msk [vmem:[%s286 + $0x2c] sm:$0xf] %vm4413, %v4392
      %4426 = vst.msk [vmem:[%s286 + $0x30] sm:$0xf] %vm4413, %v4393
      %4427 = vst.msk [vmem:[%s286 + $0x34] sm:$0xf] %vm4413, %v4394
      %4428 = vst.msk [vmem:[%s286 + $0x38] sm:$0xf] %vm4413, %v4395
      %4429 = vst.msk [vmem:[%s286 + $0x3c] sm:$0xf] %vm4413, %v4396
      %s4430 = smul.u32 8, %s20
      %p4431 = scmp.lt.s32.totalorder %s19, 1
      %s4432 = scalar_select %p4431, %s19, 1
      %p4433 = scmp.lt.s32.totalorder %s4430, 15
      %s4434 = scalar_select %p4433, %s4430, 15
      %s4435 = smul.addr %s4434, 2
      %s4436 = smul.addr %s4432, 32
      %s4437 = sadd.s32 %s4435, %s4436
      %s4438 = smul.addr %s4437, 4
      %s4439 = scalar_lea.vmem %s4, %s4438
      // Predicated region
      $region37: #{resnet_generator_apply.8} parent=35 // pred_check
        %p4440 = pneg %p147
      $region38: #{resnet_generator_apply.8} parent=35 // pred_check_branch
        %4442 = sbr.rel (%p4440) target = $region40
      $region39: #{resnet_generator_apply.8} parent=35 // pred_region
        %s4443 = smul.u32 8, %s20
      $region40: #{resnet_generator_apply.8} parent=35 // pred_fallthru
        _
    $region36: #{resnet_generator_apply.8} parent=5 // pred_fallthru
      _
    %p4444 = scmp.le.s32.totalorder 2, %s10
    // Predicated region
    $region41: #{resnet_generator_apply.8} parent=5 // pred_check
      %p4445 = pneg %p4444
    $region42: #{resnet_generator_apply.8} parent=5 // pred_check_branch
      %4447 = sbr.rel (%p4445) target = $region44
    $region43: #{resnet_generator_apply.8} parent=5 // pred_region
      %s4448 = ssub.s32 %s10, 2
      // Predicated region
      $region45: #{resnet_generator_apply.8} parent=43 // pred_check
        %p4449 = pneg %p153
      $region46: #{resnet_generator_apply.8} parent=43 // pred_check_branch
        %4451 = sbr.rel (%p4449) target = $region48
      $region47: #{resnet_generator_apply.8} parent=43 // pred_region
        %s4452 = smul.u32 8, %s22
        %p4453 = scmp.lt.s32.totalorder %s21, 1
        %s4454 = scalar_select %p4453, %s21, 1
        %p4455 = scmp.lt.s32.totalorder %s4452, 15
        %s4456 = scalar_select %p4455, %s4452, 15
        %s4457 = smul.addr %s4456, 2
        %s4458 = smul.addr %s4454, 32
        %s4459 = sadd.s32 %s4457, %s4458
        %s4460 = smul.addr %s4459, 4
        %s4461 = scalar_lea.vmem %s4, %s4460
      $region48: #{resnet_generator_apply.8} parent=43 // pred_fallthru
        _
    $region44: #{resnet_generator_apply.8} parent=5 // pred_fallthru
      _
  $region6: #{resnet_generator_apply.8} parent=0 // loop_footer
    %s14 = sadd.s32 1, %s10
  $region7: #{resnet_generator_apply.8} parent=0 // loop_footer_branch
    %9 = sbr.rel target = $region3
  $region8: #{resnet_generator_apply.8} parent=0 // loop_exit
    _

</llo_original>
